<compile_context>
chip_gen: v5e
topology: v5e:2x2
jax: 0.10.0
libtpu: 0.0.40
codegen_flags: <defaults>
</compile_context>

<pallas_src>
import jax
import jax.numpy as jnp
from jax.experimental import pallas as pl
from jax.experimental.pallas import tpu as pltpu

LANES = 128          # conv channel dims zero-padded to the 128-lane vreg width
K0_PAD = 32          # stage-0 im2col K = 9*3 = 27, padded to 32
_CONV_CH = [(3, 16), (16, 32), (32, 64)]
_HIDDEN = 512


# ------------------------------ geometry helpers ------------------------------

def _geometry(bt, h0, w0):
    """Per-stage geometry for a batch tile of `bt` samples.

    Stage 0 uses the im2col row layout (rows are (b, oh, ow), no garbage rows);
    stages 1/2 use the shifted-tap layout (rows are (b, ih, iw) of the conv INPUT,
    with unread garbage rows near the right/bottom borders).
    """
    stages = []
    h, w = h0, w0
    for s in range(3):
        ho, wo = h - 2, w - 2
        hp, wp = ho // 2, wo // 2
        if s == 0:
            L, row_w, hw = bt * ho * wo, wo, ho * wo
        else:
            L, row_w, hw = bt * h * w - (2 * w + 2), w, h * w
        stages.append(dict(H=h, W=w, Hp=hp, Wp=wp, L=L, row_w=row_w, hw=hw))
        h, w = hp, wp
    return stages, (h, w)


def _vmem_bytes(bt, h0, w0):
    """Rough per-grid-step VMEM footprint (double-buffered input & weights included)."""
    stages, (hf, wf) = _geometry(bt, h0, w0)
    p_pos = hf * wf
    l0 = stages[0]["L"]
    b = 2 * l0 * LANES * 4                                   # im2col input block (lane-padded), x2 bufs
    b += 2 * l0 * LANES * 4                                  # shared conv accumulator + hmax scratch
    for st in stages:
        b += bt * st["Hp"] * st["Wp"] * LANES * 4            # pooled activations a0/a1/a2
    b += p_pos * LANES * _HIDDEN * 2                         # fc1 weight VMEM copy (bf16)
    b += 2 * (K0_PAD * LANES + 2 * 9 * LANES * LANES) * 2    # conv weights (bf16), x2 bufs
    b += 2 * bt * LANES * 4 + 64 * 1024                      # output block + misc biases
    return b


def _device_budgets():
    """(scratch budget, vmem_limit_bytes, prefer grid>=2) tuned per TPU generation."""
    try:
        kind = jax.devices()[0].device_kind.lower()
    except Exception:
        kind = ""
    if any(t in kind for t in ("v4", "v5", "v6")):
        # 128 MiB VMEM parts: bigger batch tiles -> fewer grid steps.
        return 64 * 2**20, 96 * 2**20, False
    # v7x (64 MiB VMEM, 2 TensorCores) or unknown: conservative budget and prefer
    # grid >= 2 so the "parallel" batch axis shards across both cores.
    return 20 * 2**20, 40 * 2**20, True


def _pick_bt(batch, h0, w0, budget, prefer_split):
    """Pick a batch tile: full batch or a multiple of 8 (keeps the (bt,1) output block
    and the im2col input block (8,128)-legal), within the VMEM budget, and capped so the
    statically unrolled pool epilogue stays small."""
    hp0 = (h0 - 2) // 2
    cands = set()
    d = 8
    while d < batch:
        if batch % d == 0 and d * hp0 <= 256:
            cands.add(d)
        d += 8
    if not cands or batch * hp0 <= 256:
        cands.add(batch)
    fits = [d for d in sorted(cands) if _vmem_bytes(d, h0, w0) <= budget]
    if not fits:
        fits = [min(cands)]
    if prefer_split:
        split = [d for d in fits if batch // d >= 2]
        if split:
            return max(split)
    return max(fits)


# --------------------------------- the kernel ---------------------------------

def _build_kernel(bt, stages, p_pos):
    st0, st1, st2 = stages

    def pool_bias_relu(s_ref, hm_ref, a_ref, b_ref, st):
        """Vectorized 2x2/2 max pool of the conv accumulator, then hoisted bias+ReLU.

        One full-block horizontal max, one full-block vertical max, then a single
        stride-2 row extraction per (sample, pooled-row).  Bias and ReLU commute with
        the max, so they are applied once on the compact pooled output."""
        L, row_w, hw, Hp, Wp = st["L"], st["row_w"], st["hw"], st["Hp"], st["Wp"]
        Lh = L - 1
        hm_ref[pl.ds(0, Lh), :] = jnp.maximum(s_ref[pl.ds(0, Lh), :],
                                              s_ref[pl.ds(1, Lh), :])
        Lv = Lh - row_w
        s_ref[pl.ds(0, Lv), :] = jnp.maximum(hm_ref[pl.ds(0, Lv), :],
                                             hm_ref[pl.ds(row_w, Lv), :])
        # bt is capped in _pick_bt, so this static unroll stays small.
        for b in range(bt):
            for po in range(Hp):
                base = b * hw + 2 * po * row_w
                a_ref[pl.ds((b * Hp + po) * Wp, Wp), :] = \
                    s_ref[pl.ds(base, Wp, stride=2), :]
        a_ref[...] = jnp.maximum(a_ref[...] + b_ref[...], 0.0)

    def conv_taps(x_ref, w_ref, s_ref, st):
        """3x3 valid conv as 9 shifted bf16 matmuls, accumulated in f32 values."""
        W, L = st["W"], st["L"]
        acc = None
        for t in range(9):
            kh, kw = divmod(t, 3)
            lhs = x_ref[pl.ds(kh * W + kw, L), :].astype(jnp.bfloat16)
            tap = jnp.dot(lhs, w_ref[t], preferred_element_type=jnp.float32)
            acc = tap if acc is None else acc + tap
        s_ref[pl.ds(0, L), :] = acc

    def kernel(x0_ref, cw0_ref, cb0_ref, cw1_ref, cb1_ref, cw2_ref, cb2_ref,
               wf1_hbm, bf1_ref, wf2_ref, bf2_ref, out_ref,
               s_ref, hm_ref, a0_ref, a1_ref, a2_ref, wf1_vmem, wf1_sem):
        # Kick off the largest weight DMA (fc1, bf16) now; it overlaps the conv stages.
        wf1_cp = pltpu.make_async_copy(wf1_hbm, wf1_vmem, wf1_sem)
        wf1_cp.start()

        # ---- stage 0: im2col pre-packed in the wrapper -> ONE fused matmul ----
        s_ref[pl.ds(0, st0["L"]), :] = jnp.dot(
            x0_ref[...].astype(jnp.bfloat16), cw0_ref[...],
            preferred_element_type=jnp.float32)
        pool_bias_relu(s_ref, hm_ref, a0_ref, cb0_ref, st0)

        # ---- stages 1 & 2: shifted-tap conv on the compact pooled activations ----
        conv_taps(a0_ref, cw1_ref, s_ref, st1)
        pool_bias_relu(s_ref, hm_ref, a1_ref, cb1_ref, st1)

        conv_taps(a1_ref, cw2_ref, s_ref, st2)
        pool_bias_relu(s_ref, hm_ref, a2_ref, cb2_ref, st2)

        # ---- fc1 + ReLU + fc2: single K = p_pos*128 matmul; the torch NCHW flatten
        #      permutation is folded into the packed wf1 weight at pack time. ----
        a2f = jnp.concatenate(
            [a2_ref[pl.ds(p, bt, stride=p_pos), :] for p in range(p_pos)],
            axis=1).astype(jnp.bfloat16)                 # (bt, p_pos*128)
        wf1_cp.wait()
        hidden = jnp.dot(a2f, wf1_vmem[...], preferred_element_type=jnp.float32)
        hidden = jnp.maximum(hidden + bf1_ref[...], 0.0)
        out_ref[...] = (jnp.dot(hidden, wf2_ref[...],
                                preferred_element_type=jnp.float32) + bf2_ref[...])

    return kernel


def _full_spec(shape):
    nd = len(shape)
    return pl.BlockSpec(shape, lambda i, _nd=nd: (0,) * _nd)


def _im2col_first_layer(x_nchw, h, w):
    """(B,3,H,W) -> (B*(H-2)*(W-2), 32) rows with lane order k = (kh*3+kw)*3 + c."""
    n, c = x_nchw.shape[0], x_nchw.shape[1]
    ho, wo = h - 2, w - 2
    x_nhwc = jnp.transpose(x_nchw, (0, 2, 3, 1))
    cols = [x_nhwc[:, kh:kh + ho, kw:kw + wo, :] for kh in range(3) for kw in range(3)]
    patches = jnp.concatenate(cols, axis=-1).reshape(n * ho * wo, 9 * c)
    return jnp.pad(patches, ((0, 0), (0, K0_PAD - 9 * c)))


def make_forward(batch, height, width, batch_tile=None):
    """Build a jitted forward(x_nchw, packed_params) -> (batch, 1)."""
    assert height >= 22 and width >= 22, "spatial size too small for 3 conv+pool stages"
    budget, vmem_limit, prefer_split = _device_budgets()
    if batch_tile is None:
        batch_tile = _pick_bt(batch, height, width, budget, prefer_split)
    bt = batch_tile
    assert batch % bt == 0
    assert bt == batch or bt % 8 == 0, "batch tile must be the full batch or a multiple of 8"

    stages, (hf, wf_sp) = _geometry(bt, height, width)
    p_pos = hf * wf_sp
    hw0 = stages[0]["hw"]
    l_max = max(st["L"] for st in stages)
    kernel = _build_kernel(bt, stages, p_pos)

    in_specs = [
        pl.BlockSpec((bt * hw0, K0_PAD), lambda i: (i, 0)),      # stage-0 im2col rows
        _full_spec((K0_PAD, LANES)), _full_spec((1, LANES)),     # conv0 w (bf16), b
        _full_spec((9, LANES, LANES)), _full_spec((1, LANES)),   # conv1 w (bf16), b
        _full_spec((9, LANES, LANES)), _full_spec((1, LANES)),   # conv2 w (bf16), b
        pl.BlockSpec(memory_space=pl.ANY),                       # fc1 w: manual async DMA
        _full_spec((1, _HIDDEN)),                                # fc1 b
        _full_spec((_HIDDEN, 1)), _full_spec((1, 1)),            # fc2 w, b
    ]
    out_specs = pl.BlockSpec((bt, 1), lambda i: (i, 0))

    scratch_shapes = [
        pltpu.VMEM((l_max, LANES), jnp.float32),                 # conv accumulator (shared)
        pltpu.VMEM((l_max, LANES), jnp.float32),                 # horizontal-max scratch (shared)
    ]
    for st in stages:
        scratch_shapes.append(
            pltpu.VMEM((bt * st["Hp"] * st["Wp"], LANES), jnp.float32))   # a0 / a1 / a2
    scratch_shapes += [
        pltpu.VMEM((p_pos * LANES, _HIDDEN), jnp.bfloat16),      # fc1 weight VMEM copy
        pltpu.SemaphoreType.DMA(()),                             # its DMA semaphore
    ]

    call = pl.pallas_call(
        kernel,
        out_shape=jax.ShapeDtypeStruct((batch, 1), jnp.float32),
        grid=(batch // bt,),
        in_specs=in_specs,
        out_specs=out_specs,
        scratch_shapes=scratch_shapes,
        compiler_params=pltpu.CompilerParams(
            dimension_semantics=("parallel",),    # batch tiles shard across TCs (v7x)
            vmem_limit_bytes=vmem_limit,
        ),
    )

    @jax.jit
    def forward(x_nchw, packed):
        xcol = _im2col_first_layer(x_nchw, height, width)
        return call(xcol,
                    packed["cw0"], packed["cb0"], packed["cw1"], packed["cb1"],
                    packed["cw2"], packed["cb2"], packed["wf1"], packed["bf1"],
                    packed["wf2"], packed["bf2"])

    return forward


# ------------------------- parameters (PyTorch layout) -------------------------

def init_params(key, input_height, input_width):
    """Parameters in PyTorch layout: Conv2d (Co, Ci, kh, kw), Linear (out, in)."""
    ks = jax.random.split(key, 10)
    s = 0.05
    params = {}
    for i, (ci, co) in enumerate(_CONV_CH):
        params[f"conv{i}_w"] = s * jax.random.normal(ks[2 * i], (co, ci, 3, 3), jnp.float32)
        params[f"conv{i}_b"] = s * jax.random.normal(ks[2 * i + 1], (co,), jnp.float32)
    h, w = input_height, input_width
    for _ in range(3):
        h, w = (h - 2) // 2, (w - 2) // 2
    flat = _CONV_CH[-1][1] * h * w
    params["fc1_w"] = s * jax.random.normal(ks[6], (_HIDDEN, flat), jnp.float32)
    params["fc1_b"] = s * jax.random.normal(ks[7], (_HIDDEN,), jnp.float32)
    params["fc2_w"] = s * jax.random.normal(ks[8], (1, _HIDDEN), jnp.float32)
    params["fc2_b"] = s * jax.random.normal(ks[9], (1,), jnp.float32)
    return params


def pack_params(params, input_height, input_width):
    """One-time repack of torch-layout params into the kernel's padded bf16 layouts."""
    _, (hf, wf_sp) = _geometry(1, input_height, input_width)
    p_pos = hf * wf_sp
    packed = {}
    # conv0: taps folded into K (matches the wrapper's im2col lane order kh,kw,ci)
    ci0, co0 = _CONV_CH[0]
    w0 = jnp.transpose(params["conv0_w"], (2, 3, 1, 0)).reshape(9 * ci0, co0)
    packed["cw0"] = jnp.pad(w0, ((0, K0_PAD - 9 * ci0), (0, LANES - co0))).astype(jnp.bfloat16)
    packed["cb0"] = jnp.pad(params["conv0_b"], (0, LANES - co0)).reshape(1, LANES)
    for i in (1, 2):
        ci, co = _CONV_CH[i]
        wk = jnp.transpose(params[f"conv{i}_w"], (2, 3, 1, 0)).reshape(9, ci, co)
        packed[f"cw{i}"] = jnp.pad(
            wk, ((0, 0), (0, LANES - ci), (0, LANES - co))).astype(jnp.bfloat16)
        packed[f"cb{i}"] = jnp.pad(params[f"conv{i}_b"], (0, LANES - co)).reshape(1, LANES)
    c_last = _CONV_CH[-1][1]
    # torch flattens NCHW as idx = c*p_pos + p; kernel's fc1 LHS lane index is p*128 + c.
    w1 = params["fc1_w"]                                                 # (512, c_last*p_pos)
    wk1 = jnp.transpose(w1.T.reshape(c_last, p_pos, _HIDDEN), (1, 0, 2))  # (p_pos, c_last, 512)
    wk1 = jnp.pad(wk1, ((0, 0), (0, LANES - c_last), (0, 0)))
    packed["wf1"] = wk1.reshape(p_pos * LANES, _HIDDEN).astype(jnp.bfloat16)
    packed["bf1"] = params["fc1_b"].reshape(1, _HIDDEN)
    packed["wf2"] = params["fc2_w"].T                                    # (512, 1)
    packed["bf2"] = params["fc2_b"].reshape(1, 1)
    return packed


# ------------------------------ pure-JAX reference ------------------------------

def reference_forward(x, params):
    y = x
    for i in range(3):
        y = jax.lax.conv_general_dilated(
            y, params[f"conv{i}_w"], window_strides=(1, 1), padding="VALID",
            dimension_numbers=("NCHW", "OIHW", "NCHW"))
        y = jnp.maximum(y + params[f"conv{i}_b"][None, :, None, None], 0.0)
        n_, c_, hh, ww = y.shape
        hp, wp = hh // 2, ww // 2
        y = y[:, :, :hp * 2, :wp * 2].reshape(n_, c_, hp, 2, wp, 2).max(axis=(3, 5))
    y = y.reshape(y.shape[0], -1)
    y = jnp.maximum(y @ params["fc1_w"].T + params["fc1_b"], 0.0)
    return y @ params["fc2_w"].T + params["fc2_b"]


# ------------------------------------ main ------------------------------------

if __name__ == "__main__":
    H = W = 32          # input_height = input_width = 32 -> flattened_size = 256
    B = 2

    key = jax.random.PRNGKey(0)
    k_x, k_p = jax.random.split(key)
    x = jax.random.normal(k_x, (B, 3, H, W), jnp.float32)

    params = init_params(k_p, H, W)          # torch-layout parameters
    packed = pack_params(params, H, W)       # one-time repack for the kernel
    forward = make_forward(B, H, W)

    out = jax.block_until_ready(forward(x, packed))
    assert out.shape == (B, 1), out.shape
    assert bool(jnp.all(jnp.isfinite(out)))

    ref = reference_forward(x, params)
    err = float(jnp.max(jnp.abs(out - ref)))
    assert err < 3e-2, f"kernel/reference mismatch: max abs err {err}"
    print("KERNEL_OK")
</pallas_src>

<mosaic_0001>
module attributes {stable_mosaic.version = 11 : i64} {
  func.func @kernel(%arg0: i32, %arg1: memref<1800x32xf32, #tpu.memory_space<vmem>>, %arg2: memref<32x128xbf16, #tpu.memory_space<vmem>>, %arg3: memref<1x128xf32, #tpu.memory_space<vmem>>, %arg4: memref<9x128x128xbf16, #tpu.memory_space<vmem>>, %arg5: memref<1x128xf32, #tpu.memory_space<vmem>>, %arg6: memref<9x128x128xbf16, #tpu.memory_space<vmem>>, %arg7: memref<1x128xf32, #tpu.memory_space<vmem>>, %arg8: memref<512x512xbf16, #tpu.memory_space<any>>, %arg9: memref<1x512xf32, #tpu.memory_space<vmem>>, %arg10: memref<512x1xf32, #tpu.memory_space<vmem>>, %arg11: memref<1x1xf32, #tpu.memory_space<vmem>>, %arg12: memref<2x1xf32, #tpu.memory_space<vmem>>, %arg13: memref<1800x128xf32, #tpu.memory_space<vmem>>, %arg14: memref<1800x128xf32, #tpu.memory_space<vmem>>, %arg15: memref<450x128xf32, #tpu.memory_space<vmem>>, %arg16: memref<72x128xf32, #tpu.memory_space<vmem>>, %arg17: memref<8x128xf32, #tpu.memory_space<vmem>>, %arg18: memref<512x512xbf16, #tpu.memory_space<vmem>>, %arg19: memref<!tpu.dma_semaphore, #tpu.memory_space<semaphore_mem>>) attributes {dimension_semantics = [#tpu.dimension_semantics<parallel>], iteration_bounds = array<i64: 1>, scalar_prefetch = 0 : i64, scratch_operands = 7 : i64, tpu.core_type = #tpu.core_type<tc>, window_params = [{transform_indices = @transform_0, window_bounds = array<i64: 1800, 32>}, {pipeline_mode = #tpu.pipeline_mode<synchronous>, transform_indices = @transform_1, window_bounds = array<i64: 32, 128>}, {pipeline_mode = #tpu.pipeline_mode<synchronous>, transform_indices = @transform_2, window_bounds = array<i64: 1, 128>}, {pipeline_mode = #tpu.pipeline_mode<synchronous>, transform_indices = @transform_3, window_bounds = array<i64: 9, 128, 128>}, {pipeline_mode = #tpu.pipeline_mode<synchronous>, transform_indices = @transform_4, window_bounds = array<i64: 1, 128>}, {pipeline_mode = #tpu.pipeline_mode<synchronous>, transform_indices = @transform_5, window_bounds = array<i64: 9, 128, 128>}, {pipeline_mode = #tpu.pipeline_mode<synchronous>, transform_indices = @transform_6, window_bounds = array<i64: 1, 128>}, {}, {pipeline_mode = #tpu.pipeline_mode<synchronous>, transform_indices = @transform_8, window_bounds = array<i64: 1, 512>}, {pipeline_mode = #tpu.pipeline_mode<synchronous>, transform_indices = @transform_9, window_bounds = array<i64: 512, 1>}, {pipeline_mode = #tpu.pipeline_mode<synchronous>, transform_indices = @transform_10, window_bounds = array<i64: 1, 1>}, {transform_indices = @transform_11, window_bounds = array<i64: 2, 1>}]} {
    tpu.enqueue_dma source(%arg8 : memref<512x512xbf16, #tpu.memory_space<any>>) target(%arg18 : memref<512x512xbf16, #tpu.memory_space<vmem>>) target_semaphore(%arg19 : memref<!tpu.dma_semaphore, #tpu.memory_space<semaphore_mem>>)
    %c0 = arith.constant 0 : index
    %c0_0 = arith.constant 0 : index
    %0 = vector.load %arg1[%c0, %c0_0] : memref<1800x32xf32, #tpu.memory_space<vmem>>, vector<1800x32xf32>
    %1 = arith.truncf %0 : vector<1800x32xf32> to vector<1800x32xbf16>
    %c0_1 = arith.constant 0 : index
    %c0_2 = arith.constant 0 : index
    %2 = vector.load %arg2[%c0_1, %c0_2] : memref<32x128xbf16, #tpu.memory_space<vmem>>, vector<32x128xbf16>
    %cst = arith.constant dense<0.000000e+00> : vector<1800x128xf32>
    %3 = tpu.matmul %1, %2, %cst {dimension_numbers = #tpu.dot_dimension_numbers<[1], [0], [0], [1], [0, 0, 1, 1], [], []>} : vector<1800x32xbf16>, vector<32x128xbf16>, vector<1800x128xf32> -> vector<1800x128xf32>
    %c0_3 = arith.constant 0 : index
    %c0_4 = arith.constant 0 : index
    %4 = vector.load %arg13[%c0_3, %c0_4] : memref<1800x128xf32, #tpu.memory_space<vmem>>, vector<1800x128xf32>
    tpu.vector_store %arg13[%c0_3, %c0_4], %3 {strides = array<i32>} : memref<1800x128xf32, #tpu.memory_space<vmem>>, vector<1800x128xf32>,
    %c0_5 = arith.constant 0 : index
    %c0_6 = arith.constant 0 : index
    %5 = vector.load %arg13[%c0_5, %c0_6] : memref<1800x128xf32, #tpu.memory_space<vmem>>, vector<1799x128xf32>
    %c1 = arith.constant 1 : index
    %c0_7 = arith.constant 0 : index
    %6 = vector.load %arg13[%c1, %c0_7] : memref<1800x128xf32, #tpu.memory_space<vmem>>, vector<1799x128xf32>
    %7 = arith.maximumf %5, %6 : vector<1799x128xf32>
    %c0_8 = arith.constant 0 : index
    %c0_9 = arith.constant 0 : index
    %8 = vector.load %arg14[%c0_8, %c0_9] : memref<1800x128xf32, #tpu.memory_space<vmem>>, vector<1799x128xf32>
    tpu.vector_store %arg14[%c0_8, %c0_9], %7 {strides = array<i32>} : memref<1800x128xf32, #tpu.memory_space<vmem>>, vector<1799x128xf32>,
    %c0_10 = arith.constant 0 : index
    %c0_11 = arith.constant 0 : index
    %9 = vector.load %arg14[%c0_10, %c0_11] : memref<1800x128xf32, #tpu.memory_space<vmem>>, vector<1769x128xf32>
    %c30 = arith.constant 30 : index
    %c0_12 = arith.constant 0 : index
    %10 = vector.load %arg14[%c30, %c0_12] : memref<1800x128xf32, #tpu.memory_space<vmem>>, vector<1769x128xf32>
    %11 = arith.maximumf %9, %10 : vector<1769x128xf32>
    %c0_13 = arith.constant 0 : index
    %c0_14 = arith.constant 0 : index
    %12 = vector.load %arg13[%c0_13, %c0_14] : memref<1800x128xf32, #tpu.memory_space<vmem>>, vector<1769x128xf32>
    tpu.vector_store %arg13[%c0_13, %c0_14], %11 {strides = array<i32>} : memref<1800x128xf32, #tpu.memory_space<vmem>>, vector<1769x128xf32>,
    %c0_15 = arith.constant 0 : index
    %c0_16 = arith.constant 0 : index
    %13 = tpu.strided_load %arg13[%c0_15, %c0_16] {strides = array<i32: 2, 1>} : memref<1800x128xf32, #tpu.memory_space<vmem>>, vector<15x128xf32>
    %c0_17 = arith.constant 0 : index
    %c0_18 = arith.constant 0 : index
    %14 = vector.load %arg15[%c0_17, %c0_18] : memref<450x128xf32, #tpu.memory_space<vmem>>, vector<15x128xf32>
    tpu.vector_store %arg15[%c0_17, %c0_18], %13 {strides = array<i32>} : memref<450x128xf32, #tpu.memory_space<vmem>>, vector<15x128xf32>,
    %c60 = arith.constant 60 : index
    %c0_19 = arith.constant 0 : index
    %15 = tpu.strided_load %arg13[%c60, %c0_19] {strides = array<i32: 2, 1>} : memref<1800x128xf32, #tpu.memory_space<vmem>>, vector<15x128xf32>
    %c15 = arith.constant 15 : index
    %c0_20 = arith.constant 0 : index
    %16 = vector.load %arg15[%c15, %c0_20] : memref<450x128xf32, #tpu.memory_space<vmem>>, vector<15x128xf32>
    tpu.vector_store %arg15[%c15, %c0_20], %15 {strides = array<i32>} : memref<450x128xf32, #tpu.memory_space<vmem>>, vector<15x128xf32>,
    %c120 = arith.constant 120 : index
    %c0_21 = arith.constant 0 : index
    %17 = tpu.strided_load %arg13[%c120, %c0_21] {strides = array<i32: 2, 1>} : memref<1800x128xf32, #tpu.memory_space<vmem>>, vector<15x128xf32>
    %c30_22 = arith.constant 30 : index
    %c0_23 = arith.constant 0 : index
    %18 = vector.load %arg15[%c30_22, %c0_23] : memref<450x128xf32, #tpu.memory_space<vmem>>, vector<15x128xf32>
    tpu.vector_store %arg15[%c30_22, %c0_23], %17 {strides = array<i32>} : memref<450x128xf32, #tpu.memory_space<vmem>>, vector<15x128xf32>,
    %c180 = arith.constant 180 : index
    %c0_24 = arith.constant 0 : index
    %19 = tpu.strided_load %arg13[%c180, %c0_24] {strides = array<i32: 2, 1>} : memref<1800x128xf32, #tpu.memory_space<vmem>>, vector<15x128xf32>
    %c45 = arith.constant 45 : index
    %c0_25 = arith.constant 0 : index
    %20 = vector.load %arg15[%c45, %c0_25] : memref<450x128xf32, #tpu.memory_space<vmem>>, vector<15x128xf32>
    tpu.vector_store %arg15[%c45, %c0_25], %19 {strides = array<i32>} : memref<450x128xf32, #tpu.memory_space<vmem>>, vector<15x128xf32>,
    %c240 = arith.constant 240 : index
    %c0_26 = arith.constant 0 : index
    %21 = tpu.strided_load %arg13[%c240, %c0_26] {strides = array<i32: 2, 1>} : memref<1800x128xf32, #tpu.memory_space<vmem>>, vector<15x128xf32>
    %c60_27 = arith.constant 60 : index
    %c0_28 = arith.constant 0 : index
    %22 = vector.load %arg15[%c60_27, %c0_28] : memref<450x128xf32, #tpu.memory_space<vmem>>, vector<15x128xf32>
    tpu.vector_store %arg15[%c60_27, %c0_28], %21 {strides = array<i32>} : memref<450x128xf32, #tpu.memory_space<vmem>>, vector<15x128xf32>,
    %c300 = arith.constant 300 : index
    %c0_29 = arith.constant 0 : index
    %23 = tpu.strided_load %arg13[%c300, %c0_29] {strides = array<i32: 2, 1>} : memref<1800x128xf32, #tpu.memory_space<vmem>>, vector<15x128xf32>
    %c75 = arith.constant 75 : index
    %c0_30 = arith.constant 0 : index
    %24 = vector.load %arg15[%c75, %c0_30] : memref<450x128xf32, #tpu.memory_space<vmem>>, vector<15x128xf32>
    tpu.vector_store %arg15[%c75, %c0_30], %23 {strides = array<i32>} : memref<450x128xf32, #tpu.memory_space<vmem>>, vector<15x128xf32>,
    %c360 = arith.constant 360 : index
    %c0_31 = arith.constant 0 : index
    %25 = tpu.strided_load %arg13[%c360, %c0_31] {strides = array<i32: 2, 1>} : memref<1800x128xf32, #tpu.memory_space<vmem>>, vector<15x128xf32>
    %c90 = arith.constant 90 : index
    %c0_32 = arith.constant 0 : index
    %26 = vector.load %arg15[%c90, %c0_32] : memref<450x128xf32, #tpu.memory_space<vmem>>, vector<15x128xf32>
    tpu.vector_store %arg15[%c90, %c0_32], %25 {strides = array<i32>} : memref<450x128xf32, #tpu.memory_space<vmem>>, vector<15x128xf32>,
    %c420 = arith.constant 420 : index
    %c0_33 = arith.constant 0 : index
    %27 = tpu.strided_load %arg13[%c420, %c0_33] {strides = array<i32: 2, 1>} : memref<1800x128xf32, #tpu.memory_space<vmem>>, vector<15x128xf32>
    %c105 = arith.constant 105 : index
    %c0_34 = arith.constant 0 : index
    %28 = vector.load %arg15[%c105, %c0_34] : memref<450x128xf32, #tpu.memory_space<vmem>>, vector<15x128xf32>
    tpu.vector_store %arg15[%c105, %c0_34], %27 {strides = array<i32>} : memref<450x128xf32, #tpu.memory_space<vmem>>, vector<15x128xf32>,
    %c480 = arith.constant 480 : index
    %c0_35 = arith.constant 0 : index
    %29 = tpu.strided_load %arg13[%c480, %c0_35] {strides = array<i32: 2, 1>} : memref<1800x128xf32, #tpu.memory_space<vmem>>, vector<15x128xf32>
    %c120_36 = arith.constant 120 : index
    %c0_37 = arith.constant 0 : index
    %30 = vector.load %arg15[%c120_36, %c0_37] : memref<450x128xf32, #tpu.memory_space<vmem>>, vector<15x128xf32>
    tpu.vector_store %arg15[%c120_36, %c0_37], %29 {strides = array<i32>} : memref<450x128xf32, #tpu.memory_space<vmem>>, vector<15x128xf32>,
    %c540 = arith.constant 540 : index
    %c0_38 = arith.constant 0 : index
    %31 = tpu.strided_load %arg13[%c540, %c0_38] {strides = array<i32: 2, 1>} : memref<1800x128xf32, #tpu.memory_space<vmem>>, vector<15x128xf32>
    %c135 = arith.constant 135 : index
    %c0_39 = arith.constant 0 : index
    %32 = vector.load %arg15[%c135, %c0_39] : memref<450x128xf32, #tpu.memory_space<vmem>>, vector<15x128xf32>
    tpu.vector_store %arg15[%c135, %c0_39], %31 {strides = array<i32>} : memref<450x128xf32, #tpu.memory_space<vmem>>, vector<15x128xf32>,
    %c600 = arith.constant 600 : index
    %c0_40 = arith.constant 0 : index
    %33 = tpu.strided_load %arg13[%c600, %c0_40] {strides = array<i32: 2, 1>} : memref<1800x128xf32, #tpu.memory_space<vmem>>, vector<15x128xf32>
    %c150 = arith.constant 150 : index
    %c0_41 = arith.constant 0 : index
    %34 = vector.load %arg15[%c150, %c0_41] : memref<450x128xf32, #tpu.memory_space<vmem>>, vector<15x128xf32>
    tpu.vector_store %arg15[%c150, %c0_41], %33 {strides = array<i32>} : memref<450x128xf32, #tpu.memory_space<vmem>>, vector<15x128xf32>,
    %c660 = arith.constant 660 : index
    %c0_42 = arith.constant 0 : index
    %35 = tpu.strided_load %arg13[%c660, %c0_42] {strides = array<i32: 2, 1>} : memref<1800x128xf32, #tpu.memory_space<vmem>>, vector<15x128xf32>
    %c165 = arith.constant 165 : index
    %c0_43 = arith.constant 0 : index
    %36 = vector.load %arg15[%c165, %c0_43] : memref<450x128xf32, #tpu.memory_space<vmem>>, vector<15x128xf32>
    tpu.vector_store %arg15[%c165, %c0_43], %35 {strides = array<i32>} : memref<450x128xf32, #tpu.memory_space<vmem>>, vector<15x128xf32>,
    %c720 = arith.constant 720 : index
    %c0_44 = arith.constant 0 : index
    %37 = tpu.strided_load %arg13[%c720, %c0_44] {strides = array<i32: 2, 1>} : memref<1800x128xf32, #tpu.memory_space<vmem>>, vector<15x128xf32>
    %c180_45 = arith.constant 180 : index
    %c0_46 = arith.constant 0 : index
    %38 = vector.load %arg15[%c180_45, %c0_46] : memref<450x128xf32, #tpu.memory_space<vmem>>, vector<15x128xf32>
    tpu.vector_store %arg15[%c180_45, %c0_46], %37 {strides = array<i32>} : memref<450x128xf32, #tpu.memory_space<vmem>>, vector<15x128xf32>,
    %c780 = arith.constant 780 : index
    %c0_47 = arith.constant 0 : index
    %39 = tpu.strided_load %arg13[%c780, %c0_47] {strides = array<i32: 2, 1>} : memref<1800x128xf32, #tpu.memory_space<vmem>>, vector<15x128xf32>
    %c195 = arith.constant 195 : index
    %c0_48 = arith.constant 0 : index
    %40 = vector.load %arg15[%c195, %c0_48] : memref<450x128xf32, #tpu.memory_space<vmem>>, vector<15x128xf32>
    tpu.vector_store %arg15[%c195, %c0_48], %39 {strides = array<i32>} : memref<450x128xf32, #tpu.memory_space<vmem>>, vector<15x128xf32>,
    %c840 = arith.constant 840 : index
    %c0_49 = arith.constant 0 : index
    %41 = tpu.strided_load %arg13[%c840, %c0_49] {strides = array<i32: 2, 1>} : memref<1800x128xf32, #tpu.memory_space<vmem>>, vector<15x128xf32>
    %c210 = arith.constant 210 : index
    %c0_50 = arith.constant 0 : index
    %42 = vector.load %arg15[%c210, %c0_50] : memref<450x128xf32, #tpu.memory_space<vmem>>, vector<15x128xf32>
    tpu.vector_store %arg15[%c210, %c0_50], %41 {strides = array<i32>} : memref<450x128xf32, #tpu.memory_space<vmem>>, vector<15x128xf32>,
    %c900 = arith.constant 900 : index
    %c0_51 = arith.constant 0 : index
    %43 = tpu.strided_load %arg13[%c900, %c0_51] {strides = array<i32: 2, 1>} : memref<1800x128xf32, #tpu.memory_space<vmem>>, vector<15x128xf32>
    %c225 = arith.constant 225 : index
    %c0_52 = arith.constant 0 : index
    %44 = vector.load %arg15[%c225, %c0_52] : memref<450x128xf32, #tpu.memory_space<vmem>>, vector<15x128xf32>
    tpu.vector_store %arg15[%c225, %c0_52], %43 {strides = array<i32>} : memref<450x128xf32, #tpu.memory_space<vmem>>, vector<15x128xf32>,
    %c960 = arith.constant 960 : index
    %c0_53 = arith.constant 0 : index
    %45 = tpu.strided_load %arg13[%c960, %c0_53] {strides = array<i32: 2, 1>} : memref<1800x128xf32, #tpu.memory_space<vmem>>, vector<15x128xf32>
    %c240_54 = arith.constant 240 : index
    %c0_55 = arith.constant 0 : index
    %46 = vector.load %arg15[%c240_54, %c0_55] : memref<450x128xf32, #tpu.memory_space<vmem>>, vector<15x128xf32>
    tpu.vector_store %arg15[%c240_54, %c0_55], %45 {strides = array<i32>} : memref<450x128xf32, #tpu.memory_space<vmem>>, vector<15x128xf32>,
    %c1020 = arith.constant 1020 : index
    %c0_56 = arith.constant 0 : index
    %47 = tpu.strided_load %arg13[%c1020, %c0_56] {strides = array<i32: 2, 1>} : memref<1800x128xf32, #tpu.memory_space<vmem>>, vector<15x128xf32>
    %c255 = arith.constant 255 : index
    %c0_57 = arith.constant 0 : index
    %48 = vector.load %arg15[%c255, %c0_57] : memref<450x128xf32, #tpu.memory_space<vmem>>, vector<15x128xf32>
    tpu.vector_store %arg15[%c255, %c0_57], %47 {strides = array<i32>} : memref<450x128xf32, #tpu.memory_space<vmem>>, vector<15x128xf32>,
    %c1080 = arith.constant 1080 : index
    %c0_58 = arith.constant 0 : index
    %49 = tpu.strided_load %arg13[%c1080, %c0_58] {strides = array<i32: 2, 1>} : memref<1800x128xf32, #tpu.memory_space<vmem>>, vector<15x128xf32>
    %c270 = arith.constant 270 : index
    %c0_59 = arith.constant 0 : index
    %50 = vector.load %arg15[%c270, %c0_59] : memref<450x128xf32, #tpu.memory_space<vmem>>, vector<15x128xf32>
    tpu.vector_store %arg15[%c270, %c0_59], %49 {strides = array<i32>} : memref<450x128xf32, #tpu.memory_space<vmem>>, vector<15x128xf32>,
    %c1140 = arith.constant 1140 : index
    %c0_60 = arith.constant 0 : index
    %51 = tpu.strided_load %arg13[%c1140, %c0_60] {strides = array<i32: 2, 1>} : memref<1800x128xf32, #tpu.memory_space<vmem>>, vector<15x128xf32>
    %c285 = arith.constant 285 : index
    %c0_61 = arith.constant 0 : index
    %52 = vector.load %arg15[%c285, %c0_61] : memref<450x128xf32, #tpu.memory_space<vmem>>, vector<15x128xf32>
    tpu.vector_store %arg15[%c285, %c0_61], %51 {strides = array<i32>} : memref<450x128xf32, #tpu.memory_space<vmem>>, vector<15x128xf32>,
    %c1200 = arith.constant 1200 : index
    %c0_62 = arith.constant 0 : index
    %53 = tpu.strided_load %arg13[%c1200, %c0_62] {strides = array<i32: 2, 1>} : memref<1800x128xf32, #tpu.memory_space<vmem>>, vector<15x128xf32>
    %c300_63 = arith.constant 300 : index
    %c0_64 = arith.constant 0 : index
    %54 = vector.load %arg15[%c300_63, %c0_64] : memref<450x128xf32, #tpu.memory_space<vmem>>, vector<15x128xf32>
    tpu.vector_store %arg15[%c300_63, %c0_64], %53 {strides = array<i32>} : memref<450x128xf32, #tpu.memory_space<vmem>>, vector<15x128xf32>,
    %c1260 = arith.constant 1260 : index
    %c0_65 = arith.constant 0 : index
    %55 = tpu.strided_load %arg13[%c1260, %c0_65] {strides = array<i32: 2, 1>} : memref<1800x128xf32, #tpu.memory_space<vmem>>, vector<15x128xf32>
    %c315 = arith.constant 315 : index
    %c0_66 = arith.constant 0 : index
    %56 = vector.load %arg15[%c315, %c0_66] : memref<450x128xf32, #tpu.memory_space<vmem>>, vector<15x128xf32>
    tpu.vector_store %arg15[%c315, %c0_66], %55 {strides = array<i32>} : memref<450x128xf32, #tpu.memory_space<vmem>>, vector<15x128xf32>,
    %c1320 = arith.constant 1320 : index
    %c0_67 = arith.constant 0 : index
    %57 = tpu.strided_load %arg13[%c1320, %c0_67] {strides = array<i32: 2, 1>} : memref<1800x128xf32, #tpu.memory_space<vmem>>, vector<15x128xf32>
    %c330 = arith.constant 330 : index
    %c0_68 = arith.constant 0 : index
    %58 = vector.load %arg15[%c330, %c0_68] : memref<450x128xf32, #tpu.memory_space<vmem>>, vector<15x128xf32>
    tpu.vector_store %arg15[%c330, %c0_68], %57 {strides = array<i32>} : memref<450x128xf32, #tpu.memory_space<vmem>>, vector<15x128xf32>,
    %c1380 = arith.constant 1380 : index
    %c0_69 = arith.constant 0 : index
    %59 = tpu.strided_load %arg13[%c1380, %c0_69] {strides = array<i32: 2, 1>} : memref<1800x128xf32, #tpu.memory_space<vmem>>, vector<15x128xf32>
    %c345 = arith.constant 345 : index
    %c0_70 = arith.constant 0 : index
    %60 = vector.load %arg15[%c345, %c0_70] : memref<450x128xf32, #tpu.memory_space<vmem>>, vector<15x128xf32>
    tpu.vector_store %arg15[%c345, %c0_70], %59 {strides = array<i32>} : memref<450x128xf32, #tpu.memory_space<vmem>>, vector<15x128xf32>,
    %c1440 = arith.constant 1440 : index
    %c0_71 = arith.constant 0 : index
    %61 = tpu.strided_load %arg13[%c1440, %c0_71] {strides = array<i32: 2, 1>} : memref<1800x128xf32, #tpu.memory_space<vmem>>, vector<15x128xf32>
    %c360_72 = arith.constant 360 : index
    %c0_73 = arith.constant 0 : index
    %62 = vector.load %arg15[%c360_72, %c0_73] : memref<450x128xf32, #tpu.memory_space<vmem>>, vector<15x128xf32>
    tpu.vector_store %arg15[%c360_72, %c0_73], %61 {strides = array<i32>} : memref<450x128xf32, #tpu.memory_space<vmem>>, vector<15x128xf32>,
    %c1500 = arith.constant 1500 : index
    %c0_74 = arith.constant 0 : index
    %63 = tpu.strided_load %arg13[%c1500, %c0_74] {strides = array<i32: 2, 1>} : memref<1800x128xf32, #tpu.memory_space<vmem>>, vector<15x128xf32>
    %c375 = arith.constant 375 : index
    %c0_75 = arith.constant 0 : index
    %64 = vector.load %arg15[%c375, %c0_75] : memref<450x128xf32, #tpu.memory_space<vmem>>, vector<15x128xf32>
    tpu.vector_store %arg15[%c375, %c0_75], %63 {strides = array<i32>} : memref<450x128xf32, #tpu.memory_space<vmem>>, vector<15x128xf32>,
    %c1560 = arith.constant 1560 : index
    %c0_76 = arith.constant 0 : index
    %65 = tpu.strided_load %arg13[%c1560, %c0_76] {strides = array<i32: 2, 1>} : memref<1800x128xf32, #tpu.memory_space<vmem>>, vector<15x128xf32>
    %c390 = arith.constant 390 : index
    %c0_77 = arith.constant 0 : index
    %66 = vector.load %arg15[%c390, %c0_77] : memref<450x128xf32, #tpu.memory_space<vmem>>, vector<15x128xf32>
    tpu.vector_store %arg15[%c390, %c0_77], %65 {strides = array<i32>} : memref<450x128xf32, #tpu.memory_space<vmem>>, vector<15x128xf32>,
    %c1620 = arith.constant 1620 : index
    %c0_78 = arith.constant 0 : index
    %67 = tpu.strided_load %arg13[%c1620, %c0_78] {strides = array<i32: 2, 1>} : memref<1800x128xf32, #tpu.memory_space<vmem>>, vector<15x128xf32>
    %c405 = arith.constant 405 : index
    %c0_79 = arith.constant 0 : index
    %68 = vector.load %arg15[%c405, %c0_79] : memref<450x128xf32, #tpu.memory_space<vmem>>, vector<15x128xf32>
    tpu.vector_store %arg15[%c405, %c0_79], %67 {strides = array<i32>} : memref<450x128xf32, #tpu.memory_space<vmem>>, vector<15x128xf32>,
    %c1680 = arith.constant 1680 : index
    %c0_80 = arith.constant 0 : index
    %69 = tpu.strided_load %arg13[%c1680, %c0_80] {strides = array<i32: 2, 1>} : memref<1800x128xf32, #tpu.memory_space<vmem>>, vector<15x128xf32>
    %c420_81 = arith.constant 420 : index
    %c0_82 = arith.constant 0 : index
    %70 = vector.load %arg15[%c420_81, %c0_82] : memref<450x128xf32, #tpu.memory_space<vmem>>, vector<15x128xf32>
    tpu.vector_store %arg15[%c420_81, %c0_82], %69 {strides = array<i32>} : memref<450x128xf32, #tpu.memory_space<vmem>>, vector<15x128xf32>,
    %c1740 = arith.constant 1740 : index
    %c0_83 = arith.constant 0 : index
    %71 = tpu.strided_load %arg13[%c1740, %c0_83] {strides = array<i32: 2, 1>} : memref<1800x128xf32, #tpu.memory_space<vmem>>, vector<15x128xf32>
    %c435 = arith.constant 435 : index
    %c0_84 = arith.constant 0 : index
    %72 = vector.load %arg15[%c435, %c0_84] : memref<450x128xf32, #tpu.memory_space<vmem>>, vector<15x128xf32>
    tpu.vector_store %arg15[%c435, %c0_84], %71 {strides = array<i32>} : memref<450x128xf32, #tpu.memory_space<vmem>>, vector<15x128xf32>,
    %c0_85 = arith.constant 0 : index
    %c0_86 = arith.constant 0 : index
    %73 = vector.load %arg15[%c0_85, %c0_86] : memref<450x128xf32, #tpu.memory_space<vmem>>, vector<450x128xf32>
    %c0_87 = arith.constant 0 : index
    %c0_88 = arith.constant 0 : index
    %74 = vector.load %arg3[%c0_87, %c0_88] : memref<1x128xf32, #tpu.memory_space<vmem>>, vector<1x128xf32>
    %75 = vector.broadcast %74 : vector<1x128xf32> to vector<450x128xf32>
    %76 = arith.addf %73, %75 : vector<450x128xf32>
    %cst_89 = arith.constant 0.000000e+00 : f32
    %77 = vector.broadcast %cst_89 : f32 to vector<450x128xf32>
    %78 = arith.maximumf %76, %77 : vector<450x128xf32>
    %c0_90 = arith.constant 0 : index
    %c0_91 = arith.constant 0 : index
    %79 = vector.load %arg15[%c0_90, %c0_91] : memref<450x128xf32, #tpu.memory_space<vmem>>, vector<450x128xf32>
    tpu.vector_store %arg15[%c0_90, %c0_91], %78 {strides = array<i32>} : memref<450x128xf32, #tpu.memory_space<vmem>>, vector<450x128xf32>,
    %c0_92 = arith.constant 0 : index
    %c0_93 = arith.constant 0 : index
    %80 = vector.load %arg15[%c0_92, %c0_93] : memref<450x128xf32, #tpu.memory_space<vmem>>, vector<418x128xf32>
    %81 = arith.truncf %80 : vector<418x128xf32> to vector<418x128xbf16>
    %c0_94 = arith.constant 0 : index
    %c0_95 = arith.constant 0 : index
    %c0_96 = arith.constant 0 : index
    %82 = vector.load %arg4[%c0_94, %c0_95, %c0_96] : memref<9x128x128xbf16, #tpu.memory_space<vmem>>, vector<1x128x128xbf16>
    %83 = vector.shape_cast %82 : vector<1x128x128xbf16> to vector<128x128xbf16>
    %cst_97 = arith.constant dense<0.000000e+00> : vector<418x128xf32>
    %84 = tpu.matmul %81, %83, %cst_97 {dimension_numbers = #tpu.dot_dimension_numbers<[1], [0], [0], [1], [0, 0, 1, 1], [], []>} : vector<418x128xbf16>, vector<128x128xbf16>, vector<418x128xf32> -> vector<418x128xf32>
    %c1_98 = arith.constant 1 : index
    %c0_99 = arith.constant 0 : index
    %85 = vector.load %arg15[%c1_98, %c0_99] : memref<450x128xf32, #tpu.memory_space<vmem>>, vector<418x128xf32>
    %86 = arith.truncf %85 : vector<418x128xf32> to vector<418x128xbf16>
    %c1_100 = arith.constant 1 : index
    %c0_101 = arith.constant 0 : index
    %c0_102 = arith.constant 0 : index
    %87 = vector.load %arg4[%c1_100, %c0_101, %c0_102] : memref<9x128x128xbf16, #tpu.memory_space<vmem>>, vector<1x128x128xbf16>
    %88 = vector.shape_cast %87 : vector<1x128x128xbf16> to vector<128x128xbf16>
    %cst_103 = arith.constant dense<0.000000e+00> : vector<418x128xf32>
    %89 = tpu.matmul %86, %88, %cst_103 {dimension_numbers = #tpu.dot_dimension_numbers<[1], [0], [0], [1], [0, 0, 1, 1], [], []>} : vector<418x128xbf16>, vector<128x128xbf16>, vector<418x128xf32> -> vector<418x128xf32>
    %90 = arith.addf %84, %89 : vector<418x128xf32>
    %c2 = arith.constant 2 : index
    %c0_104 = arith.constant 0 : index
    %91 = vector.load %arg15[%c2, %c0_104] : memref<450x128xf32, #tpu.memory_space<vmem>>, vector<418x128xf32>
    %92 = arith.truncf %91 : vector<418x128xf32> to vector<418x128xbf16>
    %c2_105 = arith.constant 2 : index
    %c0_106 = arith.constant 0 : index
    %c0_107 = arith.constant 0 : index
    %93 = vector.load %arg4[%c2_105, %c0_106, %c0_107] : memref<9x128x128xbf16, #tpu.memory_space<vmem>>, vector<1x128x128xbf16>
    %94 = vector.shape_cast %93 : vector<1x128x128xbf16> to vector<128x128xbf16>
    %cst_108 = arith.constant dense<0.000000e+00> : vector<418x128xf32>
    %95 = tpu.matmul %92, %94, %cst_108 {dimension_numbers = #tpu.dot_dimension_numbers<[1], [0], [0], [1], [0, 0, 1, 1], [], []>} : vector<418x128xbf16>, vector<128x128xbf16>, vector<418x128xf32> -> vector<418x128xf32>
    %96 = arith.addf %90, %95 : vector<418x128xf32>
    %c15_109 = arith.constant 15 : index
    %c0_110 = arith.constant 0 : index
    %97 = vector.load %arg15[%c15_109, %c0_110] : memref<450x128xf32, #tpu.memory_space<vmem>>, vector<418x128xf32>
    %98 = arith.truncf %97 : vector<418x128xf32> to vector<418x128xbf16>
    %c3 = arith.constant 3 : index
    %c0_111 = arith.constant 0 : index
    %c0_112 = arith.constant 0 : index
    %99 = vector.load %arg4[%c3, %c0_111, %c0_112] : memref<9x128x128xbf16, #tpu.memory_space<vmem>>, vector<1x128x128xbf16>
    %100 = vector.shape_cast %99 : vector<1x128x128xbf16> to vector<128x128xbf16>
    %cst_113 = arith.constant dense<0.000000e+00> : vector<418x128xf32>
    %101 = tpu.matmul %98, %100, %cst_113 {dimension_numbers = #tpu.dot_dimension_numbers<[1], [0], [0], [1], [0, 0, 1, 1], [], []>} : vector<418x128xbf16>, vector<128x128xbf16>, vector<418x128xf32> -> vector<418x128xf32>
    %102 = arith.addf %96, %101 : vector<418x128xf32>
    %c16 = arith.constant 16 : index
    %c0_114 = arith.constant 0 : index
    %103 = vector.load %arg15[%c16, %c0_114] : memref<450x128xf32, #tpu.memory_space<vmem>>, vector<418x128xf32>
    %104 = arith.truncf %103 : vector<418x128xf32> to vector<418x128xbf16>
    %c4 = arith.constant 4 : index
    %c0_115 = arith.constant 0 : index
    %c0_116 = arith.constant 0 : index
    %105 = vector.load %arg4[%c4, %c0_115, %c0_116] : memref<9x128x128xbf16, #tpu.memory_space<vmem>>, vector<1x128x128xbf16>
    %106 = vector.shape_cast %105 : vector<1x128x128xbf16> to vector<128x128xbf16>
    %cst_117 = arith.constant dense<0.000000e+00> : vector<418x128xf32>
    %107 = tpu.matmul %104, %106, %cst_117 {dimension_numbers = #tpu.dot_dimension_numbers<[1], [0], [0], [1], [0, 0, 1, 1], [], []>} : vector<418x128xbf16>, vector<128x128xbf16>, vector<418x128xf32> -> vector<418x128xf32>
    %108 = arith.addf %102, %107 : vector<418x128xf32>
    %c17 = arith.constant 17 : index
    %c0_118 = arith.constant 0 : index
    %109 = vector.load %arg15[%c17, %c0_118] : memref<450x128xf32, #tpu.memory_space<vmem>>, vector<418x128xf32>
    %110 = arith.truncf %109 : vector<418x128xf32> to vector<418x128xbf16>
    %c5 = arith.constant 5 : index
    %c0_119 = arith.constant 0 : index
    %c0_120 = arith.constant 0 : index
    %111 = vector.load %arg4[%c5, %c0_119, %c0_120] : memref<9x128x128xbf16, #tpu.memory_space<vmem>>, vector<1x128x128xbf16>
    %112 = vector.shape_cast %111 : vector<1x128x128xbf16> to vector<128x128xbf16>
    %cst_121 = arith.constant dense<0.000000e+00> : vector<418x128xf32>
    %113 = tpu.matmul %110, %112, %cst_121 {dimension_numbers = #tpu.dot_dimension_numbers<[1], [0], [0], [1], [0, 0, 1, 1], [], []>} : vector<418x128xbf16>, vector<128x128xbf16>, vector<418x128xf32> -> vector<418x128xf32>
    %114 = arith.addf %108, %113 : vector<418x128xf32>
    %c30_122 = arith.constant 30 : index
    %c0_123 = arith.constant 0 : index
    %115 = vector.load %arg15[%c30_122, %c0_123] : memref<450x128xf32, #tpu.memory_space<vmem>>, vector<418x128xf32>
    %116 = arith.truncf %115 : vector<418x128xf32> to vector<418x128xbf16>
    %c6 = arith.constant 6 : index
    %c0_124 = arith.constant 0 : index
    %c0_125 = arith.constant 0 : index
    %117 = vector.load %arg4[%c6, %c0_124, %c0_125] : memref<9x128x128xbf16, #tpu.memory_space<vmem>>, vector<1x128x128xbf16>
    %118 = vector.shape_cast %117 : vector<1x128x128xbf16> to vector<128x128xbf16>
    %cst_126 = arith.constant dense<0.000000e+00> : vector<418x128xf32>
    %119 = tpu.matmul %116, %118, %cst_126 {dimension_numbers = #tpu.dot_dimension_numbers<[1], [0], [0], [1], [0, 0, 1, 1], [], []>} : vector<418x128xbf16>, vector<128x128xbf16>, vector<418x128xf32> -> vector<418x128xf32>
    %120 = arith.addf %114, %119 : vector<418x128xf32>
    %c31 = arith.constant 31 : index
    %c0_127 = arith.constant 0 : index
    %121 = vector.load %arg15[%c31, %c0_127] : memref<450x128xf32, #tpu.memory_space<vmem>>, vector<418x128xf32>
    %122 = arith.truncf %121 : vector<418x128xf32> to vector<418x128xbf16>
    %c7 = arith.constant 7 : index
    %c0_128 = arith.constant 0 : index
    %c0_129 = arith.constant 0 : index
    %123 = vector.load %arg4[%c7, %c0_128, %c0_129] : memref<9x128x128xbf16, #tpu.memory_space<vmem>>, vector<1x128x128xbf16>
    %124 = vector.shape_cast %123 : vector<1x128x128xbf16> to vector<128x128xbf16>
    %cst_130 = arith.constant dense<0.000000e+00> : vector<418x128xf32>
    %125 = tpu.matmul %122, %124, %cst_130 {dimension_numbers = #tpu.dot_dimension_numbers<[1], [0], [0], [1], [0, 0, 1, 1], [], []>} : vector<418x128xbf16>, vector<128x128xbf16>, vector<418x128xf32> -> vector<418x128xf32>
    %126 = arith.addf %120, %125 : vector<418x128xf32>
    %c32 = arith.constant 32 : index
    %c0_131 = arith.constant 0 : index
    %127 = vector.load %arg15[%c32, %c0_131] : memref<450x128xf32, #tpu.memory_space<vmem>>, vector<418x128xf32>
    %128 = arith.truncf %127 : vector<418x128xf32> to vector<418x128xbf16>
    %c8 = arith.constant 8 : index
    %c0_132 = arith.constant 0 : index
    %c0_133 = arith.constant 0 : index
    %129 = vector.load %arg4[%c8, %c0_132, %c0_133] : memref<9x128x128xbf16, #tpu.memory_space<vmem>>, vector<1x128x128xbf16>
    %130 = vector.shape_cast %129 : vector<1x128x128xbf16> to vector<128x128xbf16>
    %cst_134 = arith.constant dense<0.000000e+00> : vector<418x128xf32>
    %131 = tpu.matmul %128, %130, %cst_134 {dimension_numbers = #tpu.dot_dimension_numbers<[1], [0], [0], [1], [0, 0, 1, 1], [], []>} : vector<418x128xbf16>, vector<128x128xbf16>, vector<418x128xf32> -> vector<418x128xf32>
    %132 = arith.addf %126, %131 : vector<418x128xf32>
    %c0_135 = arith.constant 0 : index
    %c0_136 = arith.constant 0 : index
    %133 = vector.load %arg13[%c0_135, %c0_136] : memref<1800x128xf32, #tpu.memory_space<vmem>>, vector<418x128xf32>
    tpu.vector_store %arg13[%c0_135, %c0_136], %132 {strides = array<i32>} : memref<1800x128xf32, #tpu.memory_space<vmem>>, vector<418x128xf32>,
    %c0_137 = arith.constant 0 : index
    %c0_138 = arith.constant 0 : index
    %134 = vector.load %arg13[%c0_137, %c0_138] : memref<1800x128xf32, #tpu.memory_space<vmem>>, vector<417x128xf32>
    %c1_139 = arith.constant 1 : index
    %c0_140 = arith.constant 0 : index
    %135 = vector.load %arg13[%c1_139, %c0_140] : memref<1800x128xf32, #tpu.memory_space<vmem>>, vector<417x128xf32>
    %136 = arith.maximumf %134, %135 : vector<417x128xf32>
    %c0_141 = arith.constant 0 : index
    %c0_142 = arith.constant 0 : index
    %137 = vector.load %arg14[%c0_141, %c0_142] : memref<1800x128xf32, #tpu.memory_space<vmem>>, vector<417x128xf32>
    tpu.vector_store %arg14[%c0_141, %c0_142], %136 {strides = array<i32>} : memref<1800x128xf32, #tpu.memory_space<vmem>>, vector<417x128xf32>,
    %c0_143 = arith.constant 0 : index
    %c0_144 = arith.constant 0 : index
    %138 = vector.load %arg14[%c0_143, %c0_144] : memref<1800x128xf32, #tpu.memory_space<vmem>>, vector<402x128xf32>
    %c15_145 = arith.constant 15 : index
    %c0_146 = arith.constant 0 : index
    %139 = vector.load %arg14[%c15_145, %c0_146] : memref<1800x128xf32, #tpu.memory_space<vmem>>, vector<402x128xf32>
    %140 = arith.maximumf %138, %139 : vector<402x128xf32>
    %c0_147 = arith.constant 0 : index
    %c0_148 = arith.constant 0 : index
    %141 = vector.load %arg13[%c0_147, %c0_148] : memref<1800x128xf32, #tpu.memory_space<vmem>>, vector<402x128xf32>
    tpu.vector_store %arg13[%c0_147, %c0_148], %140 {strides = array<i32>} : memref<1800x128xf32, #tpu.memory_space<vmem>>, vector<402x128xf32>,
    %c0_149 = arith.constant 0 : index
    %c0_150 = arith.constant 0 : index
    %142 = tpu.strided_load %arg13[%c0_149, %c0_150] {strides = array<i32: 2, 1>} : memref<1800x128xf32, #tpu.memory_space<vmem>>, vector<6x128xf32>
    %c0_151 = arith.constant 0 : index
    %c0_152 = arith.constant 0 : index
    %143 = vector.load %arg16[%c0_151, %c0_152] : memref<72x128xf32, #tpu.memory_space<vmem>>, vector<6x128xf32>
    tpu.vector_store %arg16[%c0_151, %c0_152], %142 {strides = array<i32>} : memref<72x128xf32, #tpu.memory_space<vmem>>, vector<6x128xf32>,
    %c30_153 = arith.constant 30 : index
    %c0_154 = arith.constant 0 : index
    %144 = tpu.strided_load %arg13[%c30_153, %c0_154] {strides = array<i32: 2, 1>} : memref<1800x128xf32, #tpu.memory_space<vmem>>, vector<6x128xf32>
    %c6_155 = arith.constant 6 : index
    %c0_156 = arith.constant 0 : index
    %145 = vector.load %arg16[%c6_155, %c0_156] : memref<72x128xf32, #tpu.memory_space<vmem>>, vector<6x128xf32>
    tpu.vector_store %arg16[%c6_155, %c0_156], %144 {strides = array<i32>} : memref<72x128xf32, #tpu.memory_space<vmem>>, vector<6x128xf32>,
    %c60_157 = arith.constant 60 : index
    %c0_158 = arith.constant 0 : index
    %146 = tpu.strided_load %arg13[%c60_157, %c0_158] {strides = array<i32: 2, 1>} : memref<1800x128xf32, #tpu.memory_space<vmem>>, vector<6x128xf32>
    %c12 = arith.constant 12 : index
    %c0_159 = arith.constant 0 : index
    %147 = vector.load %arg16[%c12, %c0_159] : memref<72x128xf32, #tpu.memory_space<vmem>>, vector<6x128xf32>
    tpu.vector_store %arg16[%c12, %c0_159], %146 {strides = array<i32>} : memref<72x128xf32, #tpu.memory_space<vmem>>, vector<6x128xf32>,
    %c90_160 = arith.constant 90 : index
    %c0_161 = arith.constant 0 : index
    %148 = tpu.strided_load %arg13[%c90_160, %c0_161] {strides = array<i32: 2, 1>} : memref<1800x128xf32, #tpu.memory_space<vmem>>, vector<6x128xf32>
    %c18 = arith.constant 18 : index
    %c0_162 = arith.constant 0 : index
    %149 = vector.load %arg16[%c18, %c0_162] : memref<72x128xf32, #tpu.memory_space<vmem>>, vector<6x128xf32>
    tpu.vector_store %arg16[%c18, %c0_162], %148 {strides = array<i32>} : memref<72x128xf32, #tpu.memory_space<vmem>>, vector<6x128xf32>,
    %c120_163 = arith.constant 120 : index
    %c0_164 = arith.constant 0 : index
    %150 = tpu.strided_load %arg13[%c120_163, %c0_164] {strides = array<i32: 2, 1>} : memref<1800x128xf32, #tpu.memory_space<vmem>>, vector<6x128xf32>
    %c24 = arith.constant 24 : index
    %c0_165 = arith.constant 0 : index
    %151 = vector.load %arg16[%c24, %c0_165] : memref<72x128xf32, #tpu.memory_space<vmem>>, vector<6x128xf32>
    tpu.vector_store %arg16[%c24, %c0_165], %150 {strides = array<i32>} : memref<72x128xf32, #tpu.memory_space<vmem>>, vector<6x128xf32>,
    %c150_166 = arith.constant 150 : index
    %c0_167 = arith.constant 0 : index
    %152 = tpu.strided_load %arg13[%c150_166, %c0_167] {strides = array<i32: 2, 1>} : memref<1800x128xf32, #tpu.memory_space<vmem>>, vector<6x128xf32>
    %c30_168 = arith.constant 30 : index
    %c0_169 = arith.constant 0 : index
    %153 = vector.load %arg16[%c30_168, %c0_169] : memref<72x128xf32, #tpu.memory_space<vmem>>, vector<6x128xf32>
    tpu.vector_store %arg16[%c30_168, %c0_169], %152 {strides = array<i32>} : memref<72x128xf32, #tpu.memory_space<vmem>>, vector<6x128xf32>,
    %c225_170 = arith.constant 225 : index
    %c0_171 = arith.constant 0 : index
    %154 = tpu.strided_load %arg13[%c225_170, %c0_171] {strides = array<i32: 2, 1>} : memref<1800x128xf32, #tpu.memory_space<vmem>>, vector<6x128xf32>
    %c36 = arith.constant 36 : index
    %c0_172 = arith.constant 0 : index
    %155 = vector.load %arg16[%c36, %c0_172] : memref<72x128xf32, #tpu.memory_space<vmem>>, vector<6x128xf32>
    tpu.vector_store %arg16[%c36, %c0_172], %154 {strides = array<i32>} : memref<72x128xf32, #tpu.memory_space<vmem>>, vector<6x128xf32>,
    %c255_173 = arith.constant 255 : index
    %c0_174 = arith.constant 0 : index
    %156 = tpu.strided_load %arg13[%c255_173, %c0_174] {strides = array<i32: 2, 1>} : memref<1800x128xf32, #tpu.memory_space<vmem>>, vector<6x128xf32>
    %c42 = arith.constant 42 : index
    %c0_175 = arith.constant 0 : index
    %157 = vector.load %arg16[%c42, %c0_175] : memref<72x128xf32, #tpu.memory_space<vmem>>, vector<6x128xf32>
    tpu.vector_store %arg16[%c42, %c0_175], %156 {strides = array<i32>} : memref<72x128xf32, #tpu.memory_space<vmem>>, vector<6x128xf32>,
    %c285_176 = arith.constant 285 : index
    %c0_177 = arith.constant 0 : index
    %158 = tpu.strided_load %arg13[%c285_176, %c0_177] {strides = array<i32: 2, 1>} : memref<1800x128xf32, #tpu.memory_space<vmem>>, vector<6x128xf32>
    %c48 = arith.constant 48 : index
    %c0_178 = arith.constant 0 : index
    %159 = vector.load %arg16[%c48, %c0_178] : memref<72x128xf32, #tpu.memory_space<vmem>>, vector<6x128xf32>
    tpu.vector_store %arg16[%c48, %c0_178], %158 {strides = array<i32>} : memref<72x128xf32, #tpu.memory_space<vmem>>, vector<6x128xf32>,
    %c315_179 = arith.constant 315 : index
    %c0_180 = arith.constant 0 : index
    %160 = tpu.strided_load %arg13[%c315_179, %c0_180] {strides = array<i32: 2, 1>} : memref<1800x128xf32, #tpu.memory_space<vmem>>, vector<6x128xf32>
    %c54 = arith.constant 54 : index
    %c0_181 = arith.constant 0 : index
    %161 = vector.load %arg16[%c54, %c0_181] : memref<72x128xf32, #tpu.memory_space<vmem>>, vector<6x128xf32>
    tpu.vector_store %arg16[%c54, %c0_181], %160 {strides = array<i32>} : memref<72x128xf32, #tpu.memory_space<vmem>>, vector<6x128xf32>,
    %c345_182 = arith.constant 345 : index
    %c0_183 = arith.constant 0 : index
    %162 = tpu.strided_load %arg13[%c345_182, %c0_183] {strides = array<i32: 2, 1>} : memref<1800x128xf32, #tpu.memory_space<vmem>>, vector<6x128xf32>
    %c60_184 = arith.constant 60 : index
    %c0_185 = arith.constant 0 : index
    %163 = vector.load %arg16[%c60_184, %c0_185] : memref<72x128xf32, #tpu.memory_space<vmem>>, vector<6x128xf32>
    tpu.vector_store %arg16[%c60_184, %c0_185], %162 {strides = array<i32>} : memref<72x128xf32, #tpu.memory_space<vmem>>, vector<6x128xf32>,
    %c375_186 = arith.constant 375 : index
    %c0_187 = arith.constant 0 : index
    %164 = tpu.strided_load %arg13[%c375_186, %c0_187] {strides = array<i32: 2, 1>} : memref<1800x128xf32, #tpu.memory_space<vmem>>, vector<6x128xf32>
    %c66 = arith.constant 66 : index
    %c0_188 = arith.constant 0 : index
    %165 = vector.load %arg16[%c66, %c0_188] : memref<72x128xf32, #tpu.memory_space<vmem>>, vector<6x128xf32>
    tpu.vector_store %arg16[%c66, %c0_188], %164 {strides = array<i32>} : memref<72x128xf32, #tpu.memory_space<vmem>>, vector<6x128xf32>,
    %c0_189 = arith.constant 0 : index
    %c0_190 = arith.constant 0 : index
    %166 = vector.load %arg16[%c0_189, %c0_190] : memref<72x128xf32, #tpu.memory_space<vmem>>, vector<72x128xf32>
    %c0_191 = arith.constant 0 : index
    %c0_192 = arith.constant 0 : index
    %167 = vector.load %arg5[%c0_191, %c0_192] : memref<1x128xf32, #tpu.memory_space<vmem>>, vector<1x128xf32>
    %168 = vector.broadcast %167 : vector<1x128xf32> to vector<72x128xf32>
    %169 = arith.addf %166, %168 : vector<72x128xf32>
    %cst_193 = arith.constant 0.000000e+00 : f32
    %170 = vector.broadcast %cst_193 : f32 to vector<72x128xf32>
    %171 = arith.maximumf %169, %170 : vector<72x128xf32>
    %c0_194 = arith.constant 0 : index
    %c0_195 = arith.constant 0 : index
    %172 = vector.load %arg16[%c0_194, %c0_195] : memref<72x128xf32, #tpu.memory_space<vmem>>, vector<72x128xf32>
    tpu.vector_store %arg16[%c0_194, %c0_195], %171 {strides = array<i32>} : memref<72x128xf32, #tpu.memory_space<vmem>>, vector<72x128xf32>,
    %c0_196 = arith.constant 0 : index
    %c0_197 = arith.constant 0 : index
    %173 = vector.load %arg16[%c0_196, %c0_197] : memref<72x128xf32, #tpu.memory_space<vmem>>, vector<58x128xf32>
    %174 = arith.truncf %173 : vector<58x128xf32> to vector<58x128xbf16>
    %c0_198 = arith.constant 0 : index
    %c0_199 = arith.constant 0 : index
    %c0_200 = arith.constant 0 : index
    %175 = vector.load %arg6[%c0_198, %c0_199, %c0_200] : memref<9x128x128xbf16, #tpu.memory_space<vmem>>, vector<1x128x128xbf16>
    %176 = vector.shape_cast %175 : vector<1x128x128xbf16> to vector<128x128xbf16>
    %cst_201 = arith.constant dense<0.000000e+00> : vector<58x128xf32>
    %177 = tpu.matmul %174, %176, %cst_201 {dimension_numbers = #tpu.dot_dimension_numbers<[1], [0], [0], [1], [0, 0, 1, 1], [], []>} : vector<58x128xbf16>, vector<128x128xbf16>, vector<58x128xf32> -> vector<58x128xf32>
    %c1_202 = arith.constant 1 : index
    %c0_203 = arith.constant 0 : index
    %178 = vector.load %arg16[%c1_202, %c0_203] : memref<72x128xf32, #tpu.memory_space<vmem>>, vector<58x128xf32>
    %179 = arith.truncf %178 : vector<58x128xf32> to vector<58x128xbf16>
    %c1_204 = arith.constant 1 : index
    %c0_205 = arith.constant 0 : index
    %c0_206 = arith.constant 0 : index
    %180 = vector.load %arg6[%c1_204, %c0_205, %c0_206] : memref<9x128x128xbf16, #tpu.memory_space<vmem>>, vector<1x128x128xbf16>
    %181 = vector.shape_cast %180 : vector<1x128x128xbf16> to vector<128x128xbf16>
    %cst_207 = arith.constant dense<0.000000e+00> : vector<58x128xf32>
    %182 = tpu.matmul %179, %181, %cst_207 {dimension_numbers = #tpu.dot_dimension_numbers<[1], [0], [0], [1], [0, 0, 1, 1], [], []>} : vector<58x128xbf16>, vector<128x128xbf16>, vector<58x128xf32> -> vector<58x128xf32>
    %183 = arith.addf %177, %182 : vector<58x128xf32>
    %c2_208 = arith.constant 2 : index
    %c0_209 = arith.constant 0 : index
    %184 = vector.load %arg16[%c2_208, %c0_209] : memref<72x128xf32, #tpu.memory_space<vmem>>, vector<58x128xf32>
    %185 = arith.truncf %184 : vector<58x128xf32> to vector<58x128xbf16>
    %c2_210 = arith.constant 2 : index
    %c0_211 = arith.constant 0 : index
    %c0_212 = arith.constant 0 : index
    %186 = vector.load %arg6[%c2_210, %c0_211, %c0_212] : memref<9x128x128xbf16, #tpu.memory_space<vmem>>, vector<1x128x128xbf16>
    %187 = vector.shape_cast %186 : vector<1x128x128xbf16> to vector<128x128xbf16>
    %cst_213 = arith.constant dense<0.000000e+00> : vector<58x128xf32>
    %188 = tpu.matmul %185, %187, %cst_213 {dimension_numbers = #tpu.dot_dimension_numbers<[1], [0], [0], [1], [0, 0, 1, 1], [], []>} : vector<58x128xbf16>, vector<128x128xbf16>, vector<58x128xf32> -> vector<58x128xf32>
    %189 = arith.addf %183, %188 : vector<58x128xf32>
    %c6_214 = arith.constant 6 : index
    %c0_215 = arith.constant 0 : index
    %190 = vector.load %arg16[%c6_214, %c0_215] : memref<72x128xf32, #tpu.memory_space<vmem>>, vector<58x128xf32>
    %191 = arith.truncf %190 : vector<58x128xf32> to vector<58x128xbf16>
    %c3_216 = arith.constant 3 : index
    %c0_217 = arith.constant 0 : index
    %c0_218 = arith.constant 0 : index
    %192 = vector.load %arg6[%c3_216, %c0_217, %c0_218] : memref<9x128x128xbf16, #tpu.memory_space<vmem>>, vector<1x128x128xbf16>
    %193 = vector.shape_cast %192 : vector<1x128x128xbf16> to vector<128x128xbf16>
    %cst_219 = arith.constant dense<0.000000e+00> : vector<58x128xf32>
    %194 = tpu.matmul %191, %193, %cst_219 {dimension_numbers = #tpu.dot_dimension_numbers<[1], [0], [0], [1], [0, 0, 1, 1], [], []>} : vector<58x128xbf16>, vector<128x128xbf16>, vector<58x128xf32> -> vector<58x128xf32>
    %195 = arith.addf %189, %194 : vector<58x128xf32>
    %c7_220 = arith.constant 7 : index
    %c0_221 = arith.constant 0 : index
    %196 = vector.load %arg16[%c7_220, %c0_221] : memref<72x128xf32, #tpu.memory_space<vmem>>, vector<58x128xf32>
    %197 = arith.truncf %196 : vector<58x128xf32> to vector<58x128xbf16>
    %c4_222 = arith.constant 4 : index
    %c0_223 = arith.constant 0 : index
    %c0_224 = arith.constant 0 : index
    %198 = vector.load %arg6[%c4_222, %c0_223, %c0_224] : memref<9x128x128xbf16, #tpu.memory_space<vmem>>, vector<1x128x128xbf16>
    %199 = vector.shape_cast %198 : vector<1x128x128xbf16> to vector<128x128xbf16>
    %cst_225 = arith.constant dense<0.000000e+00> : vector<58x128xf32>
    %200 = tpu.matmul %197, %199, %cst_225 {dimension_numbers = #tpu.dot_dimension_numbers<[1], [0], [0], [1], [0, 0, 1, 1], [], []>} : vector<58x128xbf16>, vector<128x128xbf16>, vector<58x128xf32> -> vector<58x128xf32>
    %201 = arith.addf %195, %200 : vector<58x128xf32>
    %c8_226 = arith.constant 8 : index
    %c0_227 = arith.constant 0 : index
    %202 = vector.load %arg16[%c8_226, %c0_227] : memref<72x128xf32, #tpu.memory_space<vmem>>, vector<58x128xf32>
    %203 = arith.truncf %202 : vector<58x128xf32> to vector<58x128xbf16>
    %c5_228 = arith.constant 5 : index
    %c0_229 = arith.constant 0 : index
    %c0_230 = arith.constant 0 : index
    %204 = vector.load %arg6[%c5_228, %c0_229, %c0_230] : memref<9x128x128xbf16, #tpu.memory_space<vmem>>, vector<1x128x128xbf16>
    %205 = vector.shape_cast %204 : vector<1x128x128xbf16> to vector<128x128xbf16>
    %cst_231 = arith.constant dense<0.000000e+00> : vector<58x128xf32>
    %206 = tpu.matmul %203, %205, %cst_231 {dimension_numbers = #tpu.dot_dimension_numbers<[1], [0], [0], [1], [0, 0, 1, 1], [], []>} : vector<58x128xbf16>, vector<128x128xbf16>, vector<58x128xf32> -> vector<58x128xf32>
    %207 = arith.addf %201, %206 : vector<58x128xf32>
    %c12_232 = arith.constant 12 : index
    %c0_233 = arith.constant 0 : index
    %208 = vector.load %arg16[%c12_232, %c0_233] : memref<72x128xf32, #tpu.memory_space<vmem>>, vector<58x128xf32>
    %209 = arith.truncf %208 : vector<58x128xf32> to vector<58x128xbf16>
    %c6_234 = arith.constant 6 : index
    %c0_235 = arith.constant 0 : index
    %c0_236 = arith.constant 0 : index
    %210 = vector.load %arg6[%c6_234, %c0_235, %c0_236] : memref<9x128x128xbf16, #tpu.memory_space<vmem>>, vector<1x128x128xbf16>
    %211 = vector.shape_cast %210 : vector<1x128x128xbf16> to vector<128x128xbf16>
    %cst_237 = arith.constant dense<0.000000e+00> : vector<58x128xf32>
    %212 = tpu.matmul %209, %211, %cst_237 {dimension_numbers = #tpu.dot_dimension_numbers<[1], [0], [0], [1], [0, 0, 1, 1], [], []>} : vector<58x128xbf16>, vector<128x128xbf16>, vector<58x128xf32> -> vector<58x128xf32>
    %213 = arith.addf %207, %212 : vector<58x128xf32>
    %c13 = arith.constant 13 : index
    %c0_238 = arith.constant 0 : index
    %214 = vector.load %arg16[%c13, %c0_238] : memref<72x128xf32, #tpu.memory_space<vmem>>, vector<58x128xf32>
    %215 = arith.truncf %214 : vector<58x128xf32> to vector<58x128xbf16>
    %c7_239 = arith.constant 7 : index
    %c0_240 = arith.constant 0 : index
    %c0_241 = arith.constant 0 : index
    %216 = vector.load %arg6[%c7_239, %c0_240, %c0_241] : memref<9x128x128xbf16, #tpu.memory_space<vmem>>, vector<1x128x128xbf16>
    %217 = vector.shape_cast %216 : vector<1x128x128xbf16> to vector<128x128xbf16>
    %cst_242 = arith.constant dense<0.000000e+00> : vector<58x128xf32>
    %218 = tpu.matmul %215, %217, %cst_242 {dimension_numbers = #tpu.dot_dimension_numbers<[1], [0], [0], [1], [0, 0, 1, 1], [], []>} : vector<58x128xbf16>, vector<128x128xbf16>, vector<58x128xf32> -> vector<58x128xf32>
    %219 = arith.addf %213, %218 : vector<58x128xf32>
    %c14 = arith.constant 14 : index
    %c0_243 = arith.constant 0 : index
    %220 = vector.load %arg16[%c14, %c0_243] : memref<72x128xf32, #tpu.memory_space<vmem>>, vector<58x128xf32>
    %221 = arith.truncf %220 : vector<58x128xf32> to vector<58x128xbf16>
    %c8_244 = arith.constant 8 : index
    %c0_245 = arith.constant 0 : index
    %c0_246 = arith.constant 0 : index
    %222 = vector.load %arg6[%c8_244, %c0_245, %c0_246] : memref<9x128x128xbf16, #tpu.memory_space<vmem>>, vector<1x128x128xbf16>
    %223 = vector.shape_cast %222 : vector<1x128x128xbf16> to vector<128x128xbf16>
    %cst_247 = arith.constant dense<0.000000e+00> : vector<58x128xf32>
    %224 = tpu.matmul %221, %223, %cst_247 {dimension_numbers = #tpu.dot_dimension_numbers<[1], [0], [0], [1], [0, 0, 1, 1], [], []>} : vector<58x128xbf16>, vector<128x128xbf16>, vector<58x128xf32> -> vector<58x128xf32>
    %225 = arith.addf %219, %224 : vector<58x128xf32>
    %c0_248 = arith.constant 0 : index
    %c0_249 = arith.constant 0 : index
    %226 = vector.load %arg13[%c0_248, %c0_249] : memref<1800x128xf32, #tpu.memory_space<vmem>>, vector<58x128xf32>
    tpu.vector_store %arg13[%c0_248, %c0_249], %225 {strides = array<i32>} : memref<1800x128xf32, #tpu.memory_space<vmem>>, vector<58x128xf32>,
    %c0_250 = arith.constant 0 : index
    %c0_251 = arith.constant 0 : index
    %227 = vector.load %arg13[%c0_250, %c0_251] : memref<1800x128xf32, #tpu.memory_space<vmem>>, vector<57x128xf32>
    %c1_252 = arith.constant 1 : index
    %c0_253 = arith.constant 0 : index
    %228 = vector.load %arg13[%c1_252, %c0_253] : memref<1800x128xf32, #tpu.memory_space<vmem>>, vector<57x128xf32>
    %229 = arith.maximumf %227, %228 : vector<57x128xf32>
    %c0_254 = arith.constant 0 : index
    %c0_255 = arith.constant 0 : index
    %230 = vector.load %arg14[%c0_254, %c0_255] : memref<1800x128xf32, #tpu.memory_space<vmem>>, vector<57x128xf32>
    tpu.vector_store %arg14[%c0_254, %c0_255], %229 {strides = array<i32>} : memref<1800x128xf32, #tpu.memory_space<vmem>>, vector<57x128xf32>,
    %c0_256 = arith.constant 0 : index
    %c0_257 = arith.constant 0 : index
    %231 = vector.load %arg14[%c0_256, %c0_257] : memref<1800x128xf32, #tpu.memory_space<vmem>>, vector<51x128xf32>
    %c6_258 = arith.constant 6 : index
    %c0_259 = arith.constant 0 : index
    %232 = vector.load %arg14[%c6_258, %c0_259] : memref<1800x128xf32, #tpu.memory_space<vmem>>, vector<51x128xf32>
    %233 = arith.maximumf %231, %232 : vector<51x128xf32>
    %c0_260 = arith.constant 0 : index
    %c0_261 = arith.constant 0 : index
    %234 = vector.load %arg13[%c0_260, %c0_261] : memref<1800x128xf32, #tpu.memory_space<vmem>>, vector<51x128xf32>
    tpu.vector_store %arg13[%c0_260, %c0_261], %233 {strides = array<i32>} : memref<1800x128xf32, #tpu.memory_space<vmem>>, vector<51x128xf32>,
    %c0_262 = arith.constant 0 : index
    %c0_263 = arith.constant 0 : index
    %235 = tpu.strided_load %arg13[%c0_262, %c0_263] {strides = array<i32: 2, 1>} : memref<1800x128xf32, #tpu.memory_space<vmem>>, vector<2x128xf32>
    %c0_264 = arith.constant 0 : index
    %c0_265 = arith.constant 0 : index
    %236 = vector.load %arg17[%c0_264, %c0_265] : memref<8x128xf32, #tpu.memory_space<vmem>>, vector<2x128xf32>
    tpu.vector_store %arg17[%c0_264, %c0_265], %235 {strides = array<i32>} : memref<8x128xf32, #tpu.memory_space<vmem>>, vector<2x128xf32>,
    %c12_266 = arith.constant 12 : index
    %c0_267 = arith.constant 0 : index
    %237 = tpu.strided_load %arg13[%c12_266, %c0_267] {strides = array<i32: 2, 1>} : memref<1800x128xf32, #tpu.memory_space<vmem>>, vector<2x128xf32>
    %c2_268 = arith.constant 2 : index
    %c0_269 = arith.constant 0 : index
    %238 = vector.load %arg17[%c2_268, %c0_269] : memref<8x128xf32, #tpu.memory_space<vmem>>, vector<2x128xf32>
    tpu.vector_store %arg17[%c2_268, %c0_269], %237 {strides = array<i32>} : memref<8x128xf32, #tpu.memory_space<vmem>>, vector<2x128xf32>,
    %c36_270 = arith.constant 36 : index
    %c0_271 = arith.constant 0 : index
    %239 = tpu.strided_load %arg13[%c36_270, %c0_271] {strides = array<i32: 2, 1>} : memref<1800x128xf32, #tpu.memory_space<vmem>>, vector<2x128xf32>
    %c4_272 = arith.constant 4 : index
    %c0_273 = arith.constant 0 : index
    %240 = vector.load %arg17[%c4_272, %c0_273] : memref<8x128xf32, #tpu.memory_space<vmem>>, vector<2x128xf32>
    tpu.vector_store %arg17[%c4_272, %c0_273], %239 {strides = array<i32>} : memref<8x128xf32, #tpu.memory_space<vmem>>, vector<2x128xf32>,
    %c48_274 = arith.constant 48 : index
    %c0_275 = arith.constant 0 : index
    %241 = tpu.strided_load %arg13[%c48_274, %c0_275] {strides = array<i32: 2, 1>} : memref<1800x128xf32, #tpu.memory_space<vmem>>, vector<2x128xf32>
    %c6_276 = arith.constant 6 : index
    %c0_277 = arith.constant 0 : index
    %242 = vector.load %arg17[%c6_276, %c0_277] : memref<8x128xf32, #tpu.memory_space<vmem>>, vector<2x128xf32>
    tpu.vector_store %arg17[%c6_276, %c0_277], %241 {strides = array<i32>} : memref<8x128xf32, #tpu.memory_space<vmem>>, vector<2x128xf32>,
    %c0_278 = arith.constant 0 : index
    %c0_279 = arith.constant 0 : index
    %243 = vector.load %arg17[%c0_278, %c0_279] : memref<8x128xf32, #tpu.memory_space<vmem>>, vector<8x128xf32>
    %c0_280 = arith.constant 0 : index
    %c0_281 = arith.constant 0 : index
    %244 = vector.load %arg7[%c0_280, %c0_281] : memref<1x128xf32, #tpu.memory_space<vmem>>, vector<1x128xf32>
    %245 = vector.broadcast %244 : vector<1x128xf32> to vector<8x128xf32>
    %246 = arith.addf %243, %245 : vector<8x128xf32>
    %cst_282 = arith.constant 0.000000e+00 : f32
    %247 = vector.broadcast %cst_282 : f32 to vector<8x128xf32>
    %248 = arith.maximumf %246, %247 : vector<8x128xf32>
    %c0_283 = arith.constant 0 : index
    %c0_284 = arith.constant 0 : index
    %249 = vector.load %arg17[%c0_283, %c0_284] : memref<8x128xf32, #tpu.memory_space<vmem>>, vector<8x128xf32>
    tpu.vector_store %arg17[%c0_283, %c0_284], %248 {strides = array<i32>} : memref<8x128xf32, #tpu.memory_space<vmem>>, vector<8x128xf32>,
    %c0_285 = arith.constant 0 : index
    %c0_286 = arith.constant 0 : index
    %250 = tpu.strided_load %arg17[%c0_285, %c0_286] {strides = array<i32: 4, 1>} : memref<8x128xf32, #tpu.memory_space<vmem>>, vector<2x128xf32>
    %c1_287 = arith.constant 1 : index
    %c0_288 = arith.constant 0 : index
    %251 = tpu.strided_load %arg17[%c1_287, %c0_288] {strides = array<i32: 4, 1>} : memref<8x128xf32, #tpu.memory_space<vmem>>, vector<2x128xf32>
    %c2_289 = arith.constant 2 : index
    %c0_290 = arith.constant 0 : index
    %252 = tpu.strided_load %arg17[%c2_289, %c0_290] {strides = array<i32: 4, 1>} : memref<8x128xf32, #tpu.memory_space<vmem>>, vector<2x128xf32>
    %c3_291 = arith.constant 3 : index
    %c0_292 = arith.constant 0 : index
    %253 = tpu.strided_load %arg17[%c3_291, %c0_292] {strides = array<i32: 4, 1>} : memref<8x128xf32, #tpu.memory_space<vmem>>, vector<2x128xf32>
    %254 = tpu.concatenate %250, %251, %252, %253 in 1 : vector<2x128xf32>, vector<2x128xf32>, vector<2x128xf32>, vector<2x128xf32> -> vector<2x512xf32>
    %255 = arith.truncf %254 : vector<2x512xf32> to vector<2x512xbf16>
    tpu.wait_dma2 semaphore(%arg19 : memref<!tpu.dma_semaphore, #tpu.memory_space<semaphore_mem>>) src(%arg8 : memref<512x512xbf16, #tpu.memory_space<any>>) dst(%arg18 : memref<512x512xbf16, #tpu.memory_space<vmem>>)
    %c0_293 = arith.constant 0 : index
    %c0_294 = arith.constant 0 : index
    %256 = vector.load %arg18[%c0_293, %c0_294] : memref<512x512xbf16, #tpu.memory_space<vmem>>, vector<512x512xbf16>
    %cst_295 = arith.constant dense<0.000000e+00> : vector<2x512xf32>
    %257 = tpu.matmul %255, %256, %cst_295 {dimension_numbers = #tpu.dot_dimension_numbers<[1], [0], [0], [1], [0, 0, 1, 1], [], []>} : vector<2x512xbf16>, vector<512x512xbf16>, vector<2x512xf32> -> vector<2x512xf32>
    %c0_296 = arith.constant 0 : index
    %c0_297 = arith.constant 0 : index
    %258 = vector.load %arg9[%c0_296, %c0_297] : memref<1x512xf32, #tpu.memory_space<vmem>>, vector<1x512xf32>
    %259 = vector.broadcast %258 : vector<1x512xf32> to vector<2x512xf32>
    %260 = arith.addf %257, %259 : vector<2x512xf32>
    %cst_298 = arith.constant 0.000000e+00 : f32
    %261 = vector.broadcast %cst_298 : f32 to vector<2x512xf32>
    %262 = arith.maximumf %260, %261 : vector<2x512xf32>
    %c0_299 = arith.constant 0 : index
    %c0_300 = arith.constant 0 : index
    %263 = vector.load %arg10[%c0_299, %c0_300] : memref<512x1xf32, #tpu.memory_space<vmem>>, vector<512x1xf32>
    %cst_301 = arith.constant dense<0.000000e+00> : vector<2x1xf32>
    %264 = tpu.matmul %262, %263, %cst_301 {dimension_numbers = #tpu.dot_dimension_numbers<[1], [0], [0], [1], [0, 0, 1, 1], [], []>} : vector<2x512xf32>, vector<512x1xf32>, vector<2x1xf32> -> vector<2x1xf32>
    %c0_302 = arith.constant 0 : index
    %c0_303 = arith.constant 0 : index
    %265 = vector.load %arg11[%c0_302, %c0_303] : memref<1x1xf32, #tpu.memory_space<vmem>>, vector<1x1xf32>
    %266 = vector.broadcast %265 : vector<1x1xf32> to vector<2x1xf32>
    %267 = arith.addf %264, %266 : vector<2x1xf32>
    %c0_304 = arith.constant 0 : index
    %c0_305 = arith.constant 0 : index
    %268 = vector.load %arg12[%c0_304, %c0_305] : memref<2x1xf32, #tpu.memory_space<vmem>>, vector<2x1xf32>
    tpu.vector_store %arg12[%c0_304, %c0_305], %267 {strides = array<i32>} : memref<2x1xf32, #tpu.memory_space<vmem>>, vector<2x1xf32>,
    return
  }
  func.func @transform_0(%arg0: i32) -> (i32, i32) {
    %c0_i32 = arith.constant 0 : i32
    %c0_i32_0 = arith.constant 0 : i32
    return %arg0, %c0_i32 : i32, i32
  }
  func.func @transform_1(%arg0: i32) -> (i32, i32) {
    %c0_i32 = arith.constant 0 : i32
    %c0_i32_0 = arith.constant 0 : i32
    %c0_i32_1 = arith.constant 0 : i32
    return %c0_i32, %c0_i32_0 : i32, i32
  }
  func.func @transform_2(%arg0: i32) -> (i32, i32) {
    %c0_i32 = arith.constant 0 : i32
    %c0_i32_0 = arith.constant 0 : i32
    %c0_i32_1 = arith.constant 0 : i32
    return %c0_i32, %c0_i32_0 : i32, i32
  }
  func.func @transform_3(%arg0: i32) -> (i32, i32, i32) {
    %c0_i32 = arith.constant 0 : i32
    %c0_i32_0 = arith.constant 0 : i32
    %c0_i32_1 = arith.constant 0 : i32
    %c0_i32_2 = arith.constant 0 : i32
    return %c0_i32, %c0_i32_0, %c0_i32_1 : i32, i32, i32
  }
  func.func @transform_4(%arg0: i32) -> (i32, i32) {
    %c0_i32 = arith.constant 0 : i32
    %c0_i32_0 = arith.constant 0 : i32
    %c0_i32_1 = arith.constant 0 : i32
    return %c0_i32, %c0_i32_0 : i32, i32
  }
  func.func @transform_5(%arg0: i32) -> (i32, i32, i32) {
    %c0_i32 = arith.constant 0 : i32
    %c0_i32_0 = arith.constant 0 : i32
    %c0_i32_1 = arith.constant 0 : i32
    %c0_i32_2 = arith.constant 0 : i32
    return %c0_i32, %c0_i32_0, %c0_i32_1 : i32, i32, i32
  }
  func.func @transform_6(%arg0: i32) -> (i32, i32) {
    %c0_i32 = arith.constant 0 : i32
    %c0_i32_0 = arith.constant 0 : i32
    %c0_i32_1 = arith.constant 0 : i32
    return %c0_i32, %c0_i32_0 : i32, i32
  }
  func.func @transform_8(%arg0: i32) -> (i32, i32) {
    %c0_i32 = arith.constant 0 : i32
    %c0_i32_0 = arith.constant 0 : i32
    %c0_i32_1 = arith.constant 0 : i32
    return %c0_i32, %c0_i32_0 : i32, i32
  }
  func.func @transform_9(%arg0: i32) -> (i32, i32) {
    %c0_i32 = arith.constant 0 : i32
    %c0_i32_0 = arith.constant 0 : i32
    %c0_i32_1 = arith.constant 0 : i32
    return %c0_i32, %c0_i32_0 : i32, i32
  }
  func.func @transform_10(%arg0: i32) -> (i32, i32) {
    %c0_i32 = arith.constant 0 : i32
    %c0_i32_0 = arith.constant 0 : i32
    %c0_i32_1 = arith.constant 0 : i32
    return %c0_i32, %c0_i32_0 : i32, i32
  }
  func.func @transform_11(%arg0: i32) -> (i32, i32) {
    %c0_i32 = arith.constant 0 : i32
    %c0_i32_0 = arith.constant 0 : i32
    return %arg0, %c0_i32 : i32, i32
  }
}

</mosaic_0001>

<llo_original>
// kernel: forward.1
$region0: #{forward.1}
  #allocation0 [shape = 'u32[]', space=smem, size = 0x4, offset = 0x4, fixed_abs, tag = 'smem constant byte address 0x4 - core index']
  #allocation1 [shape = 'u32[72,128]{1,0:T(1,128)}', space=vmem, size = 0x9000, scoped, tag = 'internal scratch']
  #allocation2 [shape = 'f32[1800,128]{1,0:T(8,128)}', space=vmem, size = 0xe1000, scoped, tag = 'scratch operand']
  #allocation3 [shape = 'f32[1800,128]{1,0:T(8,128)}', space=vmem, size = 0xe1000, scoped, tag = 'scratch operand']
  #allocation4 [shape = 'f32[450,128]{1,0:T(8,128)}', space=vmem, size = 0x39000, scoped, tag = 'scratch operand']
  #allocation5 [shape = 'f32[72,128]{1,0:T(8,128)}', space=vmem, size = 0x9000, scoped, tag = 'scratch operand']
  #allocation6 [shape = 'f32[8,128]{1,0:T(8,128)}', space=vmem, size = 0x1000, scoped, tag = 'scratch operand']
  #allocation7 [shape = 'bf16[512,512]{1,0:T(8,128)(2,1)}', space=vmem, size = 0x80000, scoped, tag = 'scratch operand']
  #allocation8 [shape = 's32[1]{0}', space=sflag, size = 0x4, scoped, tag = 'scratch operand']
  #allocation9 [shape = 'f32[1,1]{1,0:T(1,128)S(1)}', space=vmem, size = 0x200, scoped, tag = 'scoped memory for forward.1']
  #allocation10 [shape = 's32[]', space=sflag, size = 0x4, offset = 0, fixed_abs, tag = 'sflag constant byte address 0x0 - dummy sync flag']
  %s0 = inlined_call_operand.vmem [shape: f32[1800,32], index: 0, kind: input, shape index: {}]
  %s1 = inlined_call_operand.vmem [shape: bf16[32,128], index: 1, kind: input, shape index: {}]
  %s2 = inlined_call_operand.vmem [shape: f32[1,128], index: 2, kind: input, shape index: {}]
  %s3 = inlined_call_operand.vmem [shape: bf16[9,128,128], index: 3, kind: input, shape index: {}]
  %s4 = inlined_call_operand.vmem [shape: f32[1,128], index: 4, kind: input, shape index: {}]
  %s5 = inlined_call_operand.vmem [shape: bf16[9,128,128], index: 5, kind: input, shape index: {}]
  %s6 = inlined_call_operand.vmem [shape: f32[1,128], index: 6, kind: input, shape index: {}]
  %s7 = inlined_call_operand.vmem [shape: bf16[512,512], index: 7, kind: input, shape index: {}]
  %s8 = inlined_call_operand.vmem [shape: f32[1,512], index: 8, kind: input, shape index: {}]
  %s9 = inlined_call_operand.vmem [shape: f32[512,1], index: 9, kind: input, shape index: {}]
  %s10 = inlined_call_operand.<no memory space> [shape: f32[1,1], index: 10, kind: input, shape index: {}]
  %s11 = inlined_call_operand.vmem [shape: f32[2,1], index: 11, kind: output, shape index: {}]
  %s12 = sld [smem:[#allocation0]]
  $region69: #{forward.1} parent=0
    _
  %s14 = ssub.s32 1, %s12
  %s15 = scalar_select 0, %s14, %s12
  %v16 = vstv %s10
  %17 = vst [vmem:[#allocation9] sm:$0x1] %v16
  // Predicated region
  $region2: #{forward.1} parent=0 // pred_check
    _
  $region3: #{forward.1} parent=0 // pred_check_branch
    %19 = sbr.rel (0) target = $region5
  $region4: #{forward.1} parent=0 // pred_region
    _
  $region5: #{forward.1} parent=0 // pred_fallthru
    _
  // Predicated region
  $region6: #{forward.1} parent=0 // pred_check
    _
  $region7: #{forward.1} parent=0 // pred_check_branch
    %21 = sbr.rel (0) target = $region9
  $region8: #{forward.1} parent=0 // pred_region
    _
  $region9: #{forward.1} parent=0 // pred_fallthru
    _
  // Predicated region
  $region10: #{forward.1} parent=0 // pred_check
    _
  $region11: #{forward.1} parent=0 // pred_check_branch
    %23 = sbr.rel (0) target = $region13
  $region12: #{forward.1} parent=0 // pred_region
    _
  $region13: #{forward.1} parent=0 // pred_fallthru
    _
  // Predicated region
  $region14: #{forward.1} parent=0 // pred_check
    _
  $region15: #{forward.1} parent=0 // pred_check_branch
    %25 = sbr.rel (0) target = $region17
  $region16: #{forward.1} parent=0 // pred_region
    _
  $region17: #{forward.1} parent=0 // pred_fallthru
    _
  // Predicated region
  $region18: #{forward.1} parent=0 // pred_check
    _
  $region19: #{forward.1} parent=0 // pred_check_branch
    %27 = sbr.rel (0) target = $region21
  $region20: #{forward.1} parent=0 // pred_region
    _
  $region21: #{forward.1} parent=0 // pred_fallthru
    _
  // Predicated region
  $region22: #{forward.1} parent=0 // pred_check
    _
  $region23: #{forward.1} parent=0 // pred_check_branch
    %29 = sbr.rel (0) target = $region25
  $region24: #{forward.1} parent=0 // pred_region
    _
  $region25: #{forward.1} parent=0 // pred_fallthru
    _
  // Predicated region
  $region26: #{forward.1} parent=0 // pred_check
    _
  $region27: #{forward.1} parent=0 // pred_check_branch
    %31 = sbr.rel (0) target = $region29
  $region28: #{forward.1} parent=0 // pred_region
    _
  $region29: #{forward.1} parent=0 // pred_fallthru
    _
  // Predicated region
  $region30: #{forward.1} parent=0 // pred_check
    _
  $region31: #{forward.1} parent=0 // pred_check_branch
    %33 = sbr.rel (0) target = $region33
  $region32: #{forward.1} parent=0 // pred_region
    _
  $region33: #{forward.1} parent=0 // pred_fallthru
    _
  // Predicated region
  $region34: #{forward.1} parent=0 // pred_check
    _
  $region35: #{forward.1} parent=0 // pred_check_branch
    %35 = sbr.rel (0) target = $region37
  $region36: #{forward.1} parent=0 // pred_region
    _
  $region37: #{forward.1} parent=0 // pred_fallthru
    _
  // Predicated region
  $region38: #{forward.1} parent=0 // pred_check
    _
  $region39: #{forward.1} parent=0 // pred_check_branch
    %37 = sbr.rel (0) target = $region41
  $region40: #{forward.1} parent=0 // pred_region
    _
  $region41: #{forward.1} parent=0 // pred_fallthru
    _
  // Predicated region
  $region42: #{forward.1} parent=0 // pred_check
    _
  $region43: #{forward.1} parent=0 // pred_check_branch
    %40 = sbr.rel (0) target = $region45
  $region44: #{forward.1} parent=0 // pred_region
    loop: start=0, step=1, limit=1
    $region46: #{forward.1} parent=44 // loop_pre_header
      _
    $region47: #{forward.1} parent=44 // loop_header
      %s42 = sphi 0, %s46
      %p43 = scmp.ge.s32.totalorder %s42, 1
      %s47 = sphi %s7, %s7
      %s48 = sphi [#allocation7], [#allocation7]
    $region48: #{forward.1} parent=44 // loop_header_branch
      %45 = sbr.rel (%p43) target = $region52
    $region49: #{forward.1} parent=44 // loop_body
      %v49 = vld [vmem:[%s47] sm:$0xff]
      %50 = vst [vmem:[%s48] sm:$0xff] %v49
      %v51 = vld [vmem:[%s47 + $0x8] sm:$0xff]
      %52 = vst [vmem:[%s48 + $0x8] sm:$0xff] %v51
      %v53 = vld [vmem:[%s47 + $0x10] sm:$0xff]
      %54 = vst [vmem:[%s48 + $0x10] sm:$0xff] %v53
      %v55 = vld [vmem:[%s47 + $0x18] sm:$0xff]
      %56 = vst [vmem:[%s48 + $0x18] sm:$0xff] %v55
      %v57 = vld [vmem:[%s47 + $0x20] sm:$0xff]
      %58 = vst [vmem:[%s48 + $0x20] sm:$0xff] %v57
      %v59 = vld [vmem:[%s47 + $0x28] sm:$0xff]
      %60 = vst [vmem:[%s48 + $0x28] sm:$0xff] %v59
      %v61 = vld [vmem:[%s47 + $0x30] sm:$0xff]
      %62 = vst [vmem:[%s48 + $0x30] sm:$0xff] %v61
      %v63 = vld [vmem:[%s47 + $0x38] sm:$0xff]
      %64 = vst [vmem:[%s48 + $0x38] sm:$0xff] %v63
      %v65 = vld [vmem:[%s47 + $0x40] sm:$0xff]
      %66 = vst [vmem:[%s48 + $0x40] sm:$0xff] %v65
      %v67 = vld [vmem:[%s47 + $0x48] sm:$0xff]
      %68 = vst [vmem:[%s48 + $0x48] sm:$0xff] %v67
      %v69 = vld [vmem:[%s47 + $0x50] sm:$0xff]
      %70 = vst [vmem:[%s48 + $0x50] sm:$0xff] %v69
      %v71 = vld [vmem:[%s47 + $0x58] sm:$0xff]
      %72 = vst [vmem:[%s48 + $0x58] sm:$0xff] %v71
      %v73 = vld [vmem:[%s47 + $0x60] sm:$0xff]
      %74 = vst [vmem:[%s48 + $0x60] sm:$0xff] %v73
      %v75 = vld [vmem:[%s47 + $0x68] sm:$0xff]
      %76 = vst [vmem:[%s48 + $0x68] sm:$0xff] %v75
      %v77 = vld [vmem:[%s47 + $0x70] sm:$0xff]
      %78 = vst [vmem:[%s48 + $0x70] sm:$0xff] %v77
      %v79 = vld [vmem:[%s47 + $0x78] sm:$0xff]
      %80 = vst [vmem:[%s48 + $0x78] sm:$0xff] %v79
      %v81 = vld [vmem:[%s47 + $0x80] sm:$0xff]
      %82 = vst [vmem:[%s48 + $0x80] sm:$0xff] %v81
      %v83 = vld [vmem:[%s47 + $0x88] sm:$0xff]
      %84 = vst [vmem:[%s48 + $0x88] sm:$0xff] %v83
      %v85 = vld [vmem:[%s47 + $0x90] sm:$0xff]
      %86 = vst [vmem:[%s48 + $0x90] sm:$0xff] %v85
      %v87 = vld [vmem:[%s47 + $0x98] sm:$0xff]
      %88 = vst [vmem:[%s48 + $0x98] sm:$0xff] %v87
      %v89 = vld [vmem:[%s47 + $0xa0] sm:$0xff]
      %90 = vst [vmem:[%s48 + $0xa0] sm:$0xff] %v89
      %v91 = vld [vmem:[%s47 + $0xa8] sm:$0xff]
      %92 = vst [vmem:[%s48 + $0xa8] sm:$0xff] %v91
      %v93 = vld [vmem:[%s47 + $0xb0] sm:$0xff]
      %94 = vst [vmem:[%s48 + $0xb0] sm:$0xff] %v93
      %v95 = vld [vmem:[%s47 + $0xb8] sm:$0xff]
      %96 = vst [vmem:[%s48 + $0xb8] sm:$0xff] %v95
      %v97 = vld [vmem:[%s47 + $0xc0] sm:$0xff]
      %98 = vst [vmem:[%s48 + $0xc0] sm:$0xff] %v97
      %v99 = vld [vmem:[%s47 + $0xc8] sm:$0xff]
      %100 = vst [vmem:[%s48 + $0xc8] sm:$0xff] %v99
      %v101 = vld [vmem:[%s47 + $0xd0] sm:$0xff]
      %102 = vst [vmem:[%s48 + $0xd0] sm:$0xff] %v101
      %v103 = vld [vmem:[%s47 + $0xd8] sm:$0xff]
      %104 = vst [vmem:[%s48 + $0xd8] sm:$0xff] %v103
      %v105 = vld [vmem:[%s47 + $0xe0] sm:$0xff]
      %106 = vst [vmem:[%s48 + $0xe0] sm:$0xff] %v105
      %v107 = vld [vmem:[%s47 + $0xe8] sm:$0xff]
      %108 = vst [vmem:[%s48 + $0xe8] sm:$0xff] %v107
      %v109 = vld [vmem:[%s47 + $0xf0] sm:$0xff]
      %110 = vst [vmem:[%s48 + $0xf0] sm:$0xff] %v109
      %v111 = vld [vmem:[%s47 + $0xf8] sm:$0xff]
      %112 = vst [vmem:[%s48 + $0xf8] sm:$0xff] %v111
      %v113 = vld [vmem:[%s47 + $0x100] sm:$0xff]
      %114 = vst [vmem:[%s48 + $0x100] sm:$0xff] %v113
      %v115 = vld [vmem:[%s47 + $0x108] sm:$0xff]
      %116 = vst [vmem:[%s48 + $0x108] sm:$0xff] %v115
      %v117 = vld [vmem:[%s47 + $0x110] sm:$0xff]
      %118 = vst [vmem:[%s48 + $0x110] sm:$0xff] %v117
      %v119 = vld [vmem:[%s47 + $0x118] sm:$0xff]
      %120 = vst [vmem:[%s48 + $0x118] sm:$0xff] %v119
      %v121 = vld [vmem:[%s47 + $0x120] sm:$0xff]
      %122 = vst [vmem:[%s48 + $0x120] sm:$0xff] %v121
      %v123 = vld [vmem:[%s47 + $0x128] sm:$0xff]
      %124 = vst [vmem:[%s48 + $0x128] sm:$0xff] %v123
      %v125 = vld [vmem:[%s47 + $0x130] sm:$0xff]
      %126 = vst [vmem:[%s48 + $0x130] sm:$0xff] %v125
      %v127 = vld [vmem:[%s47 + $0x138] sm:$0xff]
      %128 = vst [vmem:[%s48 + $0x138] sm:$0xff] %v127
      %v129 = vld [vmem:[%s47 + $0x140] sm:$0xff]
      %130 = vst [vmem:[%s48 + $0x140] sm:$0xff] %v129
      %v131 = vld [vmem:[%s47 + $0x148] sm:$0xff]
      %132 = vst [vmem:[%s48 + $0x148] sm:$0xff] %v131
      %v133 = vld [vmem:[%s47 + $0x150] sm:$0xff]
      %134 = vst [vmem:[%s48 + $0x150] sm:$0xff] %v133
      %v135 = vld [vmem:[%s47 + $0x158] sm:$0xff]
      %136 = vst [vmem:[%s48 + $0x158] sm:$0xff] %v135
      %v137 = vld [vmem:[%s47 + $0x160] sm:$0xff]
      %138 = vst [vmem:[%s48 + $0x160] sm:$0xff] %v137
      %v139 = vld [vmem:[%s47 + $0x168] sm:$0xff]
      %140 = vst [vmem:[%s48 + $0x168] sm:$0xff] %v139
      %v141 = vld [vmem:[%s47 + $0x170] sm:$0xff]
      %142 = vst [vmem:[%s48 + $0x170] sm:$0xff] %v141
      %v143 = vld [vmem:[%s47 + $0x178] sm:$0xff]
      %144 = vst [vmem:[%s48 + $0x178] sm:$0xff] %v143
      %v145 = vld [vmem:[%s47 + $0x180] sm:$0xff]
      %146 = vst [vmem:[%s48 + $0x180] sm:$0xff] %v145
      %v147 = vld [vmem:[%s47 + $0x188] sm:$0xff]
      %148 = vst [vmem:[%s48 + $0x188] sm:$0xff] %v147
      %v149 = vld [vmem:[%s47 + $0x190] sm:$0xff]
      %150 = vst [vmem:[%s48 + $0x190] sm:$0xff] %v149
      %v151 = vld [vmem:[%s47 + $0x198] sm:$0xff]
      %152 = vst [vmem:[%s48 + $0x198] sm:$0xff] %v151
      %v153 = vld [vmem:[%s47 + $0x1a0] sm:$0xff]
      %154 = vst [vmem:[%s48 + $0x1a0] sm:$0xff] %v153
      %v155 = vld [vmem:[%s47 + $0x1a8] sm:$0xff]
      %156 = vst [vmem:[%s48 + $0x1a8] sm:$0xff] %v155
      %v157 = vld [vmem:[%s47 + $0x1b0] sm:$0xff]
      %158 = vst [vmem:[%s48 + $0x1b0] sm:$0xff] %v157
      %v159 = vld [vmem:[%s47 + $0x1b8] sm:$0xff]
      %160 = vst [vmem:[%s48 + $0x1b8] sm:$0xff] %v159
      %v161 = vld [vmem:[%s47 + $0x1c0] sm:$0xff]
      %162 = vst [vmem:[%s48 + $0x1c0] sm:$0xff] %v161
      %v163 = vld [vmem:[%s47 + $0x1c8] sm:$0xff]
      %164 = vst [vmem:[%s48 + $0x1c8] sm:$0xff] %v163
      %v165 = vld [vmem:[%s47 + $0x1d0] sm:$0xff]
      %166 = vst [vmem:[%s48 + $0x1d0] sm:$0xff] %v165
      %v167 = vld [vmem:[%s47 + $0x1d8] sm:$0xff]
      %168 = vst [vmem:[%s48 + $0x1d8] sm:$0xff] %v167
      %v169 = vld [vmem:[%s47 + $0x1e0] sm:$0xff]
      %170 = vst [vmem:[%s48 + $0x1e0] sm:$0xff] %v169
      %v171 = vld [vmem:[%s47 + $0x1e8] sm:$0xff]
      %172 = vst [vmem:[%s48 + $0x1e8] sm:$0xff] %v171
      %v173 = vld [vmem:[%s47 + $0x1f0] sm:$0xff]
      %174 = vst [vmem:[%s48 + $0x1f0] sm:$0xff] %v173
      %v175 = vld [vmem:[%s47 + $0x1f8] sm:$0xff]
      %176 = vst [vmem:[%s48 + $0x1f8] sm:$0xff] %v175
      %v177 = vld [vmem:[%s47 + $0x200] sm:$0xff]
      %178 = vst [vmem:[%s48 + $0x200] sm:$0xff] %v177
      %v179 = vld [vmem:[%s47 + $0x208] sm:$0xff]
      %180 = vst [vmem:[%s48 + $0x208] sm:$0xff] %v179
      %v181 = vld [vmem:[%s47 + $0x210] sm:$0xff]
      %182 = vst [vmem:[%s48 + $0x210] sm:$0xff] %v181
      %v183 = vld [vmem:[%s47 + $0x218] sm:$0xff]
      %184 = vst [vmem:[%s48 + $0x218] sm:$0xff] %v183
      %v185 = vld [vmem:[%s47 + $0x220] sm:$0xff]
      %186 = vst [vmem:[%s48 + $0x220] sm:$0xff] %v185
      %v187 = vld [vmem:[%s47 + $0x228] sm:$0xff]
      %188 = vst [vmem:[%s48 + $0x228] sm:$0xff] %v187
      %v189 = vld [vmem:[%s47 + $0x230] sm:$0xff]
      %190 = vst [vmem:[%s48 + $0x230] sm:$0xff] %v189
      %v191 = vld [vmem:[%s47 + $0x238] sm:$0xff]
      %192 = vst [vmem:[%s48 + $0x238] sm:$0xff] %v191
      %v193 = vld [vmem:[%s47 + $0x240] sm:$0xff]
      %194 = vst [vmem:[%s48 + $0x240] sm:$0xff] %v193
      %v195 = vld [vmem:[%s47 + $0x248] sm:$0xff]
      %196 = vst [vmem:[%s48 + $0x248] sm:$0xff] %v195
      %v197 = vld [vmem:[%s47 + $0x250] sm:$0xff]
      %198 = vst [vmem:[%s48 + $0x250] sm:$0xff] %v197
      %v199 = vld [vmem:[%s47 + $0x258] sm:$0xff]
      %200 = vst [vmem:[%s48 + $0x258] sm:$0xff] %v199
      %v201 = vld [vmem:[%s47 + $0x260] sm:$0xff]
      %202 = vst [vmem:[%s48 + $0x260] sm:$0xff] %v201
      %v203 = vld [vmem:[%s47 + $0x268] sm:$0xff]
      %204 = vst [vmem:[%s48 + $0x268] sm:$0xff] %v203
      %v205 = vld [vmem:[%s47 + $0x270] sm:$0xff]
      %206 = vst [vmem:[%s48 + $0x270] sm:$0xff] %v205
      %v207 = vld [vmem:[%s47 + $0x278] sm:$0xff]
      %208 = vst [vmem:[%s48 + $0x278] sm:$0xff] %v207
      %v209 = vld [vmem:[%s47 + $0x280] sm:$0xff]
      %210 = vst [vmem:[%s48 + $0x280] sm:$0xff] %v209
      %v211 = vld [vmem:[%s47 + $0x288] sm:$0xff]
      %212 = vst [vmem:[%s48 + $0x288] sm:$0xff] %v211
      %v213 = vld [vmem:[%s47 + $0x290] sm:$0xff]
      %214 = vst [vmem:[%s48 + $0x290] sm:$0xff] %v213
      %v215 = vld [vmem:[%s47 + $0x298] sm:$0xff]
      %216 = vst [vmem:[%s48 + $0x298] sm:$0xff] %v215
      %v217 = vld [vmem:[%s47 + $0x2a0] sm:$0xff]
      %218 = vst [vmem:[%s48 + $0x2a0] sm:$0xff] %v217
      %v219 = vld [vmem:[%s47 + $0x2a8] sm:$0xff]
      %220 = vst [vmem:[%s48 + $0x2a8] sm:$0xff] %v219
      %v221 = vld [vmem:[%s47 + $0x2b0] sm:$0xff]
      %222 = vst [vmem:[%s48 + $0x2b0] sm:$0xff] %v221
      %v223 = vld [vmem:[%s47 + $0x2b8] sm:$0xff]
      %224 = vst [vmem:[%s48 + $0x2b8] sm:$0xff] %v223
      %v225 = vld [vmem:[%s47 + $0x2c0] sm:$0xff]
      %226 = vst [vmem:[%s48 + $0x2c0] sm:$0xff] %v225
      %v227 = vld [vmem:[%s47 + $0x2c8] sm:$0xff]
      %228 = vst [vmem:[%s48 + $0x2c8] sm:$0xff] %v227
      %v229 = vld [vmem:[%s47 + $0x2d0] sm:$0xff]
      %230 = vst [vmem:[%s48 + $0x2d0] sm:$0xff] %v229
      %v231 = vld [vmem:[%s47 + $0x2d8] sm:$0xff]
      %232 = vst [vmem:[%s48 + $0x2d8] sm:$0xff] %v231
      %v233 = vld [vmem:[%s47 + $0x2e0] sm:$0xff]
      %234 = vst [vmem:[%s48 + $0x2e0] sm:$0xff] %v233
      %v235 = vld [vmem:[%s47 + $0x2e8] sm:$0xff]
      %236 = vst [vmem:[%s48 + $0x2e8] sm:$0xff] %v235
      %v237 = vld [vmem:[%s47 + $0x2f0] sm:$0xff]
      %238 = vst [vmem:[%s48 + $0x2f0] sm:$0xff] %v237
      %v239 = vld [vmem:[%s47 + $0x2f8] sm:$0xff]
      %240 = vst [vmem:[%s48 + $0x2f8] sm:$0xff] %v239
      %v241 = vld [vmem:[%s47 + $0x300] sm:$0xff]
      %242 = vst [vmem:[%s48 + $0x300] sm:$0xff] %v241
      %v243 = vld [vmem:[%s47 + $0x308] sm:$0xff]
      %244 = vst [vmem:[%s48 + $0x308] sm:$0xff] %v243
      %v245 = vld [vmem:[%s47 + $0x310] sm:$0xff]
      %246 = vst [vmem:[%s48 + $0x310] sm:$0xff] %v245
      %v247 = vld [vmem:[%s47 + $0x318] sm:$0xff]
      %248 = vst [vmem:[%s48 + $0x318] sm:$0xff] %v247
      %v249 = vld [vmem:[%s47 + $0x320] sm:$0xff]
      %250 = vst [vmem:[%s48 + $0x320] sm:$0xff] %v249
      %v251 = vld [vmem:[%s47 + $0x328] sm:$0xff]
      %252 = vst [vmem:[%s48 + $0x328] sm:$0xff] %v251
      %v253 = vld [vmem:[%s47 + $0x330] sm:$0xff]
      %254 = vst [vmem:[%s48 + $0x330] sm:$0xff] %v253
      %v255 = vld [vmem:[%s47 + $0x338] sm:$0xff]
      %256 = vst [vmem:[%s48 + $0x338] sm:$0xff] %v255
      %v257 = vld [vmem:[%s47 + $0x340] sm:$0xff]
      %258 = vst [vmem:[%s48 + $0x340] sm:$0xff] %v257
      %v259 = vld [vmem:[%s47 + $0x348] sm:$0xff]
      %260 = vst [vmem:[%s48 + $0x348] sm:$0xff] %v259
      %v261 = vld [vmem:[%s47 + $0x350] sm:$0xff]
      %262 = vst [vmem:[%s48 + $0x350] sm:$0xff] %v261
      %v263 = vld [vmem:[%s47 + $0x358] sm:$0xff]
      %264 = vst [vmem:[%s48 + $0x358] sm:$0xff] %v263
      %v265 = vld [vmem:[%s47 + $0x360] sm:$0xff]
      %266 = vst [vmem:[%s48 + $0x360] sm:$0xff] %v265
      %v267 = vld [vmem:[%s47 + $0x368] sm:$0xff]
      %268 = vst [vmem:[%s48 + $0x368] sm:$0xff] %v267
      %v269 = vld [vmem:[%s47 + $0x370] sm:$0xff]
      %270 = vst [vmem:[%s48 + $0x370] sm:$0xff] %v269
      %v271 = vld [vmem:[%s47 + $0x378] sm:$0xff]
      %272 = vst [vmem:[%s48 + $0x378] sm:$0xff] %v271
      %v273 = vld [vmem:[%s47 + $0x380] sm:$0xff]
      %274 = vst [vmem:[%s48 + $0x380] sm:$0xff] %v273
      %v275 = vld [vmem:[%s47 + $0x388] sm:$0xff]
      %276 = vst [vmem:[%s48 + $0x388] sm:$0xff] %v275
      %v277 = vld [vmem:[%s47 + $0x390] sm:$0xff]
      %278 = vst [vmem:[%s48 + $0x390] sm:$0xff] %v277
      %v279 = vld [vmem:[%s47 + $0x398] sm:$0xff]
      %280 = vst [vmem:[%s48 + $0x398] sm:$0xff] %v279
      %v281 = vld [vmem:[%s47 + $0x3a0] sm:$0xff]
      %282 = vst [vmem:[%s48 + $0x3a0] sm:$0xff] %v281
      %v283 = vld [vmem:[%s47 + $0x3a8] sm:$0xff]
      %284 = vst [vmem:[%s48 + $0x3a8] sm:$0xff] %v283
      %v285 = vld [vmem:[%s47 + $0x3b0] sm:$0xff]
      %286 = vst [vmem:[%s48 + $0x3b0] sm:$0xff] %v285
      %v287 = vld [vmem:[%s47 + $0x3b8] sm:$0xff]
      %288 = vst [vmem:[%s48 + $0x3b8] sm:$0xff] %v287
      %v289 = vld [vmem:[%s47 + $0x3c0] sm:$0xff]
      %290 = vst [vmem:[%s48 + $0x3c0] sm:$0xff] %v289
      %v291 = vld [vmem:[%s47 + $0x3c8] sm:$0xff]
      %292 = vst [vmem:[%s48 + $0x3c8] sm:$0xff] %v291
      %v293 = vld [vmem:[%s47 + $0x3d0] sm:$0xff]
      %294 = vst [vmem:[%s48 + $0x3d0] sm:$0xff] %v293
      %v295 = vld [vmem:[%s47 + $0x3d8] sm:$0xff]
      %296 = vst [vmem:[%s48 + $0x3d8] sm:$0xff] %v295
      %v297 = vld [vmem:[%s47 + $0x3e0] sm:$0xff]
      %298 = vst [vmem:[%s48 + $0x3e0] sm:$0xff] %v297
      %v299 = vld [vmem:[%s47 + $0x3e8] sm:$0xff]
      %300 = vst [vmem:[%s48 + $0x3e8] sm:$0xff] %v299
      %v301 = vld [vmem:[%s47 + $0x3f0] sm:$0xff]
      %302 = vst [vmem:[%s48 + $0x3f0] sm:$0xff] %v301
      %v303 = vld [vmem:[%s47 + $0x3f8] sm:$0xff]
      %304 = vst [vmem:[%s48 + $0x3f8] sm:$0xff] %v303
    $region50: #{forward.1} parent=44 // loop_footer
      %s46 = sadd.s32 1, %s42
    $region51: #{forward.1} parent=44 // loop_footer_branch
      %41 = sbr.rel target = $region47
    $region52: #{forward.1} parent=44 // loop_exit
      _
  $region45: #{forward.1} parent=0 // pred_fallthru
    _
  // Predicated region
  $region53: #{forward.1} parent=0 // pred_check
    _
  $region54: #{forward.1} parent=0 // pred_check_branch
    %306 = sbr.rel target = $region56
  $region55: #{forward.1} parent=0 // pred_region
    _
  $region56: #{forward.1} parent=0 // pred_fallthru
    _
  // Predicated region
  $region57: #{forward.1} parent=0 // pred_check
    _
  $region58: #{forward.1} parent=0 // pred_check_branch
    %309 = sbr.rel (0) target = $region60
  $region59: #{forward.1} parent=0 // pred_region
    %310 = vsyncadd [#allocation8], 16384
  $region60: #{forward.1} parent=0 // pred_fallthru
    _
  %v311 = vld [vmem:[%s0] sm:$0xff]
  %v312 = vld [vmem:[%s0 + $0x8] sm:$0xff]
  %v313 = vld [vmem:[%s0 + $0x10] sm:$0xff]
  %v314 = vld [vmem:[%s0 + $0x18] sm:$0xff]
  %v315 = vld [vmem:[%s0 + $0x20] sm:$0xff]
  %v316 = vld [vmem:[%s0 + $0x28] sm:$0xff]
  %v317 = vld [vmem:[%s0 + $0x30] sm:$0xff]
  %v318 = vld [vmem:[%s0 + $0x38] sm:$0xff]
  %v319 = vld [vmem:[%s0 + $0x40] sm:$0xff]
  %v320 = vld [vmem:[%s0 + $0x48] sm:$0xff]
  %v321 = vld [vmem:[%s0 + $0x50] sm:$0xff]
  %v322 = vld [vmem:[%s0 + $0x58] sm:$0xff]
  %v323 = vld [vmem:[%s0 + $0x60] sm:$0xff]
  %v324 = vld [vmem:[%s0 + $0x68] sm:$0xff]
  %v325 = vld [vmem:[%s0 + $0x70] sm:$0xff]
  %v326 = vld [vmem:[%s0 + $0x78] sm:$0xff]
  %v327 = vld [vmem:[%s0 + $0x80] sm:$0xff]
  %v328 = vld [vmem:[%s0 + $0x88] sm:$0xff]
  %v329 = vld [vmem:[%s0 + $0x90] sm:$0xff]
  %v330 = vld [vmem:[%s0 + $0x98] sm:$0xff]
  %v331 = vld [vmem:[%s0 + $0xa0] sm:$0xff]
  %v332 = vld [vmem:[%s0 + $0xa8] sm:$0xff]
  %v333 = vld [vmem:[%s0 + $0xb0] sm:$0xff]
  %v334 = vld [vmem:[%s0 + $0xb8] sm:$0xff]
  %v335 = vld [vmem:[%s0 + $0xc0] sm:$0xff]
  %v336 = vld [vmem:[%s0 + $0xc8] sm:$0xff]
  %v337 = vld [vmem:[%s0 + $0xd0] sm:$0xff]
  %v338 = vld [vmem:[%s0 + $0xd8] sm:$0xff]
  %v339 = vld [vmem:[%s0 + $0xe0] sm:$0xff]
  %v340 = vld [vmem:[%s0 + $0xe8] sm:$0xff]
  %v341 = vld [vmem:[%s0 + $0xf0] sm:$0xff]
  %v342 = vld [vmem:[%s0 + $0xf8] sm:$0xff]
  %v343 = vld [vmem:[%s0 + $0x100] sm:$0xff]
  %v344 = vld [vmem:[%s0 + $0x108] sm:$0xff]
  %v345 = vld [vmem:[%s0 + $0x110] sm:$0xff]
  %v346 = vld [vmem:[%s0 + $0x118] sm:$0xff]
  %v347 = vld [vmem:[%s0 + $0x120] sm:$0xff]
  %v348 = vld [vmem:[%s0 + $0x128] sm:$0xff]
  %v349 = vld [vmem:[%s0 + $0x130] sm:$0xff]
  %v350 = vld [vmem:[%s0 + $0x138] sm:$0xff]
  %v351 = vld [vmem:[%s0 + $0x140] sm:$0xff]
  %v352 = vld [vmem:[%s0 + $0x148] sm:$0xff]
  %v353 = vld [vmem:[%s0 + $0x150] sm:$0xff]
  %v354 = vld [vmem:[%s0 + $0x158] sm:$0xff]
  %v355 = vld [vmem:[%s0 + $0x160] sm:$0xff]
  %v356 = vld [vmem:[%s0 + $0x168] sm:$0xff]
  %v357 = vld [vmem:[%s0 + $0x170] sm:$0xff]
  %v358 = vld [vmem:[%s0 + $0x178] sm:$0xff]
  %v359 = vld [vmem:[%s0 + $0x180] sm:$0xff]
  %v360 = vld [vmem:[%s0 + $0x188] sm:$0xff]
  %v361 = vld [vmem:[%s0 + $0x190] sm:$0xff]
  %v362 = vld [vmem:[%s0 + $0x198] sm:$0xff]
  %v363 = vld [vmem:[%s0 + $0x1a0] sm:$0xff]
  %v364 = vld [vmem:[%s0 + $0x1a8] sm:$0xff]
  %v365 = vld [vmem:[%s0 + $0x1b0] sm:$0xff]
  %v366 = vld [vmem:[%s0 + $0x1b8] sm:$0xff]
  %v367 = vld [vmem:[%s0 + $0x1c0] sm:$0xff]
  %v368 = vld [vmem:[%s0 + $0x1c8] sm:$0xff]
  %v369 = vld [vmem:[%s0 + $0x1d0] sm:$0xff]
  %v370 = vld [vmem:[%s0 + $0x1d8] sm:$0xff]
  %v371 = vld [vmem:[%s0 + $0x1e0] sm:$0xff]
  %v372 = vld [vmem:[%s0 + $0x1e8] sm:$0xff]
  %v373 = vld [vmem:[%s0 + $0x1f0] sm:$0xff]
  %v374 = vld [vmem:[%s0 + $0x1f8] sm:$0xff]
  %v375 = vld [vmem:[%s0 + $0x200] sm:$0xff]
  %v376 = vld [vmem:[%s0 + $0x208] sm:$0xff]
  %v377 = vld [vmem:[%s0 + $0x210] sm:$0xff]
  %v378 = vld [vmem:[%s0 + $0x218] sm:$0xff]
  %v379 = vld [vmem:[%s0 + $0x220] sm:$0xff]
  %v380 = vld [vmem:[%s0 + $0x228] sm:$0xff]
  %v381 = vld [vmem:[%s0 + $0x230] sm:$0xff]
  %v382 = vld [vmem:[%s0 + $0x238] sm:$0xff]
  %v383 = vld [vmem:[%s0 + $0x240] sm:$0xff]
  %v384 = vld [vmem:[%s0 + $0x248] sm:$0xff]
  %v385 = vld [vmem:[%s0 + $0x250] sm:$0xff]
  %v386 = vld [vmem:[%s0 + $0x258] sm:$0xff]
  %v387 = vld [vmem:[%s0 + $0x260] sm:$0xff]
  %v388 = vld [vmem:[%s0 + $0x268] sm:$0xff]
  %v389 = vld [vmem:[%s0 + $0x270] sm:$0xff]
  %v390 = vld [vmem:[%s0 + $0x278] sm:$0xff]
  %v391 = vld [vmem:[%s0 + $0x280] sm:$0xff]
  %v392 = vld [vmem:[%s0 + $0x288] sm:$0xff]
  %v393 = vld [vmem:[%s0 + $0x290] sm:$0xff]
  %v394 = vld [vmem:[%s0 + $0x298] sm:$0xff]
  %v395 = vld [vmem:[%s0 + $0x2a0] sm:$0xff]
  %v396 = vld [vmem:[%s0 + $0x2a8] sm:$0xff]
  %v397 = vld [vmem:[%s0 + $0x2b0] sm:$0xff]
  %v398 = vld [vmem:[%s0 + $0x2b8] sm:$0xff]
  %v399 = vld [vmem:[%s0 + $0x2c0] sm:$0xff]
  %v400 = vld [vmem:[%s0 + $0x2c8] sm:$0xff]
  %v401 = vld [vmem:[%s0 + $0x2d0] sm:$0xff]
  %v402 = vld [vmem:[%s0 + $0x2d8] sm:$0xff]
  %v403 = vld [vmem:[%s0 + $0x2e0] sm:$0xff]
  %v404 = vld [vmem:[%s0 + $0x2e8] sm:$0xff]
  %v405 = vld [vmem:[%s0 + $0x2f0] sm:$0xff]
  %v406 = vld [vmem:[%s0 + $0x2f8] sm:$0xff]
  %v407 = vld [vmem:[%s0 + $0x300] sm:$0xff]
  %v408 = vld [vmem:[%s0 + $0x308] sm:$0xff]
  %v409 = vld [vmem:[%s0 + $0x310] sm:$0xff]
  %v410 = vld [vmem:[%s0 + $0x318] sm:$0xff]
  %v411 = vld [vmem:[%s0 + $0x320] sm:$0xff]
  %v412 = vld [vmem:[%s0 + $0x328] sm:$0xff]
  %v413 = vld [vmem:[%s0 + $0x330] sm:$0xff]
  %v414 = vld [vmem:[%s0 + $0x338] sm:$0xff]
  %v415 = vld [vmem:[%s0 + $0x340] sm:$0xff]
  %v416 = vld [vmem:[%s0 + $0x348] sm:$0xff]
  %v417 = vld [vmem:[%s0 + $0x350] sm:$0xff]
  %v418 = vld [vmem:[%s0 + $0x358] sm:$0xff]
  %v419 = vld [vmem:[%s0 + $0x360] sm:$0xff]
  %v420 = vld [vmem:[%s0 + $0x368] sm:$0xff]
  %v421 = vld [vmem:[%s0 + $0x370] sm:$0xff]
  %v422 = vld [vmem:[%s0 + $0x378] sm:$0xff]
  %v423 = vld [vmem:[%s0 + $0x380] sm:$0xff]
  %v424 = vld [vmem:[%s0 + $0x388] sm:$0xff]
  %v425 = vld [vmem:[%s0 + $0x390] sm:$0xff]
  %v426 = vld [vmem:[%s0 + $0x398] sm:$0xff]
  %v427 = vld [vmem:[%s0 + $0x3a0] sm:$0xff]
  %v428 = vld [vmem:[%s0 + $0x3a8] sm:$0xff]
  %v429 = vld [vmem:[%s0 + $0x3b0] sm:$0xff]
  %v430 = vld [vmem:[%s0 + $0x3b8] sm:$0xff]
  %v431 = vld [vmem:[%s0 + $0x3c0] sm:$0xff]
  %v432 = vld [vmem:[%s0 + $0x3c8] sm:$0xff]
  %v433 = vld [vmem:[%s0 + $0x3d0] sm:$0xff]
  %v434 = vld [vmem:[%s0 + $0x3d8] sm:$0xff]
  %v435 = vld [vmem:[%s0 + $0x3e0] sm:$0xff]
  %v436 = vld [vmem:[%s0 + $0x3e8] sm:$0xff]
  %v437 = vld [vmem:[%s0 + $0x3f0] sm:$0xff]
  %v438 = vld [vmem:[%s0 + $0x3f8] sm:$0xff]
  %v439 = vld [vmem:[%s0 + $0x400] sm:$0xff]
  %v440 = vld [vmem:[%s0 + $0x408] sm:$0xff]
  %v441 = vld [vmem:[%s0 + $0x410] sm:$0xff]
  %v442 = vld [vmem:[%s0 + $0x418] sm:$0xff]
  %v443 = vld [vmem:[%s0 + $0x420] sm:$0xff]
  %v444 = vld [vmem:[%s0 + $0x428] sm:$0xff]
  %v445 = vld [vmem:[%s0 + $0x430] sm:$0xff]
  %v446 = vld [vmem:[%s0 + $0x438] sm:$0xff]
  %v447 = vld [vmem:[%s0 + $0x440] sm:$0xff]
  %v448 = vld [vmem:[%s0 + $0x448] sm:$0xff]
  %v449 = vld [vmem:[%s0 + $0x450] sm:$0xff]
  %v450 = vld [vmem:[%s0 + $0x458] sm:$0xff]
  %v451 = vld [vmem:[%s0 + $0x460] sm:$0xff]
  %v452 = vld [vmem:[%s0 + $0x468] sm:$0xff]
  %v453 = vld [vmem:[%s0 + $0x470] sm:$0xff]
  %v454 = vld [vmem:[%s0 + $0x478] sm:$0xff]
  %v455 = vld [vmem:[%s0 + $0x480] sm:$0xff]
  %v456 = vld [vmem:[%s0 + $0x488] sm:$0xff]
  %v457 = vld [vmem:[%s0 + $0x490] sm:$0xff]
  %v458 = vld [vmem:[%s0 + $0x498] sm:$0xff]
  %v459 = vld [vmem:[%s0 + $0x4a0] sm:$0xff]
  %v460 = vld [vmem:[%s0 + $0x4a8] sm:$0xff]
  %v461 = vld [vmem:[%s0 + $0x4b0] sm:$0xff]
  %v462 = vld [vmem:[%s0 + $0x4b8] sm:$0xff]
  %v463 = vld [vmem:[%s0 + $0x4c0] sm:$0xff]
  %v464 = vld [vmem:[%s0 + $0x4c8] sm:$0xff]
  %v465 = vld [vmem:[%s0 + $0x4d0] sm:$0xff]
  %v466 = vld [vmem:[%s0 + $0x4d8] sm:$0xff]
  %v467 = vld [vmem:[%s0 + $0x4e0] sm:$0xff]
  %v468 = vld [vmem:[%s0 + $0x4e8] sm:$0xff]
  %v469 = vld [vmem:[%s0 + $0x4f0] sm:$0xff]
  %v470 = vld [vmem:[%s0 + $0x4f8] sm:$0xff]
  %v471 = vld [vmem:[%s0 + $0x500] sm:$0xff]
  %v472 = vld [vmem:[%s0 + $0x508] sm:$0xff]
  %v473 = vld [vmem:[%s0 + $0x510] sm:$0xff]
  %v474 = vld [vmem:[%s0 + $0x518] sm:$0xff]
  %v475 = vld [vmem:[%s0 + $0x520] sm:$0xff]
  %v476 = vld [vmem:[%s0 + $0x528] sm:$0xff]
  %v477 = vld [vmem:[%s0 + $0x530] sm:$0xff]
  %v478 = vld [vmem:[%s0 + $0x538] sm:$0xff]
  %v479 = vld [vmem:[%s0 + $0x540] sm:$0xff]
  %v480 = vld [vmem:[%s0 + $0x548] sm:$0xff]
  %v481 = vld [vmem:[%s0 + $0x550] sm:$0xff]
  %v482 = vld [vmem:[%s0 + $0x558] sm:$0xff]
  %v483 = vld [vmem:[%s0 + $0x560] sm:$0xff]
  %v484 = vld [vmem:[%s0 + $0x568] sm:$0xff]
  %v485 = vld [vmem:[%s0 + $0x570] sm:$0xff]
  %v486 = vld [vmem:[%s0 + $0x578] sm:$0xff]
  %v487 = vld [vmem:[%s0 + $0x580] sm:$0xff]
  %v488 = vld [vmem:[%s0 + $0x588] sm:$0xff]
  %v489 = vld [vmem:[%s0 + $0x590] sm:$0xff]
  %v490 = vld [vmem:[%s0 + $0x598] sm:$0xff]
  %v491 = vld [vmem:[%s0 + $0x5a0] sm:$0xff]
  %v492 = vld [vmem:[%s0 + $0x5a8] sm:$0xff]
  %v493 = vld [vmem:[%s0 + $0x5b0] sm:$0xff]
  %v494 = vld [vmem:[%s0 + $0x5b8] sm:$0xff]
  %v495 = vld [vmem:[%s0 + $0x5c0] sm:$0xff]
  %v496 = vld [vmem:[%s0 + $0x5c8] sm:$0xff]
  %v497 = vld [vmem:[%s0 + $0x5d0] sm:$0xff]
  %v498 = vld [vmem:[%s0 + $0x5d8] sm:$0xff]
  %v499 = vld [vmem:[%s0 + $0x5e0] sm:$0xff]
  %v500 = vld [vmem:[%s0 + $0x5e8] sm:$0xff]
  %v501 = vld [vmem:[%s0 + $0x5f0] sm:$0xff]
  %v502 = vld [vmem:[%s0 + $0x5f8] sm:$0xff]
  %v503 = vld [vmem:[%s0 + $0x600] sm:$0xff]
  %v504 = vld [vmem:[%s0 + $0x608] sm:$0xff]
  %v505 = vld [vmem:[%s0 + $0x610] sm:$0xff]
  %v506 = vld [vmem:[%s0 + $0x618] sm:$0xff]
  %v507 = vld [vmem:[%s0 + $0x620] sm:$0xff]
  %v508 = vld [vmem:[%s0 + $0x628] sm:$0xff]
  %v509 = vld [vmem:[%s0 + $0x630] sm:$0xff]
  %v510 = vld [vmem:[%s0 + $0x638] sm:$0xff]
  %v511 = vld [vmem:[%s0 + $0x640] sm:$0xff]
  %v512 = vld [vmem:[%s0 + $0x648] sm:$0xff]
  %v513 = vld [vmem:[%s0 + $0x650] sm:$0xff]
  %v514 = vld [vmem:[%s0 + $0x658] sm:$0xff]
  %v515 = vld [vmem:[%s0 + $0x660] sm:$0xff]
  %v516 = vld [vmem:[%s0 + $0x668] sm:$0xff]
  %v517 = vld [vmem:[%s0 + $0x670] sm:$0xff]
  %v518 = vld [vmem:[%s0 + $0x678] sm:$0xff]
  %v519 = vld [vmem:[%s0 + $0x680] sm:$0xff]
  %v520 = vld [vmem:[%s0 + $0x688] sm:$0xff]
  %v521 = vld [vmem:[%s0 + $0x690] sm:$0xff]
  %v522 = vld [vmem:[%s0 + $0x698] sm:$0xff]
  %v523 = vld [vmem:[%s0 + $0x6a0] sm:$0xff]
  %v524 = vld [vmem:[%s0 + $0x6a8] sm:$0xff]
  %v525 = vld [vmem:[%s0 + $0x6b0] sm:$0xff]
  %v526 = vld [vmem:[%s0 + $0x6b8] sm:$0xff]
  %v527 = vld [vmem:[%s0 + $0x6c0] sm:$0xff]
  %v528 = vld [vmem:[%s0 + $0x6c8] sm:$0xff]
  %v529 = vld [vmem:[%s0 + $0x6d0] sm:$0xff]
  %v530 = vld [vmem:[%s0 + $0x6d8] sm:$0xff]
  %v531 = vld [vmem:[%s0 + $0x6e0] sm:$0xff]
  %v532 = vld [vmem:[%s0 + $0x6e8] sm:$0xff]
  %v533 = vld [vmem:[%s0 + $0x6f0] sm:$0xff]
  %v534 = vld [vmem:[%s0 + $0x6f8] sm:$0xff]
  %v535 = vld [vmem:[%s0 + $0x700] sm:$0xff]
  %v536 = vpack.c.bf16 %v312, %v311
  %v537 = vpack.c.bf16 %v314, %v313
  %v538 = vpack.c.bf16 %v316, %v315
  %v539 = vpack.c.bf16 %v318, %v317
  %v540 = vpack.c.bf16 %v320, %v319
  %v541 = vpack.c.bf16 %v322, %v321
  %v542 = vpack.c.bf16 %v324, %v323
  %v543 = vpack.c.bf16 %v326, %v325
  %v544 = vpack.c.bf16 %v328, %v327
  %v545 = vpack.c.bf16 %v330, %v329
  %v546 = vpack.c.bf16 %v332, %v331
  %v547 = vpack.c.bf16 %v334, %v333
  %v548 = vpack.c.bf16 %v336, %v335
  %v549 = vpack.c.bf16 %v338, %v337
  %v550 = vpack.c.bf16 %v340, %v339
  %v551 = vpack.c.bf16 %v342, %v341
  %v552 = vpack.c.bf16 %v344, %v343
  %v553 = vpack.c.bf16 %v346, %v345
  %v554 = vpack.c.bf16 %v348, %v347
  %v555 = vpack.c.bf16 %v350, %v349
  %v556 = vpack.c.bf16 %v352, %v351
  %v557 = vpack.c.bf16 %v354, %v353
  %v558 = vpack.c.bf16 %v356, %v355
  %v559 = vpack.c.bf16 %v358, %v357
  %v560 = vpack.c.bf16 %v360, %v359
  %v561 = vpack.c.bf16 %v362, %v361
  %v562 = vpack.c.bf16 %v364, %v363
  %v563 = vpack.c.bf16 %v366, %v365
  %v564 = vpack.c.bf16 %v368, %v367
  %v565 = vpack.c.bf16 %v370, %v369
  %v566 = vpack.c.bf16 %v372, %v371
  %v567 = vpack.c.bf16 %v374, %v373
  %v568 = vpack.c.bf16 %v376, %v375
  %v569 = vpack.c.bf16 %v378, %v377
  %v570 = vpack.c.bf16 %v380, %v379
  %v571 = vpack.c.bf16 %v382, %v381
  %v572 = vpack.c.bf16 %v384, %v383
  %v573 = vpack.c.bf16 %v386, %v385
  %v574 = vpack.c.bf16 %v388, %v387
  %v575 = vpack.c.bf16 %v390, %v389
  %v576 = vpack.c.bf16 %v392, %v391
  %v577 = vpack.c.bf16 %v394, %v393
  %v578 = vpack.c.bf16 %v396, %v395
  %v579 = vpack.c.bf16 %v398, %v397
  %v580 = vpack.c.bf16 %v400, %v399
  %v581 = vpack.c.bf16 %v402, %v401
  %v582 = vpack.c.bf16 %v404, %v403
  %v583 = vpack.c.bf16 %v406, %v405
  %v584 = vpack.c.bf16 %v408, %v407
  %v585 = vpack.c.bf16 %v410, %v409
  %v586 = vpack.c.bf16 %v412, %v411
  %v587 = vpack.c.bf16 %v414, %v413
  %v588 = vpack.c.bf16 %v416, %v415
  %v589 = vpack.c.bf16 %v418, %v417
  %v590 = vpack.c.bf16 %v420, %v419
  %v591 = vpack.c.bf16 %v422, %v421
  %v592 = vpack.c.bf16 %v424, %v423
  %v593 = vpack.c.bf16 %v426, %v425
  %v594 = vpack.c.bf16 %v428, %v427
  %v595 = vpack.c.bf16 %v430, %v429
  %v596 = vpack.c.bf16 %v432, %v431
  %v597 = vpack.c.bf16 %v434, %v433
  %v598 = vpack.c.bf16 %v436, %v435
  %v599 = vpack.c.bf16 %v438, %v437
  %v600 = vpack.c.bf16 %v440, %v439
  %v601 = vpack.c.bf16 %v442, %v441
  %v602 = vpack.c.bf16 %v444, %v443
  %v603 = vpack.c.bf16 %v446, %v445
  %v604 = vpack.c.bf16 %v448, %v447
  %v605 = vpack.c.bf16 %v450, %v449
  %v606 = vpack.c.bf16 %v452, %v451
  %v607 = vpack.c.bf16 %v454, %v453
  %v608 = vpack.c.bf16 %v456, %v455
  %v609 = vpack.c.bf16 %v458, %v457
  %v610 = vpack.c.bf16 %v460, %v459
  %v611 = vpack.c.bf16 %v462, %v461
  %v612 = vpack.c.bf16 %v464, %v463
  %v613 = vpack.c.bf16 %v466, %v465
  %v614 = vpack.c.bf16 %v468, %v467
  %v615 = vpack.c.bf16 %v470, %v469
  %v616 = vpack.c.bf16 %v472, %v471
  %v617 = vpack.c.bf16 %v474, %v473
  %v618 = vpack.c.bf16 %v476, %v475
  %v619 = vpack.c.bf16 %v478, %v477
  %v620 = vpack.c.bf16 %v480, %v479
  %v621 = vpack.c.bf16 %v482, %v481
  %v622 = vpack.c.bf16 %v484, %v483
  %v623 = vpack.c.bf16 %v486, %v485
  %v624 = vpack.c.bf16 %v488, %v487
  %v625 = vpack.c.bf16 %v490, %v489
  %v626 = vpack.c.bf16 %v492, %v491
  %v627 = vpack.c.bf16 %v494, %v493
  %v628 = vpack.c.bf16 %v496, %v495
  %v629 = vpack.c.bf16 %v498, %v497
  %v630 = vpack.c.bf16 %v500, %v499
  %v631 = vpack.c.bf16 %v502, %v501
  %v632 = vpack.c.bf16 %v504, %v503
  %v633 = vpack.c.bf16 %v506, %v505
  %v634 = vpack.c.bf16 %v508, %v507
  %v635 = vpack.c.bf16 %v510, %v509
  %v636 = vpack.c.bf16 %v512, %v511
  %v637 = vpack.c.bf16 %v514, %v513
  %v638 = vpack.c.bf16 %v516, %v515
  %v639 = vpack.c.bf16 %v518, %v517
  %v640 = vpack.c.bf16 %v520, %v519
  %v641 = vpack.c.bf16 %v522, %v521
  %v642 = vpack.c.bf16 %v524, %v523
  %v643 = vpack.c.bf16 %v526, %v525
  %v644 = vpack.c.bf16 %v528, %v527
  %v645 = vpack.c.bf16 %v530, %v529
  %v646 = vpack.c.bf16 %v532, %v531
  %v647 = vpack.c.bf16 %v534, %v533
  %v648 = vpack.c.bf16 %v535, %v535
  %v649 = vld [vmem:[%s1] sm:$0xf]
  %v650 = vld [vmem:[%s1 + $0x4] sm:$0xf]
  %v651 = vld [vmem:[%s1 + $0x8] sm:$0xf]
  %v652 = vld [vmem:[%s1 + $0xc] sm:$0xf]
  %v657 = vunpack.c.l.b16 %v649
  %v658 = vunpack.c.l.b16 %v650
  %v659 = vunpack.c.l.b16 %v651
  %v660 = vunpack.c.l.b16 %v652
  %v661 = vpack.c.b16 %v658, %v657
  %v662 = vpack.c.b16 %v660, %v659
  %vm665 = vcmask 261120
  %v667 = vsel %vm665, %v536, 0
  %v670 = vsel %vm665, %v537, 0
  %v673 = vsel %vm665, %v538, 0
  %v676 = vsel %vm665, %v539, 0
  %v679 = vsel %vm665, %v540, 0
  %v682 = vsel %vm665, %v541, 0
  %v685 = vsel %vm665, %v542, 0
  %v688 = vsel %vm665, %v543, 0
  %v691 = vsel %vm665, %v544, 0
  %v694 = vsel %vm665, %v545, 0
  %v697 = vsel %vm665, %v546, 0
  %v700 = vsel %vm665, %v547, 0
  %v703 = vsel %vm665, %v548, 0
  %v706 = vsel %vm665, %v549, 0
  %v709 = vsel %vm665, %v550, 0
  %v712 = vsel %vm665, %v551, 0
  %v715 = vsel %vm665, %v552, 0
  %v718 = vsel %vm665, %v553, 0
  %v721 = vsel %vm665, %v554, 0
  %v724 = vsel %vm665, %v555, 0
  %v727 = vsel %vm665, %v556, 0
  %v730 = vsel %vm665, %v557, 0
  %v733 = vsel %vm665, %v558, 0
  %v736 = vsel %vm665, %v559, 0
  %v739 = vsel %vm665, %v560, 0
  %v742 = vsel %vm665, %v561, 0
  %v745 = vsel %vm665, %v562, 0
  %v748 = vsel %vm665, %v563, 0
  %v751 = vsel %vm665, %v564, 0
  %v754 = vsel %vm665, %v565, 0
  %v757 = vsel %vm665, %v566, 0
  %v760 = vsel %vm665, %v567, 0
  %v763 = vsel %vm665, %v568, 0
  %v766 = vsel %vm665, %v569, 0
  %v769 = vsel %vm665, %v570, 0
  %v772 = vsel %vm665, %v571, 0
  %v775 = vsel %vm665, %v572, 0
  %v778 = vsel %vm665, %v573, 0
  %v781 = vsel %vm665, %v574, 0
  %v784 = vsel %vm665, %v575, 0
  %v787 = vsel %vm665, %v576, 0
  %v790 = vsel %vm665, %v577, 0
  %v793 = vsel %vm665, %v578, 0
  %v796 = vsel %vm665, %v579, 0
  %v799 = vsel %vm665, %v580, 0
  %v802 = vsel %vm665, %v581, 0
  %v805 = vsel %vm665, %v582, 0
  %v808 = vsel %vm665, %v583, 0
  %v811 = vsel %vm665, %v584, 0
  %v814 = vsel %vm665, %v585, 0
  %v817 = vsel %vm665, %v586, 0
  %v820 = vsel %vm665, %v587, 0
  %v823 = vsel %vm665, %v588, 0
  %v826 = vsel %vm665, %v589, 0
  %v829 = vsel %vm665, %v590, 0
  %v832 = vsel %vm665, %v591, 0
  %v835 = vsel %vm665, %v592, 0
  %v838 = vsel %vm665, %v593, 0
  %v841 = vsel %vm665, %v594, 0
  %v844 = vsel %vm665, %v595, 0
  %v847 = vsel %vm665, %v596, 0
  %v850 = vsel %vm665, %v597, 0
  %v853 = vsel %vm665, %v598, 0
  %v856 = vsel %vm665, %v599, 0
  %v859 = vsel %vm665, %v600, 0
  %v862 = vsel %vm665, %v601, 0
  %v865 = vsel %vm665, %v602, 0
  %v868 = vsel %vm665, %v603, 0
  %v871 = vsel %vm665, %v604, 0
  %v874 = vsel %vm665, %v605, 0
  %v877 = vsel %vm665, %v606, 0
  %v880 = vsel %vm665, %v607, 0
  %v883 = vsel %vm665, %v608, 0
  %v886 = vsel %vm665, %v609, 0
  %v889 = vsel %vm665, %v610, 0
  %v892 = vsel %vm665, %v611, 0
  %v895 = vsel %vm665, %v612, 0
  %v898 = vsel %vm665, %v613, 0
  %v901 = vsel %vm665, %v614, 0
  %v904 = vsel %vm665, %v615, 0
  %v907 = vsel %vm665, %v616, 0
  %v910 = vsel %vm665, %v617, 0
  %v913 = vsel %vm665, %v618, 0
  %v916 = vsel %vm665, %v619, 0
  %v919 = vsel %vm665, %v620, 0
  %v922 = vsel %vm665, %v621, 0
  %v925 = vsel %vm665, %v622, 0
  %v928 = vsel %vm665, %v623, 0
  %v931 = vsel %vm665, %v624, 0
  %v934 = vsel %vm665, %v625, 0
  %v937 = vsel %vm665, %v626, 0
  %v940 = vsel %vm665, %v627, 0
  %v943 = vsel %vm665, %v628, 0
  %v946 = vsel %vm665, %v629, 0
  %v949 = vsel %vm665, %v630, 0
  %v952 = vsel %vm665, %v631, 0
  %v955 = vsel %vm665, %v632, 0
  %v958 = vsel %vm665, %v633, 0
  %v961 = vsel %vm665, %v634, 0
  %v964 = vsel %vm665, %v635, 0
  %v967 = vsel %vm665, %v636, 0
  %v970 = vsel %vm665, %v637, 0
  %v973 = vsel %vm665, %v638, 0
  %v976 = vsel %vm665, %v639, 0
  %v979 = vsel %vm665, %v640, 0
  %v982 = vsel %vm665, %v641, 0
  %v985 = vsel %vm665, %v642, 0
  %v988 = vsel %vm665, %v643, 0
  %v991 = vsel %vm665, %v644, 0
  %v994 = vsel %vm665, %v645, 0
  %v997 = vsel %vm665, %v646, 0
  %v1000 = vsel %vm665, %v647, 0
  %v1003 = vsel %vm665, %v648, 0
  %1005 = vmatpush.bf16.msra.mxu0 0
  %1006 = vmatpush.bf16.msra.mxu0 0
  %1007 = vmatpush.bf16.msra.mxu0 0
  %1008 = vmatpush.bf16.msra.mxu0 0
  %1009 = vmatpush.bf16.msra.mxu0 0
  %1010 = vmatpush.bf16.msra.mxu0 0
  %1011 = vmatpush.bf16.msra.mxu0 %v662
  %1012 = vmatpush.bf16.msra.mxu0 %v661
  %1013 = vmatmul.bf16.gmra.mxu0 %v667
  %v1014 = vpop.f32.mrf.mxu0
  %v1015 = vadd.f32 0.0, %v1014
  %v1016 = vpop.f32.mrf.mxu0
  %v1017 = vadd.f32 0.0, %v1016
  %1018 = vmatmul.bf16.gmra.mxu0 %v670
  %v1019 = vpop.f32.mrf.mxu0
  %v1020 = vadd.f32 0.0, %v1019
  %v1021 = vpop.f32.mrf.mxu0
  %v1022 = vadd.f32 0.0, %v1021
  %1023 = vmatmul.bf16.gmra.mxu0 %v673
  %v1024 = vpop.f32.mrf.mxu0
  %v1025 = vadd.f32 0.0, %v1024
  %v1026 = vpop.f32.mrf.mxu0
  %v1027 = vadd.f32 0.0, %v1026
  %1028 = vmatmul.bf16.gmra.mxu0 %v676
  %v1029 = vpop.f32.mrf.mxu0
  %v1030 = vadd.f32 0.0, %v1029
  %v1031 = vpop.f32.mrf.mxu0
  %v1032 = vadd.f32 0.0, %v1031
  %1033 = vmatmul.bf16.gmra.mxu0 %v679
  %v1034 = vpop.f32.mrf.mxu0
  %v1035 = vadd.f32 0.0, %v1034
  %v1036 = vpop.f32.mrf.mxu0
  %v1037 = vadd.f32 0.0, %v1036
  %1038 = vmatmul.bf16.gmra.mxu0 %v682
  %v1039 = vpop.f32.mrf.mxu0
  %v1040 = vadd.f32 0.0, %v1039
  %v1041 = vpop.f32.mrf.mxu0
  %v1042 = vadd.f32 0.0, %v1041
  %1043 = vmatmul.bf16.gmra.mxu0 %v685
  %v1044 = vpop.f32.mrf.mxu0
  %v1045 = vadd.f32 0.0, %v1044
  %v1046 = vpop.f32.mrf.mxu0
  %v1047 = vadd.f32 0.0, %v1046
  %1048 = vmatmul.bf16.gmra.mxu0 %v688
  %v1049 = vpop.f32.mrf.mxu0
  %v1050 = vadd.f32 0.0, %v1049
  %v1051 = vpop.f32.mrf.mxu0
  %v1052 = vadd.f32 0.0, %v1051
  %1053 = vmatmul.bf16.gmra.mxu0 %v691
  %v1054 = vpop.f32.mrf.mxu0
  %v1055 = vadd.f32 0.0, %v1054
  %v1056 = vpop.f32.mrf.mxu0
  %v1057 = vadd.f32 0.0, %v1056
  %1058 = vmatmul.bf16.gmra.mxu0 %v694
  %v1059 = vpop.f32.mrf.mxu0
  %v1060 = vadd.f32 0.0, %v1059
  %v1061 = vpop.f32.mrf.mxu0
  %v1062 = vadd.f32 0.0, %v1061
  %1063 = vmatmul.bf16.gmra.mxu0 %v697
  %v1064 = vpop.f32.mrf.mxu0
  %v1065 = vadd.f32 0.0, %v1064
  %v1066 = vpop.f32.mrf.mxu0
  %v1067 = vadd.f32 0.0, %v1066
  %1068 = vmatmul.bf16.gmra.mxu0 %v700
  %v1069 = vpop.f32.mrf.mxu0
  %v1070 = vadd.f32 0.0, %v1069
  %v1071 = vpop.f32.mrf.mxu0
  %v1072 = vadd.f32 0.0, %v1071
  %1073 = vmatmul.bf16.gmra.mxu0 %v703
  %v1074 = vpop.f32.mrf.mxu0
  %v1075 = vadd.f32 0.0, %v1074
  %v1076 = vpop.f32.mrf.mxu0
  %v1077 = vadd.f32 0.0, %v1076
  %1078 = vmatmul.bf16.gmra.mxu0 %v706
  %v1079 = vpop.f32.mrf.mxu0
  %v1080 = vadd.f32 0.0, %v1079
  %v1081 = vpop.f32.mrf.mxu0
  %v1082 = vadd.f32 0.0, %v1081
  %1083 = vmatmul.bf16.gmra.mxu0 %v709
  %v1084 = vpop.f32.mrf.mxu0
  %v1085 = vadd.f32 0.0, %v1084
  %v1086 = vpop.f32.mrf.mxu0
  %v1087 = vadd.f32 0.0, %v1086
  %1088 = vmatmul.bf16.gmra.mxu0 %v712
  %v1089 = vpop.f32.mrf.mxu0
  %v1090 = vadd.f32 0.0, %v1089
  %v1091 = vpop.f32.mrf.mxu0
  %v1092 = vadd.f32 0.0, %v1091
  %1093 = vmatmul.bf16.gmra.mxu0 %v715
  %v1094 = vpop.f32.mrf.mxu0
  %v1095 = vadd.f32 0.0, %v1094
  %v1096 = vpop.f32.mrf.mxu0
  %v1097 = vadd.f32 0.0, %v1096
  %1098 = vmatmul.bf16.gmra.mxu0 %v718
  %v1099 = vpop.f32.mrf.mxu0
  %v1100 = vadd.f32 0.0, %v1099
  %v1101 = vpop.f32.mrf.mxu0
  %v1102 = vadd.f32 0.0, %v1101
  %1103 = vmatmul.bf16.gmra.mxu0 %v721
  %v1104 = vpop.f32.mrf.mxu0
  %v1105 = vadd.f32 0.0, %v1104
  %v1106 = vpop.f32.mrf.mxu0
  %v1107 = vadd.f32 0.0, %v1106
  %1108 = vmatmul.bf16.gmra.mxu0 %v724
  %v1109 = vpop.f32.mrf.mxu0
  %v1110 = vadd.f32 0.0, %v1109
  %v1111 = vpop.f32.mrf.mxu0
  %v1112 = vadd.f32 0.0, %v1111
  %1113 = vmatmul.bf16.gmra.mxu0 %v727
  %v1114 = vpop.f32.mrf.mxu0
  %v1115 = vadd.f32 0.0, %v1114
  %v1116 = vpop.f32.mrf.mxu0
  %v1117 = vadd.f32 0.0, %v1116
  %1118 = vmatmul.bf16.gmra.mxu0 %v730
  %v1119 = vpop.f32.mrf.mxu0
  %v1120 = vadd.f32 0.0, %v1119
  %v1121 = vpop.f32.mrf.mxu0
  %v1122 = vadd.f32 0.0, %v1121
  %1123 = vmatmul.bf16.gmra.mxu0 %v733
  %v1124 = vpop.f32.mrf.mxu0
  %v1125 = vadd.f32 0.0, %v1124
  %v1126 = vpop.f32.mrf.mxu0
  %v1127 = vadd.f32 0.0, %v1126
  %1128 = vmatmul.bf16.gmra.mxu0 %v736
  %v1129 = vpop.f32.mrf.mxu0
  %v1130 = vadd.f32 0.0, %v1129
  %v1131 = vpop.f32.mrf.mxu0
  %v1132 = vadd.f32 0.0, %v1131
  %1133 = vmatmul.bf16.gmra.mxu0 %v739
  %v1134 = vpop.f32.mrf.mxu0
  %v1135 = vadd.f32 0.0, %v1134
  %v1136 = vpop.f32.mrf.mxu0
  %v1137 = vadd.f32 0.0, %v1136
  %1138 = vmatmul.bf16.gmra.mxu0 %v742
  %v1139 = vpop.f32.mrf.mxu0
  %v1140 = vadd.f32 0.0, %v1139
  %v1141 = vpop.f32.mrf.mxu0
  %v1142 = vadd.f32 0.0, %v1141
  %1143 = vmatmul.bf16.gmra.mxu0 %v745
  %v1144 = vpop.f32.mrf.mxu0
  %v1145 = vadd.f32 0.0, %v1144
  %v1146 = vpop.f32.mrf.mxu0
  %v1147 = vadd.f32 0.0, %v1146
  %1148 = vmatmul.bf16.gmra.mxu0 %v748
  %v1149 = vpop.f32.mrf.mxu0
  %v1150 = vadd.f32 0.0, %v1149
  %v1151 = vpop.f32.mrf.mxu0
  %v1152 = vadd.f32 0.0, %v1151
  %1153 = vmatmul.bf16.gmra.mxu0 %v751
  %v1154 = vpop.f32.mrf.mxu0
  %v1155 = vadd.f32 0.0, %v1154
  %v1156 = vpop.f32.mrf.mxu0
  %v1157 = vadd.f32 0.0, %v1156
  %1158 = vmatmul.bf16.gmra.mxu0 %v754
  %v1159 = vpop.f32.mrf.mxu0
  %v1160 = vadd.f32 0.0, %v1159
  %v1161 = vpop.f32.mrf.mxu0
  %v1162 = vadd.f32 0.0, %v1161
  %1163 = vmatmul.bf16.gmra.mxu0 %v757
  %v1164 = vpop.f32.mrf.mxu0
  %v1165 = vadd.f32 0.0, %v1164
  %v1166 = vpop.f32.mrf.mxu0
  %v1167 = vadd.f32 0.0, %v1166
  %1168 = vmatmul.bf16.gmra.mxu0 %v760
  %v1169 = vpop.f32.mrf.mxu0
  %v1170 = vadd.f32 0.0, %v1169
  %v1171 = vpop.f32.mrf.mxu0
  %v1172 = vadd.f32 0.0, %v1171
  %1173 = vmatmul.bf16.gmra.mxu0 %v763
  %v1174 = vpop.f32.mrf.mxu0
  %v1175 = vadd.f32 0.0, %v1174
  %v1176 = vpop.f32.mrf.mxu0
  %v1177 = vadd.f32 0.0, %v1176
  %1178 = vmatmul.bf16.gmra.mxu0 %v766
  %v1179 = vpop.f32.mrf.mxu0
  %v1180 = vadd.f32 0.0, %v1179
  %v1181 = vpop.f32.mrf.mxu0
  %v1182 = vadd.f32 0.0, %v1181
  %1183 = vmatmul.bf16.gmra.mxu0 %v769
  %v1184 = vpop.f32.mrf.mxu0
  %v1185 = vadd.f32 0.0, %v1184
  %v1186 = vpop.f32.mrf.mxu0
  %v1187 = vadd.f32 0.0, %v1186
  %1188 = vmatmul.bf16.gmra.mxu0 %v772
  %v1189 = vpop.f32.mrf.mxu0
  %v1190 = vadd.f32 0.0, %v1189
  %v1191 = vpop.f32.mrf.mxu0
  %v1192 = vadd.f32 0.0, %v1191
  %1193 = vmatmul.bf16.gmra.mxu0 %v775
  %v1194 = vpop.f32.mrf.mxu0
  %v1195 = vadd.f32 0.0, %v1194
  %v1196 = vpop.f32.mrf.mxu0
  %v1197 = vadd.f32 0.0, %v1196
  %1198 = vmatmul.bf16.gmra.mxu0 %v778
  %v1199 = vpop.f32.mrf.mxu0
  %v1200 = vadd.f32 0.0, %v1199
  %v1201 = vpop.f32.mrf.mxu0
  %v1202 = vadd.f32 0.0, %v1201
  %1203 = vmatmul.bf16.gmra.mxu0 %v781
  %v1204 = vpop.f32.mrf.mxu0
  %v1205 = vadd.f32 0.0, %v1204
  %v1206 = vpop.f32.mrf.mxu0
  %v1207 = vadd.f32 0.0, %v1206
  %1208 = vmatmul.bf16.gmra.mxu0 %v784
  %v1209 = vpop.f32.mrf.mxu0
  %v1210 = vadd.f32 0.0, %v1209
  %v1211 = vpop.f32.mrf.mxu0
  %v1212 = vadd.f32 0.0, %v1211
  %1213 = vmatmul.bf16.gmra.mxu0 %v787
  %v1214 = vpop.f32.mrf.mxu0
  %v1215 = vadd.f32 0.0, %v1214
  %v1216 = vpop.f32.mrf.mxu0
  %v1217 = vadd.f32 0.0, %v1216
  %1218 = vmatmul.bf16.gmra.mxu0 %v790
  %v1219 = vpop.f32.mrf.mxu0
  %v1220 = vadd.f32 0.0, %v1219
  %v1221 = vpop.f32.mrf.mxu0
  %v1222 = vadd.f32 0.0, %v1221
  %1223 = vmatmul.bf16.gmra.mxu0 %v793
  %v1224 = vpop.f32.mrf.mxu0
  %v1225 = vadd.f32 0.0, %v1224
  %v1226 = vpop.f32.mrf.mxu0
  %v1227 = vadd.f32 0.0, %v1226
  %1228 = vmatmul.bf16.gmra.mxu0 %v796
  %v1229 = vpop.f32.mrf.mxu0
  %v1230 = vadd.f32 0.0, %v1229
  %v1231 = vpop.f32.mrf.mxu0
  %v1232 = vadd.f32 0.0, %v1231
  %1233 = vmatmul.bf16.gmra.mxu0 %v799
  %v1234 = vpop.f32.mrf.mxu0
  %v1235 = vadd.f32 0.0, %v1234
  %v1236 = vpop.f32.mrf.mxu0
  %v1237 = vadd.f32 0.0, %v1236
  %1238 = vmatmul.bf16.gmra.mxu0 %v802
  %v1239 = vpop.f32.mrf.mxu0
  %v1240 = vadd.f32 0.0, %v1239
  %v1241 = vpop.f32.mrf.mxu0
  %v1242 = vadd.f32 0.0, %v1241
  %1243 = vmatmul.bf16.gmra.mxu0 %v805
  %v1244 = vpop.f32.mrf.mxu0
  %v1245 = vadd.f32 0.0, %v1244
  %v1246 = vpop.f32.mrf.mxu0
  %v1247 = vadd.f32 0.0, %v1246
  %1248 = vmatmul.bf16.gmra.mxu0 %v808
  %v1249 = vpop.f32.mrf.mxu0
  %v1250 = vadd.f32 0.0, %v1249
  %v1251 = vpop.f32.mrf.mxu0
  %v1252 = vadd.f32 0.0, %v1251
  %1253 = vmatmul.bf16.gmra.mxu0 %v811
  %v1254 = vpop.f32.mrf.mxu0
  %v1255 = vadd.f32 0.0, %v1254
  %v1256 = vpop.f32.mrf.mxu0
  %v1257 = vadd.f32 0.0, %v1256
  %1258 = vmatmul.bf16.gmra.mxu0 %v814
  %v1259 = vpop.f32.mrf.mxu0
  %v1260 = vadd.f32 0.0, %v1259
  %v1261 = vpop.f32.mrf.mxu0
  %v1262 = vadd.f32 0.0, %v1261
  %1263 = vmatmul.bf16.gmra.mxu0 %v817
  %v1264 = vpop.f32.mrf.mxu0
  %v1265 = vadd.f32 0.0, %v1264
  %v1266 = vpop.f32.mrf.mxu0
  %v1267 = vadd.f32 0.0, %v1266
  %1268 = vmatmul.bf16.gmra.mxu0 %v820
  %v1269 = vpop.f32.mrf.mxu0
  %v1270 = vadd.f32 0.0, %v1269
  %v1271 = vpop.f32.mrf.mxu0
  %v1272 = vadd.f32 0.0, %v1271
  %1273 = vmatmul.bf16.gmra.mxu0 %v823
  %v1274 = vpop.f32.mrf.mxu0
  %v1275 = vadd.f32 0.0, %v1274
  %v1276 = vpop.f32.mrf.mxu0
  %v1277 = vadd.f32 0.0, %v1276
  %1278 = vmatmul.bf16.gmra.mxu0 %v826
  %v1279 = vpop.f32.mrf.mxu0
  %v1280 = vadd.f32 0.0, %v1279
  %v1281 = vpop.f32.mrf.mxu0
  %v1282 = vadd.f32 0.0, %v1281
  %1283 = vmatmul.bf16.gmra.mxu0 %v829
  %v1284 = vpop.f32.mrf.mxu0
  %v1285 = vadd.f32 0.0, %v1284
  %v1286 = vpop.f32.mrf.mxu0
  %v1287 = vadd.f32 0.0, %v1286
  %1288 = vmatmul.bf16.gmra.mxu0 %v832
  %v1289 = vpop.f32.mrf.mxu0
  %v1290 = vadd.f32 0.0, %v1289
  %v1291 = vpop.f32.mrf.mxu0
  %v1292 = vadd.f32 0.0, %v1291
  %1293 = vmatmul.bf16.gmra.mxu0 %v835
  %v1294 = vpop.f32.mrf.mxu0
  %v1295 = vadd.f32 0.0, %v1294
  %v1296 = vpop.f32.mrf.mxu0
  %v1297 = vadd.f32 0.0, %v1296
  %1298 = vmatmul.bf16.gmra.mxu0 %v838
  %v1299 = vpop.f32.mrf.mxu0
  %v1300 = vadd.f32 0.0, %v1299
  %v1301 = vpop.f32.mrf.mxu0
  %v1302 = vadd.f32 0.0, %v1301
  %1303 = vmatmul.bf16.gmra.mxu0 %v841
  %v1304 = vpop.f32.mrf.mxu0
  %v1305 = vadd.f32 0.0, %v1304
  %v1306 = vpop.f32.mrf.mxu0
  %v1307 = vadd.f32 0.0, %v1306
  %1308 = vmatmul.bf16.gmra.mxu0 %v844
  %v1309 = vpop.f32.mrf.mxu0
  %v1310 = vadd.f32 0.0, %v1309
  %v1311 = vpop.f32.mrf.mxu0
  %v1312 = vadd.f32 0.0, %v1311
  %1313 = vmatmul.bf16.gmra.mxu0 %v847
  %v1314 = vpop.f32.mrf.mxu0
  %v1315 = vadd.f32 0.0, %v1314
  %v1316 = vpop.f32.mrf.mxu0
  %v1317 = vadd.f32 0.0, %v1316
  %1318 = vmatmul.bf16.gmra.mxu0 %v850
  %v1319 = vpop.f32.mrf.mxu0
  %v1320 = vadd.f32 0.0, %v1319
  %v1321 = vpop.f32.mrf.mxu0
  %v1322 = vadd.f32 0.0, %v1321
  %1323 = vmatmul.bf16.gmra.mxu0 %v853
  %v1324 = vpop.f32.mrf.mxu0
  %v1325 = vadd.f32 0.0, %v1324
  %v1326 = vpop.f32.mrf.mxu0
  %v1327 = vadd.f32 0.0, %v1326
  %1328 = vmatmul.bf16.gmra.mxu0 %v856
  %v1329 = vpop.f32.mrf.mxu0
  %v1330 = vadd.f32 0.0, %v1329
  %v1331 = vpop.f32.mrf.mxu0
  %v1332 = vadd.f32 0.0, %v1331
  %1333 = vmatmul.bf16.gmra.mxu0 %v859
  %v1334 = vpop.f32.mrf.mxu0
  %v1335 = vadd.f32 0.0, %v1334
  %v1336 = vpop.f32.mrf.mxu0
  %v1337 = vadd.f32 0.0, %v1336
  %1338 = vmatmul.bf16.gmra.mxu0 %v862
  %v1339 = vpop.f32.mrf.mxu0
  %v1340 = vadd.f32 0.0, %v1339
  %v1341 = vpop.f32.mrf.mxu0
  %v1342 = vadd.f32 0.0, %v1341
  %1343 = vmatmul.bf16.gmra.mxu0 %v865
  %v1344 = vpop.f32.mrf.mxu0
  %v1345 = vadd.f32 0.0, %v1344
  %v1346 = vpop.f32.mrf.mxu0
  %v1347 = vadd.f32 0.0, %v1346
  %1348 = vmatmul.bf16.gmra.mxu0 %v868
  %v1349 = vpop.f32.mrf.mxu0
  %v1350 = vadd.f32 0.0, %v1349
  %v1351 = vpop.f32.mrf.mxu0
  %v1352 = vadd.f32 0.0, %v1351
  %1353 = vmatmul.bf16.gmra.mxu0 %v871
  %v1354 = vpop.f32.mrf.mxu0
  %v1355 = vadd.f32 0.0, %v1354
  %v1356 = vpop.f32.mrf.mxu0
  %v1357 = vadd.f32 0.0, %v1356
  %1358 = vmatmul.bf16.gmra.mxu0 %v874
  %v1359 = vpop.f32.mrf.mxu0
  %v1360 = vadd.f32 0.0, %v1359
  %v1361 = vpop.f32.mrf.mxu0
  %v1362 = vadd.f32 0.0, %v1361
  %1363 = vmatmul.bf16.gmra.mxu0 %v877
  %v1364 = vpop.f32.mrf.mxu0
  %v1365 = vadd.f32 0.0, %v1364
  %v1366 = vpop.f32.mrf.mxu0
  %v1367 = vadd.f32 0.0, %v1366
  %1368 = vmatmul.bf16.gmra.mxu0 %v880
  %v1369 = vpop.f32.mrf.mxu0
  %v1370 = vadd.f32 0.0, %v1369
  %v1371 = vpop.f32.mrf.mxu0
  %v1372 = vadd.f32 0.0, %v1371
  %1373 = vmatmul.bf16.gmra.mxu0 %v883
  %v1374 = vpop.f32.mrf.mxu0
  %v1375 = vadd.f32 0.0, %v1374
  %v1376 = vpop.f32.mrf.mxu0
  %v1377 = vadd.f32 0.0, %v1376
  %1378 = vmatmul.bf16.gmra.mxu0 %v886
  %v1379 = vpop.f32.mrf.mxu0
  %v1380 = vadd.f32 0.0, %v1379
  %v1381 = vpop.f32.mrf.mxu0
  %v1382 = vadd.f32 0.0, %v1381
  %1383 = vmatmul.bf16.gmra.mxu0 %v889
  %v1384 = vpop.f32.mrf.mxu0
  %v1385 = vadd.f32 0.0, %v1384
  %v1386 = vpop.f32.mrf.mxu0
  %v1387 = vadd.f32 0.0, %v1386
  %1388 = vmatmul.bf16.gmra.mxu0 %v892
  %v1389 = vpop.f32.mrf.mxu0
  %v1390 = vadd.f32 0.0, %v1389
  %v1391 = vpop.f32.mrf.mxu0
  %v1392 = vadd.f32 0.0, %v1391
  %1393 = vmatmul.bf16.gmra.mxu0 %v895
  %v1394 = vpop.f32.mrf.mxu0
  %v1395 = vadd.f32 0.0, %v1394
  %v1396 = vpop.f32.mrf.mxu0
  %v1397 = vadd.f32 0.0, %v1396
  %1398 = vmatmul.bf16.gmra.mxu0 %v898
  %v1399 = vpop.f32.mrf.mxu0
  %v1400 = vadd.f32 0.0, %v1399
  %v1401 = vpop.f32.mrf.mxu0
  %v1402 = vadd.f32 0.0, %v1401
  %1403 = vmatmul.bf16.gmra.mxu0 %v901
  %v1404 = vpop.f32.mrf.mxu0
  %v1405 = vadd.f32 0.0, %v1404
  %v1406 = vpop.f32.mrf.mxu0
  %v1407 = vadd.f32 0.0, %v1406
  %1408 = vmatmul.bf16.gmra.mxu0 %v904
  %v1409 = vpop.f32.mrf.mxu0
  %v1410 = vadd.f32 0.0, %v1409
  %v1411 = vpop.f32.mrf.mxu0
  %v1412 = vadd.f32 0.0, %v1411
  %1413 = vmatmul.bf16.gmra.mxu0 %v907
  %v1414 = vpop.f32.mrf.mxu0
  %v1415 = vadd.f32 0.0, %v1414
  %v1416 = vpop.f32.mrf.mxu0
  %v1417 = vadd.f32 0.0, %v1416
  %1418 = vmatmul.bf16.gmra.mxu0 %v910
  %v1419 = vpop.f32.mrf.mxu0
  %v1420 = vadd.f32 0.0, %v1419
  %v1421 = vpop.f32.mrf.mxu0
  %v1422 = vadd.f32 0.0, %v1421
  %1423 = vmatmul.bf16.gmra.mxu0 %v913
  %v1424 = vpop.f32.mrf.mxu0
  %v1425 = vadd.f32 0.0, %v1424
  %v1426 = vpop.f32.mrf.mxu0
  %v1427 = vadd.f32 0.0, %v1426
  %1428 = vmatmul.bf16.gmra.mxu0 %v916
  %v1429 = vpop.f32.mrf.mxu0
  %v1430 = vadd.f32 0.0, %v1429
  %v1431 = vpop.f32.mrf.mxu0
  %v1432 = vadd.f32 0.0, %v1431
  %1433 = vmatmul.bf16.gmra.mxu0 %v919
  %v1434 = vpop.f32.mrf.mxu0
  %v1435 = vadd.f32 0.0, %v1434
  %v1436 = vpop.f32.mrf.mxu0
  %v1437 = vadd.f32 0.0, %v1436
  %1438 = vmatmul.bf16.gmra.mxu0 %v922
  %v1439 = vpop.f32.mrf.mxu0
  %v1440 = vadd.f32 0.0, %v1439
  %v1441 = vpop.f32.mrf.mxu0
  %v1442 = vadd.f32 0.0, %v1441
  %1443 = vmatmul.bf16.gmra.mxu0 %v925
  %v1444 = vpop.f32.mrf.mxu0
  %v1445 = vadd.f32 0.0, %v1444
  %v1446 = vpop.f32.mrf.mxu0
  %v1447 = vadd.f32 0.0, %v1446
  %1448 = vmatmul.bf16.gmra.mxu0 %v928
  %v1449 = vpop.f32.mrf.mxu0
  %v1450 = vadd.f32 0.0, %v1449
  %v1451 = vpop.f32.mrf.mxu0
  %v1452 = vadd.f32 0.0, %v1451
  %1453 = vmatmul.bf16.gmra.mxu0 %v931
  %v1454 = vpop.f32.mrf.mxu0
  %v1455 = vadd.f32 0.0, %v1454
  %v1456 = vpop.f32.mrf.mxu0
  %v1457 = vadd.f32 0.0, %v1456
  %1458 = vmatmul.bf16.gmra.mxu0 %v934
  %v1459 = vpop.f32.mrf.mxu0
  %v1460 = vadd.f32 0.0, %v1459
  %v1461 = vpop.f32.mrf.mxu0
  %v1462 = vadd.f32 0.0, %v1461
  %1463 = vmatmul.bf16.gmra.mxu0 %v937
  %v1464 = vpop.f32.mrf.mxu0
  %v1465 = vadd.f32 0.0, %v1464
  %v1466 = vpop.f32.mrf.mxu0
  %v1467 = vadd.f32 0.0, %v1466
  %1468 = vmatmul.bf16.gmra.mxu0 %v940
  %v1469 = vpop.f32.mrf.mxu0
  %v1470 = vadd.f32 0.0, %v1469
  %v1471 = vpop.f32.mrf.mxu0
  %v1472 = vadd.f32 0.0, %v1471
  %1473 = vmatmul.bf16.gmra.mxu0 %v943
  %v1474 = vpop.f32.mrf.mxu0
  %v1475 = vadd.f32 0.0, %v1474
  %v1476 = vpop.f32.mrf.mxu0
  %v1477 = vadd.f32 0.0, %v1476
  %1478 = vmatmul.bf16.gmra.mxu0 %v946
  %v1479 = vpop.f32.mrf.mxu0
  %v1480 = vadd.f32 0.0, %v1479
  %v1481 = vpop.f32.mrf.mxu0
  %v1482 = vadd.f32 0.0, %v1481
  %1483 = vmatmul.bf16.gmra.mxu0 %v949
  %v1484 = vpop.f32.mrf.mxu0
  %v1485 = vadd.f32 0.0, %v1484
  %v1486 = vpop.f32.mrf.mxu0
  %v1487 = vadd.f32 0.0, %v1486
  %1488 = vmatmul.bf16.gmra.mxu0 %v952
  %v1489 = vpop.f32.mrf.mxu0
  %v1490 = vadd.f32 0.0, %v1489
  %v1491 = vpop.f32.mrf.mxu0
  %v1492 = vadd.f32 0.0, %v1491
  %1493 = vmatmul.bf16.gmra.mxu0 %v955
  %v1494 = vpop.f32.mrf.mxu0
  %v1495 = vadd.f32 0.0, %v1494
  %v1496 = vpop.f32.mrf.mxu0
  %v1497 = vadd.f32 0.0, %v1496
  %1498 = vmatmul.bf16.gmra.mxu0 %v958
  %v1499 = vpop.f32.mrf.mxu0
  %v1500 = vadd.f32 0.0, %v1499
  %v1501 = vpop.f32.mrf.mxu0
  %v1502 = vadd.f32 0.0, %v1501
  %1503 = vmatmul.bf16.gmra.mxu0 %v961
  %v1504 = vpop.f32.mrf.mxu0
  %v1505 = vadd.f32 0.0, %v1504
  %v1506 = vpop.f32.mrf.mxu0
  %v1507 = vadd.f32 0.0, %v1506
  %1508 = vmatmul.bf16.gmra.mxu0 %v964
  %v1509 = vpop.f32.mrf.mxu0
  %v1510 = vadd.f32 0.0, %v1509
  %v1511 = vpop.f32.mrf.mxu0
  %v1512 = vadd.f32 0.0, %v1511
  %1513 = vmatmul.bf16.gmra.mxu0 %v967
  %v1514 = vpop.f32.mrf.mxu0
  %v1515 = vadd.f32 0.0, %v1514
  %v1516 = vpop.f32.mrf.mxu0
  %v1517 = vadd.f32 0.0, %v1516
  %1518 = vmatmul.bf16.gmra.mxu0 %v970
  %v1519 = vpop.f32.mrf.mxu0
  %v1520 = vadd.f32 0.0, %v1519
  %v1521 = vpop.f32.mrf.mxu0
  %v1522 = vadd.f32 0.0, %v1521
  %1523 = vmatmul.bf16.gmra.mxu0 %v973
  %v1524 = vpop.f32.mrf.mxu0
  %v1525 = vadd.f32 0.0, %v1524
  %v1526 = vpop.f32.mrf.mxu0
  %v1527 = vadd.f32 0.0, %v1526
  %1528 = vmatmul.bf16.gmra.mxu0 %v976
  %v1529 = vpop.f32.mrf.mxu0
  %v1530 = vadd.f32 0.0, %v1529
  %v1531 = vpop.f32.mrf.mxu0
  %v1532 = vadd.f32 0.0, %v1531
  %1533 = vmatmul.bf16.gmra.mxu0 %v979
  %v1534 = vpop.f32.mrf.mxu0
  %v1535 = vadd.f32 0.0, %v1534
  %v1536 = vpop.f32.mrf.mxu0
  %v1537 = vadd.f32 0.0, %v1536
  %1538 = vmatmul.bf16.gmra.mxu0 %v982
  %v1539 = vpop.f32.mrf.mxu0
  %v1540 = vadd.f32 0.0, %v1539
  %v1541 = vpop.f32.mrf.mxu0
  %v1542 = vadd.f32 0.0, %v1541
  %1543 = vmatmul.bf16.gmra.mxu0 %v985
  %v1544 = vpop.f32.mrf.mxu0
  %v1545 = vadd.f32 0.0, %v1544
  %v1546 = vpop.f32.mrf.mxu0
  %v1547 = vadd.f32 0.0, %v1546
  %1548 = vmatmul.bf16.gmra.mxu0 %v988
  %v1549 = vpop.f32.mrf.mxu0
  %v1550 = vadd.f32 0.0, %v1549
  %v1551 = vpop.f32.mrf.mxu0
  %v1552 = vadd.f32 0.0, %v1551
  %1553 = vmatmul.bf16.gmra.mxu0 %v991
  %v1554 = vpop.f32.mrf.mxu0
  %v1555 = vadd.f32 0.0, %v1554
  %v1556 = vpop.f32.mrf.mxu0
  %v1557 = vadd.f32 0.0, %v1556
  %1558 = vmatmul.bf16.gmra.mxu0 %v994
  %v1559 = vpop.f32.mrf.mxu0
  %v1560 = vadd.f32 0.0, %v1559
  %v1561 = vpop.f32.mrf.mxu0
  %v1562 = vadd.f32 0.0, %v1561
  %1563 = vmatmul.bf16.gmra.mxu0 %v997
  %v1564 = vpop.f32.mrf.mxu0
  %v1565 = vadd.f32 0.0, %v1564
  %v1566 = vpop.f32.mrf.mxu0
  %v1567 = vadd.f32 0.0, %v1566
  %1568 = vmatmul.bf16.gmra.mxu0 %v1000
  %v1569 = vpop.f32.mrf.mxu0
  %v1570 = vadd.f32 0.0, %v1569
  %v1571 = vpop.f32.mrf.mxu0
  %v1572 = vadd.f32 0.0, %v1571
  %1573 = vmatmul.bf16.gmra.mxu0 %v1003
  %v1574 = vpop.f32.mrf.mxu0
  %v1575 = vadd.f32 0.0, %v1574
  %v1576 = vpop.f32.mrf.mxu0
  %1577 = vdwg.mxu0
  %1578 = vst [vmem:[#allocation2] sm:$0xff] %v1015
  %1579 = vst [vmem:[#allocation2 + $0x8] sm:$0xff] %v1017
  %1580 = vst [vmem:[#allocation2 + $0x10] sm:$0xff] %v1020
  %1581 = vst [vmem:[#allocation2 + $0x18] sm:$0xff] %v1022
  %1582 = vst [vmem:[#allocation2 + $0x20] sm:$0xff] %v1025
  %1583 = vst [vmem:[#allocation2 + $0x28] sm:$0xff] %v1027
  %1584 = vst [vmem:[#allocation2 + $0x30] sm:$0xff] %v1030
  %1585 = vst [vmem:[#allocation2 + $0x38] sm:$0xff] %v1032
  %1586 = vst [vmem:[#allocation2 + $0x40] sm:$0xff] %v1035
  %1587 = vst [vmem:[#allocation2 + $0x48] sm:$0xff] %v1037
  %1588 = vst [vmem:[#allocation2 + $0x50] sm:$0xff] %v1040
  %1589 = vst [vmem:[#allocation2 + $0x58] sm:$0xff] %v1042
  %1590 = vst [vmem:[#allocation2 + $0x60] sm:$0xff] %v1045
  %1591 = vst [vmem:[#allocation2 + $0x68] sm:$0xff] %v1047
  %1592 = vst [vmem:[#allocation2 + $0x70] sm:$0xff] %v1050
  %1593 = vst [vmem:[#allocation2 + $0x78] sm:$0xff] %v1052
  %1594 = vst [vmem:[#allocation2 + $0x80] sm:$0xff] %v1055
  %1595 = vst [vmem:[#allocation2 + $0x88] sm:$0xff] %v1057
  %1596 = vst [vmem:[#allocation2 + $0x90] sm:$0xff] %v1060
  %1597 = vst [vmem:[#allocation2 + $0x98] sm:$0xff] %v1062
  %1598 = vst [vmem:[#allocation2 + $0xa0] sm:$0xff] %v1065
  %1599 = vst [vmem:[#allocation2 + $0xa8] sm:$0xff] %v1067
  %1600 = vst [vmem:[#allocation2 + $0xb0] sm:$0xff] %v1070
  %1601 = vst [vmem:[#allocation2 + $0xb8] sm:$0xff] %v1072
  %1602 = vst [vmem:[#allocation2 + $0xc0] sm:$0xff] %v1075
  %1603 = vst [vmem:[#allocation2 + $0xc8] sm:$0xff] %v1077
  %1604 = vst [vmem:[#allocation2 + $0xd0] sm:$0xff] %v1080
  %1605 = vst [vmem:[#allocation2 + $0xd8] sm:$0xff] %v1082
  %1606 = vst [vmem:[#allocation2 + $0xe0] sm:$0xff] %v1085
  %1607 = vst [vmem:[#allocation2 + $0xe8] sm:$0xff] %v1087
  %1608 = vst [vmem:[#allocation2 + $0xf0] sm:$0xff] %v1090
  %1609 = vst [vmem:[#allocation2 + $0xf8] sm:$0xff] %v1092
  %1610 = vst [vmem:[#allocation2 + $0x100] sm:$0xff] %v1095
  %1611 = vst [vmem:[#allocation2 + $0x108] sm:$0xff] %v1097
  %1612 = vst [vmem:[#allocation2 + $0x110] sm:$0xff] %v1100
  %1613 = vst [vmem:[#allocation2 + $0x118] sm:$0xff] %v1102
  %1614 = vst [vmem:[#allocation2 + $0x120] sm:$0xff] %v1105
  %1615 = vst [vmem:[#allocation2 + $0x128] sm:$0xff] %v1107
  %1616 = vst [vmem:[#allocation2 + $0x130] sm:$0xff] %v1110
  %1617 = vst [vmem:[#allocation2 + $0x138] sm:$0xff] %v1112
  %1618 = vst [vmem:[#allocation2 + $0x140] sm:$0xff] %v1115
  %1619 = vst [vmem:[#allocation2 + $0x148] sm:$0xff] %v1117
  %1620 = vst [vmem:[#allocation2 + $0x150] sm:$0xff] %v1120
  %1621 = vst [vmem:[#allocation2 + $0x158] sm:$0xff] %v1122
  %1622 = vst [vmem:[#allocation2 + $0x160] sm:$0xff] %v1125
  %1623 = vst [vmem:[#allocation2 + $0x168] sm:$0xff] %v1127
  %1624 = vst [vmem:[#allocation2 + $0x170] sm:$0xff] %v1130
  %1625 = vst [vmem:[#allocation2 + $0x178] sm:$0xff] %v1132
  %1626 = vst [vmem:[#allocation2 + $0x180] sm:$0xff] %v1135
  %1627 = vst [vmem:[#allocation2 + $0x188] sm:$0xff] %v1137
  %1628 = vst [vmem:[#allocation2 + $0x190] sm:$0xff] %v1140
  %1629 = vst [vmem:[#allocation2 + $0x198] sm:$0xff] %v1142
  %1630 = vst [vmem:[#allocation2 + $0x1a0] sm:$0xff] %v1145
  %1631 = vst [vmem:[#allocation2 + $0x1a8] sm:$0xff] %v1147
  %1632 = vst [vmem:[#allocation2 + $0x1b0] sm:$0xff] %v1150
  %1633 = vst [vmem:[#allocation2 + $0x1b8] sm:$0xff] %v1152
  %1634 = vst [vmem:[#allocation2 + $0x1c0] sm:$0xff] %v1155
  %1635 = vst [vmem:[#allocation2 + $0x1c8] sm:$0xff] %v1157
  %1636 = vst [vmem:[#allocation2 + $0x1d0] sm:$0xff] %v1160
  %1637 = vst [vmem:[#allocation2 + $0x1d8] sm:$0xff] %v1162
  %1638 = vst [vmem:[#allocation2 + $0x1e0] sm:$0xff] %v1165
  %1639 = vst [vmem:[#allocation2 + $0x1e8] sm:$0xff] %v1167
  %1640 = vst [vmem:[#allocation2 + $0x1f0] sm:$0xff] %v1170
  %1641 = vst [vmem:[#allocation2 + $0x1f8] sm:$0xff] %v1172
  %1642 = vst [vmem:[#allocation2 + $0x200] sm:$0xff] %v1175
  %1643 = vst [vmem:[#allocation2 + $0x208] sm:$0xff] %v1177
  %1644 = vst [vmem:[#allocation2 + $0x210] sm:$0xff] %v1180
  %1645 = vst [vmem:[#allocation2 + $0x218] sm:$0xff] %v1182
  %1646 = vst [vmem:[#allocation2 + $0x220] sm:$0xff] %v1185
  %1647 = vst [vmem:[#allocation2 + $0x228] sm:$0xff] %v1187
  %1648 = vst [vmem:[#allocation2 + $0x230] sm:$0xff] %v1190
  %1649 = vst [vmem:[#allocation2 + $0x238] sm:$0xff] %v1192
  %1650 = vst [vmem:[#allocation2 + $0x240] sm:$0xff] %v1195
  %1651 = vst [vmem:[#allocation2 + $0x248] sm:$0xff] %v1197
  %1652 = vst [vmem:[#allocation2 + $0x250] sm:$0xff] %v1200
  %1653 = vst [vmem:[#allocation2 + $0x258] sm:$0xff] %v1202
  %1654 = vst [vmem:[#allocation2 + $0x260] sm:$0xff] %v1205
  %1655 = vst [vmem:[#allocation2 + $0x268] sm:$0xff] %v1207
  %1656 = vst [vmem:[#allocation2 + $0x270] sm:$0xff] %v1210
  %1657 = vst [vmem:[#allocation2 + $0x278] sm:$0xff] %v1212
  %1658 = vst [vmem:[#allocation2 + $0x280] sm:$0xff] %v1215
  %1659 = vst [vmem:[#allocation2 + $0x288] sm:$0xff] %v1217
  %1660 = vst [vmem:[#allocation2 + $0x290] sm:$0xff] %v1220
  %1661 = vst [vmem:[#allocation2 + $0x298] sm:$0xff] %v1222
  %1662 = vst [vmem:[#allocation2 + $0x2a0] sm:$0xff] %v1225
  %1663 = vst [vmem:[#allocation2 + $0x2a8] sm:$0xff] %v1227
  %1664 = vst [vmem:[#allocation2 + $0x2b0] sm:$0xff] %v1230
  %1665 = vst [vmem:[#allocation2 + $0x2b8] sm:$0xff] %v1232
  %1666 = vst [vmem:[#allocation2 + $0x2c0] sm:$0xff] %v1235
  %1667 = vst [vmem:[#allocation2 + $0x2c8] sm:$0xff] %v1237
  %1668 = vst [vmem:[#allocation2 + $0x2d0] sm:$0xff] %v1240
  %1669 = vst [vmem:[#allocation2 + $0x2d8] sm:$0xff] %v1242
  %1670 = vst [vmem:[#allocation2 + $0x2e0] sm:$0xff] %v1245
  %1671 = vst [vmem:[#allocation2 + $0x2e8] sm:$0xff] %v1247
  %1672 = vst [vmem:[#allocation2 + $0x2f0] sm:$0xff] %v1250
  %1673 = vst [vmem:[#allocation2 + $0x2f8] sm:$0xff] %v1252
  %1674 = vst [vmem:[#allocation2 + $0x300] sm:$0xff] %v1255
  %1675 = vst [vmem:[#allocation2 + $0x308] sm:$0xff] %v1257
  %1676 = vst [vmem:[#allocation2 + $0x310] sm:$0xff] %v1260
  %1677 = vst [vmem:[#allocation2 + $0x318] sm:$0xff] %v1262
  %1678 = vst [vmem:[#allocation2 + $0x320] sm:$0xff] %v1265
  %1679 = vst [vmem:[#allocation2 + $0x328] sm:$0xff] %v1267
  %1680 = vst [vmem:[#allocation2 + $0x330] sm:$0xff] %v1270
  %1681 = vst [vmem:[#allocation2 + $0x338] sm:$0xff] %v1272
  %1682 = vst [vmem:[#allocation2 + $0x340] sm:$0xff] %v1275
  %1683 = vst [vmem:[#allocation2 + $0x348] sm:$0xff] %v1277
  %1684 = vst [vmem:[#allocation2 + $0x350] sm:$0xff] %v1280
  %1685 = vst [vmem:[#allocation2 + $0x358] sm:$0xff] %v1282
  %1686 = vst [vmem:[#allocation2 + $0x360] sm:$0xff] %v1285
  %1687 = vst [vmem:[#allocation2 + $0x368] sm:$0xff] %v1287
  %1688 = vst [vmem:[#allocation2 + $0x370] sm:$0xff] %v1290
  %1689 = vst [vmem:[#allocation2 + $0x378] sm:$0xff] %v1292
  %1690 = vst [vmem:[#allocation2 + $0x380] sm:$0xff] %v1295
  %1691 = vst [vmem:[#allocation2 + $0x388] sm:$0xff] %v1297
  %1692 = vst [vmem:[#allocation2 + $0x390] sm:$0xff] %v1300
  %1693 = vst [vmem:[#allocation2 + $0x398] sm:$0xff] %v1302
  %1694 = vst [vmem:[#allocation2 + $0x3a0] sm:$0xff] %v1305
  %1695 = vst [vmem:[#allocation2 + $0x3a8] sm:$0xff] %v1307
  %1696 = vst [vmem:[#allocation2 + $0x3b0] sm:$0xff] %v1310
  %1697 = vst [vmem:[#allocation2 + $0x3b8] sm:$0xff] %v1312
  %1698 = vst [vmem:[#allocation2 + $0x3c0] sm:$0xff] %v1315
  %1699 = vst [vmem:[#allocation2 + $0x3c8] sm:$0xff] %v1317
  %1700 = vst [vmem:[#allocation2 + $0x3d0] sm:$0xff] %v1320
  %1701 = vst [vmem:[#allocation2 + $0x3d8] sm:$0xff] %v1322
  %1702 = vst [vmem:[#allocation2 + $0x3e0] sm:$0xff] %v1325
  %1703 = vst [vmem:[#allocation2 + $0x3e8] sm:$0xff] %v1327
  %1704 = vst [vmem:[#allocation2 + $0x3f0] sm:$0xff] %v1330
  %1705 = vst [vmem:[#allocation2 + $0x3f8] sm:$0xff] %v1332
  %1706 = vst [vmem:[#allocation2 + $0x400] sm:$0xff] %v1335
  %1707 = vst [vmem:[#allocation2 + $0x408] sm:$0xff] %v1337
  %1708 = vst [vmem:[#allocation2 + $0x410] sm:$0xff] %v1340
  %1709 = vst [vmem:[#allocation2 + $0x418] sm:$0xff] %v1342
  %1710 = vst [vmem:[#allocation2 + $0x420] sm:$0xff] %v1345
  %1711 = vst [vmem:[#allocation2 + $0x428] sm:$0xff] %v1347
  %1712 = vst [vmem:[#allocation2 + $0x430] sm:$0xff] %v1350
  %1713 = vst [vmem:[#allocation2 + $0x438] sm:$0xff] %v1352
  %1714 = vst [vmem:[#allocation2 + $0x440] sm:$0xff] %v1355
  %1715 = vst [vmem:[#allocation2 + $0x448] sm:$0xff] %v1357
  %1716 = vst [vmem:[#allocation2 + $0x450] sm:$0xff] %v1360
  %1717 = vst [vmem:[#allocation2 + $0x458] sm:$0xff] %v1362
  %1718 = vst [vmem:[#allocation2 + $0x460] sm:$0xff] %v1365
  %1719 = vst [vmem:[#allocation2 + $0x468] sm:$0xff] %v1367
  %1720 = vst [vmem:[#allocation2 + $0x470] sm:$0xff] %v1370
  %1721 = vst [vmem:[#allocation2 + $0x478] sm:$0xff] %v1372
  %1722 = vst [vmem:[#allocation2 + $0x480] sm:$0xff] %v1375
  %1723 = vst [vmem:[#allocation2 + $0x488] sm:$0xff] %v1377
  %1724 = vst [vmem:[#allocation2 + $0x490] sm:$0xff] %v1380
  %1725 = vst [vmem:[#allocation2 + $0x498] sm:$0xff] %v1382
  %1726 = vst [vmem:[#allocation2 + $0x4a0] sm:$0xff] %v1385
  %1727 = vst [vmem:[#allocation2 + $0x4a8] sm:$0xff] %v1387
  %1728 = vst [vmem:[#allocation2 + $0x4b0] sm:$0xff] %v1390
  %1729 = vst [vmem:[#allocation2 + $0x4b8] sm:$0xff] %v1392
  %1730 = vst [vmem:[#allocation2 + $0x4c0] sm:$0xff] %v1395
  %1731 = vst [vmem:[#allocation2 + $0x4c8] sm:$0xff] %v1397
  %1732 = vst [vmem:[#allocation2 + $0x4d0] sm:$0xff] %v1400
  %1733 = vst [vmem:[#allocation2 + $0x4d8] sm:$0xff] %v1402
  %1734 = vst [vmem:[#allocation2 + $0x4e0] sm:$0xff] %v1405
  %1735 = vst [vmem:[#allocation2 + $0x4e8] sm:$0xff] %v1407
  %1736 = vst [vmem:[#allocation2 + $0x4f0] sm:$0xff] %v1410
  %1737 = vst [vmem:[#allocation2 + $0x4f8] sm:$0xff] %v1412
  %1738 = vst [vmem:[#allocation2 + $0x500] sm:$0xff] %v1415
  %1739 = vst [vmem:[#allocation2 + $0x508] sm:$0xff] %v1417
  %1740 = vst [vmem:[#allocation2 + $0x510] sm:$0xff] %v1420
  %1741 = vst [vmem:[#allocation2 + $0x518] sm:$0xff] %v1422
  %1742 = vst [vmem:[#allocation2 + $0x520] sm:$0xff] %v1425
  %1743 = vst [vmem:[#allocation2 + $0x528] sm:$0xff] %v1427
  %1744 = vst [vmem:[#allocation2 + $0x530] sm:$0xff] %v1430
  %1745 = vst [vmem:[#allocation2 + $0x538] sm:$0xff] %v1432
  %1746 = vst [vmem:[#allocation2 + $0x540] sm:$0xff] %v1435
  %1747 = vst [vmem:[#allocation2 + $0x548] sm:$0xff] %v1437
  %1748 = vst [vmem:[#allocation2 + $0x550] sm:$0xff] %v1440
  %1749 = vst [vmem:[#allocation2 + $0x558] sm:$0xff] %v1442
  %1750 = vst [vmem:[#allocation2 + $0x560] sm:$0xff] %v1445
  %1751 = vst [vmem:[#allocation2 + $0x568] sm:$0xff] %v1447
  %1752 = vst [vmem:[#allocation2 + $0x570] sm:$0xff] %v1450
  %1753 = vst [vmem:[#allocation2 + $0x578] sm:$0xff] %v1452
  %1754 = vst [vmem:[#allocation2 + $0x580] sm:$0xff] %v1455
  %1755 = vst [vmem:[#allocation2 + $0x588] sm:$0xff] %v1457
  %1756 = vst [vmem:[#allocation2 + $0x590] sm:$0xff] %v1460
  %1757 = vst [vmem:[#allocation2 + $0x598] sm:$0xff] %v1462
  %1758 = vst [vmem:[#allocation2 + $0x5a0] sm:$0xff] %v1465
  %1759 = vst [vmem:[#allocation2 + $0x5a8] sm:$0xff] %v1467
  %1760 = vst [vmem:[#allocation2 + $0x5b0] sm:$0xff] %v1470
  %1761 = vst [vmem:[#allocation2 + $0x5b8] sm:$0xff] %v1472
  %1762 = vst [vmem:[#allocation2 + $0x5c0] sm:$0xff] %v1475
  %1763 = vst [vmem:[#allocation2 + $0x5c8] sm:$0xff] %v1477
  %1764 = vst [vmem:[#allocation2 + $0x5d0] sm:$0xff] %v1480
  %1765 = vst [vmem:[#allocation2 + $0x5d8] sm:$0xff] %v1482
  %1766 = vst [vmem:[#allocation2 + $0x5e0] sm:$0xff] %v1485
  %1767 = vst [vmem:[#allocation2 + $0x5e8] sm:$0xff] %v1487
  %1768 = vst [vmem:[#allocation2 + $0x5f0] sm:$0xff] %v1490
  %1769 = vst [vmem:[#allocation2 + $0x5f8] sm:$0xff] %v1492
  %1770 = vst [vmem:[#allocation2 + $0x600] sm:$0xff] %v1495
  %1771 = vst [vmem:[#allocation2 + $0x608] sm:$0xff] %v1497
  %1772 = vst [vmem:[#allocation2 + $0x610] sm:$0xff] %v1500
  %1773 = vst [vmem:[#allocation2 + $0x618] sm:$0xff] %v1502
  %1774 = vst [vmem:[#allocation2 + $0x620] sm:$0xff] %v1505
  %1775 = vst [vmem:[#allocation2 + $0x628] sm:$0xff] %v1507
  %1776 = vst [vmem:[#allocation2 + $0x630] sm:$0xff] %v1510
  %1777 = vst [vmem:[#allocation2 + $0x638] sm:$0xff] %v1512
  %1778 = vst [vmem:[#allocation2 + $0x640] sm:$0xff] %v1515
  %1779 = vst [vmem:[#allocation2 + $0x648] sm:$0xff] %v1517
  %1780 = vst [vmem:[#allocation2 + $0x650] sm:$0xff] %v1520
  %1781 = vst [vmem:[#allocation2 + $0x658] sm:$0xff] %v1522
  %1782 = vst [vmem:[#allocation2 + $0x660] sm:$0xff] %v1525
  %1783 = vst [vmem:[#allocation2 + $0x668] sm:$0xff] %v1527
  %1784 = vst [vmem:[#allocation2 + $0x670] sm:$0xff] %v1530
  %1785 = vst [vmem:[#allocation2 + $0x678] sm:$0xff] %v1532
  %1786 = vst [vmem:[#allocation2 + $0x680] sm:$0xff] %v1535
  %1787 = vst [vmem:[#allocation2 + $0x688] sm:$0xff] %v1537
  %1788 = vst [vmem:[#allocation2 + $0x690] sm:$0xff] %v1540
  %1789 = vst [vmem:[#allocation2 + $0x698] sm:$0xff] %v1542
  %1790 = vst [vmem:[#allocation2 + $0x6a0] sm:$0xff] %v1545
  %1791 = vst [vmem:[#allocation2 + $0x6a8] sm:$0xff] %v1547
  %1792 = vst [vmem:[#allocation2 + $0x6b0] sm:$0xff] %v1550
  %1793 = vst [vmem:[#allocation2 + $0x6b8] sm:$0xff] %v1552
  %1794 = vst [vmem:[#allocation2 + $0x6c0] sm:$0xff] %v1555
  %1795 = vst [vmem:[#allocation2 + $0x6c8] sm:$0xff] %v1557
  %1796 = vst [vmem:[#allocation2 + $0x6d0] sm:$0xff] %v1560
  %1797 = vst [vmem:[#allocation2 + $0x6d8] sm:$0xff] %v1562
  %1798 = vst [vmem:[#allocation2 + $0x6e0] sm:$0xff] %v1565
  %1799 = vst [vmem:[#allocation2 + $0x6e8] sm:$0xff] %v1567
  %1800 = vst [vmem:[#allocation2 + $0x6f0] sm:$0xff] %v1570
  %1801 = vst [vmem:[#allocation2 + $0x6f8] sm:$0xff] %v1572
  %1802 = vst [vmem:[#allocation2 + $0x700] sm:$0xff] %v1575
  %v1803 = vld [vmem:[#allocation2] sm:$0xff]
  %v1804 = vld [vmem:[#allocation2 + $0x8] sm:$0xff]
  %v1805 = vld [vmem:[#allocation2 + $0x10] sm:$0xff]
  %v1806 = vld [vmem:[#allocation2 + $0x18] sm:$0xff]
  %v1807 = vld [vmem:[#allocation2 + $0x20] sm:$0xff]
  %v1808 = vld [vmem:[#allocation2 + $0x28] sm:$0xff]
  %v1809 = vld [vmem:[#allocation2 + $0x30] sm:$0xff]
  %v1810 = vld [vmem:[#allocation2 + $0x38] sm:$0xff]
  %v1811 = vld [vmem:[#allocation2 + $0x40] sm:$0xff]
  %v1812 = vld [vmem:[#allocation2 + $0x48] sm:$0xff]
  %v1813 = vld [vmem:[#allocation2 + $0x50] sm:$0xff]
  %v1814 = vld [vmem:[#allocation2 + $0x58] sm:$0xff]
  %v1815 = vld [vmem:[#allocation2 + $0x60] sm:$0xff]
  %v1816 = vld [vmem:[#allocation2 + $0x68] sm:$0xff]
  %v1817 = vld [vmem:[#allocation2 + $0x70] sm:$0xff]
  %v1818 = vld [vmem:[#allocation2 + $0x78] sm:$0xff]
  %v1819 = vld [vmem:[#allocation2 + $0x80] sm:$0xff]
  %v1820 = vld [vmem:[#allocation2 + $0x88] sm:$0xff]
  %v1821 = vld [vmem:[#allocation2 + $0x90] sm:$0xff]
  %v1822 = vld [vmem:[#allocation2 + $0x98] sm:$0xff]
  %v1823 = vld [vmem:[#allocation2 + $0xa0] sm:$0xff]
  %v1824 = vld [vmem:[#allocation2 + $0xa8] sm:$0xff]
  %v1825 = vld [vmem:[#allocation2 + $0xb0] sm:$0xff]
  %v1826 = vld [vmem:[#allocation2 + $0xb8] sm:$0xff]
  %v1827 = vld [vmem:[#allocation2 + $0xc0] sm:$0xff]
  %v1828 = vld [vmem:[#allocation2 + $0xc8] sm:$0xff]
  %v1829 = vld [vmem:[#allocation2 + $0xd0] sm:$0xff]
  %v1830 = vld [vmem:[#allocation2 + $0xd8] sm:$0xff]
  %v1831 = vld [vmem:[#allocation2 + $0xe0] sm:$0xff]
  %v1832 = vld [vmem:[#allocation2 + $0xe8] sm:$0xff]
  %v1833 = vld [vmem:[#allocation2 + $0xf0] sm:$0xff]
  %v1834 = vld [vmem:[#allocation2 + $0xf8] sm:$0xff]
  %v1835 = vld [vmem:[#allocation2 + $0x100] sm:$0xff]
  %v1836 = vld [vmem:[#allocation2 + $0x108] sm:$0xff]
  %v1837 = vld [vmem:[#allocation2 + $0x110] sm:$0xff]
  %v1838 = vld [vmem:[#allocation2 + $0x118] sm:$0xff]
  %v1839 = vld [vmem:[#allocation2 + $0x120] sm:$0xff]
  %v1840 = vld [vmem:[#allocation2 + $0x128] sm:$0xff]
  %v1841 = vld [vmem:[#allocation2 + $0x130] sm:$0xff]
  %v1842 = vld [vmem:[#allocation2 + $0x138] sm:$0xff]
  %v1843 = vld [vmem:[#allocation2 + $0x140] sm:$0xff]
  %v1844 = vld [vmem:[#allocation2 + $0x148] sm:$0xff]
  %v1845 = vld [vmem:[#allocation2 + $0x150] sm:$0xff]
  %v1846 = vld [vmem:[#allocation2 + $0x158] sm:$0xff]
  %v1847 = vld [vmem:[#allocation2 + $0x160] sm:$0xff]
  %v1848 = vld [vmem:[#allocation2 + $0x168] sm:$0xff]
  %v1849 = vld [vmem:[#allocation2 + $0x170] sm:$0xff]
  %v1850 = vld [vmem:[#allocation2 + $0x178] sm:$0xff]
  %v1851 = vld [vmem:[#allocation2 + $0x180] sm:$0xff]
  %v1852 = vld [vmem:[#allocation2 + $0x188] sm:$0xff]
  %v1853 = vld [vmem:[#allocation2 + $0x190] sm:$0xff]
  %v1854 = vld [vmem:[#allocation2 + $0x198] sm:$0xff]
  %v1855 = vld [vmem:[#allocation2 + $0x1a0] sm:$0xff]
  %v1856 = vld [vmem:[#allocation2 + $0x1a8] sm:$0xff]
  %v1857 = vld [vmem:[#allocation2 + $0x1b0] sm:$0xff]
  %v1858 = vld [vmem:[#allocation2 + $0x1b8] sm:$0xff]
  %v1859 = vld [vmem:[#allocation2 + $0x1c0] sm:$0xff]
  %v1860 = vld [vmem:[#allocation2 + $0x1c8] sm:$0xff]
  %v1861 = vld [vmem:[#allocation2 + $0x1d0] sm:$0xff]
  %v1862 = vld [vmem:[#allocation2 + $0x1d8] sm:$0xff]
  %v1863 = vld [vmem:[#allocation2 + $0x1e0] sm:$0xff]
  %v1864 = vld [vmem:[#allocation2 + $0x1e8] sm:$0xff]
  %v1865 = vld [vmem:[#allocation2 + $0x1f0] sm:$0xff]
  %v1866 = vld [vmem:[#allocation2 + $0x1f8] sm:$0xff]
  %v1867 = vld [vmem:[#allocation2 + $0x200] sm:$0xff]
  %v1868 = vld [vmem:[#allocation2 + $0x208] sm:$0xff]
  %v1869 = vld [vmem:[#allocation2 + $0x210] sm:$0xff]
  %v1870 = vld [vmem:[#allocation2 + $0x218] sm:$0xff]
  %v1871 = vld [vmem:[#allocation2 + $0x220] sm:$0xff]
  %v1872 = vld [vmem:[#allocation2 + $0x228] sm:$0xff]
  %v1873 = vld [vmem:[#allocation2 + $0x230] sm:$0xff]
  %v1874 = vld [vmem:[#allocation2 + $0x238] sm:$0xff]
  %v1875 = vld [vmem:[#allocation2 + $0x240] sm:$0xff]
  %v1876 = vld [vmem:[#allocation2 + $0x248] sm:$0xff]
  %v1877 = vld [vmem:[#allocation2 + $0x250] sm:$0xff]
  %v1878 = vld [vmem:[#allocation2 + $0x258] sm:$0xff]
  %v1879 = vld [vmem:[#allocation2 + $0x260] sm:$0xff]
  %v1880 = vld [vmem:[#allocation2 + $0x268] sm:$0xff]
  %v1881 = vld [vmem:[#allocation2 + $0x270] sm:$0xff]
  %v1882 = vld [vmem:[#allocation2 + $0x278] sm:$0xff]
  %v1883 = vld [vmem:[#allocation2 + $0x280] sm:$0xff]
  %v1884 = vld [vmem:[#allocation2 + $0x288] sm:$0xff]
  %v1885 = vld [vmem:[#allocation2 + $0x290] sm:$0xff]
  %v1886 = vld [vmem:[#allocation2 + $0x298] sm:$0xff]
  %v1887 = vld [vmem:[#allocation2 + $0x2a0] sm:$0xff]
  %v1888 = vld [vmem:[#allocation2 + $0x2a8] sm:$0xff]
  %v1889 = vld [vmem:[#allocation2 + $0x2b0] sm:$0xff]
  %v1890 = vld [vmem:[#allocation2 + $0x2b8] sm:$0xff]
  %v1891 = vld [vmem:[#allocation2 + $0x2c0] sm:$0xff]
  %v1892 = vld [vmem:[#allocation2 + $0x2c8] sm:$0xff]
  %v1893 = vld [vmem:[#allocation2 + $0x2d0] sm:$0xff]
  %v1894 = vld [vmem:[#allocation2 + $0x2d8] sm:$0xff]
  %v1895 = vld [vmem:[#allocation2 + $0x2e0] sm:$0xff]
  %v1896 = vld [vmem:[#allocation2 + $0x2e8] sm:$0xff]
  %v1897 = vld [vmem:[#allocation2 + $0x2f0] sm:$0xff]
  %v1898 = vld [vmem:[#allocation2 + $0x2f8] sm:$0xff]
  %v1899 = vld [vmem:[#allocation2 + $0x300] sm:$0xff]
  %v1900 = vld [vmem:[#allocation2 + $0x308] sm:$0xff]
  %v1901 = vld [vmem:[#allocation2 + $0x310] sm:$0xff]
  %v1902 = vld [vmem:[#allocation2 + $0x318] sm:$0xff]
  %v1903 = vld [vmem:[#allocation2 + $0x320] sm:$0xff]
  %v1904 = vld [vmem:[#allocation2 + $0x328] sm:$0xff]
  %v1905 = vld [vmem:[#allocation2 + $0x330] sm:$0xff]
  %v1906 = vld [vmem:[#allocation2 + $0x338] sm:$0xff]
  %v1907 = vld [vmem:[#allocation2 + $0x340] sm:$0xff]
  %v1908 = vld [vmem:[#allocation2 + $0x348] sm:$0xff]
  %v1909 = vld [vmem:[#allocation2 + $0x350] sm:$0xff]
  %v1910 = vld [vmem:[#allocation2 + $0x358] sm:$0xff]
  %v1911 = vld [vmem:[#allocation2 + $0x360] sm:$0xff]
  %v1912 = vld [vmem:[#allocation2 + $0x368] sm:$0xff]
  %v1913 = vld [vmem:[#allocation2 + $0x370] sm:$0xff]
  %v1914 = vld [vmem:[#allocation2 + $0x378] sm:$0xff]
  %v1915 = vld [vmem:[#allocation2 + $0x380] sm:$0xff]
  %v1916 = vld [vmem:[#allocation2 + $0x388] sm:$0xff]
  %v1917 = vld [vmem:[#allocation2 + $0x390] sm:$0xff]
  %v1918 = vld [vmem:[#allocation2 + $0x398] sm:$0xff]
  %v1919 = vld [vmem:[#allocation2 + $0x3a0] sm:$0xff]
  %v1920 = vld [vmem:[#allocation2 + $0x3a8] sm:$0xff]
  %v1921 = vld [vmem:[#allocation2 + $0x3b0] sm:$0xff]
  %v1922 = vld [vmem:[#allocation2 + $0x3b8] sm:$0xff]
  %v1923 = vld [vmem:[#allocation2 + $0x3c0] sm:$0xff]
  %v1924 = vld [vmem:[#allocation2 + $0x3c8] sm:$0xff]
  %v1925 = vld [vmem:[#allocation2 + $0x3d0] sm:$0xff]
  %v1926 = vld [vmem:[#allocation2 + $0x3d8] sm:$0xff]
  %v1927 = vld [vmem:[#allocation2 + $0x3e0] sm:$0xff]
  %v1928 = vld [vmem:[#allocation2 + $0x3e8] sm:$0xff]
  %v1929 = vld [vmem:[#allocation2 + $0x3f0] sm:$0xff]
  %v1930 = vld [vmem:[#allocation2 + $0x3f8] sm:$0xff]
  %v1931 = vld [vmem:[#allocation2 + $0x400] sm:$0xff]
  %v1932 = vld [vmem:[#allocation2 + $0x408] sm:$0xff]
  %v1933 = vld [vmem:[#allocation2 + $0x410] sm:$0xff]
  %v1934 = vld [vmem:[#allocation2 + $0x418] sm:$0xff]
  %v1935 = vld [vmem:[#allocation2 + $0x420] sm:$0xff]
  %v1936 = vld [vmem:[#allocation2 + $0x428] sm:$0xff]
  %v1937 = vld [vmem:[#allocation2 + $0x430] sm:$0xff]
  %v1938 = vld [vmem:[#allocation2 + $0x438] sm:$0xff]
  %v1939 = vld [vmem:[#allocation2 + $0x440] sm:$0xff]
  %v1940 = vld [vmem:[#allocation2 + $0x448] sm:$0xff]
  %v1941 = vld [vmem:[#allocation2 + $0x450] sm:$0xff]
  %v1942 = vld [vmem:[#allocation2 + $0x458] sm:$0xff]
  %v1943 = vld [vmem:[#allocation2 + $0x460] sm:$0xff]
  %v1944 = vld [vmem:[#allocation2 + $0x468] sm:$0xff]
  %v1945 = vld [vmem:[#allocation2 + $0x470] sm:$0xff]
  %v1946 = vld [vmem:[#allocation2 + $0x478] sm:$0xff]
  %v1947 = vld [vmem:[#allocation2 + $0x480] sm:$0xff]
  %v1948 = vld [vmem:[#allocation2 + $0x488] sm:$0xff]
  %v1949 = vld [vmem:[#allocation2 + $0x490] sm:$0xff]
  %v1950 = vld [vmem:[#allocation2 + $0x498] sm:$0xff]
  %v1951 = vld [vmem:[#allocation2 + $0x4a0] sm:$0xff]
  %v1952 = vld [vmem:[#allocation2 + $0x4a8] sm:$0xff]
  %v1953 = vld [vmem:[#allocation2 + $0x4b0] sm:$0xff]
  %v1954 = vld [vmem:[#allocation2 + $0x4b8] sm:$0xff]
  %v1955 = vld [vmem:[#allocation2 + $0x4c0] sm:$0xff]
  %v1956 = vld [vmem:[#allocation2 + $0x4c8] sm:$0xff]
  %v1957 = vld [vmem:[#allocation2 + $0x4d0] sm:$0xff]
  %v1958 = vld [vmem:[#allocation2 + $0x4d8] sm:$0xff]
  %v1959 = vld [vmem:[#allocation2 + $0x4e0] sm:$0xff]
  %v1960 = vld [vmem:[#allocation2 + $0x4e8] sm:$0xff]
  %v1961 = vld [vmem:[#allocation2 + $0x4f0] sm:$0xff]
  %v1962 = vld [vmem:[#allocation2 + $0x4f8] sm:$0xff]
  %v1963 = vld [vmem:[#allocation2 + $0x500] sm:$0xff]
  %v1964 = vld [vmem:[#allocation2 + $0x508] sm:$0xff]
  %v1965 = vld [vmem:[#allocation2 + $0x510] sm:$0xff]
  %v1966 = vld [vmem:[#allocation2 + $0x518] sm:$0xff]
  %v1967 = vld [vmem:[#allocation2 + $0x520] sm:$0xff]
  %v1968 = vld [vmem:[#allocation2 + $0x528] sm:$0xff]
  %v1969 = vld [vmem:[#allocation2 + $0x530] sm:$0xff]
  %v1970 = vld [vmem:[#allocation2 + $0x538] sm:$0xff]
  %v1971 = vld [vmem:[#allocation2 + $0x540] sm:$0xff]
  %v1972 = vld [vmem:[#allocation2 + $0x548] sm:$0xff]
  %v1973 = vld [vmem:[#allocation2 + $0x550] sm:$0xff]
  %v1974 = vld [vmem:[#allocation2 + $0x558] sm:$0xff]
  %v1975 = vld [vmem:[#allocation2 + $0x560] sm:$0xff]
  %v1976 = vld [vmem:[#allocation2 + $0x568] sm:$0xff]
  %v1977 = vld [vmem:[#allocation2 + $0x570] sm:$0xff]
  %v1978 = vld [vmem:[#allocation2 + $0x578] sm:$0xff]
  %v1979 = vld [vmem:[#allocation2 + $0x580] sm:$0xff]
  %v1980 = vld [vmem:[#allocation2 + $0x588] sm:$0xff]
  %v1981 = vld [vmem:[#allocation2 + $0x590] sm:$0xff]
  %v1982 = vld [vmem:[#allocation2 + $0x598] sm:$0xff]
  %v1983 = vld [vmem:[#allocation2 + $0x5a0] sm:$0xff]
  %v1984 = vld [vmem:[#allocation2 + $0x5a8] sm:$0xff]
  %v1985 = vld [vmem:[#allocation2 + $0x5b0] sm:$0xff]
  %v1986 = vld [vmem:[#allocation2 + $0x5b8] sm:$0xff]
  %v1987 = vld [vmem:[#allocation2 + $0x5c0] sm:$0xff]
  %v1988 = vld [vmem:[#allocation2 + $0x5c8] sm:$0xff]
  %v1989 = vld [vmem:[#allocation2 + $0x5d0] sm:$0xff]
  %v1990 = vld [vmem:[#allocation2 + $0x5d8] sm:$0xff]
  %v1991 = vld [vmem:[#allocation2 + $0x5e0] sm:$0xff]
  %v1992 = vld [vmem:[#allocation2 + $0x5e8] sm:$0xff]
  %v1993 = vld [vmem:[#allocation2 + $0x5f0] sm:$0xff]
  %v1994 = vld [vmem:[#allocation2 + $0x5f8] sm:$0xff]
  %v1995 = vld [vmem:[#allocation2 + $0x600] sm:$0xff]
  %v1996 = vld [vmem:[#allocation2 + $0x608] sm:$0xff]
  %v1997 = vld [vmem:[#allocation2 + $0x610] sm:$0xff]
  %v1998 = vld [vmem:[#allocation2 + $0x618] sm:$0xff]
  %v1999 = vld [vmem:[#allocation2 + $0x620] sm:$0xff]
  %v2000 = vld [vmem:[#allocation2 + $0x628] sm:$0xff]
  %v2001 = vld [vmem:[#allocation2 + $0x630] sm:$0xff]
  %v2002 = vld [vmem:[#allocation2 + $0x638] sm:$0xff]
  %v2003 = vld [vmem:[#allocation2 + $0x640] sm:$0xff]
  %v2004 = vld [vmem:[#allocation2 + $0x648] sm:$0xff]
  %v2005 = vld [vmem:[#allocation2 + $0x650] sm:$0xff]
  %v2006 = vld [vmem:[#allocation2 + $0x658] sm:$0xff]
  %v2007 = vld [vmem:[#allocation2 + $0x660] sm:$0xff]
  %v2008 = vld [vmem:[#allocation2 + $0x668] sm:$0xff]
  %v2009 = vld [vmem:[#allocation2 + $0x670] sm:$0xff]
  %v2010 = vld [vmem:[#allocation2 + $0x678] sm:$0xff]
  %v2011 = vld [vmem:[#allocation2 + $0x680] sm:$0xff]
  %v2012 = vld [vmem:[#allocation2 + $0x688] sm:$0xff]
  %v2013 = vld [vmem:[#allocation2 + $0x690] sm:$0xff]
  %v2014 = vld [vmem:[#allocation2 + $0x698] sm:$0xff]
  %v2015 = vld [vmem:[#allocation2 + $0x6a0] sm:$0xff]
  %v2016 = vld [vmem:[#allocation2 + $0x6a8] sm:$0xff]
  %v2017 = vld [vmem:[#allocation2 + $0x6b0] sm:$0xff]
  %v2018 = vld [vmem:[#allocation2 + $0x6b8] sm:$0xff]
  %v2019 = vld [vmem:[#allocation2 + $0x6c0] sm:$0xff]
  %v2020 = vld [vmem:[#allocation2 + $0x6c8] sm:$0xff]
  %v2021 = vld [vmem:[#allocation2 + $0x6d0] sm:$0xff]
  %v2022 = vld [vmem:[#allocation2 + $0x6d8] sm:$0xff]
  %v2023 = vld [vmem:[#allocation2 + $0x6e0] sm:$0xff]
  %v2024 = vld [vmem:[#allocation2 + $0x6e8] sm:$0xff]
  %v2025 = vld [vmem:[#allocation2 + $0x6f0] sm:$0xff]
  %v2026 = vld [vmem:[#allocation2 + $0x6f8] sm:$0xff]
  %v2027 = vld [vmem:[#allocation2 + $0x700] sm:$0x7f]
  %v2028 = vld [vmem:[#allocation2 + $0x1] sm:$0xff]
  %v2029 = vld [vmem:[#allocation2 + $0x9] sm:$0xff]
  %v2030 = vld [vmem:[#allocation2 + $0x11] sm:$0xff]
  %v2031 = vld [vmem:[#allocation2 + $0x19] sm:$0xff]
  %v2032 = vld [vmem:[#allocation2 + $0x21] sm:$0xff]
  %v2033 = vld [vmem:[#allocation2 + $0x29] sm:$0xff]
  %v2034 = vld [vmem:[#allocation2 + $0x31] sm:$0xff]
  %v2035 = vld [vmem:[#allocation2 + $0x39] sm:$0xff]
  %v2036 = vld [vmem:[#allocation2 + $0x41] sm:$0xff]
  %v2037 = vld [vmem:[#allocation2 + $0x49] sm:$0xff]
  %v2038 = vld [vmem:[#allocation2 + $0x51] sm:$0xff]
  %v2039 = vld [vmem:[#allocation2 + $0x59] sm:$0xff]
  %v2040 = vld [vmem:[#allocation2 + $0x61] sm:$0xff]
  %v2041 = vld [vmem:[#allocation2 + $0x69] sm:$0xff]
  %v2042 = vld [vmem:[#allocation2 + $0x71] sm:$0xff]
  %v2043 = vld [vmem:[#allocation2 + $0x79] sm:$0xff]
  %v2044 = vld [vmem:[#allocation2 + $0x81] sm:$0xff]
  %v2045 = vld [vmem:[#allocation2 + $0x89] sm:$0xff]
  %v2046 = vld [vmem:[#allocation2 + $0x91] sm:$0xff]
  %v2047 = vld [vmem:[#allocation2 + $0x99] sm:$0xff]
  %v2048 = vld [vmem:[#allocation2 + $0xa1] sm:$0xff]
  %v2049 = vld [vmem:[#allocation2 + $0xa9] sm:$0xff]
  %v2050 = vld [vmem:[#allocation2 + $0xb1] sm:$0xff]
  %v2051 = vld [vmem:[#allocation2 + $0xb9] sm:$0xff]
  %v2052 = vld [vmem:[#allocation2 + $0xc1] sm:$0xff]
  %v2053 = vld [vmem:[#allocation2 + $0xc9] sm:$0xff]
  %v2054 = vld [vmem:[#allocation2 + $0xd1] sm:$0xff]
  %v2055 = vld [vmem:[#allocation2 + $0xd9] sm:$0xff]
  %v2056 = vld [vmem:[#allocation2 + $0xe1] sm:$0xff]
  %v2057 = vld [vmem:[#allocation2 + $0xe9] sm:$0xff]
  %v2058 = vld [vmem:[#allocation2 + $0xf1] sm:$0xff]
  %v2059 = vld [vmem:[#allocation2 + $0xf9] sm:$0xff]
  %v2060 = vld [vmem:[#allocation2 + $0x101] sm:$0xff]
  %v2061 = vld [vmem:[#allocation2 + $0x109] sm:$0xff]
  %v2062 = vld [vmem:[#allocation2 + $0x111] sm:$0xff]
  %v2063 = vld [vmem:[#allocation2 + $0x119] sm:$0xff]
  %v2064 = vld [vmem:[#allocation2 + $0x121] sm:$0xff]
  %v2065 = vld [vmem:[#allocation2 + $0x129] sm:$0xff]
  %v2066 = vld [vmem:[#allocation2 + $0x131] sm:$0xff]
  %v2067 = vld [vmem:[#allocation2 + $0x139] sm:$0xff]
  %v2068 = vld [vmem:[#allocation2 + $0x141] sm:$0xff]
  %v2069 = vld [vmem:[#allocation2 + $0x149] sm:$0xff]
  %v2070 = vld [vmem:[#allocation2 + $0x151] sm:$0xff]
  %v2071 = vld [vmem:[#allocation2 + $0x159] sm:$0xff]
  %v2072 = vld [vmem:[#allocation2 + $0x161] sm:$0xff]
  %v2073 = vld [vmem:[#allocation2 + $0x169] sm:$0xff]
  %v2074 = vld [vmem:[#allocation2 + $0x171] sm:$0xff]
  %v2075 = vld [vmem:[#allocation2 + $0x179] sm:$0xff]
  %v2076 = vld [vmem:[#allocation2 + $0x181] sm:$0xff]
  %v2077 = vld [vmem:[#allocation2 + $0x189] sm:$0xff]
  %v2078 = vld [vmem:[#allocation2 + $0x191] sm:$0xff]
  %v2079 = vld [vmem:[#allocation2 + $0x199] sm:$0xff]
  %v2080 = vld [vmem:[#allocation2 + $0x1a1] sm:$0xff]
  %v2081 = vld [vmem:[#allocation2 + $0x1a9] sm:$0xff]
  %v2082 = vld [vmem:[#allocation2 + $0x1b1] sm:$0xff]
  %v2083 = vld [vmem:[#allocation2 + $0x1b9] sm:$0xff]
  %v2084 = vld [vmem:[#allocation2 + $0x1c1] sm:$0xff]
  %v2085 = vld [vmem:[#allocation2 + $0x1c9] sm:$0xff]
  %v2086 = vld [vmem:[#allocation2 + $0x1d1] sm:$0xff]
  %v2087 = vld [vmem:[#allocation2 + $0x1d9] sm:$0xff]
  %v2088 = vld [vmem:[#allocation2 + $0x1e1] sm:$0xff]
  %v2089 = vld [vmem:[#allocation2 + $0x1e9] sm:$0xff]
  %v2090 = vld [vmem:[#allocation2 + $0x1f1] sm:$0xff]
  %v2091 = vld [vmem:[#allocation2 + $0x1f9] sm:$0xff]
  %v2092 = vld [vmem:[#allocation2 + $0x201] sm:$0xff]
  %v2093 = vld [vmem:[#allocation2 + $0x209] sm:$0xff]
  %v2094 = vld [vmem:[#allocation2 + $0x211] sm:$0xff]
  %v2095 = vld [vmem:[#allocation2 + $0x219] sm:$0xff]
  %v2096 = vld [vmem:[#allocation2 + $0x221] sm:$0xff]
  %v2097 = vld [vmem:[#allocation2 + $0x229] sm:$0xff]
  %v2098 = vld [vmem:[#allocation2 + $0x231] sm:$0xff]
  %v2099 = vld [vmem:[#allocation2 + $0x239] sm:$0xff]
  %v2100 = vld [vmem:[#allocation2 + $0x241] sm:$0xff]
  %v2101 = vld [vmem:[#allocation2 + $0x249] sm:$0xff]
  %v2102 = vld [vmem:[#allocation2 + $0x251] sm:$0xff]
  %v2103 = vld [vmem:[#allocation2 + $0x259] sm:$0xff]
  %v2104 = vld [vmem:[#allocation2 + $0x261] sm:$0xff]
  %v2105 = vld [vmem:[#allocation2 + $0x269] sm:$0xff]
  %v2106 = vld [vmem:[#allocation2 + $0x271] sm:$0xff]
  %v2107 = vld [vmem:[#allocation2 + $0x279] sm:$0xff]
  %v2108 = vld [vmem:[#allocation2 + $0x281] sm:$0xff]
  %v2109 = vld [vmem:[#allocation2 + $0x289] sm:$0xff]
  %v2110 = vld [vmem:[#allocation2 + $0x291] sm:$0xff]
  %v2111 = vld [vmem:[#allocation2 + $0x299] sm:$0xff]
  %v2112 = vld [vmem:[#allocation2 + $0x2a1] sm:$0xff]
  %v2113 = vld [vmem:[#allocation2 + $0x2a9] sm:$0xff]
  %v2114 = vld [vmem:[#allocation2 + $0x2b1] sm:$0xff]
  %v2115 = vld [vmem:[#allocation2 + $0x2b9] sm:$0xff]
  %v2116 = vld [vmem:[#allocation2 + $0x2c1] sm:$0xff]
  %v2117 = vld [vmem:[#allocation2 + $0x2c9] sm:$0xff]
  %v2118 = vld [vmem:[#allocation2 + $0x2d1] sm:$0xff]
  %v2119 = vld [vmem:[#allocation2 + $0x2d9] sm:$0xff]
  %v2120 = vld [vmem:[#allocation2 + $0x2e1] sm:$0xff]
  %v2121 = vld [vmem:[#allocation2 + $0x2e9] sm:$0xff]
  %v2122 = vld [vmem:[#allocation2 + $0x2f1] sm:$0xff]
  %v2123 = vld [vmem:[#allocation2 + $0x2f9] sm:$0xff]
  %v2124 = vld [vmem:[#allocation2 + $0x301] sm:$0xff]
  %v2125 = vld [vmem:[#allocation2 + $0x309] sm:$0xff]
  %v2126 = vld [vmem:[#allocation2 + $0x311] sm:$0xff]
  %v2127 = vld [vmem:[#allocation2 + $0x319] sm:$0xff]
  %v2128 = vld [vmem:[#allocation2 + $0x321] sm:$0xff]
  %v2129 = vld [vmem:[#allocation2 + $0x329] sm:$0xff]
  %v2130 = vld [vmem:[#allocation2 + $0x331] sm:$0xff]
  %v2131 = vld [vmem:[#allocation2 + $0x339] sm:$0xff]
  %v2132 = vld [vmem:[#allocation2 + $0x341] sm:$0xff]
  %v2133 = vld [vmem:[#allocation2 + $0x349] sm:$0xff]
  %v2134 = vld [vmem:[#allocation2 + $0x351] sm:$0xff]
  %v2135 = vld [vmem:[#allocation2 + $0x359] sm:$0xff]
  %v2136 = vld [vmem:[#allocation2 + $0x361] sm:$0xff]
  %v2137 = vld [vmem:[#allocation2 + $0x369] sm:$0xff]
  %v2138 = vld [vmem:[#allocation2 + $0x371] sm:$0xff]
  %v2139 = vld [vmem:[#allocation2 + $0x379] sm:$0xff]
  %v2140 = vld [vmem:[#allocation2 + $0x381] sm:$0xff]
  %v2141 = vld [vmem:[#allocation2 + $0x389] sm:$0xff]
  %v2142 = vld [vmem:[#allocation2 + $0x391] sm:$0xff]
  %v2143 = vld [vmem:[#allocation2 + $0x399] sm:$0xff]
  %v2144 = vld [vmem:[#allocation2 + $0x3a1] sm:$0xff]
  %v2145 = vld [vmem:[#allocation2 + $0x3a9] sm:$0xff]
  %v2146 = vld [vmem:[#allocation2 + $0x3b1] sm:$0xff]
  %v2147 = vld [vmem:[#allocation2 + $0x3b9] sm:$0xff]
  %v2148 = vld [vmem:[#allocation2 + $0x3c1] sm:$0xff]
  %v2149 = vld [vmem:[#allocation2 + $0x3c9] sm:$0xff]
  %v2150 = vld [vmem:[#allocation2 + $0x3d1] sm:$0xff]
  %v2151 = vld [vmem:[#allocation2 + $0x3d9] sm:$0xff]
  %v2152 = vld [vmem:[#allocation2 + $0x3e1] sm:$0xff]
  %v2153 = vld [vmem:[#allocation2 + $0x3e9] sm:$0xff]
  %v2154 = vld [vmem:[#allocation2 + $0x3f1] sm:$0xff]
  %v2155 = vld [vmem:[#allocation2 + $0x3f9] sm:$0xff]
  %v2156 = vld [vmem:[#allocation2 + $0x401] sm:$0xff]
  %v2157 = vld [vmem:[#allocation2 + $0x409] sm:$0xff]
  %v2158 = vld [vmem:[#allocation2 + $0x411] sm:$0xff]
  %v2159 = vld [vmem:[#allocation2 + $0x419] sm:$0xff]
  %v2160 = vld [vmem:[#allocation2 + $0x421] sm:$0xff]
  %v2161 = vld [vmem:[#allocation2 + $0x429] sm:$0xff]
  %v2162 = vld [vmem:[#allocation2 + $0x431] sm:$0xff]
  %v2163 = vld [vmem:[#allocation2 + $0x439] sm:$0xff]
  %v2164 = vld [vmem:[#allocation2 + $0x441] sm:$0xff]
  %v2165 = vld [vmem:[#allocation2 + $0x449] sm:$0xff]
  %v2166 = vld [vmem:[#allocation2 + $0x451] sm:$0xff]
  %v2167 = vld [vmem:[#allocation2 + $0x459] sm:$0xff]
  %v2168 = vld [vmem:[#allocation2 + $0x461] sm:$0xff]
  %v2169 = vld [vmem:[#allocation2 + $0x469] sm:$0xff]
  %v2170 = vld [vmem:[#allocation2 + $0x471] sm:$0xff]
  %v2171 = vld [vmem:[#allocation2 + $0x479] sm:$0xff]
  %v2172 = vld [vmem:[#allocation2 + $0x481] sm:$0xff]
  %v2173 = vld [vmem:[#allocation2 + $0x489] sm:$0xff]
  %v2174 = vld [vmem:[#allocation2 + $0x491] sm:$0xff]
  %v2175 = vld [vmem:[#allocation2 + $0x499] sm:$0xff]
  %v2176 = vld [vmem:[#allocation2 + $0x4a1] sm:$0xff]
  %v2177 = vld [vmem:[#allocation2 + $0x4a9] sm:$0xff]
  %v2178 = vld [vmem:[#allocation2 + $0x4b1] sm:$0xff]
  %v2179 = vld [vmem:[#allocation2 + $0x4b9] sm:$0xff]
  %v2180 = vld [vmem:[#allocation2 + $0x4c1] sm:$0xff]
  %v2181 = vld [vmem:[#allocation2 + $0x4c9] sm:$0xff]
  %v2182 = vld [vmem:[#allocation2 + $0x4d1] sm:$0xff]
  %v2183 = vld [vmem:[#allocation2 + $0x4d9] sm:$0xff]
  %v2184 = vld [vmem:[#allocation2 + $0x4e1] sm:$0xff]
  %v2185 = vld [vmem:[#allocation2 + $0x4e9] sm:$0xff]
  %v2186 = vld [vmem:[#allocation2 + $0x4f1] sm:$0xff]
  %v2187 = vld [vmem:[#allocation2 + $0x4f9] sm:$0xff]
  %v2188 = vld [vmem:[#allocation2 + $0x501] sm:$0xff]
  %v2189 = vld [vmem:[#allocation2 + $0x509] sm:$0xff]
  %v2190 = vld [vmem:[#allocation2 + $0x511] sm:$0xff]
  %v2191 = vld [vmem:[#allocation2 + $0x519] sm:$0xff]
  %v2192 = vld [vmem:[#allocation2 + $0x521] sm:$0xff]
  %v2193 = vld [vmem:[#allocation2 + $0x529] sm:$0xff]
  %v2194 = vld [vmem:[#allocation2 + $0x531] sm:$0xff]
  %v2195 = vld [vmem:[#allocation2 + $0x539] sm:$0xff]
  %v2196 = vld [vmem:[#allocation2 + $0x541] sm:$0xff]
  %v2197 = vld [vmem:[#allocation2 + $0x549] sm:$0xff]
  %v2198 = vld [vmem:[#allocation2 + $0x551] sm:$0xff]
  %v2199 = vld [vmem:[#allocation2 + $0x559] sm:$0xff]
  %v2200 = vld [vmem:[#allocation2 + $0x561] sm:$0xff]
  %v2201 = vld [vmem:[#allocation2 + $0x569] sm:$0xff]
  %v2202 = vld [vmem:[#allocation2 + $0x571] sm:$0xff]
  %v2203 = vld [vmem:[#allocation2 + $0x579] sm:$0xff]
  %v2204 = vld [vmem:[#allocation2 + $0x581] sm:$0xff]
  %v2205 = vld [vmem:[#allocation2 + $0x589] sm:$0xff]
  %v2206 = vld [vmem:[#allocation2 + $0x591] sm:$0xff]
  %v2207 = vld [vmem:[#allocation2 + $0x599] sm:$0xff]
  %v2208 = vld [vmem:[#allocation2 + $0x5a1] sm:$0xff]
  %v2209 = vld [vmem:[#allocation2 + $0x5a9] sm:$0xff]
  %v2210 = vld [vmem:[#allocation2 + $0x5b1] sm:$0xff]
  %v2211 = vld [vmem:[#allocation2 + $0x5b9] sm:$0xff]
  %v2212 = vld [vmem:[#allocation2 + $0x5c1] sm:$0xff]
  %v2213 = vld [vmem:[#allocation2 + $0x5c9] sm:$0xff]
  %v2214 = vld [vmem:[#allocation2 + $0x5d1] sm:$0xff]
  %v2215 = vld [vmem:[#allocation2 + $0x5d9] sm:$0xff]
  %v2216 = vld [vmem:[#allocation2 + $0x5e1] sm:$0xff]
  %v2217 = vld [vmem:[#allocation2 + $0x5e9] sm:$0xff]
  %v2218 = vld [vmem:[#allocation2 + $0x5f1] sm:$0xff]
  %v2219 = vld [vmem:[#allocation2 + $0x5f9] sm:$0xff]
  %v2220 = vld [vmem:[#allocation2 + $0x601] sm:$0xff]
  %v2221 = vld [vmem:[#allocation2 + $0x609] sm:$0xff]
  %v2222 = vld [vmem:[#allocation2 + $0x611] sm:$0xff]
  %v2223 = vld [vmem:[#allocation2 + $0x619] sm:$0xff]
  %v2224 = vld [vmem:[#allocation2 + $0x621] sm:$0xff]
  %v2225 = vld [vmem:[#allocation2 + $0x629] sm:$0xff]
  %v2226 = vld [vmem:[#allocation2 + $0x631] sm:$0xff]
  %v2227 = vld [vmem:[#allocation2 + $0x639] sm:$0xff]
  %v2228 = vld [vmem:[#allocation2 + $0x641] sm:$0xff]
  %v2229 = vld [vmem:[#allocation2 + $0x649] sm:$0xff]
  %v2230 = vld [vmem:[#allocation2 + $0x651] sm:$0xff]
  %v2231 = vld [vmem:[#allocation2 + $0x659] sm:$0xff]
  %v2232 = vld [vmem:[#allocation2 + $0x661] sm:$0xff]
  %v2233 = vld [vmem:[#allocation2 + $0x669] sm:$0xff]
  %v2234 = vld [vmem:[#allocation2 + $0x671] sm:$0xff]
  %v2235 = vld [vmem:[#allocation2 + $0x679] sm:$0xff]
  %v2236 = vld [vmem:[#allocation2 + $0x681] sm:$0xff]
  %v2237 = vld [vmem:[#allocation2 + $0x689] sm:$0xff]
  %v2238 = vld [vmem:[#allocation2 + $0x691] sm:$0xff]
  %v2239 = vld [vmem:[#allocation2 + $0x699] sm:$0xff]
  %v2240 = vld [vmem:[#allocation2 + $0x6a1] sm:$0xff]
  %v2241 = vld [vmem:[#allocation2 + $0x6a9] sm:$0xff]
  %v2242 = vld [vmem:[#allocation2 + $0x6b1] sm:$0xff]
  %v2243 = vld [vmem:[#allocation2 + $0x6b9] sm:$0xff]
  %v2244 = vld [vmem:[#allocation2 + $0x6c1] sm:$0xff]
  %v2245 = vld [vmem:[#allocation2 + $0x6c9] sm:$0xff]
  %v2246 = vld [vmem:[#allocation2 + $0x6d1] sm:$0xff]
  %v2247 = vld [vmem:[#allocation2 + $0x6d9] sm:$0xff]
  %v2248 = vld [vmem:[#allocation2 + $0x6e1] sm:$0xff]
  %v2249 = vld [vmem:[#allocation2 + $0x6e9] sm:$0xff]
  %v2250 = vld [vmem:[#allocation2 + $0x6f1] sm:$0xff]
  %v2251 = vld [vmem:[#allocation2 + $0x6f9] sm:$0xff]
  %v2252 = vld [vmem:[#allocation2 + $0x701] sm:$0x7f]
  %v2253 = vmax.f32 %v1803, %v2028
  %v2254 = vmax.f32 %v1804, %v2029
  %v2255 = vmax.f32 %v1805, %v2030
  %v2256 = vmax.f32 %v1806, %v2031
  %v2257 = vmax.f32 %v1807, %v2032
  %v2258 = vmax.f32 %v1808, %v2033
  %v2259 = vmax.f32 %v1809, %v2034
  %v2260 = vmax.f32 %v1810, %v2035
  %v2261 = vmax.f32 %v1811, %v2036
  %v2262 = vmax.f32 %v1812, %v2037
  %v2263 = vmax.f32 %v1813, %v2038
  %v2264 = vmax.f32 %v1814, %v2039
  %v2265 = vmax.f32 %v1815, %v2040
  %v2266 = vmax.f32 %v1816, %v2041
  %v2267 = vmax.f32 %v1817, %v2042
  %v2268 = vmax.f32 %v1818, %v2043
  %v2269 = vmax.f32 %v1819, %v2044
  %v2270 = vmax.f32 %v1820, %v2045
  %v2271 = vmax.f32 %v1821, %v2046
  %v2272 = vmax.f32 %v1822, %v2047
  %v2273 = vmax.f32 %v1823, %v2048
  %v2274 = vmax.f32 %v1824, %v2049
  %v2275 = vmax.f32 %v1825, %v2050
  %v2276 = vmax.f32 %v1826, %v2051
  %v2277 = vmax.f32 %v1827, %v2052
  %v2278 = vmax.f32 %v1828, %v2053
  %v2279 = vmax.f32 %v1829, %v2054
  %v2280 = vmax.f32 %v1830, %v2055
  %v2281 = vmax.f32 %v1831, %v2056
  %v2282 = vmax.f32 %v1832, %v2057
  %v2283 = vmax.f32 %v1833, %v2058
  %v2284 = vmax.f32 %v1834, %v2059
  %v2285 = vmax.f32 %v1835, %v2060
  %v2286 = vmax.f32 %v1836, %v2061
  %v2287 = vmax.f32 %v1837, %v2062
  %v2288 = vmax.f32 %v1838, %v2063
  %v2289 = vmax.f32 %v1839, %v2064
  %v2290 = vmax.f32 %v1840, %v2065
  %v2291 = vmax.f32 %v1841, %v2066
  %v2292 = vmax.f32 %v1842, %v2067
  %v2293 = vmax.f32 %v1843, %v2068
  %v2294 = vmax.f32 %v1844, %v2069
  %v2295 = vmax.f32 %v1845, %v2070
  %v2296 = vmax.f32 %v1846, %v2071
  %v2297 = vmax.f32 %v1847, %v2072
  %v2298 = vmax.f32 %v1848, %v2073
  %v2299 = vmax.f32 %v1849, %v2074
  %v2300 = vmax.f32 %v1850, %v2075
  %v2301 = vmax.f32 %v1851, %v2076
  %v2302 = vmax.f32 %v1852, %v2077
  %v2303 = vmax.f32 %v1853, %v2078
  %v2304 = vmax.f32 %v1854, %v2079
  %v2305 = vmax.f32 %v1855, %v2080
  %v2306 = vmax.f32 %v1856, %v2081
  %v2307 = vmax.f32 %v1857, %v2082
  %v2308 = vmax.f32 %v1858, %v2083
  %v2309 = vmax.f32 %v1859, %v2084
  %v2310 = vmax.f32 %v1860, %v2085
  %v2311 = vmax.f32 %v1861, %v2086
  %v2312 = vmax.f32 %v1862, %v2087
  %v2313 = vmax.f32 %v1863, %v2088
  %v2314 = vmax.f32 %v1864, %v2089
  %v2315 = vmax.f32 %v1865, %v2090
  %v2316 = vmax.f32 %v1866, %v2091
  %v2317 = vmax.f32 %v1867, %v2092
  %v2318 = vmax.f32 %v1868, %v2093
  %v2319 = vmax.f32 %v1869, %v2094
  %v2320 = vmax.f32 %v1870, %v2095
  %v2321 = vmax.f32 %v1871, %v2096
  %v2322 = vmax.f32 %v1872, %v2097
  %v2323 = vmax.f32 %v1873, %v2098
  %v2324 = vmax.f32 %v1874, %v2099
  %v2325 = vmax.f32 %v1875, %v2100
  %v2326 = vmax.f32 %v1876, %v2101
  %v2327 = vmax.f32 %v1877, %v2102
  %v2328 = vmax.f32 %v1878, %v2103
  %v2329 = vmax.f32 %v1879, %v2104
  %v2330 = vmax.f32 %v1880, %v2105
  %v2331 = vmax.f32 %v1881, %v2106
  %v2332 = vmax.f32 %v1882, %v2107
  %v2333 = vmax.f32 %v1883, %v2108
  %v2334 = vmax.f32 %v1884, %v2109
  %v2335 = vmax.f32 %v1885, %v2110
  %v2336 = vmax.f32 %v1886, %v2111
  %v2337 = vmax.f32 %v1887, %v2112
  %v2338 = vmax.f32 %v1888, %v2113
  %v2339 = vmax.f32 %v1889, %v2114
  %v2340 = vmax.f32 %v1890, %v2115
  %v2341 = vmax.f32 %v1891, %v2116
  %v2342 = vmax.f32 %v1892, %v2117
  %v2343 = vmax.f32 %v1893, %v2118
  %v2344 = vmax.f32 %v1894, %v2119
  %v2345 = vmax.f32 %v1895, %v2120
  %v2346 = vmax.f32 %v1896, %v2121
  %v2347 = vmax.f32 %v1897, %v2122
  %v2348 = vmax.f32 %v1898, %v2123
  %v2349 = vmax.f32 %v1899, %v2124
  %v2350 = vmax.f32 %v1900, %v2125
  %v2351 = vmax.f32 %v1901, %v2126
  %v2352 = vmax.f32 %v1902, %v2127
  %v2353 = vmax.f32 %v1903, %v2128
  %v2354 = vmax.f32 %v1904, %v2129
  %v2355 = vmax.f32 %v1905, %v2130
  %v2356 = vmax.f32 %v1906, %v2131
  %v2357 = vmax.f32 %v1907, %v2132
  %v2358 = vmax.f32 %v1908, %v2133
  %v2359 = vmax.f32 %v1909, %v2134
  %v2360 = vmax.f32 %v1910, %v2135
  %v2361 = vmax.f32 %v1911, %v2136
  %v2362 = vmax.f32 %v1912, %v2137
  %v2363 = vmax.f32 %v1913, %v2138
  %v2364 = vmax.f32 %v1914, %v2139
  %v2365 = vmax.f32 %v1915, %v2140
  %v2366 = vmax.f32 %v1916, %v2141
  %v2367 = vmax.f32 %v1917, %v2142
  %v2368 = vmax.f32 %v1918, %v2143
  %v2369 = vmax.f32 %v1919, %v2144
  %v2370 = vmax.f32 %v1920, %v2145
  %v2371 = vmax.f32 %v1921, %v2146
  %v2372 = vmax.f32 %v1922, %v2147
  %v2373 = vmax.f32 %v1923, %v2148
  %v2374 = vmax.f32 %v1924, %v2149
  %v2375 = vmax.f32 %v1925, %v2150
  %v2376 = vmax.f32 %v1926, %v2151
  %v2377 = vmax.f32 %v1927, %v2152
  %v2378 = vmax.f32 %v1928, %v2153
  %v2379 = vmax.f32 %v1929, %v2154
  %v2380 = vmax.f32 %v1930, %v2155
  %v2381 = vmax.f32 %v1931, %v2156
  %v2382 = vmax.f32 %v1932, %v2157
  %v2383 = vmax.f32 %v1933, %v2158
  %v2384 = vmax.f32 %v1934, %v2159
  %v2385 = vmax.f32 %v1935, %v2160
  %v2386 = vmax.f32 %v1936, %v2161
  %v2387 = vmax.f32 %v1937, %v2162
  %v2388 = vmax.f32 %v1938, %v2163
  %v2389 = vmax.f32 %v1939, %v2164
  %v2390 = vmax.f32 %v1940, %v2165
  %v2391 = vmax.f32 %v1941, %v2166
  %v2392 = vmax.f32 %v1942, %v2167
  %v2393 = vmax.f32 %v1943, %v2168
  %v2394 = vmax.f32 %v1944, %v2169
  %v2395 = vmax.f32 %v1945, %v2170
  %v2396 = vmax.f32 %v1946, %v2171
  %v2397 = vmax.f32 %v1947, %v2172
  %v2398 = vmax.f32 %v1948, %v2173
  %v2399 = vmax.f32 %v1949, %v2174
  %v2400 = vmax.f32 %v1950, %v2175
  %v2401 = vmax.f32 %v1951, %v2176
  %v2402 = vmax.f32 %v1952, %v2177
  %v2403 = vmax.f32 %v1953, %v2178
  %v2404 = vmax.f32 %v1954, %v2179
  %v2405 = vmax.f32 %v1955, %v2180
  %v2406 = vmax.f32 %v1956, %v2181
  %v2407 = vmax.f32 %v1957, %v2182
  %v2408 = vmax.f32 %v1958, %v2183
  %v2409 = vmax.f32 %v1959, %v2184
  %v2410 = vmax.f32 %v1960, %v2185
  %v2411 = vmax.f32 %v1961, %v2186
  %v2412 = vmax.f32 %v1962, %v2187
  %v2413 = vmax.f32 %v1963, %v2188
  %v2414 = vmax.f32 %v1964, %v2189
  %v2415 = vmax.f32 %v1965, %v2190
  %v2416 = vmax.f32 %v1966, %v2191
  %v2417 = vmax.f32 %v1967, %v2192
  %v2418 = vmax.f32 %v1968, %v2193
  %v2419 = vmax.f32 %v1969, %v2194
  %v2420 = vmax.f32 %v1970, %v2195
  %v2421 = vmax.f32 %v1971, %v2196
  %v2422 = vmax.f32 %v1972, %v2197
  %v2423 = vmax.f32 %v1973, %v2198
  %v2424 = vmax.f32 %v1974, %v2199
  %v2425 = vmax.f32 %v1975, %v2200
  %v2426 = vmax.f32 %v1976, %v2201
  %v2427 = vmax.f32 %v1977, %v2202
  %v2428 = vmax.f32 %v1978, %v2203
  %v2429 = vmax.f32 %v1979, %v2204
  %v2430 = vmax.f32 %v1980, %v2205
  %v2431 = vmax.f32 %v1981, %v2206
  %v2432 = vmax.f32 %v1982, %v2207
  %v2433 = vmax.f32 %v1983, %v2208
  %v2434 = vmax.f32 %v1984, %v2209
  %v2435 = vmax.f32 %v1985, %v2210
  %v2436 = vmax.f32 %v1986, %v2211
  %v2437 = vmax.f32 %v1987, %v2212
  %v2438 = vmax.f32 %v1988, %v2213
  %v2439 = vmax.f32 %v1989, %v2214
  %v2440 = vmax.f32 %v1990, %v2215
  %v2441 = vmax.f32 %v1991, %v2216
  %v2442 = vmax.f32 %v1992, %v2217
  %v2443 = vmax.f32 %v1993, %v2218
  %v2444 = vmax.f32 %v1994, %v2219
  %v2445 = vmax.f32 %v1995, %v2220
  %v2446 = vmax.f32 %v1996, %v2221
  %v2447 = vmax.f32 %v1997, %v2222
  %v2448 = vmax.f32 %v1998, %v2223
  %v2449 = vmax.f32 %v1999, %v2224
  %v2450 = vmax.f32 %v2000, %v2225
  %v2451 = vmax.f32 %v2001, %v2226
  %v2452 = vmax.f32 %v2002, %v2227
  %v2453 = vmax.f32 %v2003, %v2228
  %v2454 = vmax.f32 %v2004, %v2229
  %v2455 = vmax.f32 %v2005, %v2230
  %v2456 = vmax.f32 %v2006, %v2231
  %v2457 = vmax.f32 %v2007, %v2232
  %v2458 = vmax.f32 %v2008, %v2233
  %v2459 = vmax.f32 %v2009, %v2234
  %v2460 = vmax.f32 %v2010, %v2235
  %v2461 = vmax.f32 %v2011, %v2236
  %v2462 = vmax.f32 %v2012, %v2237
  %v2463 = vmax.f32 %v2013, %v2238
  %v2464 = vmax.f32 %v2014, %v2239
  %v2465 = vmax.f32 %v2015, %v2240
  %v2466 = vmax.f32 %v2016, %v2241
  %v2467 = vmax.f32 %v2017, %v2242
  %v2468 = vmax.f32 %v2018, %v2243
  %v2469 = vmax.f32 %v2019, %v2244
  %v2470 = vmax.f32 %v2020, %v2245
  %v2471 = vmax.f32 %v2021, %v2246
  %v2472 = vmax.f32 %v2022, %v2247
  %v2473 = vmax.f32 %v2023, %v2248
  %v2474 = vmax.f32 %v2024, %v2249
  %v2475 = vmax.f32 %v2025, %v2250
  %v2476 = vmax.f32 %v2026, %v2251
  %v2477 = vmax.f32 %v2027, %v2252
  %2478 = vst [vmem:[#allocation3] sm:$0xff] %v2253
  %2479 = vst [vmem:[#allocation3 + $0x8] sm:$0xff] %v2254
  %2480 = vst [vmem:[#allocation3 + $0x10] sm:$0xff] %v2255
  %2481 = vst [vmem:[#allocation3 + $0x18] sm:$0xff] %v2256
  %2482 = vst [vmem:[#allocation3 + $0x20] sm:$0xff] %v2257
  %2483 = vst [vmem:[#allocation3 + $0x28] sm:$0xff] %v2258
  %2484 = vst [vmem:[#allocation3 + $0x30] sm:$0xff] %v2259
  %2485 = vst [vmem:[#allocation3 + $0x38] sm:$0xff] %v2260
  %2486 = vst [vmem:[#allocation3 + $0x40] sm:$0xff] %v2261
  %2487 = vst [vmem:[#allocation3 + $0x48] sm:$0xff] %v2262
  %2488 = vst [vmem:[#allocation3 + $0x50] sm:$0xff] %v2263
  %2489 = vst [vmem:[#allocation3 + $0x58] sm:$0xff] %v2264
  %2490 = vst [vmem:[#allocation3 + $0x60] sm:$0xff] %v2265
  %2491 = vst [vmem:[#allocation3 + $0x68] sm:$0xff] %v2266
  %2492 = vst [vmem:[#allocation3 + $0x70] sm:$0xff] %v2267
  %2493 = vst [vmem:[#allocation3 + $0x78] sm:$0xff] %v2268
  %2494 = vst [vmem:[#allocation3 + $0x80] sm:$0xff] %v2269
  %2495 = vst [vmem:[#allocation3 + $0x88] sm:$0xff] %v2270
  %2496 = vst [vmem:[#allocation3 + $0x90] sm:$0xff] %v2271
  %2497 = vst [vmem:[#allocation3 + $0x98] sm:$0xff] %v2272
  %2498 = vst [vmem:[#allocation3 + $0xa0] sm:$0xff] %v2273
  %2499 = vst [vmem:[#allocation3 + $0xa8] sm:$0xff] %v2274
  %2500 = vst [vmem:[#allocation3 + $0xb0] sm:$0xff] %v2275
  %2501 = vst [vmem:[#allocation3 + $0xb8] sm:$0xff] %v2276
  %2502 = vst [vmem:[#allocation3 + $0xc0] sm:$0xff] %v2277
  %2503 = vst [vmem:[#allocation3 + $0xc8] sm:$0xff] %v2278
  %2504 = vst [vmem:[#allocation3 + $0xd0] sm:$0xff] %v2279
  %2505 = vst [vmem:[#allocation3 + $0xd8] sm:$0xff] %v2280
  %2506 = vst [vmem:[#allocation3 + $0xe0] sm:$0xff] %v2281
  %2507 = vst [vmem:[#allocation3 + $0xe8] sm:$0xff] %v2282
  %2508 = vst [vmem:[#allocation3 + $0xf0] sm:$0xff] %v2283
  %2509 = vst [vmem:[#allocation3 + $0xf8] sm:$0xff] %v2284
  %2510 = vst [vmem:[#allocation3 + $0x100] sm:$0xff] %v2285
  %2511 = vst [vmem:[#allocation3 + $0x108] sm:$0xff] %v2286
  %2512 = vst [vmem:[#allocation3 + $0x110] sm:$0xff] %v2287
  %2513 = vst [vmem:[#allocation3 + $0x118] sm:$0xff] %v2288
  %2514 = vst [vmem:[#allocation3 + $0x120] sm:$0xff] %v2289
  %2515 = vst [vmem:[#allocation3 + $0x128] sm:$0xff] %v2290
  %2516 = vst [vmem:[#allocation3 + $0x130] sm:$0xff] %v2291
  %2517 = vst [vmem:[#allocation3 + $0x138] sm:$0xff] %v2292
  %2518 = vst [vmem:[#allocation3 + $0x140] sm:$0xff] %v2293
  %2519 = vst [vmem:[#allocation3 + $0x148] sm:$0xff] %v2294
  %2520 = vst [vmem:[#allocation3 + $0x150] sm:$0xff] %v2295
  %2521 = vst [vmem:[#allocation3 + $0x158] sm:$0xff] %v2296
  %2522 = vst [vmem:[#allocation3 + $0x160] sm:$0xff] %v2297
  %2523 = vst [vmem:[#allocation3 + $0x168] sm:$0xff] %v2298
  %2524 = vst [vmem:[#allocation3 + $0x170] sm:$0xff] %v2299
  %2525 = vst [vmem:[#allocation3 + $0x178] sm:$0xff] %v2300
  %2526 = vst [vmem:[#allocation3 + $0x180] sm:$0xff] %v2301
  %2527 = vst [vmem:[#allocation3 + $0x188] sm:$0xff] %v2302
  %2528 = vst [vmem:[#allocation3 + $0x190] sm:$0xff] %v2303
  %2529 = vst [vmem:[#allocation3 + $0x198] sm:$0xff] %v2304
  %2530 = vst [vmem:[#allocation3 + $0x1a0] sm:$0xff] %v2305
  %2531 = vst [vmem:[#allocation3 + $0x1a8] sm:$0xff] %v2306
  %2532 = vst [vmem:[#allocation3 + $0x1b0] sm:$0xff] %v2307
  %2533 = vst [vmem:[#allocation3 + $0x1b8] sm:$0xff] %v2308
  %2534 = vst [vmem:[#allocation3 + $0x1c0] sm:$0xff] %v2309
  %2535 = vst [vmem:[#allocation3 + $0x1c8] sm:$0xff] %v2310
  %2536 = vst [vmem:[#allocation3 + $0x1d0] sm:$0xff] %v2311
  %2537 = vst [vmem:[#allocation3 + $0x1d8] sm:$0xff] %v2312
  %2538 = vst [vmem:[#allocation3 + $0x1e0] sm:$0xff] %v2313
  %2539 = vst [vmem:[#allocation3 + $0x1e8] sm:$0xff] %v2314
  %2540 = vst [vmem:[#allocation3 + $0x1f0] sm:$0xff] %v2315
  %2541 = vst [vmem:[#allocation3 + $0x1f8] sm:$0xff] %v2316
  %2542 = vst [vmem:[#allocation3 + $0x200] sm:$0xff] %v2317
  %2543 = vst [vmem:[#allocation3 + $0x208] sm:$0xff] %v2318
  %2544 = vst [vmem:[#allocation3 + $0x210] sm:$0xff] %v2319
  %2545 = vst [vmem:[#allocation3 + $0x218] sm:$0xff] %v2320
  %2546 = vst [vmem:[#allocation3 + $0x220] sm:$0xff] %v2321
  %2547 = vst [vmem:[#allocation3 + $0x228] sm:$0xff] %v2322
  %2548 = vst [vmem:[#allocation3 + $0x230] sm:$0xff] %v2323
  %2549 = vst [vmem:[#allocation3 + $0x238] sm:$0xff] %v2324
  %2550 = vst [vmem:[#allocation3 + $0x240] sm:$0xff] %v2325
  %2551 = vst [vmem:[#allocation3 + $0x248] sm:$0xff] %v2326
  %2552 = vst [vmem:[#allocation3 + $0x250] sm:$0xff] %v2327
  %2553 = vst [vmem:[#allocation3 + $0x258] sm:$0xff] %v2328
  %2554 = vst [vmem:[#allocation3 + $0x260] sm:$0xff] %v2329
  %2555 = vst [vmem:[#allocation3 + $0x268] sm:$0xff] %v2330
  %2556 = vst [vmem:[#allocation3 + $0x270] sm:$0xff] %v2331
  %2557 = vst [vmem:[#allocation3 + $0x278] sm:$0xff] %v2332
  %2558 = vst [vmem:[#allocation3 + $0x280] sm:$0xff] %v2333
  %2559 = vst [vmem:[#allocation3 + $0x288] sm:$0xff] %v2334
  %2560 = vst [vmem:[#allocation3 + $0x290] sm:$0xff] %v2335
  %2561 = vst [vmem:[#allocation3 + $0x298] sm:$0xff] %v2336
  %2562 = vst [vmem:[#allocation3 + $0x2a0] sm:$0xff] %v2337
  %2563 = vst [vmem:[#allocation3 + $0x2a8] sm:$0xff] %v2338
  %2564 = vst [vmem:[#allocation3 + $0x2b0] sm:$0xff] %v2339
  %2565 = vst [vmem:[#allocation3 + $0x2b8] sm:$0xff] %v2340
  %2566 = vst [vmem:[#allocation3 + $0x2c0] sm:$0xff] %v2341
  %2567 = vst [vmem:[#allocation3 + $0x2c8] sm:$0xff] %v2342
  %2568 = vst [vmem:[#allocation3 + $0x2d0] sm:$0xff] %v2343
  %2569 = vst [vmem:[#allocation3 + $0x2d8] sm:$0xff] %v2344
  %2570 = vst [vmem:[#allocation3 + $0x2e0] sm:$0xff] %v2345
  %2571 = vst [vmem:[#allocation3 + $0x2e8] sm:$0xff] %v2346
  %2572 = vst [vmem:[#allocation3 + $0x2f0] sm:$0xff] %v2347
  %2573 = vst [vmem:[#allocation3 + $0x2f8] sm:$0xff] %v2348
  %2574 = vst [vmem:[#allocation3 + $0x300] sm:$0xff] %v2349
  %2575 = vst [vmem:[#allocation3 + $0x308] sm:$0xff] %v2350
  %2576 = vst [vmem:[#allocation3 + $0x310] sm:$0xff] %v2351
  %2577 = vst [vmem:[#allocation3 + $0x318] sm:$0xff] %v2352
  %2578 = vst [vmem:[#allocation3 + $0x320] sm:$0xff] %v2353
  %2579 = vst [vmem:[#allocation3 + $0x328] sm:$0xff] %v2354
  %2580 = vst [vmem:[#allocation3 + $0x330] sm:$0xff] %v2355
  %2581 = vst [vmem:[#allocation3 + $0x338] sm:$0xff] %v2356
  %2582 = vst [vmem:[#allocation3 + $0x340] sm:$0xff] %v2357
  %2583 = vst [vmem:[#allocation3 + $0x348] sm:$0xff] %v2358
  %2584 = vst [vmem:[#allocation3 + $0x350] sm:$0xff] %v2359
  %2585 = vst [vmem:[#allocation3 + $0x358] sm:$0xff] %v2360
  %2586 = vst [vmem:[#allocation3 + $0x360] sm:$0xff] %v2361
  %2587 = vst [vmem:[#allocation3 + $0x368] sm:$0xff] %v2362
  %2588 = vst [vmem:[#allocation3 + $0x370] sm:$0xff] %v2363
  %2589 = vst [vmem:[#allocation3 + $0x378] sm:$0xff] %v2364
  %2590 = vst [vmem:[#allocation3 + $0x380] sm:$0xff] %v2365
  %2591 = vst [vmem:[#allocation3 + $0x388] sm:$0xff] %v2366
  %2592 = vst [vmem:[#allocation3 + $0x390] sm:$0xff] %v2367
  %2593 = vst [vmem:[#allocation3 + $0x398] sm:$0xff] %v2368
  %2594 = vst [vmem:[#allocation3 + $0x3a0] sm:$0xff] %v2369
  %2595 = vst [vmem:[#allocation3 + $0x3a8] sm:$0xff] %v2370
  %2596 = vst [vmem:[#allocation3 + $0x3b0] sm:$0xff] %v2371
  %2597 = vst [vmem:[#allocation3 + $0x3b8] sm:$0xff] %v2372
  %2598 = vst [vmem:[#allocation3 + $0x3c0] sm:$0xff] %v2373
  %2599 = vst [vmem:[#allocation3 + $0x3c8] sm:$0xff] %v2374
  %2600 = vst [vmem:[#allocation3 + $0x3d0] sm:$0xff] %v2375
  %2601 = vst [vmem:[#allocation3 + $0x3d8] sm:$0xff] %v2376
  %2602 = vst [vmem:[#allocation3 + $0x3e0] sm:$0xff] %v2377
  %2603 = vst [vmem:[#allocation3 + $0x3e8] sm:$0xff] %v2378
  %2604 = vst [vmem:[#allocation3 + $0x3f0] sm:$0xff] %v2379
  %2605 = vst [vmem:[#allocation3 + $0x3f8] sm:$0xff] %v2380
  %2606 = vst [vmem:[#allocation3 + $0x400] sm:$0xff] %v2381
  %2607 = vst [vmem:[#allocation3 + $0x408] sm:$0xff] %v2382
  %2608 = vst [vmem:[#allocation3 + $0x410] sm:$0xff] %v2383
  %2609 = vst [vmem:[#allocation3 + $0x418] sm:$0xff] %v2384
  %2610 = vst [vmem:[#allocation3 + $0x420] sm:$0xff] %v2385
  %2611 = vst [vmem:[#allocation3 + $0x428] sm:$0xff] %v2386
  %2612 = vst [vmem:[#allocation3 + $0x430] sm:$0xff] %v2387
  %2613 = vst [vmem:[#allocation3 + $0x438] sm:$0xff] %v2388
  %2614 = vst [vmem:[#allocation3 + $0x440] sm:$0xff] %v2389
  %2615 = vst [vmem:[#allocation3 + $0x448] sm:$0xff] %v2390
  %2616 = vst [vmem:[#allocation3 + $0x450] sm:$0xff] %v2391
  %2617 = vst [vmem:[#allocation3 + $0x458] sm:$0xff] %v2392
  %2618 = vst [vmem:[#allocation3 + $0x460] sm:$0xff] %v2393
  %2619 = vst [vmem:[#allocation3 + $0x468] sm:$0xff] %v2394
  %2620 = vst [vmem:[#allocation3 + $0x470] sm:$0xff] %v2395
  %2621 = vst [vmem:[#allocation3 + $0x478] sm:$0xff] %v2396
  %2622 = vst [vmem:[#allocation3 + $0x480] sm:$0xff] %v2397
  %2623 = vst [vmem:[#allocation3 + $0x488] sm:$0xff] %v2398
  %2624 = vst [vmem:[#allocation3 + $0x490] sm:$0xff] %v2399
  %2625 = vst [vmem:[#allocation3 + $0x498] sm:$0xff] %v2400
  %2626 = vst [vmem:[#allocation3 + $0x4a0] sm:$0xff] %v2401
  %2627 = vst [vmem:[#allocation3 + $0x4a8] sm:$0xff] %v2402
  %2628 = vst [vmem:[#allocation3 + $0x4b0] sm:$0xff] %v2403
  %2629 = vst [vmem:[#allocation3 + $0x4b8] sm:$0xff] %v2404
  %2630 = vst [vmem:[#allocation3 + $0x4c0] sm:$0xff] %v2405
  %2631 = vst [vmem:[#allocation3 + $0x4c8] sm:$0xff] %v2406
  %2632 = vst [vmem:[#allocation3 + $0x4d0] sm:$0xff] %v2407
  %2633 = vst [vmem:[#allocation3 + $0x4d8] sm:$0xff] %v2408
  %2634 = vst [vmem:[#allocation3 + $0x4e0] sm:$0xff] %v2409
  %2635 = vst [vmem:[#allocation3 + $0x4e8] sm:$0xff] %v2410
  %2636 = vst [vmem:[#allocation3 + $0x4f0] sm:$0xff] %v2411
  %2637 = vst [vmem:[#allocation3 + $0x4f8] sm:$0xff] %v2412
  %2638 = vst [vmem:[#allocation3 + $0x500] sm:$0xff] %v2413
  %2639 = vst [vmem:[#allocation3 + $0x508] sm:$0xff] %v2414
  %2640 = vst [vmem:[#allocation3 + $0x510] sm:$0xff] %v2415
  %2641 = vst [vmem:[#allocation3 + $0x518] sm:$0xff] %v2416
  %2642 = vst [vmem:[#allocation3 + $0x520] sm:$0xff] %v2417
  %2643 = vst [vmem:[#allocation3 + $0x528] sm:$0xff] %v2418
  %2644 = vst [vmem:[#allocation3 + $0x530] sm:$0xff] %v2419
  %2645 = vst [vmem:[#allocation3 + $0x538] sm:$0xff] %v2420
  %2646 = vst [vmem:[#allocation3 + $0x540] sm:$0xff] %v2421
  %2647 = vst [vmem:[#allocation3 + $0x548] sm:$0xff] %v2422
  %2648 = vst [vmem:[#allocation3 + $0x550] sm:$0xff] %v2423
  %2649 = vst [vmem:[#allocation3 + $0x558] sm:$0xff] %v2424
  %2650 = vst [vmem:[#allocation3 + $0x560] sm:$0xff] %v2425
  %2651 = vst [vmem:[#allocation3 + $0x568] sm:$0xff] %v2426
  %2652 = vst [vmem:[#allocation3 + $0x570] sm:$0xff] %v2427
  %2653 = vst [vmem:[#allocation3 + $0x578] sm:$0xff] %v2428
  %2654 = vst [vmem:[#allocation3 + $0x580] sm:$0xff] %v2429
  %2655 = vst [vmem:[#allocation3 + $0x588] sm:$0xff] %v2430
  %2656 = vst [vmem:[#allocation3 + $0x590] sm:$0xff] %v2431
  %2657 = vst [vmem:[#allocation3 + $0x598] sm:$0xff] %v2432
  %2658 = vst [vmem:[#allocation3 + $0x5a0] sm:$0xff] %v2433
  %2659 = vst [vmem:[#allocation3 + $0x5a8] sm:$0xff] %v2434
  %2660 = vst [vmem:[#allocation3 + $0x5b0] sm:$0xff] %v2435
  %2661 = vst [vmem:[#allocation3 + $0x5b8] sm:$0xff] %v2436
  %2662 = vst [vmem:[#allocation3 + $0x5c0] sm:$0xff] %v2437
  %2663 = vst [vmem:[#allocation3 + $0x5c8] sm:$0xff] %v2438
  %2664 = vst [vmem:[#allocation3 + $0x5d0] sm:$0xff] %v2439
  %2665 = vst [vmem:[#allocation3 + $0x5d8] sm:$0xff] %v2440
  %2666 = vst [vmem:[#allocation3 + $0x5e0] sm:$0xff] %v2441
  %2667 = vst [vmem:[#allocation3 + $0x5e8] sm:$0xff] %v2442
  %2668 = vst [vmem:[#allocation3 + $0x5f0] sm:$0xff] %v2443
  %2669 = vst [vmem:[#allocation3 + $0x5f8] sm:$0xff] %v2444
  %2670 = vst [vmem:[#allocation3 + $0x600] sm:$0xff] %v2445
  %2671 = vst [vmem:[#allocation3 + $0x608] sm:$0xff] %v2446
  %2672 = vst [vmem:[#allocation3 + $0x610] sm:$0xff] %v2447
  %2673 = vst [vmem:[#allocation3 + $0x618] sm:$0xff] %v2448
  %2674 = vst [vmem:[#allocation3 + $0x620] sm:$0xff] %v2449
  %2675 = vst [vmem:[#allocation3 + $0x628] sm:$0xff] %v2450
  %2676 = vst [vmem:[#allocation3 + $0x630] sm:$0xff] %v2451
  %2677 = vst [vmem:[#allocation3 + $0x638] sm:$0xff] %v2452
  %2678 = vst [vmem:[#allocation3 + $0x640] sm:$0xff] %v2453
  %2679 = vst [vmem:[#allocation3 + $0x648] sm:$0xff] %v2454
  %2680 = vst [vmem:[#allocation3 + $0x650] sm:$0xff] %v2455
  %2681 = vst [vmem:[#allocation3 + $0x658] sm:$0xff] %v2456
  %2682 = vst [vmem:[#allocation3 + $0x660] sm:$0xff] %v2457
  %2683 = vst [vmem:[#allocation3 + $0x668] sm:$0xff] %v2458
  %2684 = vst [vmem:[#allocation3 + $0x670] sm:$0xff] %v2459
  %2685 = vst [vmem:[#allocation3 + $0x678] sm:$0xff] %v2460
  %2686 = vst [vmem:[#allocation3 + $0x680] sm:$0xff] %v2461
  %2687 = vst [vmem:[#allocation3 + $0x688] sm:$0xff] %v2462
  %2688 = vst [vmem:[#allocation3 + $0x690] sm:$0xff] %v2463
  %2689 = vst [vmem:[#allocation3 + $0x698] sm:$0xff] %v2464
  %2690 = vst [vmem:[#allocation3 + $0x6a0] sm:$0xff] %v2465
  %2691 = vst [vmem:[#allocation3 + $0x6a8] sm:$0xff] %v2466
  %2692 = vst [vmem:[#allocation3 + $0x6b0] sm:$0xff] %v2467
  %2693 = vst [vmem:[#allocation3 + $0x6b8] sm:$0xff] %v2468
  %2694 = vst [vmem:[#allocation3 + $0x6c0] sm:$0xff] %v2469
  %2695 = vst [vmem:[#allocation3 + $0x6c8] sm:$0xff] %v2470
  %2696 = vst [vmem:[#allocation3 + $0x6d0] sm:$0xff] %v2471
  %2697 = vst [vmem:[#allocation3 + $0x6d8] sm:$0xff] %v2472
  %2698 = vst [vmem:[#allocation3 + $0x6e0] sm:$0xff] %v2473
  %2699 = vst [vmem:[#allocation3 + $0x6e8] sm:$0xff] %v2474
  %2700 = vst [vmem:[#allocation3 + $0x6f0] sm:$0xff] %v2475
  %2701 = vst [vmem:[#allocation3 + $0x6f8] sm:$0xff] %v2476
  %2702 = vst [vmem:[#allocation3 + $0x700] sm:$0x7f] %v2477
  %v2703 = vld [vmem:[#allocation3] sm:$0xff]
  %v2704 = vld [vmem:[#allocation3 + $0x8] sm:$0xff]
  %v2705 = vld [vmem:[#allocation3 + $0x10] sm:$0xff]
  %v2706 = vld [vmem:[#allocation3 + $0x18] sm:$0xff]
  %v2707 = vld [vmem:[#allocation3 + $0x20] sm:$0xff]
  %v2708 = vld [vmem:[#allocation3 + $0x28] sm:$0xff]
  %v2709 = vld [vmem:[#allocation3 + $0x30] sm:$0xff]
  %v2710 = vld [vmem:[#allocation3 + $0x38] sm:$0xff]
  %v2711 = vld [vmem:[#allocation3 + $0x40] sm:$0xff]
  %v2712 = vld [vmem:[#allocation3 + $0x48] sm:$0xff]
  %v2713 = vld [vmem:[#allocation3 + $0x50] sm:$0xff]
  %v2714 = vld [vmem:[#allocation3 + $0x58] sm:$0xff]
  %v2715 = vld [vmem:[#allocation3 + $0x60] sm:$0xff]
  %v2716 = vld [vmem:[#allocation3 + $0x68] sm:$0xff]
  %v2717 = vld [vmem:[#allocation3 + $0x70] sm:$0xff]
  %v2718 = vld [vmem:[#allocation3 + $0x78] sm:$0xff]
  %v2719 = vld [vmem:[#allocation3 + $0x80] sm:$0xff]
  %v2720 = vld [vmem:[#allocation3 + $0x88] sm:$0xff]
  %v2721 = vld [vmem:[#allocation3 + $0x90] sm:$0xff]
  %v2722 = vld [vmem:[#allocation3 + $0x98] sm:$0xff]
  %v2723 = vld [vmem:[#allocation3 + $0xa0] sm:$0xff]
  %v2724 = vld [vmem:[#allocation3 + $0xa8] sm:$0xff]
  %v2725 = vld [vmem:[#allocation3 + $0xb0] sm:$0xff]
  %v2726 = vld [vmem:[#allocation3 + $0xb8] sm:$0xff]
  %v2727 = vld [vmem:[#allocation3 + $0xc0] sm:$0xff]
  %v2728 = vld [vmem:[#allocation3 + $0xc8] sm:$0xff]
  %v2729 = vld [vmem:[#allocation3 + $0xd0] sm:$0xff]
  %v2730 = vld [vmem:[#allocation3 + $0xd8] sm:$0xff]
  %v2731 = vld [vmem:[#allocation3 + $0xe0] sm:$0xff]
  %v2732 = vld [vmem:[#allocation3 + $0xe8] sm:$0xff]
  %v2733 = vld [vmem:[#allocation3 + $0xf0] sm:$0xff]
  %v2734 = vld [vmem:[#allocation3 + $0xf8] sm:$0xff]
  %v2735 = vld [vmem:[#allocation3 + $0x100] sm:$0xff]
  %v2736 = vld [vmem:[#allocation3 + $0x108] sm:$0xff]
  %v2737 = vld [vmem:[#allocation3 + $0x110] sm:$0xff]
  %v2738 = vld [vmem:[#allocation3 + $0x118] sm:$0xff]
  %v2739 = vld [vmem:[#allocation3 + $0x120] sm:$0xff]
  %v2740 = vld [vmem:[#allocation3 + $0x128] sm:$0xff]
  %v2741 = vld [vmem:[#allocation3 + $0x130] sm:$0xff]
  %v2742 = vld [vmem:[#allocation3 + $0x138] sm:$0xff]
  %v2743 = vld [vmem:[#allocation3 + $0x140] sm:$0xff]
  %v2744 = vld [vmem:[#allocation3 + $0x148] sm:$0xff]
  %v2745 = vld [vmem:[#allocation3 + $0x150] sm:$0xff]
  %v2746 = vld [vmem:[#allocation3 + $0x158] sm:$0xff]
  %v2747 = vld [vmem:[#allocation3 + $0x160] sm:$0xff]
  %v2748 = vld [vmem:[#allocation3 + $0x168] sm:$0xff]
  %v2749 = vld [vmem:[#allocation3 + $0x170] sm:$0xff]
  %v2750 = vld [vmem:[#allocation3 + $0x178] sm:$0xff]
  %v2751 = vld [vmem:[#allocation3 + $0x180] sm:$0xff]
  %v2752 = vld [vmem:[#allocation3 + $0x188] sm:$0xff]
  %v2753 = vld [vmem:[#allocation3 + $0x190] sm:$0xff]
  %v2754 = vld [vmem:[#allocation3 + $0x198] sm:$0xff]
  %v2755 = vld [vmem:[#allocation3 + $0x1a0] sm:$0xff]
  %v2756 = vld [vmem:[#allocation3 + $0x1a8] sm:$0xff]
  %v2757 = vld [vmem:[#allocation3 + $0x1b0] sm:$0xff]
  %v2758 = vld [vmem:[#allocation3 + $0x1b8] sm:$0xff]
  %v2759 = vld [vmem:[#allocation3 + $0x1c0] sm:$0xff]
  %v2760 = vld [vmem:[#allocation3 + $0x1c8] sm:$0xff]
  %v2761 = vld [vmem:[#allocation3 + $0x1d0] sm:$0xff]
  %v2762 = vld [vmem:[#allocation3 + $0x1d8] sm:$0xff]
  %v2763 = vld [vmem:[#allocation3 + $0x1e0] sm:$0xff]
  %v2764 = vld [vmem:[#allocation3 + $0x1e8] sm:$0xff]
  %v2765 = vld [vmem:[#allocation3 + $0x1f0] sm:$0xff]
  %v2766 = vld [vmem:[#allocation3 + $0x1f8] sm:$0xff]
  %v2767 = vld [vmem:[#allocation3 + $0x200] sm:$0xff]
  %v2768 = vld [vmem:[#allocation3 + $0x208] sm:$0xff]
  %v2769 = vld [vmem:[#allocation3 + $0x210] sm:$0xff]
  %v2770 = vld [vmem:[#allocation3 + $0x218] sm:$0xff]
  %v2771 = vld [vmem:[#allocation3 + $0x220] sm:$0xff]
  %v2772 = vld [vmem:[#allocation3 + $0x228] sm:$0xff]
  %v2773 = vld [vmem:[#allocation3 + $0x230] sm:$0xff]
  %v2774 = vld [vmem:[#allocation3 + $0x238] sm:$0xff]
  %v2775 = vld [vmem:[#allocation3 + $0x240] sm:$0xff]
  %v2776 = vld [vmem:[#allocation3 + $0x248] sm:$0xff]
  %v2777 = vld [vmem:[#allocation3 + $0x250] sm:$0xff]
  %v2778 = vld [vmem:[#allocation3 + $0x258] sm:$0xff]
  %v2779 = vld [vmem:[#allocation3 + $0x260] sm:$0xff]
  %v2780 = vld [vmem:[#allocation3 + $0x268] sm:$0xff]
  %v2781 = vld [vmem:[#allocation3 + $0x270] sm:$0xff]
  %v2782 = vld [vmem:[#allocation3 + $0x278] sm:$0xff]
  %v2783 = vld [vmem:[#allocation3 + $0x280] sm:$0xff]
  %v2784 = vld [vmem:[#allocation3 + $0x288] sm:$0xff]
  %v2785 = vld [vmem:[#allocation3 + $0x290] sm:$0xff]
  %v2786 = vld [vmem:[#allocation3 + $0x298] sm:$0xff]
  %v2787 = vld [vmem:[#allocation3 + $0x2a0] sm:$0xff]
  %v2788 = vld [vmem:[#allocation3 + $0x2a8] sm:$0xff]
  %v2789 = vld [vmem:[#allocation3 + $0x2b0] sm:$0xff]
  %v2790 = vld [vmem:[#allocation3 + $0x2b8] sm:$0xff]
  %v2791 = vld [vmem:[#allocation3 + $0x2c0] sm:$0xff]
  %v2792 = vld [vmem:[#allocation3 + $0x2c8] sm:$0xff]
  %v2793 = vld [vmem:[#allocation3 + $0x2d0] sm:$0xff]
  %v2794 = vld [vmem:[#allocation3 + $0x2d8] sm:$0xff]
  %v2795 = vld [vmem:[#allocation3 + $0x2e0] sm:$0xff]
  %v2796 = vld [vmem:[#allocation3 + $0x2e8] sm:$0xff]
  %v2797 = vld [vmem:[#allocation3 + $0x2f0] sm:$0xff]
  %v2798 = vld [vmem:[#allocation3 + $0x2f8] sm:$0xff]
  %v2799 = vld [vmem:[#allocation3 + $0x300] sm:$0xff]
  %v2800 = vld [vmem:[#allocation3 + $0x308] sm:$0xff]
  %v2801 = vld [vmem:[#allocation3 + $0x310] sm:$0xff]
  %v2802 = vld [vmem:[#allocation3 + $0x318] sm:$0xff]
  %v2803 = vld [vmem:[#allocation3 + $0x320] sm:$0xff]
  %v2804 = vld [vmem:[#allocation3 + $0x328] sm:$0xff]
  %v2805 = vld [vmem:[#allocation3 + $0x330] sm:$0xff]
  %v2806 = vld [vmem:[#allocation3 + $0x338] sm:$0xff]
  %v2807 = vld [vmem:[#allocation3 + $0x340] sm:$0xff]
  %v2808 = vld [vmem:[#allocation3 + $0x348] sm:$0xff]
  %v2809 = vld [vmem:[#allocation3 + $0x350] sm:$0xff]
  %v2810 = vld [vmem:[#allocation3 + $0x358] sm:$0xff]
  %v2811 = vld [vmem:[#allocation3 + $0x360] sm:$0xff]
  %v2812 = vld [vmem:[#allocation3 + $0x368] sm:$0xff]
  %v2813 = vld [vmem:[#allocation3 + $0x370] sm:$0xff]
  %v2814 = vld [vmem:[#allocation3 + $0x378] sm:$0xff]
  %v2815 = vld [vmem:[#allocation3 + $0x380] sm:$0xff]
  %v2816 = vld [vmem:[#allocation3 + $0x388] sm:$0xff]
  %v2817 = vld [vmem:[#allocation3 + $0x390] sm:$0xff]
  %v2818 = vld [vmem:[#allocation3 + $0x398] sm:$0xff]
  %v2819 = vld [vmem:[#allocation3 + $0x3a0] sm:$0xff]
  %v2820 = vld [vmem:[#allocation3 + $0x3a8] sm:$0xff]
  %v2821 = vld [vmem:[#allocation3 + $0x3b0] sm:$0xff]
  %v2822 = vld [vmem:[#allocation3 + $0x3b8] sm:$0xff]
  %v2823 = vld [vmem:[#allocation3 + $0x3c0] sm:$0xff]
  %v2824 = vld [vmem:[#allocation3 + $0x3c8] sm:$0xff]
  %v2825 = vld [vmem:[#allocation3 + $0x3d0] sm:$0xff]
  %v2826 = vld [vmem:[#allocation3 + $0x3d8] sm:$0xff]
  %v2827 = vld [vmem:[#allocation3 + $0x3e0] sm:$0xff]
  %v2828 = vld [vmem:[#allocation3 + $0x3e8] sm:$0xff]
  %v2829 = vld [vmem:[#allocation3 + $0x3f0] sm:$0xff]
  %v2830 = vld [vmem:[#allocation3 + $0x3f8] sm:$0xff]
  %v2831 = vld [vmem:[#allocation3 + $0x400] sm:$0xff]
  %v2832 = vld [vmem:[#allocation3 + $0x408] sm:$0xff]
  %v2833 = vld [vmem:[#allocation3 + $0x410] sm:$0xff]
  %v2834 = vld [vmem:[#allocation3 + $0x418] sm:$0xff]
  %v2835 = vld [vmem:[#allocation3 + $0x420] sm:$0xff]
  %v2836 = vld [vmem:[#allocation3 + $0x428] sm:$0xff]
  %v2837 = vld [vmem:[#allocation3 + $0x430] sm:$0xff]
  %v2838 = vld [vmem:[#allocation3 + $0x438] sm:$0xff]
  %v2839 = vld [vmem:[#allocation3 + $0x440] sm:$0xff]
  %v2840 = vld [vmem:[#allocation3 + $0x448] sm:$0xff]
  %v2841 = vld [vmem:[#allocation3 + $0x450] sm:$0xff]
  %v2842 = vld [vmem:[#allocation3 + $0x458] sm:$0xff]
  %v2843 = vld [vmem:[#allocation3 + $0x460] sm:$0xff]
  %v2844 = vld [vmem:[#allocation3 + $0x468] sm:$0xff]
  %v2845 = vld [vmem:[#allocation3 + $0x470] sm:$0xff]
  %v2846 = vld [vmem:[#allocation3 + $0x478] sm:$0xff]
  %v2847 = vld [vmem:[#allocation3 + $0x480] sm:$0xff]
  %v2848 = vld [vmem:[#allocation3 + $0x488] sm:$0xff]
  %v2849 = vld [vmem:[#allocation3 + $0x490] sm:$0xff]
  %v2850 = vld [vmem:[#allocation3 + $0x498] sm:$0xff]
  %v2851 = vld [vmem:[#allocation3 + $0x4a0] sm:$0xff]
  %v2852 = vld [vmem:[#allocation3 + $0x4a8] sm:$0xff]
  %v2853 = vld [vmem:[#allocation3 + $0x4b0] sm:$0xff]
  %v2854 = vld [vmem:[#allocation3 + $0x4b8] sm:$0xff]
  %v2855 = vld [vmem:[#allocation3 + $0x4c0] sm:$0xff]
  %v2856 = vld [vmem:[#allocation3 + $0x4c8] sm:$0xff]
  %v2857 = vld [vmem:[#allocation3 + $0x4d0] sm:$0xff]
  %v2858 = vld [vmem:[#allocation3 + $0x4d8] sm:$0xff]
  %v2859 = vld [vmem:[#allocation3 + $0x4e0] sm:$0xff]
  %v2860 = vld [vmem:[#allocation3 + $0x4e8] sm:$0xff]
  %v2861 = vld [vmem:[#allocation3 + $0x4f0] sm:$0xff]
  %v2862 = vld [vmem:[#allocation3 + $0x4f8] sm:$0xff]
  %v2863 = vld [vmem:[#allocation3 + $0x500] sm:$0xff]
  %v2864 = vld [vmem:[#allocation3 + $0x508] sm:$0xff]
  %v2865 = vld [vmem:[#allocation3 + $0x510] sm:$0xff]
  %v2866 = vld [vmem:[#allocation3 + $0x518] sm:$0xff]
  %v2867 = vld [vmem:[#allocation3 + $0x520] sm:$0xff]
  %v2868 = vld [vmem:[#allocation3 + $0x528] sm:$0xff]
  %v2869 = vld [vmem:[#allocation3 + $0x530] sm:$0xff]
  %v2870 = vld [vmem:[#allocation3 + $0x538] sm:$0xff]
  %v2871 = vld [vmem:[#allocation3 + $0x540] sm:$0xff]
  %v2872 = vld [vmem:[#allocation3 + $0x548] sm:$0xff]
  %v2873 = vld [vmem:[#allocation3 + $0x550] sm:$0xff]
  %v2874 = vld [vmem:[#allocation3 + $0x558] sm:$0xff]
  %v2875 = vld [vmem:[#allocation3 + $0x560] sm:$0xff]
  %v2876 = vld [vmem:[#allocation3 + $0x568] sm:$0xff]
  %v2877 = vld [vmem:[#allocation3 + $0x570] sm:$0xff]
  %v2878 = vld [vmem:[#allocation3 + $0x578] sm:$0xff]
  %v2879 = vld [vmem:[#allocation3 + $0x580] sm:$0xff]
  %v2880 = vld [vmem:[#allocation3 + $0x588] sm:$0xff]
  %v2881 = vld [vmem:[#allocation3 + $0x590] sm:$0xff]
  %v2882 = vld [vmem:[#allocation3 + $0x598] sm:$0xff]
  %v2883 = vld [vmem:[#allocation3 + $0x5a0] sm:$0xff]
  %v2884 = vld [vmem:[#allocation3 + $0x5a8] sm:$0xff]
  %v2885 = vld [vmem:[#allocation3 + $0x5b0] sm:$0xff]
  %v2886 = vld [vmem:[#allocation3 + $0x5b8] sm:$0xff]
  %v2887 = vld [vmem:[#allocation3 + $0x5c0] sm:$0xff]
  %v2888 = vld [vmem:[#allocation3 + $0x5c8] sm:$0xff]
  %v2889 = vld [vmem:[#allocation3 + $0x5d0] sm:$0xff]
  %v2890 = vld [vmem:[#allocation3 + $0x5d8] sm:$0xff]
  %v2891 = vld [vmem:[#allocation3 + $0x5e0] sm:$0xff]
  %v2892 = vld [vmem:[#allocation3 + $0x5e8] sm:$0xff]
  %v2893 = vld [vmem:[#allocation3 + $0x5f0] sm:$0xff]
  %v2894 = vld [vmem:[#allocation3 + $0x5f8] sm:$0xff]
  %v2895 = vld [vmem:[#allocation3 + $0x600] sm:$0xff]
  %v2896 = vld [vmem:[#allocation3 + $0x608] sm:$0xff]
  %v2897 = vld [vmem:[#allocation3 + $0x610] sm:$0xff]
  %v2898 = vld [vmem:[#allocation3 + $0x618] sm:$0xff]
  %v2899 = vld [vmem:[#allocation3 + $0x620] sm:$0xff]
  %v2900 = vld [vmem:[#allocation3 + $0x628] sm:$0xff]
  %v2901 = vld [vmem:[#allocation3 + $0x630] sm:$0xff]
  %v2902 = vld [vmem:[#allocation3 + $0x638] sm:$0xff]
  %v2903 = vld [vmem:[#allocation3 + $0x640] sm:$0xff]
  %v2904 = vld [vmem:[#allocation3 + $0x648] sm:$0xff]
  %v2905 = vld [vmem:[#allocation3 + $0x650] sm:$0xff]
  %v2906 = vld [vmem:[#allocation3 + $0x658] sm:$0xff]
  %v2907 = vld [vmem:[#allocation3 + $0x660] sm:$0xff]
  %v2908 = vld [vmem:[#allocation3 + $0x668] sm:$0xff]
  %v2909 = vld [vmem:[#allocation3 + $0x670] sm:$0xff]
  %v2910 = vld [vmem:[#allocation3 + $0x678] sm:$0xff]
  %v2911 = vld [vmem:[#allocation3 + $0x680] sm:$0xff]
  %v2912 = vld [vmem:[#allocation3 + $0x688] sm:$0xff]
  %v2913 = vld [vmem:[#allocation3 + $0x690] sm:$0xff]
  %v2914 = vld [vmem:[#allocation3 + $0x698] sm:$0xff]
  %v2915 = vld [vmem:[#allocation3 + $0x6a0] sm:$0xff]
  %v2916 = vld [vmem:[#allocation3 + $0x6a8] sm:$0xff]
  %v2917 = vld [vmem:[#allocation3 + $0x6b0] sm:$0xff]
  %v2918 = vld [vmem:[#allocation3 + $0x6b8] sm:$0xff]
  %v2919 = vld [vmem:[#allocation3 + $0x6c0] sm:$0xff]
  %v2920 = vld [vmem:[#allocation3 + $0x6c8] sm:$0xff]
  %v2921 = vld [vmem:[#allocation3 + $0x6d0] sm:$0xff]
  %v2922 = vld [vmem:[#allocation3 + $0x6d8] sm:$0xff]
  %v2923 = vld [vmem:[#allocation3 + $0x6e0] sm:$0xff]
  %v2924 = vld [vmem:[#allocation3 + $0x6e8] sm:$0x1]
  %v2925 = vld [vmem:[#allocation3 + $0x1e] sm:$0xff]
  %v2926 = vld [vmem:[#allocation3 + $0x26] sm:$0xff]
  %v2927 = vld [vmem:[#allocation3 + $0x2e] sm:$0xff]
  %v2928 = vld [vmem:[#allocation3 + $0x36] sm:$0xff]
  %v2929 = vld [vmem:[#allocation3 + $0x3e] sm:$0xff]
  %v2930 = vld [vmem:[#allocation3 + $0x46] sm:$0xff]
  %v2931 = vld [vmem:[#allocation3 + $0x4e] sm:$0xff]
  %v2932 = vld [vmem:[#allocation3 + $0x56] sm:$0xff]
  %v2933 = vld [vmem:[#allocation3 + $0x5e] sm:$0xff]
  %v2934 = vld [vmem:[#allocation3 + $0x66] sm:$0xff]
  %v2935 = vld [vmem:[#allocation3 + $0x6e] sm:$0xff]
  %v2936 = vld [vmem:[#allocation3 + $0x76] sm:$0xff]
  %v2937 = vld [vmem:[#allocation3 + $0x7e] sm:$0xff]
  %v2938 = vld [vmem:[#allocation3 + $0x86] sm:$0xff]
  %v2939 = vld [vmem:[#allocation3 + $0x8e] sm:$0xff]
  %v2940 = vld [vmem:[#allocation3 + $0x96] sm:$0xff]
  %v2941 = vld [vmem:[#allocation3 + $0x9e] sm:$0xff]
  %v2942 = vld [vmem:[#allocation3 + $0xa6] sm:$0xff]
  %v2943 = vld [vmem:[#allocation3 + $0xae] sm:$0xff]
  %v2944 = vld [vmem:[#allocation3 + $0xb6] sm:$0xff]
  %v2945 = vld [vmem:[#allocation3 + $0xbe] sm:$0xff]
  %v2946 = vld [vmem:[#allocation3 + $0xc6] sm:$0xff]
  %v2947 = vld [vmem:[#allocation3 + $0xce] sm:$0xff]
  %v2948 = vld [vmem:[#allocation3 + $0xd6] sm:$0xff]
  %v2949 = vld [vmem:[#allocation3 + $0xde] sm:$0xff]
  %v2950 = vld [vmem:[#allocation3 + $0xe6] sm:$0xff]
  %v2951 = vld [vmem:[#allocation3 + $0xee] sm:$0xff]
  %v2952 = vld [vmem:[#allocation3 + $0xf6] sm:$0xff]
  %v2953 = vld [vmem:[#allocation3 + $0xfe] sm:$0xff]
  %v2954 = vld [vmem:[#allocation3 + $0x106] sm:$0xff]
  %v2955 = vld [vmem:[#allocation3 + $0x10e] sm:$0xff]
  %v2956 = vld [vmem:[#allocation3 + $0x116] sm:$0xff]
  %v2957 = vld [vmem:[#allocation3 + $0x11e] sm:$0xff]
  %v2958 = vld [vmem:[#allocation3 + $0x126] sm:$0xff]
  %v2959 = vld [vmem:[#allocation3 + $0x12e] sm:$0xff]
  %v2960 = vld [vmem:[#allocation3 + $0x136] sm:$0xff]
  %v2961 = vld [vmem:[#allocation3 + $0x13e] sm:$0xff]
  %v2962 = vld [vmem:[#allocation3 + $0x146] sm:$0xff]
  %v2963 = vld [vmem:[#allocation3 + $0x14e] sm:$0xff]
  %v2964 = vld [vmem:[#allocation3 + $0x156] sm:$0xff]
  %v2965 = vld [vmem:[#allocation3 + $0x15e] sm:$0xff]
  %v2966 = vld [vmem:[#allocation3 + $0x166] sm:$0xff]
  %v2967 = vld [vmem:[#allocation3 + $0x16e] sm:$0xff]
  %v2968 = vld [vmem:[#allocation3 + $0x176] sm:$0xff]
  %v2969 = vld [vmem:[#allocation3 + $0x17e] sm:$0xff]
  %v2970 = vld [vmem:[#allocation3 + $0x186] sm:$0xff]
  %v2971 = vld [vmem:[#allocation3 + $0x18e] sm:$0xff]
  %v2972 = vld [vmem:[#allocation3 + $0x196] sm:$0xff]
  %v2973 = vld [vmem:[#allocation3 + $0x19e] sm:$0xff]
  %v2974 = vld [vmem:[#allocation3 + $0x1a6] sm:$0xff]
  %v2975 = vld [vmem:[#allocation3 + $0x1ae] sm:$0xff]
  %v2976 = vld [vmem:[#allocation3 + $0x1b6] sm:$0xff]
  %v2977 = vld [vmem:[#allocation3 + $0x1be] sm:$0xff]
  %v2978 = vld [vmem:[#allocation3 + $0x1c6] sm:$0xff]
  %v2979 = vld [vmem:[#allocation3 + $0x1ce] sm:$0xff]
  %v2980 = vld [vmem:[#allocation3 + $0x1d6] sm:$0xff]
  %v2981 = vld [vmem:[#allocation3 + $0x1de] sm:$0xff]
  %v2982 = vld [vmem:[#allocation3 + $0x1e6] sm:$0xff]
  %v2983 = vld [vmem:[#allocation3 + $0x1ee] sm:$0xff]
  %v2984 = vld [vmem:[#allocation3 + $0x1f6] sm:$0xff]
  %v2985 = vld [vmem:[#allocation3 + $0x1fe] sm:$0xff]
  %v2986 = vld [vmem:[#allocation3 + $0x206] sm:$0xff]
  %v2987 = vld [vmem:[#allocation3 + $0x20e] sm:$0xff]
  %v2988 = vld [vmem:[#allocation3 + $0x216] sm:$0xff]
  %v2989 = vld [vmem:[#allocation3 + $0x21e] sm:$0xff]
  %v2990 = vld [vmem:[#allocation3 + $0x226] sm:$0xff]
  %v2991 = vld [vmem:[#allocation3 + $0x22e] sm:$0xff]
  %v2992 = vld [vmem:[#allocation3 + $0x236] sm:$0xff]
  %v2993 = vld [vmem:[#allocation3 + $0x23e] sm:$0xff]
  %v2994 = vld [vmem:[#allocation3 + $0x246] sm:$0xff]
  %v2995 = vld [vmem:[#allocation3 + $0x24e] sm:$0xff]
  %v2996 = vld [vmem:[#allocation3 + $0x256] sm:$0xff]
  %v2997 = vld [vmem:[#allocation3 + $0x25e] sm:$0xff]
  %v2998 = vld [vmem:[#allocation3 + $0x266] sm:$0xff]
  %v2999 = vld [vmem:[#allocation3 + $0x26e] sm:$0xff]
  %v3000 = vld [vmem:[#allocation3 + $0x276] sm:$0xff]
  %v3001 = vld [vmem:[#allocation3 + $0x27e] sm:$0xff]
  %v3002 = vld [vmem:[#allocation3 + $0x286] sm:$0xff]
  %v3003 = vld [vmem:[#allocation3 + $0x28e] sm:$0xff]
  %v3004 = vld [vmem:[#allocation3 + $0x296] sm:$0xff]
  %v3005 = vld [vmem:[#allocation3 + $0x29e] sm:$0xff]
  %v3006 = vld [vmem:[#allocation3 + $0x2a6] sm:$0xff]
  %v3007 = vld [vmem:[#allocation3 + $0x2ae] sm:$0xff]
  %v3008 = vld [vmem:[#allocation3 + $0x2b6] sm:$0xff]
  %v3009 = vld [vmem:[#allocation3 + $0x2be] sm:$0xff]
  %v3010 = vld [vmem:[#allocation3 + $0x2c6] sm:$0xff]
  %v3011 = vld [vmem:[#allocation3 + $0x2ce] sm:$0xff]
  %v3012 = vld [vmem:[#allocation3 + $0x2d6] sm:$0xff]
  %v3013 = vld [vmem:[#allocation3 + $0x2de] sm:$0xff]
  %v3014 = vld [vmem:[#allocation3 + $0x2e6] sm:$0xff]
  %v3015 = vld [vmem:[#allocation3 + $0x2ee] sm:$0xff]
  %v3016 = vld [vmem:[#allocation3 + $0x2f6] sm:$0xff]
  %v3017 = vld [vmem:[#allocation3 + $0x2fe] sm:$0xff]
  %v3018 = vld [vmem:[#allocation3 + $0x306] sm:$0xff]
  %v3019 = vld [vmem:[#allocation3 + $0x30e] sm:$0xff]
  %v3020 = vld [vmem:[#allocation3 + $0x316] sm:$0xff]
  %v3021 = vld [vmem:[#allocation3 + $0x31e] sm:$0xff]
  %v3022 = vld [vmem:[#allocation3 + $0x326] sm:$0xff]
  %v3023 = vld [vmem:[#allocation3 + $0x32e] sm:$0xff]
  %v3024 = vld [vmem:[#allocation3 + $0x336] sm:$0xff]
  %v3025 = vld [vmem:[#allocation3 + $0x33e] sm:$0xff]
  %v3026 = vld [vmem:[#allocation3 + $0x346] sm:$0xff]
  %v3027 = vld [vmem:[#allocation3 + $0x34e] sm:$0xff]
  %v3028 = vld [vmem:[#allocation3 + $0x356] sm:$0xff]
  %v3029 = vld [vmem:[#allocation3 + $0x35e] sm:$0xff]
  %v3030 = vld [vmem:[#allocation3 + $0x366] sm:$0xff]
  %v3031 = vld [vmem:[#allocation3 + $0x36e] sm:$0xff]
  %v3032 = vld [vmem:[#allocation3 + $0x376] sm:$0xff]
  %v3033 = vld [vmem:[#allocation3 + $0x37e] sm:$0xff]
  %v3034 = vld [vmem:[#allocation3 + $0x386] sm:$0xff]
  %v3035 = vld [vmem:[#allocation3 + $0x38e] sm:$0xff]
  %v3036 = vld [vmem:[#allocation3 + $0x396] sm:$0xff]
  %v3037 = vld [vmem:[#allocation3 + $0x39e] sm:$0xff]
  %v3038 = vld [vmem:[#allocation3 + $0x3a6] sm:$0xff]
  %v3039 = vld [vmem:[#allocation3 + $0x3ae] sm:$0xff]
  %v3040 = vld [vmem:[#allocation3 + $0x3b6] sm:$0xff]
  %v3041 = vld [vmem:[#allocation3 + $0x3be] sm:$0xff]
  %v3042 = vld [vmem:[#allocation3 + $0x3c6] sm:$0xff]
  %v3043 = vld [vmem:[#allocation3 + $0x3ce] sm:$0xff]
  %v3044 = vld [vmem:[#allocation3 + $0x3d6] sm:$0xff]
  %v3045 = vld [vmem:[#allocation3 + $0x3de] sm:$0xff]
  %v3046 = vld [vmem:[#allocation3 + $0x3e6] sm:$0xff]
  %v3047 = vld [vmem:[#allocation3 + $0x3ee] sm:$0xff]
  %v3048 = vld [vmem:[#allocation3 + $0x3f6] sm:$0xff]
  %v3049 = vld [vmem:[#allocation3 + $0x3fe] sm:$0xff]
  %v3050 = vld [vmem:[#allocation3 + $0x406] sm:$0xff]
  %v3051 = vld [vmem:[#allocation3 + $0x40e] sm:$0xff]
  %v3052 = vld [vmem:[#allocation3 + $0x416] sm:$0xff]
  %v3053 = vld [vmem:[#allocation3 + $0x41e] sm:$0xff]
  %v3054 = vld [vmem:[#allocation3 + $0x426] sm:$0xff]
  %v3055 = vld [vmem:[#allocation3 + $0x42e] sm:$0xff]
  %v3056 = vld [vmem:[#allocation3 + $0x436] sm:$0xff]
  %v3057 = vld [vmem:[#allocation3 + $0x43e] sm:$0xff]
  %v3058 = vld [vmem:[#allocation3 + $0x446] sm:$0xff]
  %v3059 = vld [vmem:[#allocation3 + $0x44e] sm:$0xff]
  %v3060 = vld [vmem:[#allocation3 + $0x456] sm:$0xff]
  %v3061 = vld [vmem:[#allocation3 + $0x45e] sm:$0xff]
  %v3062 = vld [vmem:[#allocation3 + $0x466] sm:$0xff]
  %v3063 = vld [vmem:[#allocation3 + $0x46e] sm:$0xff]
  %v3064 = vld [vmem:[#allocation3 + $0x476] sm:$0xff]
  %v3065 = vld [vmem:[#allocation3 + $0x47e] sm:$0xff]
  %v3066 = vld [vmem:[#allocation3 + $0x486] sm:$0xff]
  %v3067 = vld [vmem:[#allocation3 + $0x48e] sm:$0xff]
  %v3068 = vld [vmem:[#allocation3 + $0x496] sm:$0xff]
  %v3069 = vld [vmem:[#allocation3 + $0x49e] sm:$0xff]
  %v3070 = vld [vmem:[#allocation3 + $0x4a6] sm:$0xff]
  %v3071 = vld [vmem:[#allocation3 + $0x4ae] sm:$0xff]
  %v3072 = vld [vmem:[#allocation3 + $0x4b6] sm:$0xff]
  %v3073 = vld [vmem:[#allocation3 + $0x4be] sm:$0xff]
  %v3074 = vld [vmem:[#allocation3 + $0x4c6] sm:$0xff]
  %v3075 = vld [vmem:[#allocation3 + $0x4ce] sm:$0xff]
  %v3076 = vld [vmem:[#allocation3 + $0x4d6] sm:$0xff]
  %v3077 = vld [vmem:[#allocation3 + $0x4de] sm:$0xff]
  %v3078 = vld [vmem:[#allocation3 + $0x4e6] sm:$0xff]
  %v3079 = vld [vmem:[#allocation3 + $0x4ee] sm:$0xff]
  %v3080 = vld [vmem:[#allocation3 + $0x4f6] sm:$0xff]
  %v3081 = vld [vmem:[#allocation3 + $0x4fe] sm:$0xff]
  %v3082 = vld [vmem:[#allocation3 + $0x506] sm:$0xff]
  %v3083 = vld [vmem:[#allocation3 + $0x50e] sm:$0xff]
  %v3084 = vld [vmem:[#allocation3 + $0x516] sm:$0xff]
  %v3085 = vld [vmem:[#allocation3 + $0x51e] sm:$0xff]
  %v3086 = vld [vmem:[#allocation3 + $0x526] sm:$0xff]
  %v3087 = vld [vmem:[#allocation3 + $0x52e] sm:$0xff]
  %v3088 = vld [vmem:[#allocation3 + $0x536] sm:$0xff]
  %v3089 = vld [vmem:[#allocation3 + $0x53e] sm:$0xff]
  %v3090 = vld [vmem:[#allocation3 + $0x546] sm:$0xff]
  %v3091 = vld [vmem:[#allocation3 + $0x54e] sm:$0xff]
  %v3092 = vld [vmem:[#allocation3 + $0x556] sm:$0xff]
  %v3093 = vld [vmem:[#allocation3 + $0x55e] sm:$0xff]
  %v3094 = vld [vmem:[#allocation3 + $0x566] sm:$0xff]
  %v3095 = vld [vmem:[#allocation3 + $0x56e] sm:$0xff]
  %v3096 = vld [vmem:[#allocation3 + $0x576] sm:$0xff]
  %v3097 = vld [vmem:[#allocation3 + $0x57e] sm:$0xff]
  %v3098 = vld [vmem:[#allocation3 + $0x586] sm:$0xff]
  %v3099 = vld [vmem:[#allocation3 + $0x58e] sm:$0xff]
  %v3100 = vld [vmem:[#allocation3 + $0x596] sm:$0xff]
  %v3101 = vld [vmem:[#allocation3 + $0x59e] sm:$0xff]
  %v3102 = vld [vmem:[#allocation3 + $0x5a6] sm:$0xff]
  %v3103 = vld [vmem:[#allocation3 + $0x5ae] sm:$0xff]
  %v3104 = vld [vmem:[#allocation3 + $0x5b6] sm:$0xff]
  %v3105 = vld [vmem:[#allocation3 + $0x5be] sm:$0xff]
  %v3106 = vld [vmem:[#allocation3 + $0x5c6] sm:$0xff]
  %v3107 = vld [vmem:[#allocation3 + $0x5ce] sm:$0xff]
  %v3108 = vld [vmem:[#allocation3 + $0x5d6] sm:$0xff]
  %v3109 = vld [vmem:[#allocation3 + $0x5de] sm:$0xff]
  %v3110 = vld [vmem:[#allocation3 + $0x5e6] sm:$0xff]
  %v3111 = vld [vmem:[#allocation3 + $0x5ee] sm:$0xff]
  %v3112 = vld [vmem:[#allocation3 + $0x5f6] sm:$0xff]
  %v3113 = vld [vmem:[#allocation3 + $0x5fe] sm:$0xff]
  %v3114 = vld [vmem:[#allocation3 + $0x606] sm:$0xff]
  %v3115 = vld [vmem:[#allocation3 + $0x60e] sm:$0xff]
  %v3116 = vld [vmem:[#allocation3 + $0x616] sm:$0xff]
  %v3117 = vld [vmem:[#allocation3 + $0x61e] sm:$0xff]
  %v3118 = vld [vmem:[#allocation3 + $0x626] sm:$0xff]
  %v3119 = vld [vmem:[#allocation3 + $0x62e] sm:$0xff]
  %v3120 = vld [vmem:[#allocation3 + $0x636] sm:$0xff]
  %v3121 = vld [vmem:[#allocation3 + $0x63e] sm:$0xff]
  %v3122 = vld [vmem:[#allocation3 + $0x646] sm:$0xff]
  %v3123 = vld [vmem:[#allocation3 + $0x64e] sm:$0xff]
  %v3124 = vld [vmem:[#allocation3 + $0x656] sm:$0xff]
  %v3125 = vld [vmem:[#allocation3 + $0x65e] sm:$0xff]
  %v3126 = vld [vmem:[#allocation3 + $0x666] sm:$0xff]
  %v3127 = vld [vmem:[#allocation3 + $0x66e] sm:$0xff]
  %v3128 = vld [vmem:[#allocation3 + $0x676] sm:$0xff]
  %v3129 = vld [vmem:[#allocation3 + $0x67e] sm:$0xff]
  %v3130 = vld [vmem:[#allocation3 + $0x686] sm:$0xff]
  %v3131 = vld [vmem:[#allocation3 + $0x68e] sm:$0xff]
  %v3132 = vld [vmem:[#allocation3 + $0x696] sm:$0xff]
  %v3133 = vld [vmem:[#allocation3 + $0x69e] sm:$0xff]
  %v3134 = vld [vmem:[#allocation3 + $0x6a6] sm:$0xff]
  %v3135 = vld [vmem:[#allocation3 + $0x6ae] sm:$0xff]
  %v3136 = vld [vmem:[#allocation3 + $0x6b6] sm:$0xff]
  %v3137 = vld [vmem:[#allocation3 + $0x6be] sm:$0xff]
  %v3138 = vld [vmem:[#allocation3 + $0x6c6] sm:$0xff]
  %v3139 = vld [vmem:[#allocation3 + $0x6ce] sm:$0xff]
  %v3140 = vld [vmem:[#allocation3 + $0x6d6] sm:$0xff]
  %v3141 = vld [vmem:[#allocation3 + $0x6de] sm:$0xff]
  %v3142 = vld [vmem:[#allocation3 + $0x6e6] sm:$0xff]
  %v3143 = vld [vmem:[#allocation3 + $0x6ee] sm:$0xff]
  %v3144 = vld [vmem:[#allocation3 + $0x6f6] sm:$0xff]
  %v3145 = vld [vmem:[#allocation3 + $0x6fe] sm:$0xff]
  %v3146 = vld [vmem:[#allocation3 + $0x706] sm:$0x1]
  %v3147 = vmax.f32 %v2703, %v2925
  %v3148 = vmax.f32 %v2704, %v2926
  %v3149 = vmax.f32 %v2705, %v2927
  %v3150 = vmax.f32 %v2706, %v2928
  %v3151 = vmax.f32 %v2707, %v2929
  %v3152 = vmax.f32 %v2708, %v2930
  %v3153 = vmax.f32 %v2709, %v2931
  %v3154 = vmax.f32 %v2710, %v2932
  %v3155 = vmax.f32 %v2711, %v2933
  %v3156 = vmax.f32 %v2712, %v2934
  %v3157 = vmax.f32 %v2713, %v2935
  %v3158 = vmax.f32 %v2714, %v2936
  %v3159 = vmax.f32 %v2715, %v2937
  %v3160 = vmax.f32 %v2716, %v2938
  %v3161 = vmax.f32 %v2717, %v2939
  %v3162 = vmax.f32 %v2718, %v2940
  %v3163 = vmax.f32 %v2719, %v2941
  %v3164 = vmax.f32 %v2720, %v2942
  %v3165 = vmax.f32 %v2721, %v2943
  %v3166 = vmax.f32 %v2722, %v2944
  %v3167 = vmax.f32 %v2723, %v2945
  %v3168 = vmax.f32 %v2724, %v2946
  %v3169 = vmax.f32 %v2725, %v2947
  %v3170 = vmax.f32 %v2726, %v2948
  %v3171 = vmax.f32 %v2727, %v2949
  %v3172 = vmax.f32 %v2728, %v2950
  %v3173 = vmax.f32 %v2729, %v2951
  %v3174 = vmax.f32 %v2730, %v2952
  %v3175 = vmax.f32 %v2731, %v2953
  %v3176 = vmax.f32 %v2732, %v2954
  %v3177 = vmax.f32 %v2733, %v2955
  %v3178 = vmax.f32 %v2734, %v2956
  %v3179 = vmax.f32 %v2735, %v2957
  %v3180 = vmax.f32 %v2736, %v2958
  %v3181 = vmax.f32 %v2737, %v2959
  %v3182 = vmax.f32 %v2738, %v2960
  %v3183 = vmax.f32 %v2739, %v2961
  %v3184 = vmax.f32 %v2740, %v2962
  %v3185 = vmax.f32 %v2741, %v2963
  %v3186 = vmax.f32 %v2742, %v2964
  %v3187 = vmax.f32 %v2743, %v2965
  %v3188 = vmax.f32 %v2744, %v2966
  %v3189 = vmax.f32 %v2745, %v2967
  %v3190 = vmax.f32 %v2746, %v2968
  %v3191 = vmax.f32 %v2747, %v2969
  %v3192 = vmax.f32 %v2748, %v2970
  %v3193 = vmax.f32 %v2749, %v2971
  %v3194 = vmax.f32 %v2750, %v2972
  %v3195 = vmax.f32 %v2751, %v2973
  %v3196 = vmax.f32 %v2752, %v2974
  %v3197 = vmax.f32 %v2753, %v2975
  %v3198 = vmax.f32 %v2754, %v2976
  %v3199 = vmax.f32 %v2755, %v2977
  %v3200 = vmax.f32 %v2756, %v2978
  %v3201 = vmax.f32 %v2757, %v2979
  %v3202 = vmax.f32 %v2758, %v2980
  %v3203 = vmax.f32 %v2759, %v2981
  %v3204 = vmax.f32 %v2760, %v2982
  %v3205 = vmax.f32 %v2761, %v2983
  %v3206 = vmax.f32 %v2762, %v2984
  %v3207 = vmax.f32 %v2763, %v2985
  %v3208 = vmax.f32 %v2764, %v2986
  %v3209 = vmax.f32 %v2765, %v2987
  %v3210 = vmax.f32 %v2766, %v2988
  %v3211 = vmax.f32 %v2767, %v2989
  %v3212 = vmax.f32 %v2768, %v2990
  %v3213 = vmax.f32 %v2769, %v2991
  %v3214 = vmax.f32 %v2770, %v2992
  %v3215 = vmax.f32 %v2771, %v2993
  %v3216 = vmax.f32 %v2772, %v2994
  %v3217 = vmax.f32 %v2773, %v2995
  %v3218 = vmax.f32 %v2774, %v2996
  %v3219 = vmax.f32 %v2775, %v2997
  %v3220 = vmax.f32 %v2776, %v2998
  %v3221 = vmax.f32 %v2777, %v2999
  %v3222 = vmax.f32 %v2778, %v3000
  %v3223 = vmax.f32 %v2779, %v3001
  %v3224 = vmax.f32 %v2780, %v3002
  %v3225 = vmax.f32 %v2781, %v3003
  %v3226 = vmax.f32 %v2782, %v3004
  %v3227 = vmax.f32 %v2783, %v3005
  %v3228 = vmax.f32 %v2784, %v3006
  %v3229 = vmax.f32 %v2785, %v3007
  %v3230 = vmax.f32 %v2786, %v3008
  %v3231 = vmax.f32 %v2787, %v3009
  %v3232 = vmax.f32 %v2788, %v3010
  %v3233 = vmax.f32 %v2789, %v3011
  %v3234 = vmax.f32 %v2790, %v3012
  %v3235 = vmax.f32 %v2791, %v3013
  %v3236 = vmax.f32 %v2792, %v3014
  %v3237 = vmax.f32 %v2793, %v3015
  %v3238 = vmax.f32 %v2794, %v3016
  %v3239 = vmax.f32 %v2795, %v3017
  %v3240 = vmax.f32 %v2796, %v3018
  %v3241 = vmax.f32 %v2797, %v3019
  %v3242 = vmax.f32 %v2798, %v3020
  %v3243 = vmax.f32 %v2799, %v3021
  %v3244 = vmax.f32 %v2800, %v3022
  %v3245 = vmax.f32 %v2801, %v3023
  %v3246 = vmax.f32 %v2802, %v3024
  %v3247 = vmax.f32 %v2803, %v3025
  %v3248 = vmax.f32 %v2804, %v3026
  %v3249 = vmax.f32 %v2805, %v3027
  %v3250 = vmax.f32 %v2806, %v3028
  %v3251 = vmax.f32 %v2807, %v3029
  %v3252 = vmax.f32 %v2808, %v3030
  %v3253 = vmax.f32 %v2809, %v3031
  %v3254 = vmax.f32 %v2810, %v3032
  %v3255 = vmax.f32 %v2811, %v3033
  %v3256 = vmax.f32 %v2812, %v3034
  %v3257 = vmax.f32 %v2813, %v3035
  %v3258 = vmax.f32 %v2814, %v3036
  %v3259 = vmax.f32 %v2815, %v3037
  %v3260 = vmax.f32 %v2816, %v3038
  %v3261 = vmax.f32 %v2817, %v3039
  %v3262 = vmax.f32 %v2818, %v3040
  %v3263 = vmax.f32 %v2819, %v3041
  %v3264 = vmax.f32 %v2820, %v3042
  %v3265 = vmax.f32 %v2821, %v3043
  %v3266 = vmax.f32 %v2822, %v3044
  %v3267 = vmax.f32 %v2823, %v3045
  %v3268 = vmax.f32 %v2824, %v3046
  %v3269 = vmax.f32 %v2825, %v3047
  %v3270 = vmax.f32 %v2826, %v3048
  %v3271 = vmax.f32 %v2827, %v3049
  %v3272 = vmax.f32 %v2828, %v3050
  %v3273 = vmax.f32 %v2829, %v3051
  %v3274 = vmax.f32 %v2830, %v3052
  %v3275 = vmax.f32 %v2831, %v3053
  %v3276 = vmax.f32 %v2832, %v3054
  %v3277 = vmax.f32 %v2833, %v3055
  %v3278 = vmax.f32 %v2834, %v3056
  %v3279 = vmax.f32 %v2835, %v3057
  %v3280 = vmax.f32 %v2836, %v3058
  %v3281 = vmax.f32 %v2837, %v3059
  %v3282 = vmax.f32 %v2838, %v3060
  %v3283 = vmax.f32 %v2839, %v3061
  %v3284 = vmax.f32 %v2840, %v3062
  %v3285 = vmax.f32 %v2841, %v3063
  %v3286 = vmax.f32 %v2842, %v3064
  %v3287 = vmax.f32 %v2843, %v3065
  %v3288 = vmax.f32 %v2844, %v3066
  %v3289 = vmax.f32 %v2845, %v3067
  %v3290 = vmax.f32 %v2846, %v3068
  %v3291 = vmax.f32 %v2847, %v3069
  %v3292 = vmax.f32 %v2848, %v3070
  %v3293 = vmax.f32 %v2849, %v3071
  %v3294 = vmax.f32 %v2850, %v3072
  %v3295 = vmax.f32 %v2851, %v3073
  %v3296 = vmax.f32 %v2852, %v3074
  %v3297 = vmax.f32 %v2853, %v3075
  %v3298 = vmax.f32 %v2854, %v3076
  %v3299 = vmax.f32 %v2855, %v3077
  %v3300 = vmax.f32 %v2856, %v3078
  %v3301 = vmax.f32 %v2857, %v3079
  %v3302 = vmax.f32 %v2858, %v3080
  %v3303 = vmax.f32 %v2859, %v3081
  %v3304 = vmax.f32 %v2860, %v3082
  %v3305 = vmax.f32 %v2861, %v3083
  %v3306 = vmax.f32 %v2862, %v3084
  %v3307 = vmax.f32 %v2863, %v3085
  %v3308 = vmax.f32 %v2864, %v3086
  %v3309 = vmax.f32 %v2865, %v3087
  %v3310 = vmax.f32 %v2866, %v3088
  %v3311 = vmax.f32 %v2867, %v3089
  %v3312 = vmax.f32 %v2868, %v3090
  %v3313 = vmax.f32 %v2869, %v3091
  %v3314 = vmax.f32 %v2870, %v3092
  %v3315 = vmax.f32 %v2871, %v3093
  %v3316 = vmax.f32 %v2872, %v3094
  %v3317 = vmax.f32 %v2873, %v3095
  %v3318 = vmax.f32 %v2874, %v3096
  %v3319 = vmax.f32 %v2875, %v3097
  %v3320 = vmax.f32 %v2876, %v3098
  %v3321 = vmax.f32 %v2877, %v3099
  %v3322 = vmax.f32 %v2878, %v3100
  %v3323 = vmax.f32 %v2879, %v3101
  %v3324 = vmax.f32 %v2880, %v3102
  %v3325 = vmax.f32 %v2881, %v3103
  %v3326 = vmax.f32 %v2882, %v3104
  %v3327 = vmax.f32 %v2883, %v3105
  %v3328 = vmax.f32 %v2884, %v3106
  %v3329 = vmax.f32 %v2885, %v3107
  %v3330 = vmax.f32 %v2886, %v3108
  %v3331 = vmax.f32 %v2887, %v3109
  %v3332 = vmax.f32 %v2888, %v3110
  %v3333 = vmax.f32 %v2889, %v3111
  %v3334 = vmax.f32 %v2890, %v3112
  %v3335 = vmax.f32 %v2891, %v3113
  %v3336 = vmax.f32 %v2892, %v3114
  %v3337 = vmax.f32 %v2893, %v3115
  %v3338 = vmax.f32 %v2894, %v3116
  %v3339 = vmax.f32 %v2895, %v3117
  %v3340 = vmax.f32 %v2896, %v3118
  %v3341 = vmax.f32 %v2897, %v3119
  %v3342 = vmax.f32 %v2898, %v3120
  %v3343 = vmax.f32 %v2899, %v3121
  %v3344 = vmax.f32 %v2900, %v3122
  %v3345 = vmax.f32 %v2901, %v3123
  %v3346 = vmax.f32 %v2902, %v3124
  %v3347 = vmax.f32 %v2903, %v3125
  %v3348 = vmax.f32 %v2904, %v3126
  %v3349 = vmax.f32 %v2905, %v3127
  %v3350 = vmax.f32 %v2906, %v3128
  %v3351 = vmax.f32 %v2907, %v3129
  %v3352 = vmax.f32 %v2908, %v3130
  %v3353 = vmax.f32 %v2909, %v3131
  %v3354 = vmax.f32 %v2910, %v3132
  %v3355 = vmax.f32 %v2911, %v3133
  %v3356 = vmax.f32 %v2912, %v3134
  %v3357 = vmax.f32 %v2913, %v3135
  %v3358 = vmax.f32 %v2914, %v3136
  %v3359 = vmax.f32 %v2915, %v3137
  %v3360 = vmax.f32 %v2916, %v3138
  %v3361 = vmax.f32 %v2917, %v3139
  %v3362 = vmax.f32 %v2918, %v3140
  %v3363 = vmax.f32 %v2919, %v3141
  %v3364 = vmax.f32 %v2920, %v3142
  %v3365 = vmax.f32 %v2921, %v3143
  %v3366 = vmax.f32 %v2922, %v3144
  %v3367 = vmax.f32 %v2923, %v3145
  %v3368 = vmax.f32 %v2924, %v3146
  %3369 = vst [vmem:[#allocation2] sm:$0xff] %v3147
  %3370 = vst [vmem:[#allocation2 + $0x8] sm:$0xff] %v3148
  %3371 = vst [vmem:[#allocation2 + $0x10] sm:$0xff] %v3149
  %3372 = vst [vmem:[#allocation2 + $0x18] sm:$0xff] %v3150
  %3373 = vst [vmem:[#allocation2 + $0x20] sm:$0xff] %v3151
  %3374 = vst [vmem:[#allocation2 + $0x28] sm:$0xff] %v3152
  %3375 = vst [vmem:[#allocation2 + $0x30] sm:$0xff] %v3153
  %3376 = vst [vmem:[#allocation2 + $0x38] sm:$0xff] %v3154
  %3377 = vst [vmem:[#allocation2 + $0x40] sm:$0xff] %v3155
  %3378 = vst [vmem:[#allocation2 + $0x48] sm:$0xff] %v3156
  %3379 = vst [vmem:[#allocation2 + $0x50] sm:$0xff] %v3157
  %3380 = vst [vmem:[#allocation2 + $0x58] sm:$0xff] %v3158
  %3381 = vst [vmem:[#allocation2 + $0x60] sm:$0xff] %v3159
  %3382 = vst [vmem:[#allocation2 + $0x68] sm:$0xff] %v3160
  %3383 = vst [vmem:[#allocation2 + $0x70] sm:$0xff] %v3161
  %3384 = vst [vmem:[#allocation2 + $0x78] sm:$0xff] %v3162
  %3385 = vst [vmem:[#allocation2 + $0x80] sm:$0xff] %v3163
  %3386 = vst [vmem:[#allocation2 + $0x88] sm:$0xff] %v3164
  %3387 = vst [vmem:[#allocation2 + $0x90] sm:$0xff] %v3165
  %3388 = vst [vmem:[#allocation2 + $0x98] sm:$0xff] %v3166
  %3389 = vst [vmem:[#allocation2 + $0xa0] sm:$0xff] %v3167
  %3390 = vst [vmem:[#allocation2 + $0xa8] sm:$0xff] %v3168
  %3391 = vst [vmem:[#allocation2 + $0xb0] sm:$0xff] %v3169
  %3392 = vst [vmem:[#allocation2 + $0xb8] sm:$0xff] %v3170
  %3393 = vst [vmem:[#allocation2 + $0xc0] sm:$0xff] %v3171
  %3394 = vst [vmem:[#allocation2 + $0xc8] sm:$0xff] %v3172
  %3395 = vst [vmem:[#allocation2 + $0xd0] sm:$0xff] %v3173
  %3396 = vst [vmem:[#allocation2 + $0xd8] sm:$0xff] %v3174
  %3397 = vst [vmem:[#allocation2 + $0xe0] sm:$0xff] %v3175
  %3398 = vst [vmem:[#allocation2 + $0xe8] sm:$0xff] %v3176
  %3399 = vst [vmem:[#allocation2 + $0xf0] sm:$0xff] %v3177
  %3400 = vst [vmem:[#allocation2 + $0xf8] sm:$0xff] %v3178
  %3401 = vst [vmem:[#allocation2 + $0x100] sm:$0xff] %v3179
  %3402 = vst [vmem:[#allocation2 + $0x108] sm:$0xff] %v3180
  %3403 = vst [vmem:[#allocation2 + $0x110] sm:$0xff] %v3181
  %3404 = vst [vmem:[#allocation2 + $0x118] sm:$0xff] %v3182
  %3405 = vst [vmem:[#allocation2 + $0x120] sm:$0xff] %v3183
  %3406 = vst [vmem:[#allocation2 + $0x128] sm:$0xff] %v3184
  %3407 = vst [vmem:[#allocation2 + $0x130] sm:$0xff] %v3185
  %3408 = vst [vmem:[#allocation2 + $0x138] sm:$0xff] %v3186
  %3409 = vst [vmem:[#allocation2 + $0x140] sm:$0xff] %v3187
  %3410 = vst [vmem:[#allocation2 + $0x148] sm:$0xff] %v3188
  %3411 = vst [vmem:[#allocation2 + $0x150] sm:$0xff] %v3189
  %3412 = vst [vmem:[#allocation2 + $0x158] sm:$0xff] %v3190
  %3413 = vst [vmem:[#allocation2 + $0x160] sm:$0xff] %v3191
  %3414 = vst [vmem:[#allocation2 + $0x168] sm:$0xff] %v3192
  %3415 = vst [vmem:[#allocation2 + $0x170] sm:$0xff] %v3193
  %3416 = vst [vmem:[#allocation2 + $0x178] sm:$0xff] %v3194
  %3417 = vst [vmem:[#allocation2 + $0x180] sm:$0xff] %v3195
  %3418 = vst [vmem:[#allocation2 + $0x188] sm:$0xff] %v3196
  %3419 = vst [vmem:[#allocation2 + $0x190] sm:$0xff] %v3197
  %3420 = vst [vmem:[#allocation2 + $0x198] sm:$0xff] %v3198
  %3421 = vst [vmem:[#allocation2 + $0x1a0] sm:$0xff] %v3199
  %3422 = vst [vmem:[#allocation2 + $0x1a8] sm:$0xff] %v3200
  %3423 = vst [vmem:[#allocation2 + $0x1b0] sm:$0xff] %v3201
  %3424 = vst [vmem:[#allocation2 + $0x1b8] sm:$0xff] %v3202
  %3425 = vst [vmem:[#allocation2 + $0x1c0] sm:$0xff] %v3203
  %3426 = vst [vmem:[#allocation2 + $0x1c8] sm:$0xff] %v3204
  %3427 = vst [vmem:[#allocation2 + $0x1d0] sm:$0xff] %v3205
  %3428 = vst [vmem:[#allocation2 + $0x1d8] sm:$0xff] %v3206
  %3429 = vst [vmem:[#allocation2 + $0x1e0] sm:$0xff] %v3207
  %3430 = vst [vmem:[#allocation2 + $0x1e8] sm:$0xff] %v3208
  %3431 = vst [vmem:[#allocation2 + $0x1f0] sm:$0xff] %v3209
  %3432 = vst [vmem:[#allocation2 + $0x1f8] sm:$0xff] %v3210
  %3433 = vst [vmem:[#allocation2 + $0x200] sm:$0xff] %v3211
  %3434 = vst [vmem:[#allocation2 + $0x208] sm:$0xff] %v3212
  %3435 = vst [vmem:[#allocation2 + $0x210] sm:$0xff] %v3213
  %3436 = vst [vmem:[#allocation2 + $0x218] sm:$0xff] %v3214
  %3437 = vst [vmem:[#allocation2 + $0x220] sm:$0xff] %v3215
  %3438 = vst [vmem:[#allocation2 + $0x228] sm:$0xff] %v3216
  %3439 = vst [vmem:[#allocation2 + $0x230] sm:$0xff] %v3217
  %3440 = vst [vmem:[#allocation2 + $0x238] sm:$0xff] %v3218
  %3441 = vst [vmem:[#allocation2 + $0x240] sm:$0xff] %v3219
  %3442 = vst [vmem:[#allocation2 + $0x248] sm:$0xff] %v3220
  %3443 = vst [vmem:[#allocation2 + $0x250] sm:$0xff] %v3221
  %3444 = vst [vmem:[#allocation2 + $0x258] sm:$0xff] %v3222
  %3445 = vst [vmem:[#allocation2 + $0x260] sm:$0xff] %v3223
  %3446 = vst [vmem:[#allocation2 + $0x268] sm:$0xff] %v3224
  %3447 = vst [vmem:[#allocation2 + $0x270] sm:$0xff] %v3225
  %3448 = vst [vmem:[#allocation2 + $0x278] sm:$0xff] %v3226
  %3449 = vst [vmem:[#allocation2 + $0x280] sm:$0xff] %v3227
  %3450 = vst [vmem:[#allocation2 + $0x288] sm:$0xff] %v3228
  %3451 = vst [vmem:[#allocation2 + $0x290] sm:$0xff] %v3229
  %3452 = vst [vmem:[#allocation2 + $0x298] sm:$0xff] %v3230
  %3453 = vst [vmem:[#allocation2 + $0x2a0] sm:$0xff] %v3231
  %3454 = vst [vmem:[#allocation2 + $0x2a8] sm:$0xff] %v3232
  %3455 = vst [vmem:[#allocation2 + $0x2b0] sm:$0xff] %v3233
  %3456 = vst [vmem:[#allocation2 + $0x2b8] sm:$0xff] %v3234
  %3457 = vst [vmem:[#allocation2 + $0x2c0] sm:$0xff] %v3235
  %3458 = vst [vmem:[#allocation2 + $0x2c8] sm:$0xff] %v3236
  %3459 = vst [vmem:[#allocation2 + $0x2d0] sm:$0xff] %v3237
  %3460 = vst [vmem:[#allocation2 + $0x2d8] sm:$0xff] %v3238
  %3461 = vst [vmem:[#allocation2 + $0x2e0] sm:$0xff] %v3239
  %3462 = vst [vmem:[#allocation2 + $0x2e8] sm:$0xff] %v3240
  %3463 = vst [vmem:[#allocation2 + $0x2f0] sm:$0xff] %v3241
  %3464 = vst [vmem:[#allocation2 + $0x2f8] sm:$0xff] %v3242
  %3465 = vst [vmem:[#allocation2 + $0x300] sm:$0xff] %v3243
  %3466 = vst [vmem:[#allocation2 + $0x308] sm:$0xff] %v3244
  %3467 = vst [vmem:[#allocation2 + $0x310] sm:$0xff] %v3245
  %3468 = vst [vmem:[#allocation2 + $0x318] sm:$0xff] %v3246
  %3469 = vst [vmem:[#allocation2 + $0x320] sm:$0xff] %v3247
  %3470 = vst [vmem:[#allocation2 + $0x328] sm:$0xff] %v3248
  %3471 = vst [vmem:[#allocation2 + $0x330] sm:$0xff] %v3249
  %3472 = vst [vmem:[#allocation2 + $0x338] sm:$0xff] %v3250
  %3473 = vst [vmem:[#allocation2 + $0x340] sm:$0xff] %v3251
  %3474 = vst [vmem:[#allocation2 + $0x348] sm:$0xff] %v3252
  %3475 = vst [vmem:[#allocation2 + $0x350] sm:$0xff] %v3253
  %3476 = vst [vmem:[#allocation2 + $0x358] sm:$0xff] %v3254
  %3477 = vst [vmem:[#allocation2 + $0x360] sm:$0xff] %v3255
  %3478 = vst [vmem:[#allocation2 + $0x368] sm:$0xff] %v3256
  %3479 = vst [vmem:[#allocation2 + $0x370] sm:$0xff] %v3257
  %3480 = vst [vmem:[#allocation2 + $0x378] sm:$0xff] %v3258
  %3481 = vst [vmem:[#allocation2 + $0x380] sm:$0xff] %v3259
  %3482 = vst [vmem:[#allocation2 + $0x388] sm:$0xff] %v3260
  %3483 = vst [vmem:[#allocation2 + $0x390] sm:$0xff] %v3261
  %3484 = vst [vmem:[#allocation2 + $0x398] sm:$0xff] %v3262
  %3485 = vst [vmem:[#allocation2 + $0x3a0] sm:$0xff] %v3263
  %3486 = vst [vmem:[#allocation2 + $0x3a8] sm:$0xff] %v3264
  %3487 = vst [vmem:[#allocation2 + $0x3b0] sm:$0xff] %v3265
  %3488 = vst [vmem:[#allocation2 + $0x3b8] sm:$0xff] %v3266
  %3489 = vst [vmem:[#allocation2 + $0x3c0] sm:$0xff] %v3267
  %3490 = vst [vmem:[#allocation2 + $0x3c8] sm:$0xff] %v3268
  %3491 = vst [vmem:[#allocation2 + $0x3d0] sm:$0xff] %v3269
  %3492 = vst [vmem:[#allocation2 + $0x3d8] sm:$0xff] %v3270
  %3493 = vst [vmem:[#allocation2 + $0x3e0] sm:$0xff] %v3271
  %3494 = vst [vmem:[#allocation2 + $0x3e8] sm:$0xff] %v3272
  %3495 = vst [vmem:[#allocation2 + $0x3f0] sm:$0xff] %v3273
  %3496 = vst [vmem:[#allocation2 + $0x3f8] sm:$0xff] %v3274
  %3497 = vst [vmem:[#allocation2 + $0x400] sm:$0xff] %v3275
  %3498 = vst [vmem:[#allocation2 + $0x408] sm:$0xff] %v3276
  %3499 = vst [vmem:[#allocation2 + $0x410] sm:$0xff] %v3277
  %3500 = vst [vmem:[#allocation2 + $0x418] sm:$0xff] %v3278
  %3501 = vst [vmem:[#allocation2 + $0x420] sm:$0xff] %v3279
  %3502 = vst [vmem:[#allocation2 + $0x428] sm:$0xff] %v3280
  %3503 = vst [vmem:[#allocation2 + $0x430] sm:$0xff] %v3281
  %3504 = vst [vmem:[#allocation2 + $0x438] sm:$0xff] %v3282
  %3505 = vst [vmem:[#allocation2 + $0x440] sm:$0xff] %v3283
  %3506 = vst [vmem:[#allocation2 + $0x448] sm:$0xff] %v3284
  %3507 = vst [vmem:[#allocation2 + $0x450] sm:$0xff] %v3285
  %3508 = vst [vmem:[#allocation2 + $0x458] sm:$0xff] %v3286
  %3509 = vst [vmem:[#allocation2 + $0x460] sm:$0xff] %v3287
  %3510 = vst [vmem:[#allocation2 + $0x468] sm:$0xff] %v3288
  %3511 = vst [vmem:[#allocation2 + $0x470] sm:$0xff] %v3289
  %3512 = vst [vmem:[#allocation2 + $0x478] sm:$0xff] %v3290
  %3513 = vst [vmem:[#allocation2 + $0x480] sm:$0xff] %v3291
  %3514 = vst [vmem:[#allocation2 + $0x488] sm:$0xff] %v3292
  %3515 = vst [vmem:[#allocation2 + $0x490] sm:$0xff] %v3293
  %3516 = vst [vmem:[#allocation2 + $0x498] sm:$0xff] %v3294
  %3517 = vst [vmem:[#allocation2 + $0x4a0] sm:$0xff] %v3295
  %3518 = vst [vmem:[#allocation2 + $0x4a8] sm:$0xff] %v3296
  %3519 = vst [vmem:[#allocation2 + $0x4b0] sm:$0xff] %v3297
  %3520 = vst [vmem:[#allocation2 + $0x4b8] sm:$0xff] %v3298
  %3521 = vst [vmem:[#allocation2 + $0x4c0] sm:$0xff] %v3299
  %3522 = vst [vmem:[#allocation2 + $0x4c8] sm:$0xff] %v3300
  %3523 = vst [vmem:[#allocation2 + $0x4d0] sm:$0xff] %v3301
  %3524 = vst [vmem:[#allocation2 + $0x4d8] sm:$0xff] %v3302
  %3525 = vst [vmem:[#allocation2 + $0x4e0] sm:$0xff] %v3303
  %3526 = vst [vmem:[#allocation2 + $0x4e8] sm:$0xff] %v3304
  %3527 = vst [vmem:[#allocation2 + $0x4f0] sm:$0xff] %v3305
  %3528 = vst [vmem:[#allocation2 + $0x4f8] sm:$0xff] %v3306
  %3529 = vst [vmem:[#allocation2 + $0x500] sm:$0xff] %v3307
  %3530 = vst [vmem:[#allocation2 + $0x508] sm:$0xff] %v3308
  %3531 = vst [vmem:[#allocation2 + $0x510] sm:$0xff] %v3309
  %3532 = vst [vmem:[#allocation2 + $0x518] sm:$0xff] %v3310
  %3533 = vst [vmem:[#allocation2 + $0x520] sm:$0xff] %v3311
  %3534 = vst [vmem:[#allocation2 + $0x528] sm:$0xff] %v3312
  %3535 = vst [vmem:[#allocation2 + $0x530] sm:$0xff] %v3313
  %3536 = vst [vmem:[#allocation2 + $0x538] sm:$0xff] %v3314
  %3537 = vst [vmem:[#allocation2 + $0x540] sm:$0xff] %v3315
  %3538 = vst [vmem:[#allocation2 + $0x548] sm:$0xff] %v3316
  %3539 = vst [vmem:[#allocation2 + $0x550] sm:$0xff] %v3317
  %3540 = vst [vmem:[#allocation2 + $0x558] sm:$0xff] %v3318
  %3541 = vst [vmem:[#allocation2 + $0x560] sm:$0xff] %v3319
  %3542 = vst [vmem:[#allocation2 + $0x568] sm:$0xff] %v3320
  %3543 = vst [vmem:[#allocation2 + $0x570] sm:$0xff] %v3321
  %3544 = vst [vmem:[#allocation2 + $0x578] sm:$0xff] %v3322
  %3545 = vst [vmem:[#allocation2 + $0x580] sm:$0xff] %v3323
  %3546 = vst [vmem:[#allocation2 + $0x588] sm:$0xff] %v3324
  %3547 = vst [vmem:[#allocation2 + $0x590] sm:$0xff] %v3325
  %3548 = vst [vmem:[#allocation2 + $0x598] sm:$0xff] %v3326
  %3549 = vst [vmem:[#allocation2 + $0x5a0] sm:$0xff] %v3327
  %3550 = vst [vmem:[#allocation2 + $0x5a8] sm:$0xff] %v3328
  %3551 = vst [vmem:[#allocation2 + $0x5b0] sm:$0xff] %v3329
  %3552 = vst [vmem:[#allocation2 + $0x5b8] sm:$0xff] %v3330
  %3553 = vst [vmem:[#allocation2 + $0x5c0] sm:$0xff] %v3331
  %3554 = vst [vmem:[#allocation2 + $0x5c8] sm:$0xff] %v3332
  %3555 = vst [vmem:[#allocation2 + $0x5d0] sm:$0xff] %v3333
  %3556 = vst [vmem:[#allocation2 + $0x5d8] sm:$0xff] %v3334
  %3557 = vst [vmem:[#allocation2 + $0x5e0] sm:$0xff] %v3335
  %3558 = vst [vmem:[#allocation2 + $0x5e8] sm:$0xff] %v3336
  %3559 = vst [vmem:[#allocation2 + $0x5f0] sm:$0xff] %v3337
  %3560 = vst [vmem:[#allocation2 + $0x5f8] sm:$0xff] %v3338
  %3561 = vst [vmem:[#allocation2 + $0x600] sm:$0xff] %v3339
  %3562 = vst [vmem:[#allocation2 + $0x608] sm:$0xff] %v3340
  %3563 = vst [vmem:[#allocation2 + $0x610] sm:$0xff] %v3341
  %3564 = vst [vmem:[#allocation2 + $0x618] sm:$0xff] %v3342
  %3565 = vst [vmem:[#allocation2 + $0x620] sm:$0xff] %v3343
  %3566 = vst [vmem:[#allocation2 + $0x628] sm:$0xff] %v3344
  %3567 = vst [vmem:[#allocation2 + $0x630] sm:$0xff] %v3345
  %3568 = vst [vmem:[#allocation2 + $0x638] sm:$0xff] %v3346
  %3569 = vst [vmem:[#allocation2 + $0x640] sm:$0xff] %v3347
  %3570 = vst [vmem:[#allocation2 + $0x648] sm:$0xff] %v3348
  %3571 = vst [vmem:[#allocation2 + $0x650] sm:$0xff] %v3349
  %3572 = vst [vmem:[#allocation2 + $0x658] sm:$0xff] %v3350
  %3573 = vst [vmem:[#allocation2 + $0x660] sm:$0xff] %v3351
  %3574 = vst [vmem:[#allocation2 + $0x668] sm:$0xff] %v3352
  %3575 = vst [vmem:[#allocation2 + $0x670] sm:$0xff] %v3353
  %3576 = vst [vmem:[#allocation2 + $0x678] sm:$0xff] %v3354
  %3577 = vst [vmem:[#allocation2 + $0x680] sm:$0xff] %v3355
  %3578 = vst [vmem:[#allocation2 + $0x688] sm:$0xff] %v3356
  %3579 = vst [vmem:[#allocation2 + $0x690] sm:$0xff] %v3357
  %3580 = vst [vmem:[#allocation2 + $0x698] sm:$0xff] %v3358
  %3581 = vst [vmem:[#allocation2 + $0x6a0] sm:$0xff] %v3359
  %3582 = vst [vmem:[#allocation2 + $0x6a8] sm:$0xff] %v3360
  %3583 = vst [vmem:[#allocation2 + $0x6b0] sm:$0xff] %v3361
  %3584 = vst [vmem:[#allocation2 + $0x6b8] sm:$0xff] %v3362
  %3585 = vst [vmem:[#allocation2 + $0x6c0] sm:$0xff] %v3363
  %3586 = vst [vmem:[#allocation2 + $0x6c8] sm:$0xff] %v3364
  %3587 = vst [vmem:[#allocation2 + $0x6d0] sm:$0xff] %v3365
  %3588 = vst [vmem:[#allocation2 + $0x6d8] sm:$0xff] %v3366
  %3589 = vst [vmem:[#allocation2 + $0x6e0] sm:$0xff] %v3367
  %3590 = vst [vmem:[#allocation2 + $0x6e8] sm:$0x1] %v3368
  %v3591 = vld [vmem:[#allocation2] ss:$2 sm:$0xff]
  %s3592 = scalar_lea.vmem [#allocation2], 16
  %v3593 = vld [vmem:[%s3592] ss:$2 sm:$0x7f]
  %3594 = vst [vmem:[#allocation4] sm:$0xff] %v3591
  %3595 = vst [vmem:[#allocation4 + $0x8] sm:$0x7f] %v3593
  %s3596 = scalar_lea.vmem [#allocation2], 60
  %v3597 = vld [vmem:[%s3596] ss:$2 sm:$0xff]
  %s3598 = scalar_lea.vmem [#allocation2], 76
  %v3599 = vld [vmem:[%s3598] ss:$2 sm:$0x7f]
  %3600 = vst [vmem:[#allocation4 + $0xf] sm:$0xff] %v3597
  %3601 = vst [vmem:[#allocation4 + $0x17] sm:$0x7f] %v3599
  %s3602 = scalar_lea.vmem [#allocation2], 120
  %v3603 = vld [vmem:[%s3602] ss:$2 sm:$0xff]
  %s3604 = scalar_lea.vmem [#allocation2], 136
  %v3605 = vld [vmem:[%s3604] ss:$2 sm:$0x7f]
  %3606 = vst [vmem:[#allocation4 + $0x1e] sm:$0xff] %v3603
  %3607 = vst [vmem:[#allocation4 + $0x26] sm:$0x7f] %v3605
  %s3608 = scalar_lea.vmem [#allocation2], 180
  %v3609 = vld [vmem:[%s3608] ss:$2 sm:$0xff]
  %s3610 = scalar_lea.vmem [#allocation2], 196
  %v3611 = vld [vmem:[%s3610] ss:$2 sm:$0x7f]
  %3612 = vst [vmem:[#allocation4 + $0x2d] sm:$0xff] %v3609
  %3613 = vst [vmem:[#allocation4 + $0x35] sm:$0x7f] %v3611
  %s3614 = scalar_lea.vmem [#allocation2], 240
  %v3615 = vld [vmem:[%s3614] ss:$2 sm:$0xff]
  %s3616 = scalar_lea.vmem [#allocation2], 256
  %v3617 = vld [vmem:[%s3616] ss:$2 sm:$0x7f]
  %3618 = vst [vmem:[#allocation4 + $0x3c] sm:$0xff] %v3615
  %3619 = vst [vmem:[#allocation4 + $0x44] sm:$0x7f] %v3617
  %s3620 = scalar_lea.vmem [#allocation2], 300
  %v3621 = vld [vmem:[%s3620] ss:$2 sm:$0xff]
  %s3622 = scalar_lea.vmem [#allocation2], 316
  %v3623 = vld [vmem:[%s3622] ss:$2 sm:$0x7f]
  %3624 = vst [vmem:[#allocation4 + $0x4b] sm:$0xff] %v3621
  %3625 = vst [vmem:[#allocation4 + $0x53] sm:$0x7f] %v3623
  %s3626 = scalar_lea.vmem [#allocation2], 360
  %v3627 = vld [vmem:[%s3626] ss:$2 sm:$0xff]
  %s3628 = scalar_lea.vmem [#allocation2], 376
  %v3629 = vld [vmem:[%s3628] ss:$2 sm:$0x7f]
  %3630 = vst [vmem:[#allocation4 + $0x5a] sm:$0xff] %v3627
  %3631 = vst [vmem:[#allocation4 + $0x62] sm:$0x7f] %v3629
  %s3632 = scalar_lea.vmem [#allocation2], 420
  %v3633 = vld [vmem:[%s3632] ss:$2 sm:$0xff]
  %s3634 = scalar_lea.vmem [#allocation2], 436
  %v3635 = vld [vmem:[%s3634] ss:$2 sm:$0x7f]
  %3636 = vst [vmem:[#allocation4 + $0x69] sm:$0xff] %v3633
  %3637 = vst [vmem:[#allocation4 + $0x71] sm:$0x7f] %v3635
  %s3638 = scalar_lea.vmem [#allocation2], 480
  %v3639 = vld [vmem:[%s3638] ss:$2 sm:$0xff]
  %s3640 = scalar_lea.vmem [#allocation2], 496
  %v3641 = vld [vmem:[%s3640] ss:$2 sm:$0x7f]
  %3642 = vst [vmem:[#allocation4 + $0x78] sm:$0xff] %v3639
  %3643 = vst [vmem:[#allocation4 + $0x80] sm:$0x7f] %v3641
  %s3644 = scalar_lea.vmem [#allocation2], 540
  %v3645 = vld [vmem:[%s3644] ss:$2 sm:$0xff]
  %s3646 = scalar_lea.vmem [#allocation2], 556
  %v3647 = vld [vmem:[%s3646] ss:$2 sm:$0x7f]
  %3648 = vst [vmem:[#allocation4 + $0x87] sm:$0xff] %v3645
  %3649 = vst [vmem:[#allocation4 + $0x8f] sm:$0x7f] %v3647
  %s3650 = scalar_lea.vmem [#allocation2], 600
  %v3651 = vld [vmem:[%s3650] ss:$2 sm:$0xff]
  %s3652 = scalar_lea.vmem [#allocation2], 616
  %v3653 = vld [vmem:[%s3652] ss:$2 sm:$0x7f]
  %3654 = vst [vmem:[#allocation4 + $0x96] sm:$0xff] %v3651
  %3655 = vst [vmem:[#allocation4 + $0x9e] sm:$0x7f] %v3653
  %s3656 = scalar_lea.vmem [#allocation2], 660
  %v3657 = vld [vmem:[%s3656] ss:$2 sm:$0xff]
  %s3658 = scalar_lea.vmem [#allocation2], 676
  %v3659 = vld [vmem:[%s3658] ss:$2 sm:$0x7f]
  %3660 = vst [vmem:[#allocation4 + $0xa5] sm:$0xff] %v3657
  %3661 = vst [vmem:[#allocation4 + $0xad] sm:$0x7f] %v3659
  %s3662 = scalar_lea.vmem [#allocation2], 720
  %v3663 = vld [vmem:[%s3662] ss:$2 sm:$0xff]
  %s3664 = scalar_lea.vmem [#allocation2], 736
  %v3665 = vld [vmem:[%s3664] ss:$2 sm:$0x7f]
  %3666 = vst [vmem:[#allocation4 + $0xb4] sm:$0xff] %v3663
  %3667 = vst [vmem:[#allocation4 + $0xbc] sm:$0x7f] %v3665
  %s3668 = scalar_lea.vmem [#allocation2], 780
  %v3669 = vld [vmem:[%s3668] ss:$2 sm:$0xff]
  %s3670 = scalar_lea.vmem [#allocation2], 796
  %v3671 = vld [vmem:[%s3670] ss:$2 sm:$0x7f]
  %3672 = vst [vmem:[#allocation4 + $0xc3] sm:$0xff] %v3669
  %3673 = vst [vmem:[#allocation4 + $0xcb] sm:$0x7f] %v3671
  %s3674 = scalar_lea.vmem [#allocation2], 840
  %v3675 = vld [vmem:[%s3674] ss:$2 sm:$0xff]
  %s3676 = scalar_lea.vmem [#allocation2], 856
  %v3677 = vld [vmem:[%s3676] ss:$2 sm:$0x7f]
  %3678 = vst [vmem:[#allocation4 + $0xd2] sm:$0xff] %v3675
  %3679 = vst [vmem:[#allocation4 + $0xda] sm:$0x7f] %v3677
  %s3680 = scalar_lea.vmem [#allocation2], 900
  %v3681 = vld [vmem:[%s3680] ss:$2 sm:$0xff]
  %s3682 = scalar_lea.vmem [#allocation2], 916
  %v3683 = vld [vmem:[%s3682] ss:$2 sm:$0x7f]
  %3684 = vst [vmem:[#allocation4 + $0xe1] sm:$0xff] %v3681
  %3685 = vst [vmem:[#allocation4 + $0xe9] sm:$0x7f] %v3683
  %s3686 = scalar_lea.vmem [#allocation2], 960
  %v3687 = vld [vmem:[%s3686] ss:$2 sm:$0xff]
  %s3688 = scalar_lea.vmem [#allocation2], 976
  %v3689 = vld [vmem:[%s3688] ss:$2 sm:$0x7f]
  %3690 = vst [vmem:[#allocation4 + $0xf0] sm:$0xff] %v3687
  %3691 = vst [vmem:[#allocation4 + $0xf8] sm:$0x7f] %v3689
  %s3692 = scalar_lea.vmem [#allocation2], 1020
  %v3693 = vld [vmem:[%s3692] ss:$2 sm:$0xff]
  %s3694 = scalar_lea.vmem [#allocation2], 1036
  %v3695 = vld [vmem:[%s3694] ss:$2 sm:$0x7f]
  %3696 = vst [vmem:[#allocation4 + $0xff] sm:$0xff] %v3693
  %3697 = vst [vmem:[#allocation4 + $0x107] sm:$0x7f] %v3695
  %s3698 = scalar_lea.vmem [#allocation2], 1080
  %v3699 = vld [vmem:[%s3698] ss:$2 sm:$0xff]
  %s3700 = scalar_lea.vmem [#allocation2], 1096
  %v3701 = vld [vmem:[%s3700] ss:$2 sm:$0x7f]
  %3702 = vst [vmem:[#allocation4 + $0x10e] sm:$0xff] %v3699
  %3703 = vst [vmem:[#allocation4 + $0x116] sm:$0x7f] %v3701
  %s3704 = scalar_lea.vmem [#allocation2], 1140
  %v3705 = vld [vmem:[%s3704] ss:$2 sm:$0xff]
  %s3706 = scalar_lea.vmem [#allocation2], 1156
  %v3707 = vld [vmem:[%s3706] ss:$2 sm:$0x7f]
  %3708 = vst [vmem:[#allocation4 + $0x11d] sm:$0xff] %v3705
  %3709 = vst [vmem:[#allocation4 + $0x125] sm:$0x7f] %v3707
  %s3710 = scalar_lea.vmem [#allocation2], 1200
  %v3711 = vld [vmem:[%s3710] ss:$2 sm:$0xff]
  %s3712 = scalar_lea.vmem [#allocation2], 1216
  %v3713 = vld [vmem:[%s3712] ss:$2 sm:$0x7f]
  %3714 = vst [vmem:[#allocation4 + $0x12c] sm:$0xff] %v3711
  %3715 = vst [vmem:[#allocation4 + $0x134] sm:$0x7f] %v3713
  %s3716 = scalar_lea.vmem [#allocation2], 1260
  %v3717 = vld [vmem:[%s3716] ss:$2 sm:$0xff]
  %s3718 = scalar_lea.vmem [#allocation2], 1276
  %v3719 = vld [vmem:[%s3718] ss:$2 sm:$0x7f]
  %3720 = vst [vmem:[#allocation4 + $0x13b] sm:$0xff] %v3717
  %3721 = vst [vmem:[#allocation4 + $0x143] sm:$0x7f] %v3719
  %s3722 = scalar_lea.vmem [#allocation2], 1320
  %v3723 = vld [vmem:[%s3722] ss:$2 sm:$0xff]
  %s3724 = scalar_lea.vmem [#allocation2], 1336
  %v3725 = vld [vmem:[%s3724] ss:$2 sm:$0x7f]
  %3726 = vst [vmem:[#allocation4 + $0x14a] sm:$0xff] %v3723
  %3727 = vst [vmem:[#allocation4 + $0x152] sm:$0x7f] %v3725
  %s3728 = scalar_lea.vmem [#allocation2], 1380
  %v3729 = vld [vmem:[%s3728] ss:$2 sm:$0xff]
  %s3730 = scalar_lea.vmem [#allocation2], 1396
  %v3731 = vld [vmem:[%s3730] ss:$2 sm:$0x7f]
  %3732 = vst [vmem:[#allocation4 + $0x159] sm:$0xff] %v3729
  %3733 = vst [vmem:[#allocation4 + $0x161] sm:$0x7f] %v3731
  %s3734 = scalar_lea.vmem [#allocation2], 1440
  %v3735 = vld [vmem:[%s3734] ss:$2 sm:$0xff]
  %s3736 = scalar_lea.vmem [#allocation2], 1456
  %v3737 = vld [vmem:[%s3736] ss:$2 sm:$0x7f]
  %3738 = vst [vmem:[#allocation4 + $0x168] sm:$0xff] %v3735
  %3739 = vst [vmem:[#allocation4 + $0x170] sm:$0x7f] %v3737
  %s3740 = scalar_lea.vmem [#allocation2], 1500
  %v3741 = vld [vmem:[%s3740] ss:$2 sm:$0xff]
  %s3742 = scalar_lea.vmem [#allocation2], 1516
  %v3743 = vld [vmem:[%s3742] ss:$2 sm:$0x7f]
  %3744 = vst [vmem:[#allocation4 + $0x177] sm:$0xff] %v3741
  %3745 = vst [vmem:[#allocation4 + $0x17f] sm:$0x7f] %v3743
  %s3746 = scalar_lea.vmem [#allocation2], 1560
  %v3747 = vld [vmem:[%s3746] ss:$2 sm:$0xff]
  %s3748 = scalar_lea.vmem [#allocation2], 1576
  %v3749 = vld [vmem:[%s3748] ss:$2 sm:$0x7f]
  %3750 = vst [vmem:[#allocation4 + $0x186] sm:$0xff] %v3747
  %3751 = vst [vmem:[#allocation4 + $0x18e] sm:$0x7f] %v3749
  %s3752 = scalar_lea.vmem [#allocation2], 1620
  %v3753 = vld [vmem:[%s3752] ss:$2 sm:$0xff]
  %s3754 = scalar_lea.vmem [#allocation2], 1636
  %v3755 = vld [vmem:[%s3754] ss:$2 sm:$0x7f]
  %3756 = vst [vmem:[#allocation4 + $0x195] sm:$0xff] %v3753
  %3757 = vst [vmem:[#allocation4 + $0x19d] sm:$0x7f] %v3755
  %s3758 = scalar_lea.vmem [#allocation2], 1680
  %v3759 = vld [vmem:[%s3758] ss:$2 sm:$0xff]
  %s3760 = scalar_lea.vmem [#allocation2], 1696
  %v3761 = vld [vmem:[%s3760] ss:$2 sm:$0x7f]
  %3762 = vst [vmem:[#allocation4 + $0x1a4] sm:$0xff] %v3759
  %3763 = vst [vmem:[#allocation4 + $0x1ac] sm:$0x7f] %v3761
  %s3764 = scalar_lea.vmem [#allocation2], 1740
  %v3765 = vld [vmem:[%s3764] ss:$2 sm:$0xff]
  %s3766 = scalar_lea.vmem [#allocation2], 1756
  %v3767 = vld [vmem:[%s3766] ss:$2 sm:$0x7f]
  %3768 = vst [vmem:[#allocation4 + $0x1b3] sm:$0xff] %v3765
  %3769 = vst [vmem:[#allocation4 + $0x1bb] sm:$0x7f] %v3767
  %v3770 = vld [vmem:[#allocation4] sm:$0xff]
  %v3771 = vld [vmem:[#allocation4 + $0x8] sm:$0xff]
  %v3772 = vld [vmem:[#allocation4 + $0x10] sm:$0xff]
  %v3773 = vld [vmem:[#allocation4 + $0x18] sm:$0xff]
  %v3774 = vld [vmem:[#allocation4 + $0x20] sm:$0xff]
  %v3775 = vld [vmem:[#allocation4 + $0x28] sm:$0xff]
  %v3776 = vld [vmem:[#allocation4 + $0x30] sm:$0xff]
  %v3777 = vld [vmem:[#allocation4 + $0x38] sm:$0xff]
  %v3778 = vld [vmem:[#allocation4 + $0x40] sm:$0xff]
  %v3779 = vld [vmem:[#allocation4 + $0x48] sm:$0xff]
  %v3780 = vld [vmem:[#allocation4 + $0x50] sm:$0xff]
  %v3781 = vld [vmem:[#allocation4 + $0x58] sm:$0xff]
  %v3782 = vld [vmem:[#allocation4 + $0x60] sm:$0xff]
  %v3783 = vld [vmem:[#allocation4 + $0x68] sm:$0xff]
  %v3784 = vld [vmem:[#allocation4 + $0x70] sm:$0xff]
  %v3785 = vld [vmem:[#allocation4 + $0x78] sm:$0xff]
  %v3786 = vld [vmem:[#allocation4 + $0x80] sm:$0xff]
  %v3787 = vld [vmem:[#allocation4 + $0x88] sm:$0xff]
  %v3788 = vld [vmem:[#allocation4 + $0x90] sm:$0xff]
  %v3789 = vld [vmem:[#allocation4 + $0x98] sm:$0xff]
  %v3790 = vld [vmem:[#allocation4 + $0xa0] sm:$0xff]
  %v3791 = vld [vmem:[#allocation4 + $0xa8] sm:$0xff]
  %v3792 = vld [vmem:[#allocation4 + $0xb0] sm:$0xff]
  %v3793 = vld [vmem:[#allocation4 + $0xb8] sm:$0xff]
  %v3794 = vld [vmem:[#allocation4 + $0xc0] sm:$0xff]
  %v3795 = vld [vmem:[#allocation4 + $0xc8] sm:$0xff]
  %v3796 = vld [vmem:[#allocation4 + $0xd0] sm:$0xff]
  %v3797 = vld [vmem:[#allocation4 + $0xd8] sm:$0xff]
  %v3798 = vld [vmem:[#allocation4 + $0xe0] sm:$0xff]
  %v3799 = vld [vmem:[#allocation4 + $0xe8] sm:$0xff]
  %v3800 = vld [vmem:[#allocation4 + $0xf0] sm:$0xff]
  %v3801 = vld [vmem:[#allocation4 + $0xf8] sm:$0xff]
  %v3802 = vld [vmem:[#allocation4 + $0x100] sm:$0xff]
  %v3803 = vld [vmem:[#allocation4 + $0x108] sm:$0xff]
  %v3804 = vld [vmem:[#allocation4 + $0x110] sm:$0xff]
  %v3805 = vld [vmem:[#allocation4 + $0x118] sm:$0xff]
  %v3806 = vld [vmem:[#allocation4 + $0x120] sm:$0xff]
  %v3807 = vld [vmem:[#allocation4 + $0x128] sm:$0xff]
  %v3808 = vld [vmem:[#allocation4 + $0x130] sm:$0xff]
  %v3809 = vld [vmem:[#allocation4 + $0x138] sm:$0xff]
  %v3810 = vld [vmem:[#allocation4 + $0x140] sm:$0xff]
  %v3811 = vld [vmem:[#allocation4 + $0x148] sm:$0xff]
  %v3812 = vld [vmem:[#allocation4 + $0x150] sm:$0xff]
  %v3813 = vld [vmem:[#allocation4 + $0x158] sm:$0xff]
  %v3814 = vld [vmem:[#allocation4 + $0x160] sm:$0xff]
  %v3815 = vld [vmem:[#allocation4 + $0x168] sm:$0xff]
  %v3816 = vld [vmem:[#allocation4 + $0x170] sm:$0xff]
  %v3817 = vld [vmem:[#allocation4 + $0x178] sm:$0xff]
  %v3818 = vld [vmem:[#allocation4 + $0x180] sm:$0xff]
  %v3819 = vld [vmem:[#allocation4 + $0x188] sm:$0xff]
  %v3820 = vld [vmem:[#allocation4 + $0x190] sm:$0xff]
  %v3821 = vld [vmem:[#allocation4 + $0x198] sm:$0xff]
  %v3822 = vld [vmem:[#allocation4 + $0x1a0] sm:$0xff]
  %v3823 = vld [vmem:[#allocation4 + $0x1a8] sm:$0xff]
  %v3824 = vld [vmem:[#allocation4 + $0x1b0] sm:$0xff]
  %v3825 = vld [vmem:[#allocation4 + $0x1b8] sm:$0xff]
  %v3826 = vld [vmem:[#allocation4 + $0x1c0] sm:$0x3]
  %v3827 = vld [vmem:[%s2] sm:$0x1]
  %v3829 = vperm.slane %v3827, 0
  %v3831 = vadd.f32 %v3770, %v3829
  %v3832 = vadd.f32 %v3771, %v3829
  %v3833 = vadd.f32 %v3772, %v3829
  %v3834 = vadd.f32 %v3773, %v3829
  %v3835 = vadd.f32 %v3774, %v3829
  %v3836 = vadd.f32 %v3775, %v3829
  %v3837 = vadd.f32 %v3776, %v3829
  %v3838 = vadd.f32 %v3777, %v3829
  %v3839 = vadd.f32 %v3778, %v3829
  %v3840 = vadd.f32 %v3779, %v3829
  %v3841 = vadd.f32 %v3780, %v3829
  %v3842 = vadd.f32 %v3781, %v3829
  %v3843 = vadd.f32 %v3782, %v3829
  %v3844 = vadd.f32 %v3783, %v3829
  %v3845 = vadd.f32 %v3784, %v3829
  %v3846 = vadd.f32 %v3785, %v3829
  %v3847 = vadd.f32 %v3786, %v3829
  %v3848 = vadd.f32 %v3787, %v3829
  %v3849 = vadd.f32 %v3788, %v3829
  %v3850 = vadd.f32 %v3789, %v3829
  %v3851 = vadd.f32 %v3790, %v3829
  %v3852 = vadd.f32 %v3791, %v3829
  %v3853 = vadd.f32 %v3792, %v3829
  %v3854 = vadd.f32 %v3793, %v3829
  %v3855 = vadd.f32 %v3794, %v3829
  %v3856 = vadd.f32 %v3795, %v3829
  %v3857 = vadd.f32 %v3796, %v3829
  %v3858 = vadd.f32 %v3797, %v3829
  %v3859 = vadd.f32 %v3798, %v3829
  %v3860 = vadd.f32 %v3799, %v3829
  %v3861 = vadd.f32 %v3800, %v3829
  %v3862 = vadd.f32 %v3801, %v3829
  %v3863 = vadd.f32 %v3802, %v3829
  %v3864 = vadd.f32 %v3803, %v3829
  %v3865 = vadd.f32 %v3804, %v3829
  %v3866 = vadd.f32 %v3805, %v3829
  %v3867 = vadd.f32 %v3806, %v3829
  %v3868 = vadd.f32 %v3807, %v3829
  %v3869 = vadd.f32 %v3808, %v3829
  %v3870 = vadd.f32 %v3809, %v3829
  %v3871 = vadd.f32 %v3810, %v3829
  %v3872 = vadd.f32 %v3811, %v3829
  %v3873 = vadd.f32 %v3812, %v3829
  %v3874 = vadd.f32 %v3813, %v3829
  %v3875 = vadd.f32 %v3814, %v3829
  %v3876 = vadd.f32 %v3815, %v3829
  %v3877 = vadd.f32 %v3816, %v3829
  %v3878 = vadd.f32 %v3817, %v3829
  %v3879 = vadd.f32 %v3818, %v3829
  %v3880 = vadd.f32 %v3819, %v3829
  %v3881 = vadd.f32 %v3820, %v3829
  %v3882 = vadd.f32 %v3821, %v3829
  %v3883 = vadd.f32 %v3822, %v3829
  %v3884 = vadd.f32 %v3823, %v3829
  %v3885 = vadd.f32 %v3824, %v3829
  %v3886 = vadd.f32 %v3825, %v3829
  %v3887 = vadd.f32 %v3826, %v3829
  %v3888 = vmax.f32 %v3831, 0.0
  %v3889 = vmax.f32 %v3832, 0.0
  %v3890 = vmax.f32 %v3833, 0.0
  %v3891 = vmax.f32 %v3834, 0.0
  %v3892 = vmax.f32 %v3835, 0.0
  %v3893 = vmax.f32 %v3836, 0.0
  %v3894 = vmax.f32 %v3837, 0.0
  %v3895 = vmax.f32 %v3838, 0.0
  %v3896 = vmax.f32 %v3839, 0.0
  %v3897 = vmax.f32 %v3840, 0.0
  %v3898 = vmax.f32 %v3841, 0.0
  %v3899 = vmax.f32 %v3842, 0.0
  %v3900 = vmax.f32 %v3843, 0.0
  %v3901 = vmax.f32 %v3844, 0.0
  %v3902 = vmax.f32 %v3845, 0.0
  %v3903 = vmax.f32 %v3846, 0.0
  %v3904 = vmax.f32 %v3847, 0.0
  %v3905 = vmax.f32 %v3848, 0.0
  %v3906 = vmax.f32 %v3849, 0.0
  %v3907 = vmax.f32 %v3850, 0.0
  %v3908 = vmax.f32 %v3851, 0.0
  %v3909 = vmax.f32 %v3852, 0.0
  %v3910 = vmax.f32 %v3853, 0.0
  %v3911 = vmax.f32 %v3854, 0.0
  %v3912 = vmax.f32 %v3855, 0.0
  %v3913 = vmax.f32 %v3856, 0.0
  %v3914 = vmax.f32 %v3857, 0.0
  %v3915 = vmax.f32 %v3858, 0.0
  %v3916 = vmax.f32 %v3859, 0.0
  %v3917 = vmax.f32 %v3860, 0.0
  %v3918 = vmax.f32 %v3861, 0.0
  %v3919 = vmax.f32 %v3862, 0.0
  %v3920 = vmax.f32 %v3863, 0.0
  %v3921 = vmax.f32 %v3864, 0.0
  %v3922 = vmax.f32 %v3865, 0.0
  %v3923 = vmax.f32 %v3866, 0.0
  %v3924 = vmax.f32 %v3867, 0.0
  %v3925 = vmax.f32 %v3868, 0.0
  %v3926 = vmax.f32 %v3869, 0.0
  %v3927 = vmax.f32 %v3870, 0.0
  %v3928 = vmax.f32 %v3871, 0.0
  %v3929 = vmax.f32 %v3872, 0.0
  %v3930 = vmax.f32 %v3873, 0.0
  %v3931 = vmax.f32 %v3874, 0.0
  %v3932 = vmax.f32 %v3875, 0.0
  %v3933 = vmax.f32 %v3876, 0.0
  %v3934 = vmax.f32 %v3877, 0.0
  %v3935 = vmax.f32 %v3878, 0.0
  %v3936 = vmax.f32 %v3879, 0.0
  %v3937 = vmax.f32 %v3880, 0.0
  %v3938 = vmax.f32 %v3881, 0.0
  %v3939 = vmax.f32 %v3882, 0.0
  %v3940 = vmax.f32 %v3883, 0.0
  %v3941 = vmax.f32 %v3884, 0.0
  %v3942 = vmax.f32 %v3885, 0.0
  %v3943 = vmax.f32 %v3886, 0.0
  %v3944 = vmax.f32 %v3887, 0.0
  %3945 = vst [vmem:[#allocation4] sm:$0xff] %v3888
  %3946 = vst [vmem:[#allocation4 + $0x8] sm:$0xff] %v3889
  %3947 = vst [vmem:[#allocation4 + $0x10] sm:$0xff] %v3890
  %3948 = vst [vmem:[#allocation4 + $0x18] sm:$0xff] %v3891
  %3949 = vst [vmem:[#allocation4 + $0x20] sm:$0xff] %v3892
  %3950 = vst [vmem:[#allocation4 + $0x28] sm:$0xff] %v3893
  %3951 = vst [vmem:[#allocation4 + $0x30] sm:$0xff] %v3894
  %3952 = vst [vmem:[#allocation4 + $0x38] sm:$0xff] %v3895
  %3953 = vst [vmem:[#allocation4 + $0x40] sm:$0xff] %v3896
  %3954 = vst [vmem:[#allocation4 + $0x48] sm:$0xff] %v3897
  %3955 = vst [vmem:[#allocation4 + $0x50] sm:$0xff] %v3898
  %3956 = vst [vmem:[#allocation4 + $0x58] sm:$0xff] %v3899
  %3957 = vst [vmem:[#allocation4 + $0x60] sm:$0xff] %v3900
  %3958 = vst [vmem:[#allocation4 + $0x68] sm:$0xff] %v3901
  %3959 = vst [vmem:[#allocation4 + $0x70] sm:$0xff] %v3902
  %3960 = vst [vmem:[#allocation4 + $0x78] sm:$0xff] %v3903
  %3961 = vst [vmem:[#allocation4 + $0x80] sm:$0xff] %v3904
  %3962 = vst [vmem:[#allocation4 + $0x88] sm:$0xff] %v3905
  %3963 = vst [vmem:[#allocation4 + $0x90] sm:$0xff] %v3906
  %3964 = vst [vmem:[#allocation4 + $0x98] sm:$0xff] %v3907
  %3965 = vst [vmem:[#allocation4 + $0xa0] sm:$0xff] %v3908
  %3966 = vst [vmem:[#allocation4 + $0xa8] sm:$0xff] %v3909
  %3967 = vst [vmem:[#allocation4 + $0xb0] sm:$0xff] %v3910
  %3968 = vst [vmem:[#allocation4 + $0xb8] sm:$0xff] %v3911
  %3969 = vst [vmem:[#allocation4 + $0xc0] sm:$0xff] %v3912
  %3970 = vst [vmem:[#allocation4 + $0xc8] sm:$0xff] %v3913
  %3971 = vst [vmem:[#allocation4 + $0xd0] sm:$0xff] %v3914
  %3972 = vst [vmem:[#allocation4 + $0xd8] sm:$0xff] %v3915
  %3973 = vst [vmem:[#allocation4 + $0xe0] sm:$0xff] %v3916
  %3974 = vst [vmem:[#allocation4 + $0xe8] sm:$0xff] %v3917
  %3975 = vst [vmem:[#allocation4 + $0xf0] sm:$0xff] %v3918
  %3976 = vst [vmem:[#allocation4 + $0xf8] sm:$0xff] %v3919
  %3977 = vst [vmem:[#allocation4 + $0x100] sm:$0xff] %v3920
  %3978 = vst [vmem:[#allocation4 + $0x108] sm:$0xff] %v3921
  %3979 = vst [vmem:[#allocation4 + $0x110] sm:$0xff] %v3922
  %3980 = vst [vmem:[#allocation4 + $0x118] sm:$0xff] %v3923
  %3981 = vst [vmem:[#allocation4 + $0x120] sm:$0xff] %v3924
  %3982 = vst [vmem:[#allocation4 + $0x128] sm:$0xff] %v3925
  %3983 = vst [vmem:[#allocation4 + $0x130] sm:$0xff] %v3926
  %3984 = vst [vmem:[#allocation4 + $0x138] sm:$0xff] %v3927
  %3985 = vst [vmem:[#allocation4 + $0x140] sm:$0xff] %v3928
  %3986 = vst [vmem:[#allocation4 + $0x148] sm:$0xff] %v3929
  %3987 = vst [vmem:[#allocation4 + $0x150] sm:$0xff] %v3930
  %3988 = vst [vmem:[#allocation4 + $0x158] sm:$0xff] %v3931
  %3989 = vst [vmem:[#allocation4 + $0x160] sm:$0xff] %v3932
  %3990 = vst [vmem:[#allocation4 + $0x168] sm:$0xff] %v3933
  %3991 = vst [vmem:[#allocation4 + $0x170] sm:$0xff] %v3934
  %3992 = vst [vmem:[#allocation4 + $0x178] sm:$0xff] %v3935
  %3993 = vst [vmem:[#allocation4 + $0x180] sm:$0xff] %v3936
  %3994 = vst [vmem:[#allocation4 + $0x188] sm:$0xff] %v3937
  %3995 = vst [vmem:[#allocation4 + $0x190] sm:$0xff] %v3938
  %3996 = vst [vmem:[#allocation4 + $0x198] sm:$0xff] %v3939
  %3997 = vst [vmem:[#allocation4 + $0x1a0] sm:$0xff] %v3940
  %3998 = vst [vmem:[#allocation4 + $0x1a8] sm:$0xff] %v3941
  %3999 = vst [vmem:[#allocation4 + $0x1b0] sm:$0xff] %v3942
  %4000 = vst [vmem:[#allocation4 + $0x1b8] sm:$0xff] %v3943
  %4001 = vst [vmem:[#allocation4 + $0x1c0] sm:$0x3] %v3944
  %v4002 = vld [vmem:[#allocation4] sm:$0xff]
  %v4003 = vld [vmem:[#allocation4 + $0x8] sm:$0xff]
  %v4004 = vld [vmem:[#allocation4 + $0x10] sm:$0xff]
  %v4005 = vld [vmem:[#allocation4 + $0x18] sm:$0xff]
  %v4006 = vld [vmem:[#allocation4 + $0x20] sm:$0xff]
  %v4007 = vld [vmem:[#allocation4 + $0x28] sm:$0xff]
  %v4008 = vld [vmem:[#allocation4 + $0x30] sm:$0xff]
  %v4009 = vld [vmem:[#allocation4 + $0x38] sm:$0xff]
  %v4010 = vld [vmem:[#allocation4 + $0x40] sm:$0xff]
  %v4011 = vld [vmem:[#allocation4 + $0x48] sm:$0xff]
  %v4012 = vld [vmem:[#allocation4 + $0x50] sm:$0xff]
  %v4013 = vld [vmem:[#allocation4 + $0x58] sm:$0xff]
  %v4014 = vld [vmem:[#allocation4 + $0x60] sm:$0xff]
  %v4015 = vld [vmem:[#allocation4 + $0x68] sm:$0xff]
  %v4016 = vld [vmem:[#allocation4 + $0x70] sm:$0xff]
  %v4017 = vld [vmem:[#allocation4 + $0x78] sm:$0xff]
  %v4018 = vld [vmem:[#allocation4 + $0x80] sm:$0xff]
  %v4019 = vld [vmem:[#allocation4 + $0x88] sm:$0xff]
  %v4020 = vld [vmem:[#allocation4 + $0x90] sm:$0xff]
  %v4021 = vld [vmem:[#allocation4 + $0x98] sm:$0xff]
  %v4022 = vld [vmem:[#allocation4 + $0xa0] sm:$0xff]
  %v4023 = vld [vmem:[#allocation4 + $0xa8] sm:$0xff]
  %v4024 = vld [vmem:[#allocation4 + $0xb0] sm:$0xff]
  %v4025 = vld [vmem:[#allocation4 + $0xb8] sm:$0xff]
  %v4026 = vld [vmem:[#allocation4 + $0xc0] sm:$0xff]
  %v4027 = vld [vmem:[#allocation4 + $0xc8] sm:$0xff]
  %v4028 = vld [vmem:[#allocation4 + $0xd0] sm:$0xff]
  %v4029 = vld [vmem:[#allocation4 + $0xd8] sm:$0xff]
  %v4030 = vld [vmem:[#allocation4 + $0xe0] sm:$0xff]
  %v4031 = vld [vmem:[#allocation4 + $0xe8] sm:$0xff]
  %v4032 = vld [vmem:[#allocation4 + $0xf0] sm:$0xff]
  %v4033 = vld [vmem:[#allocation4 + $0xf8] sm:$0xff]
  %v4034 = vld [vmem:[#allocation4 + $0x100] sm:$0xff]
  %v4035 = vld [vmem:[#allocation4 + $0x108] sm:$0xff]
  %v4036 = vld [vmem:[#allocation4 + $0x110] sm:$0xff]
  %v4037 = vld [vmem:[#allocation4 + $0x118] sm:$0xff]
  %v4038 = vld [vmem:[#allocation4 + $0x120] sm:$0xff]
  %v4039 = vld [vmem:[#allocation4 + $0x128] sm:$0xff]
  %v4040 = vld [vmem:[#allocation4 + $0x130] sm:$0xff]
  %v4041 = vld [vmem:[#allocation4 + $0x138] sm:$0xff]
  %v4042 = vld [vmem:[#allocation4 + $0x140] sm:$0xff]
  %v4043 = vld [vmem:[#allocation4 + $0x148] sm:$0xff]
  %v4044 = vld [vmem:[#allocation4 + $0x150] sm:$0xff]
  %v4045 = vld [vmem:[#allocation4 + $0x158] sm:$0xff]
  %v4046 = vld [vmem:[#allocation4 + $0x160] sm:$0xff]
  %v4047 = vld [vmem:[#allocation4 + $0x168] sm:$0xff]
  %v4048 = vld [vmem:[#allocation4 + $0x170] sm:$0xff]
  %v4049 = vld [vmem:[#allocation4 + $0x178] sm:$0xff]
  %v4050 = vld [vmem:[#allocation4 + $0x180] sm:$0xff]
  %v4051 = vld [vmem:[#allocation4 + $0x188] sm:$0xff]
  %v4052 = vld [vmem:[#allocation4 + $0x190] sm:$0xff]
  %v4053 = vld [vmem:[#allocation4 + $0x198] sm:$0xff]
  %v4054 = vld [vmem:[#allocation4 + $0x1a0] sm:$0x3]
  %v4055 = vpack.c.bf16 %v4003, %v4002
  %v4056 = vpack.c.bf16 %v4005, %v4004
  %v4057 = vpack.c.bf16 %v4007, %v4006
  %v4058 = vpack.c.bf16 %v4009, %v4008
  %v4059 = vpack.c.bf16 %v4011, %v4010
  %v4060 = vpack.c.bf16 %v4013, %v4012
  %v4061 = vpack.c.bf16 %v4015, %v4014
  %v4062 = vpack.c.bf16 %v4017, %v4016
  %v4063 = vpack.c.bf16 %v4019, %v4018
  %v4064 = vpack.c.bf16 %v4021, %v4020
  %v4065 = vpack.c.bf16 %v4023, %v4022
  %v4066 = vpack.c.bf16 %v4025, %v4024
  %v4067 = vpack.c.bf16 %v4027, %v4026
  %v4068 = vpack.c.bf16 %v4029, %v4028
  %v4069 = vpack.c.bf16 %v4031, %v4030
  %v4070 = vpack.c.bf16 %v4033, %v4032
  %v4071 = vpack.c.bf16 %v4035, %v4034
  %v4072 = vpack.c.bf16 %v4037, %v4036
  %v4073 = vpack.c.bf16 %v4039, %v4038
  %v4074 = vpack.c.bf16 %v4041, %v4040
  %v4075 = vpack.c.bf16 %v4043, %v4042
  %v4076 = vpack.c.bf16 %v4045, %v4044
  %v4077 = vpack.c.bf16 %v4047, %v4046
  %v4078 = vpack.c.bf16 %v4049, %v4048
  %v4079 = vpack.c.bf16 %v4051, %v4050
  %v4080 = vpack.c.bf16 %v4053, %v4052
  %v4081 = vpack.c.bf16 %v4054, %v4054
  %v4082 = vld [vmem:[%s3] sm:$0xf]
  %v4083 = vld [vmem:[%s3 + $0x4] sm:$0xf]
  %v4084 = vld [vmem:[%s3 + $0x8] sm:$0xf]
  %v4085 = vld [vmem:[%s3 + $0xc] sm:$0xf]
  %v4086 = vld [vmem:[%s3 + $0x10] sm:$0xf]
  %v4087 = vld [vmem:[%s3 + $0x14] sm:$0xf]
  %v4088 = vld [vmem:[%s3 + $0x18] sm:$0xf]
  %v4089 = vld [vmem:[%s3 + $0x1c] sm:$0xf]
  %v4090 = vld [vmem:[%s3 + $0x20] sm:$0xf]
  %v4091 = vld [vmem:[%s3 + $0x24] sm:$0xf]
  %v4092 = vld [vmem:[%s3 + $0x28] sm:$0xf]
  %v4093 = vld [vmem:[%s3 + $0x2c] sm:$0xf]
  %v4094 = vld [vmem:[%s3 + $0x30] sm:$0xf]
  %v4095 = vld [vmem:[%s3 + $0x34] sm:$0xf]
  %v4096 = vld [vmem:[%s3 + $0x38] sm:$0xf]
  %v4097 = vld [vmem:[%s3 + $0x3c] sm:$0xf]
  %v4098 = vld [vmem:[#allocation4 + $0x1] sm:$0xff]
  %v4099 = vld [vmem:[#allocation4 + $0x9] sm:$0xff]
  %v4100 = vld [vmem:[#allocation4 + $0x11] sm:$0xff]
  %v4101 = vld [vmem:[#allocation4 + $0x19] sm:$0xff]
  %v4102 = vld [vmem:[#allocation4 + $0x21] sm:$0xff]
  %v4103 = vld [vmem:[#allocation4 + $0x29] sm:$0xff]
  %v4104 = vld [vmem:[#allocation4 + $0x31] sm:$0xff]
  %v4105 = vld [vmem:[#allocation4 + $0x39] sm:$0xff]
  %v4106 = vld [vmem:[#allocation4 + $0x41] sm:$0xff]
  %v4107 = vld [vmem:[#allocation4 + $0x49] sm:$0xff]
  %v4108 = vld [vmem:[#allocation4 + $0x51] sm:$0xff]
  %v4109 = vld [vmem:[#allocation4 + $0x59] sm:$0xff]
  %v4110 = vld [vmem:[#allocation4 + $0x61] sm:$0xff]
  %v4111 = vld [vmem:[#allocation4 + $0x69] sm:$0xff]
  %v4112 = vld [vmem:[#allocation4 + $0x71] sm:$0xff]
  %v4113 = vld [vmem:[#allocation4 + $0x79] sm:$0xff]
  %v4114 = vld [vmem:[#allocation4 + $0x81] sm:$0xff]
  %v4115 = vld [vmem:[#allocation4 + $0x89] sm:$0xff]
  %v4116 = vld [vmem:[#allocation4 + $0x91] sm:$0xff]
  %v4117 = vld [vmem:[#allocation4 + $0x99] sm:$0xff]
  %v4118 = vld [vmem:[#allocation4 + $0xa1] sm:$0xff]
  %v4119 = vld [vmem:[#allocation4 + $0xa9] sm:$0xff]
  %v4120 = vld [vmem:[#allocation4 + $0xb1] sm:$0xff]
  %v4121 = vld [vmem:[#allocation4 + $0xb9] sm:$0xff]
  %v4122 = vld [vmem:[#allocation4 + $0xc1] sm:$0xff]
  %v4123 = vld [vmem:[#allocation4 + $0xc9] sm:$0xff]
  %v4124 = vld [vmem:[#allocation4 + $0xd1] sm:$0xff]
  %v4125 = vld [vmem:[#allocation4 + $0xd9] sm:$0xff]
  %v4126 = vld [vmem:[#allocation4 + $0xe1] sm:$0xff]
  %v4127 = vld [vmem:[#allocation4 + $0xe9] sm:$0xff]
  %v4128 = vld [vmem:[#allocation4 + $0xf1] sm:$0xff]
  %v4129 = vld [vmem:[#allocation4 + $0xf9] sm:$0xff]
  %v4130 = vld [vmem:[#allocation4 + $0x101] sm:$0xff]
  %v4131 = vld [vmem:[#allocation4 + $0x109] sm:$0xff]
  %v4132 = vld [vmem:[#allocation4 + $0x111] sm:$0xff]
  %v4133 = vld [vmem:[#allocation4 + $0x119] sm:$0xff]
  %v4134 = vld [vmem:[#allocation4 + $0x121] sm:$0xff]
  %v4135 = vld [vmem:[#allocation4 + $0x129] sm:$0xff]
  %v4136 = vld [vmem:[#allocation4 + $0x131] sm:$0xff]
  %v4137 = vld [vmem:[#allocation4 + $0x139] sm:$0xff]
  %v4138 = vld [vmem:[#allocation4 + $0x141] sm:$0xff]
  %v4139 = vld [vmem:[#allocation4 + $0x149] sm:$0xff]
  %v4140 = vld [vmem:[#allocation4 + $0x151] sm:$0xff]
  %v4141 = vld [vmem:[#allocation4 + $0x159] sm:$0xff]
  %v4142 = vld [vmem:[#allocation4 + $0x161] sm:$0xff]
  %v4143 = vld [vmem:[#allocation4 + $0x169] sm:$0xff]
  %v4144 = vld [vmem:[#allocation4 + $0x171] sm:$0xff]
  %v4145 = vld [vmem:[#allocation4 + $0x179] sm:$0xff]
  %v4146 = vld [vmem:[#allocation4 + $0x181] sm:$0xff]
  %v4147 = vld [vmem:[#allocation4 + $0x189] sm:$0xff]
  %v4148 = vld [vmem:[#allocation4 + $0x191] sm:$0xff]
  %v4149 = vld [vmem:[#allocation4 + $0x199] sm:$0xff]
  %v4150 = vld [vmem:[#allocation4 + $0x1a1] sm:$0x3]
  %v4151 = vpack.c.bf16 %v4099, %v4098
  %v4152 = vpack.c.bf16 %v4101, %v4100
  %v4153 = vpack.c.bf16 %v4103, %v4102
  %v4154 = vpack.c.bf16 %v4105, %v4104
  %v4155 = vpack.c.bf16 %v4107, %v4106
  %v4156 = vpack.c.bf16 %v4109, %v4108
  %v4157 = vpack.c.bf16 %v4111, %v4110
  %v4158 = vpack.c.bf16 %v4113, %v4112
  %v4159 = vpack.c.bf16 %v4115, %v4114
  %v4160 = vpack.c.bf16 %v4117, %v4116
  %v4161 = vpack.c.bf16 %v4119, %v4118
  %v4162 = vpack.c.bf16 %v4121, %v4120
  %v4163 = vpack.c.bf16 %v4123, %v4122
  %v4164 = vpack.c.bf16 %v4125, %v4124
  %v4165 = vpack.c.bf16 %v4127, %v4126
  %v4166 = vpack.c.bf16 %v4129, %v4128
  %v4167 = vpack.c.bf16 %v4131, %v4130
  %v4168 = vpack.c.bf16 %v4133, %v4132
  %v4169 = vpack.c.bf16 %v4135, %v4134
  %v4170 = vpack.c.bf16 %v4137, %v4136
  %v4171 = vpack.c.bf16 %v4139, %v4138
  %v4172 = vpack.c.bf16 %v4141, %v4140
  %v4173 = vpack.c.bf16 %v4143, %v4142
  %v4174 = vpack.c.bf16 %v4145, %v4144
  %v4175 = vpack.c.bf16 %v4147, %v4146
  %v4176 = vpack.c.bf16 %v4149, %v4148
  %v4177 = vpack.c.bf16 %v4150, %v4150
  %s4178 = scalar_lea.vmem %s3, 64
  %v4179 = vld [vmem:[%s4178] sm:$0xf]
  %v4180 = vld [vmem:[%s4178 + $0x4] sm:$0xf]
  %v4181 = vld [vmem:[%s4178 + $0x8] sm:$0xf]
  %v4182 = vld [vmem:[%s4178 + $0xc] sm:$0xf]
  %v4183 = vld [vmem:[%s4178 + $0x10] sm:$0xf]
  %v4184 = vld [vmem:[%s4178 + $0x14] sm:$0xf]
  %v4185 = vld [vmem:[%s4178 + $0x18] sm:$0xf]
  %v4186 = vld [vmem:[%s4178 + $0x1c] sm:$0xf]
  %v4187 = vld [vmem:[%s4178 + $0x20] sm:$0xf]
  %v4188 = vld [vmem:[%s4178 + $0x24] sm:$0xf]
  %v4189 = vld [vmem:[%s4178 + $0x28] sm:$0xf]
  %v4190 = vld [vmem:[%s4178 + $0x2c] sm:$0xf]
  %v4191 = vld [vmem:[%s4178 + $0x30] sm:$0xf]
  %v4192 = vld [vmem:[%s4178 + $0x34] sm:$0xf]
  %v4193 = vld [vmem:[%s4178 + $0x38] sm:$0xf]
  %v4194 = vld [vmem:[%s4178 + $0x3c] sm:$0xf]
  %v4211 = vunpack.c.l.b16 %v4179
  %v4212 = vunpack.c.l.b16 %v4180
  %v4213 = vunpack.c.l.b16 %v4181
  %v4214 = vunpack.c.l.b16 %v4182
  %v4215 = vunpack.c.l.b16 %v4183
  %v4216 = vunpack.c.l.b16 %v4184
  %v4217 = vunpack.c.l.b16 %v4185
  %v4218 = vunpack.c.l.b16 %v4186
  %v4219 = vunpack.c.l.b16 %v4187
  %v4220 = vunpack.c.l.b16 %v4188
  %v4221 = vunpack.c.l.b16 %v4189
  %v4222 = vunpack.c.l.b16 %v4190
  %v4223 = vunpack.c.l.b16 %v4191
  %v4224 = vunpack.c.l.b16 %v4192
  %v4225 = vunpack.c.l.b16 %v4193
  %v4226 = vunpack.c.l.b16 %v4194
  %v4227 = vpack.c.b16 %v4212, %v4211
  %v4228 = vpack.c.b16 %v4214, %v4213
  %v4229 = vpack.c.b16 %v4216, %v4215
  %v4230 = vpack.c.b16 %v4218, %v4217
  %v4231 = vpack.c.b16 %v4220, %v4219
  %v4232 = vpack.c.b16 %v4222, %v4221
  %v4233 = vpack.c.b16 %v4224, %v4223
  %v4234 = vpack.c.b16 %v4226, %v4225
  %4243 = vmatpush.bf16.msra.mxu0 %v4234
  %4244 = vmatpush.bf16.msra.mxu0 %v4233
  %4245 = vmatpush.bf16.msra.mxu0 %v4232
  %4246 = vmatpush.bf16.msra.mxu0 %v4231
  %4247 = vmatpush.bf16.msra.mxu0 %v4230
  %4248 = vmatpush.bf16.msra.mxu0 %v4229
  %4249 = vmatpush.bf16.msra.mxu0 %v4228
  %4250 = vmatpush.bf16.msra.mxu0 %v4227
  %4251 = vmatmul.bf16.gmra.mxu0 %v4151
  %v4252 = vpop.f32.mrf.mxu0
  %v4253 = vadd.f32 0.0, %v4252
  %v4254 = vpop.f32.mrf.mxu0
  %v4255 = vadd.f32 0.0, %v4254
  %4256 = vmatmul.bf16.gmra.mxu0 %v4152
  %v4257 = vpop.f32.mrf.mxu0
  %v4258 = vadd.f32 0.0, %v4257
  %v4259 = vpop.f32.mrf.mxu0
  %v4260 = vadd.f32 0.0, %v4259
  %4261 = vmatmul.bf16.gmra.mxu0 %v4153
  %v4262 = vpop.f32.mrf.mxu0
  %v4263 = vadd.f32 0.0, %v4262
  %v4264 = vpop.f32.mrf.mxu0
  %v4265 = vadd.f32 0.0, %v4264
  %4266 = vmatmul.bf16.gmra.mxu0 %v4154
  %v4267 = vpop.f32.mrf.mxu0
  %v4268 = vadd.f32 0.0, %v4267
  %v4269 = vpop.f32.mrf.mxu0
  %v4270 = vadd.f32 0.0, %v4269
  %4271 = vmatmul.bf16.gmra.mxu0 %v4155
  %v4272 = vpop.f32.mrf.mxu0
  %v4273 = vadd.f32 0.0, %v4272
  %v4274 = vpop.f32.mrf.mxu0
  %v4275 = vadd.f32 0.0, %v4274
  %4276 = vmatmul.bf16.gmra.mxu0 %v4156
  %v4277 = vpop.f32.mrf.mxu0
  %v4278 = vadd.f32 0.0, %v4277
  %v4279 = vpop.f32.mrf.mxu0
  %v4280 = vadd.f32 0.0, %v4279
  %4281 = vmatmul.bf16.gmra.mxu0 %v4157
  %v4282 = vpop.f32.mrf.mxu0
  %v4283 = vadd.f32 0.0, %v4282
  %v4284 = vpop.f32.mrf.mxu0
  %v4285 = vadd.f32 0.0, %v4284
  %4286 = vmatmul.bf16.gmra.mxu0 %v4158
  %v4287 = vpop.f32.mrf.mxu0
  %v4288 = vadd.f32 0.0, %v4287
  %v4289 = vpop.f32.mrf.mxu0
  %v4290 = vadd.f32 0.0, %v4289
  %4291 = vmatmul.bf16.gmra.mxu0 %v4159
  %v4292 = vpop.f32.mrf.mxu0
  %v4293 = vadd.f32 0.0, %v4292
  %v4294 = vpop.f32.mrf.mxu0
  %v4295 = vadd.f32 0.0, %v4294
  %4296 = vmatmul.bf16.gmra.mxu0 %v4160
  %v4297 = vpop.f32.mrf.mxu0
  %v4298 = vadd.f32 0.0, %v4297
  %v4299 = vpop.f32.mrf.mxu0
  %v4300 = vadd.f32 0.0, %v4299
  %4301 = vmatmul.bf16.gmra.mxu0 %v4161
  %v4302 = vpop.f32.mrf.mxu0
  %v4303 = vadd.f32 0.0, %v4302
  %v4304 = vpop.f32.mrf.mxu0
  %v4305 = vadd.f32 0.0, %v4304
  %4306 = vmatmul.bf16.gmra.mxu0 %v4162
  %v4307 = vpop.f32.mrf.mxu0
  %v4308 = vadd.f32 0.0, %v4307
  %v4309 = vpop.f32.mrf.mxu0
  %v4310 = vadd.f32 0.0, %v4309
  %4311 = vmatmul.bf16.gmra.mxu0 %v4163
  %v4312 = vpop.f32.mrf.mxu0
  %v4313 = vadd.f32 0.0, %v4312
  %v4314 = vpop.f32.mrf.mxu0
  %v4315 = vadd.f32 0.0, %v4314
  %4316 = vmatmul.bf16.gmra.mxu0 %v4164
  %v4317 = vpop.f32.mrf.mxu0
  %v4318 = vadd.f32 0.0, %v4317
  %v4319 = vpop.f32.mrf.mxu0
  %v4320 = vadd.f32 0.0, %v4319
  %4321 = vmatmul.bf16.gmra.mxu0 %v4165
  %v4322 = vpop.f32.mrf.mxu0
  %v4323 = vadd.f32 0.0, %v4322
  %v4324 = vpop.f32.mrf.mxu0
  %v4325 = vadd.f32 0.0, %v4324
  %4326 = vmatmul.bf16.gmra.mxu0 %v4166
  %v4327 = vpop.f32.mrf.mxu0
  %v4328 = vadd.f32 0.0, %v4327
  %v4329 = vpop.f32.mrf.mxu0
  %v4330 = vadd.f32 0.0, %v4329
  %4331 = vmatmul.bf16.gmra.mxu0 %v4167
  %v4332 = vpop.f32.mrf.mxu0
  %v4333 = vadd.f32 0.0, %v4332
  %v4334 = vpop.f32.mrf.mxu0
  %v4335 = vadd.f32 0.0, %v4334
  %4336 = vmatmul.bf16.gmra.mxu0 %v4168
  %v4337 = vpop.f32.mrf.mxu0
  %v4338 = vadd.f32 0.0, %v4337
  %v4339 = vpop.f32.mrf.mxu0
  %v4340 = vadd.f32 0.0, %v4339
  %4341 = vmatmul.bf16.gmra.mxu0 %v4169
  %v4342 = vpop.f32.mrf.mxu0
  %v4343 = vadd.f32 0.0, %v4342
  %v4344 = vpop.f32.mrf.mxu0
  %v4345 = vadd.f32 0.0, %v4344
  %4346 = vmatmul.bf16.gmra.mxu0 %v4170
  %v4347 = vpop.f32.mrf.mxu0
  %v4348 = vadd.f32 0.0, %v4347
  %v4349 = vpop.f32.mrf.mxu0
  %v4350 = vadd.f32 0.0, %v4349
  %4351 = vmatmul.bf16.gmra.mxu0 %v4171
  %v4352 = vpop.f32.mrf.mxu0
  %v4353 = vadd.f32 0.0, %v4352
  %v4354 = vpop.f32.mrf.mxu0
  %v4355 = vadd.f32 0.0, %v4354
  %4356 = vmatmul.bf16.gmra.mxu0 %v4172
  %v4357 = vpop.f32.mrf.mxu0
  %v4358 = vadd.f32 0.0, %v4357
  %v4359 = vpop.f32.mrf.mxu0
  %v4360 = vadd.f32 0.0, %v4359
  %4361 = vmatmul.bf16.gmra.mxu0 %v4173
  %v4362 = vpop.f32.mrf.mxu0
  %v4363 = vadd.f32 0.0, %v4362
  %v4364 = vpop.f32.mrf.mxu0
  %v4365 = vadd.f32 0.0, %v4364
  %4366 = vmatmul.bf16.gmra.mxu0 %v4174
  %v4367 = vpop.f32.mrf.mxu0
  %v4368 = vadd.f32 0.0, %v4367
  %v4369 = vpop.f32.mrf.mxu0
  %v4370 = vadd.f32 0.0, %v4369
  %4371 = vmatmul.bf16.gmra.mxu0 %v4175
  %v4372 = vpop.f32.mrf.mxu0
  %v4373 = vadd.f32 0.0, %v4372
  %v4374 = vpop.f32.mrf.mxu0
  %v4375 = vadd.f32 0.0, %v4374
  %4376 = vmatmul.bf16.gmra.mxu0 %v4176
  %v4377 = vpop.f32.mrf.mxu0
  %v4378 = vadd.f32 0.0, %v4377
  %v4379 = vpop.f32.mrf.mxu0
  %v4380 = vadd.f32 0.0, %v4379
  %4381 = vmatmul.bf16.gmra.mxu0 %v4177
  %v4382 = vpop.f32.mrf.mxu0
  %v4383 = vadd.f32 0.0, %v4382
  %v4384 = vpop.f32.mrf.mxu0
  %4385 = vdwg.mxu0
  %v4402 = vunpack.c.l.b16 %v4082
  %v4403 = vunpack.c.l.b16 %v4083
  %v4404 = vunpack.c.l.b16 %v4084
  %v4405 = vunpack.c.l.b16 %v4085
  %v4406 = vunpack.c.l.b16 %v4086
  %v4407 = vunpack.c.l.b16 %v4087
  %v4408 = vunpack.c.l.b16 %v4088
  %v4409 = vunpack.c.l.b16 %v4089
  %v4410 = vunpack.c.l.b16 %v4090
  %v4411 = vunpack.c.l.b16 %v4091
  %v4412 = vunpack.c.l.b16 %v4092
  %v4413 = vunpack.c.l.b16 %v4093
  %v4414 = vunpack.c.l.b16 %v4094
  %v4415 = vunpack.c.l.b16 %v4095
  %v4416 = vunpack.c.l.b16 %v4096
  %v4417 = vunpack.c.l.b16 %v4097
  %v4418 = vpack.c.b16 %v4403, %v4402
  %v4419 = vpack.c.b16 %v4405, %v4404
  %v4420 = vpack.c.b16 %v4407, %v4406
  %v4421 = vpack.c.b16 %v4409, %v4408
  %v4422 = vpack.c.b16 %v4411, %v4410
  %v4423 = vpack.c.b16 %v4413, %v4412
  %v4424 = vpack.c.b16 %v4415, %v4414
  %v4425 = vpack.c.b16 %v4417, %v4416
  %4434 = vmatpush.bf16.msra.mxu0 %v4425
  %4435 = vmatpush.bf16.msra.mxu0 %v4424
  %4436 = vmatpush.bf16.msra.mxu0 %v4423
  %4437 = vmatpush.bf16.msra.mxu0 %v4422
  %4438 = vmatpush.bf16.msra.mxu0 %v4421
  %4439 = vmatpush.bf16.msra.mxu0 %v4420
  %4440 = vmatpush.bf16.msra.mxu0 %v4419
  %4441 = vmatpush.bf16.msra.mxu0 %v4418
  %4442 = vmatmul.bf16.gmra.mxu0 %v4055
  %v4443 = vpop.f32.mrf.mxu0
  %v4444 = vadd.f32 %v4253, %v4443
  %v4445 = vpop.f32.mrf.mxu0
  %v4446 = vadd.f32 %v4255, %v4445
  %4447 = vmatmul.bf16.gmra.mxu0 %v4056
  %v4448 = vpop.f32.mrf.mxu0
  %v4449 = vadd.f32 %v4258, %v4448
  %v4450 = vpop.f32.mrf.mxu0
  %v4451 = vadd.f32 %v4260, %v4450
  %4452 = vmatmul.bf16.gmra.mxu0 %v4057
  %v4453 = vpop.f32.mrf.mxu0
  %v4454 = vadd.f32 %v4263, %v4453
  %v4455 = vpop.f32.mrf.mxu0
  %v4456 = vadd.f32 %v4265, %v4455
  %4457 = vmatmul.bf16.gmra.mxu0 %v4058
  %v4458 = vpop.f32.mrf.mxu0
  %v4459 = vadd.f32 %v4268, %v4458
  %v4460 = vpop.f32.mrf.mxu0
  %v4461 = vadd.f32 %v4270, %v4460
  %4462 = vmatmul.bf16.gmra.mxu0 %v4059
  %v4463 = vpop.f32.mrf.mxu0
  %v4464 = vadd.f32 %v4273, %v4463
  %v4465 = vpop.f32.mrf.mxu0
  %v4466 = vadd.f32 %v4275, %v4465
  %4467 = vmatmul.bf16.gmra.mxu0 %v4060
  %v4468 = vpop.f32.mrf.mxu0
  %v4469 = vadd.f32 %v4278, %v4468
  %v4470 = vpop.f32.mrf.mxu0
  %v4471 = vadd.f32 %v4280, %v4470
  %4472 = vmatmul.bf16.gmra.mxu0 %v4061
  %v4473 = vpop.f32.mrf.mxu0
  %v4474 = vadd.f32 %v4283, %v4473
  %v4475 = vpop.f32.mrf.mxu0
  %v4476 = vadd.f32 %v4285, %v4475
  %4477 = vmatmul.bf16.gmra.mxu0 %v4062
  %v4478 = vpop.f32.mrf.mxu0
  %v4479 = vadd.f32 %v4288, %v4478
  %v4480 = vpop.f32.mrf.mxu0
  %v4481 = vadd.f32 %v4290, %v4480
  %4482 = vmatmul.bf16.gmra.mxu0 %v4063
  %v4483 = vpop.f32.mrf.mxu0
  %v4484 = vadd.f32 %v4293, %v4483
  %v4485 = vpop.f32.mrf.mxu0
  %v4486 = vadd.f32 %v4295, %v4485
  %4487 = vmatmul.bf16.gmra.mxu0 %v4064
  %v4488 = vpop.f32.mrf.mxu0
  %v4489 = vadd.f32 %v4298, %v4488
  %v4490 = vpop.f32.mrf.mxu0
  %v4491 = vadd.f32 %v4300, %v4490
  %4492 = vmatmul.bf16.gmra.mxu0 %v4065
  %v4493 = vpop.f32.mrf.mxu0
  %v4494 = vadd.f32 %v4303, %v4493
  %v4495 = vpop.f32.mrf.mxu0
  %v4496 = vadd.f32 %v4305, %v4495
  %4497 = vmatmul.bf16.gmra.mxu0 %v4066
  %v4498 = vpop.f32.mrf.mxu0
  %v4499 = vadd.f32 %v4308, %v4498
  %v4500 = vpop.f32.mrf.mxu0
  %v4501 = vadd.f32 %v4310, %v4500
  %4502 = vmatmul.bf16.gmra.mxu0 %v4067
  %v4503 = vpop.f32.mrf.mxu0
  %v4504 = vadd.f32 %v4313, %v4503
  %v4505 = vpop.f32.mrf.mxu0
  %v4506 = vadd.f32 %v4315, %v4505
  %4507 = vmatmul.bf16.gmra.mxu0 %v4068
  %v4508 = vpop.f32.mrf.mxu0
  %v4509 = vadd.f32 %v4318, %v4508
  %v4510 = vpop.f32.mrf.mxu0
  %v4511 = vadd.f32 %v4320, %v4510
  %4512 = vmatmul.bf16.gmra.mxu0 %v4069
  %v4513 = vpop.f32.mrf.mxu0
  %v4514 = vadd.f32 %v4323, %v4513
  %v4515 = vpop.f32.mrf.mxu0
  %v4516 = vadd.f32 %v4325, %v4515
  %4517 = vmatmul.bf16.gmra.mxu0 %v4070
  %v4518 = vpop.f32.mrf.mxu0
  %v4519 = vadd.f32 %v4328, %v4518
  %v4520 = vpop.f32.mrf.mxu0
  %v4521 = vadd.f32 %v4330, %v4520
  %4522 = vmatmul.bf16.gmra.mxu0 %v4071
  %v4523 = vpop.f32.mrf.mxu0
  %v4524 = vadd.f32 %v4333, %v4523
  %v4525 = vpop.f32.mrf.mxu0
  %v4526 = vadd.f32 %v4335, %v4525
  %4527 = vmatmul.bf16.gmra.mxu0 %v4072
  %v4528 = vpop.f32.mrf.mxu0
  %v4529 = vadd.f32 %v4338, %v4528
  %v4530 = vpop.f32.mrf.mxu0
  %v4531 = vadd.f32 %v4340, %v4530
  %4532 = vmatmul.bf16.gmra.mxu0 %v4073
  %v4533 = vpop.f32.mrf.mxu0
  %v4534 = vadd.f32 %v4343, %v4533
  %v4535 = vpop.f32.mrf.mxu0
  %v4536 = vadd.f32 %v4345, %v4535
  %4537 = vmatmul.bf16.gmra.mxu0 %v4074
  %v4538 = vpop.f32.mrf.mxu0
  %v4539 = vadd.f32 %v4348, %v4538
  %v4540 = vpop.f32.mrf.mxu0
  %v4541 = vadd.f32 %v4350, %v4540
  %4542 = vmatmul.bf16.gmra.mxu0 %v4075
  %v4543 = vpop.f32.mrf.mxu0
  %v4544 = vadd.f32 %v4353, %v4543
  %v4545 = vpop.f32.mrf.mxu0
  %v4546 = vadd.f32 %v4355, %v4545
  %4547 = vmatmul.bf16.gmra.mxu0 %v4076
  %v4548 = vpop.f32.mrf.mxu0
  %v4549 = vadd.f32 %v4358, %v4548
  %v4550 = vpop.f32.mrf.mxu0
  %v4551 = vadd.f32 %v4360, %v4550
  %4552 = vmatmul.bf16.gmra.mxu0 %v4077
  %v4553 = vpop.f32.mrf.mxu0
  %v4554 = vadd.f32 %v4363, %v4553
  %v4555 = vpop.f32.mrf.mxu0
  %v4556 = vadd.f32 %v4365, %v4555
  %4557 = vmatmul.bf16.gmra.mxu0 %v4078
  %v4558 = vpop.f32.mrf.mxu0
  %v4559 = vadd.f32 %v4368, %v4558
  %v4560 = vpop.f32.mrf.mxu0
  %v4561 = vadd.f32 %v4370, %v4560
  %4562 = vmatmul.bf16.gmra.mxu0 %v4079
  %v4563 = vpop.f32.mrf.mxu0
  %v4564 = vadd.f32 %v4373, %v4563
  %v4565 = vpop.f32.mrf.mxu0
  %v4566 = vadd.f32 %v4375, %v4565
  %4567 = vmatmul.bf16.gmra.mxu0 %v4080
  %v4568 = vpop.f32.mrf.mxu0
  %v4569 = vadd.f32 %v4378, %v4568
  %v4570 = vpop.f32.mrf.mxu0
  %v4571 = vadd.f32 %v4380, %v4570
  %4572 = vmatmul.bf16.gmra.mxu0 %v4081
  %v4573 = vpop.f32.mrf.mxu0
  %v4574 = vadd.f32 %v4383, %v4573
  %v4575 = vpop.f32.mrf.mxu0
  %4576 = vdwg.mxu0
  %v4577 = vld [vmem:[#allocation4 + $0x2] sm:$0xff]
  %v4578 = vld [vmem:[#allocation4 + $0xa] sm:$0xff]
  %v4579 = vld [vmem:[#allocation4 + $0x12] sm:$0xff]
  %v4580 = vld [vmem:[#allocation4 + $0x1a] sm:$0xff]
  %v4581 = vld [vmem:[#allocation4 + $0x22] sm:$0xff]
  %v4582 = vld [vmem:[#allocation4 + $0x2a] sm:$0xff]
  %v4583 = vld [vmem:[#allocation4 + $0x32] sm:$0xff]
  %v4584 = vld [vmem:[#allocation4 + $0x3a] sm:$0xff]
  %v4585 = vld [vmem:[#allocation4 + $0x42] sm:$0xff]
  %v4586 = vld [vmem:[#allocation4 + $0x4a] sm:$0xff]
  %v4587 = vld [vmem:[#allocation4 + $0x52] sm:$0xff]
  %v4588 = vld [vmem:[#allocation4 + $0x5a] sm:$0xff]
  %v4589 = vld [vmem:[#allocation4 + $0x62] sm:$0xff]
  %v4590 = vld [vmem:[#allocation4 + $0x6a] sm:$0xff]
  %v4591 = vld [vmem:[#allocation4 + $0x72] sm:$0xff]
  %v4592 = vld [vmem:[#allocation4 + $0x7a] sm:$0xff]
  %v4593 = vld [vmem:[#allocation4 + $0x82] sm:$0xff]
  %v4594 = vld [vmem:[#allocation4 + $0x8a] sm:$0xff]
  %v4595 = vld [vmem:[#allocation4 + $0x92] sm:$0xff]
  %v4596 = vld [vmem:[#allocation4 + $0x9a] sm:$0xff]
  %v4597 = vld [vmem:[#allocation4 + $0xa2] sm:$0xff]
  %v4598 = vld [vmem:[#allocation4 + $0xaa] sm:$0xff]
  %v4599 = vld [vmem:[#allocation4 + $0xb2] sm:$0xff]
  %v4600 = vld [vmem:[#allocation4 + $0xba] sm:$0xff]
  %v4601 = vld [vmem:[#allocation4 + $0xc2] sm:$0xff]
  %v4602 = vld [vmem:[#allocation4 + $0xca] sm:$0xff]
  %v4603 = vld [vmem:[#allocation4 + $0xd2] sm:$0xff]
  %v4604 = vld [vmem:[#allocation4 + $0xda] sm:$0xff]
  %v4605 = vld [vmem:[#allocation4 + $0xe2] sm:$0xff]
  %v4606 = vld [vmem:[#allocation4 + $0xea] sm:$0xff]
  %v4607 = vld [vmem:[#allocation4 + $0xf2] sm:$0xff]
  %v4608 = vld [vmem:[#allocation4 + $0xfa] sm:$0xff]
  %v4609 = vld [vmem:[#allocation4 + $0x102] sm:$0xff]
  %v4610 = vld [vmem:[#allocation4 + $0x10a] sm:$0xff]
  %v4611 = vld [vmem:[#allocation4 + $0x112] sm:$0xff]
  %v4612 = vld [vmem:[#allocation4 + $0x11a] sm:$0xff]
  %v4613 = vld [vmem:[#allocation4 + $0x122] sm:$0xff]
  %v4614 = vld [vmem:[#allocation4 + $0x12a] sm:$0xff]
  %v4615 = vld [vmem:[#allocation4 + $0x132] sm:$0xff]
  %v4616 = vld [vmem:[#allocation4 + $0x13a] sm:$0xff]
  %v4617 = vld [vmem:[#allocation4 + $0x142] sm:$0xff]
  %v4618 = vld [vmem:[#allocation4 + $0x14a] sm:$0xff]
  %v4619 = vld [vmem:[#allocation4 + $0x152] sm:$0xff]
  %v4620 = vld [vmem:[#allocation4 + $0x15a] sm:$0xff]
  %v4621 = vld [vmem:[#allocation4 + $0x162] sm:$0xff]
  %v4622 = vld [vmem:[#allocation4 + $0x16a] sm:$0xff]
  %v4623 = vld [vmem:[#allocation4 + $0x172] sm:$0xff]
  %v4624 = vld [vmem:[#allocation4 + $0x17a] sm:$0xff]
  %v4625 = vld [vmem:[#allocation4 + $0x182] sm:$0xff]
  %v4626 = vld [vmem:[#allocation4 + $0x18a] sm:$0xff]
  %v4627 = vld [vmem:[#allocation4 + $0x192] sm:$0xff]
  %v4628 = vld [vmem:[#allocation4 + $0x19a] sm:$0xff]
  %v4629 = vld [vmem:[#allocation4 + $0x1a2] sm:$0x3]
  %v4630 = vpack.c.bf16 %v4578, %v4577
  %v4631 = vpack.c.bf16 %v4580, %v4579
  %v4632 = vpack.c.bf16 %v4582, %v4581
  %v4633 = vpack.c.bf16 %v4584, %v4583
  %v4634 = vpack.c.bf16 %v4586, %v4585
  %v4635 = vpack.c.bf16 %v4588, %v4587
  %v4636 = vpack.c.bf16 %v4590, %v4589
  %v4637 = vpack.c.bf16 %v4592, %v4591
  %v4638 = vpack.c.bf16 %v4594, %v4593
  %v4639 = vpack.c.bf16 %v4596, %v4595
  %v4640 = vpack.c.bf16 %v4598, %v4597
  %v4641 = vpack.c.bf16 %v4600, %v4599
  %v4642 = vpack.c.bf16 %v4602, %v4601
  %v4643 = vpack.c.bf16 %v4604, %v4603
  %v4644 = vpack.c.bf16 %v4606, %v4605
  %v4645 = vpack.c.bf16 %v4608, %v4607
  %v4646 = vpack.c.bf16 %v4610, %v4609
  %v4647 = vpack.c.bf16 %v4612, %v4611
  %v4648 = vpack.c.bf16 %v4614, %v4613
  %v4649 = vpack.c.bf16 %v4616, %v4615
  %v4650 = vpack.c.bf16 %v4618, %v4617
  %v4651 = vpack.c.bf16 %v4620, %v4619
  %v4652 = vpack.c.bf16 %v4622, %v4621
  %v4653 = vpack.c.bf16 %v4624, %v4623
  %v4654 = vpack.c.bf16 %v4626, %v4625
  %v4655 = vpack.c.bf16 %v4628, %v4627
  %v4656 = vpack.c.bf16 %v4629, %v4629
  %s4657 = scalar_lea.vmem %s3, 128
  %v4658 = vld [vmem:[%s4657] sm:$0xf]
  %v4659 = vld [vmem:[%s4657 + $0x4] sm:$0xf]
  %v4660 = vld [vmem:[%s4657 + $0x8] sm:$0xf]
  %v4661 = vld [vmem:[%s4657 + $0xc] sm:$0xf]
  %v4662 = vld [vmem:[%s4657 + $0x10] sm:$0xf]
  %v4663 = vld [vmem:[%s4657 + $0x14] sm:$0xf]
  %v4664 = vld [vmem:[%s4657 + $0x18] sm:$0xf]
  %v4665 = vld [vmem:[%s4657 + $0x1c] sm:$0xf]
  %v4666 = vld [vmem:[%s4657 + $0x20] sm:$0xf]
  %v4667 = vld [vmem:[%s4657 + $0x24] sm:$0xf]
  %v4668 = vld [vmem:[%s4657 + $0x28] sm:$0xf]
  %v4669 = vld [vmem:[%s4657 + $0x2c] sm:$0xf]
  %v4670 = vld [vmem:[%s4657 + $0x30] sm:$0xf]
  %v4671 = vld [vmem:[%s4657 + $0x34] sm:$0xf]
  %v4672 = vld [vmem:[%s4657 + $0x38] sm:$0xf]
  %v4673 = vld [vmem:[%s4657 + $0x3c] sm:$0xf]
  %v4690 = vunpack.c.l.b16 %v4658
  %v4691 = vunpack.c.l.b16 %v4659
  %v4692 = vunpack.c.l.b16 %v4660
  %v4693 = vunpack.c.l.b16 %v4661
  %v4694 = vunpack.c.l.b16 %v4662
  %v4695 = vunpack.c.l.b16 %v4663
  %v4696 = vunpack.c.l.b16 %v4664
  %v4697 = vunpack.c.l.b16 %v4665
  %v4698 = vunpack.c.l.b16 %v4666
  %v4699 = vunpack.c.l.b16 %v4667
  %v4700 = vunpack.c.l.b16 %v4668
  %v4701 = vunpack.c.l.b16 %v4669
  %v4702 = vunpack.c.l.b16 %v4670
  %v4703 = vunpack.c.l.b16 %v4671
  %v4704 = vunpack.c.l.b16 %v4672
  %v4705 = vunpack.c.l.b16 %v4673
  %v4706 = vpack.c.b16 %v4691, %v4690
  %v4707 = vpack.c.b16 %v4693, %v4692
  %v4708 = vpack.c.b16 %v4695, %v4694
  %v4709 = vpack.c.b16 %v4697, %v4696
  %v4710 = vpack.c.b16 %v4699, %v4698
  %v4711 = vpack.c.b16 %v4701, %v4700
  %v4712 = vpack.c.b16 %v4703, %v4702
  %v4713 = vpack.c.b16 %v4705, %v4704
  %4722 = vmatpush.bf16.msra.mxu0 %v4713
  %4723 = vmatpush.bf16.msra.mxu0 %v4712
  %4724 = vmatpush.bf16.msra.mxu0 %v4711
  %4725 = vmatpush.bf16.msra.mxu0 %v4710
  %4726 = vmatpush.bf16.msra.mxu0 %v4709
  %4727 = vmatpush.bf16.msra.mxu0 %v4708
  %4728 = vmatpush.bf16.msra.mxu0 %v4707
  %4729 = vmatpush.bf16.msra.mxu0 %v4706
  %4730 = vmatmul.bf16.gmra.mxu0 %v4630
  %v4731 = vpop.f32.mrf.mxu0
  %v4732 = vadd.f32 0.0, %v4731
  %v4733 = vpop.f32.mrf.mxu0
  %v4734 = vadd.f32 0.0, %v4733
  %4735 = vmatmul.bf16.gmra.mxu0 %v4631
  %v4736 = vpop.f32.mrf.mxu0
  %v4737 = vadd.f32 0.0, %v4736
  %v4738 = vpop.f32.mrf.mxu0
  %v4739 = vadd.f32 0.0, %v4738
  %4740 = vmatmul.bf16.gmra.mxu0 %v4632
  %v4741 = vpop.f32.mrf.mxu0
  %v4742 = vadd.f32 0.0, %v4741
  %v4743 = vpop.f32.mrf.mxu0
  %v4744 = vadd.f32 0.0, %v4743
  %4745 = vmatmul.bf16.gmra.mxu0 %v4633
  %v4746 = vpop.f32.mrf.mxu0
  %v4747 = vadd.f32 0.0, %v4746
  %v4748 = vpop.f32.mrf.mxu0
  %v4749 = vadd.f32 0.0, %v4748
  %4750 = vmatmul.bf16.gmra.mxu0 %v4634
  %v4751 = vpop.f32.mrf.mxu0
  %v4752 = vadd.f32 0.0, %v4751
  %v4753 = vpop.f32.mrf.mxu0
  %v4754 = vadd.f32 0.0, %v4753
  %4755 = vmatmul.bf16.gmra.mxu0 %v4635
  %v4756 = vpop.f32.mrf.mxu0
  %v4757 = vadd.f32 0.0, %v4756
  %v4758 = vpop.f32.mrf.mxu0
  %v4759 = vadd.f32 0.0, %v4758
  %4760 = vmatmul.bf16.gmra.mxu0 %v4636
  %v4761 = vpop.f32.mrf.mxu0
  %v4762 = vadd.f32 0.0, %v4761
  %v4763 = vpop.f32.mrf.mxu0
  %v4764 = vadd.f32 0.0, %v4763
  %4765 = vmatmul.bf16.gmra.mxu0 %v4637
  %v4766 = vpop.f32.mrf.mxu0
  %v4767 = vadd.f32 0.0, %v4766
  %v4768 = vpop.f32.mrf.mxu0
  %v4769 = vadd.f32 0.0, %v4768
  %4770 = vmatmul.bf16.gmra.mxu0 %v4638
  %v4771 = vpop.f32.mrf.mxu0
  %v4772 = vadd.f32 0.0, %v4771
  %v4773 = vpop.f32.mrf.mxu0
  %v4774 = vadd.f32 0.0, %v4773
  %4775 = vmatmul.bf16.gmra.mxu0 %v4639
  %v4776 = vpop.f32.mrf.mxu0
  %v4777 = vadd.f32 0.0, %v4776
  %v4778 = vpop.f32.mrf.mxu0
  %v4779 = vadd.f32 0.0, %v4778
  %4780 = vmatmul.bf16.gmra.mxu0 %v4640
  %v4781 = vpop.f32.mrf.mxu0
  %v4782 = vadd.f32 0.0, %v4781
  %v4783 = vpop.f32.mrf.mxu0
  %v4784 = vadd.f32 0.0, %v4783
  %4785 = vmatmul.bf16.gmra.mxu0 %v4641
  %v4786 = vpop.f32.mrf.mxu0
  %v4787 = vadd.f32 0.0, %v4786
  %v4788 = vpop.f32.mrf.mxu0
  %v4789 = vadd.f32 0.0, %v4788
  %4790 = vmatmul.bf16.gmra.mxu0 %v4642
  %v4791 = vpop.f32.mrf.mxu0
  %v4792 = vadd.f32 0.0, %v4791
  %v4793 = vpop.f32.mrf.mxu0
  %v4794 = vadd.f32 0.0, %v4793
  %4795 = vmatmul.bf16.gmra.mxu0 %v4643
  %v4796 = vpop.f32.mrf.mxu0
  %v4797 = vadd.f32 0.0, %v4796
  %v4798 = vpop.f32.mrf.mxu0
  %v4799 = vadd.f32 0.0, %v4798
  %4800 = vmatmul.bf16.gmra.mxu0 %v4644
  %v4801 = vpop.f32.mrf.mxu0
  %v4802 = vadd.f32 0.0, %v4801
  %v4803 = vpop.f32.mrf.mxu0
  %v4804 = vadd.f32 0.0, %v4803
  %4805 = vmatmul.bf16.gmra.mxu0 %v4645
  %v4806 = vpop.f32.mrf.mxu0
  %v4807 = vadd.f32 0.0, %v4806
  %v4808 = vpop.f32.mrf.mxu0
  %v4809 = vadd.f32 0.0, %v4808
  %4810 = vmatmul.bf16.gmra.mxu0 %v4646
  %v4811 = vpop.f32.mrf.mxu0
  %v4812 = vadd.f32 0.0, %v4811
  %v4813 = vpop.f32.mrf.mxu0
  %v4814 = vadd.f32 0.0, %v4813
  %4815 = vmatmul.bf16.gmra.mxu0 %v4647
  %v4816 = vpop.f32.mrf.mxu0
  %v4817 = vadd.f32 0.0, %v4816
  %v4818 = vpop.f32.mrf.mxu0
  %v4819 = vadd.f32 0.0, %v4818
  %4820 = vmatmul.bf16.gmra.mxu0 %v4648
  %v4821 = vpop.f32.mrf.mxu0
  %v4822 = vadd.f32 0.0, %v4821
  %v4823 = vpop.f32.mrf.mxu0
  %v4824 = vadd.f32 0.0, %v4823
  %4825 = vmatmul.bf16.gmra.mxu0 %v4649
  %v4826 = vpop.f32.mrf.mxu0
  %v4827 = vadd.f32 0.0, %v4826
  %v4828 = vpop.f32.mrf.mxu0
  %v4829 = vadd.f32 0.0, %v4828
  %4830 = vmatmul.bf16.gmra.mxu0 %v4650
  %v4831 = vpop.f32.mrf.mxu0
  %v4832 = vadd.f32 0.0, %v4831
  %v4833 = vpop.f32.mrf.mxu0
  %v4834 = vadd.f32 0.0, %v4833
  %4835 = vmatmul.bf16.gmra.mxu0 %v4651
  %v4836 = vpop.f32.mrf.mxu0
  %v4837 = vadd.f32 0.0, %v4836
  %v4838 = vpop.f32.mrf.mxu0
  %v4839 = vadd.f32 0.0, %v4838
  %4840 = vmatmul.bf16.gmra.mxu0 %v4652
  %v4841 = vpop.f32.mrf.mxu0
  %v4842 = vadd.f32 0.0, %v4841
  %v4843 = vpop.f32.mrf.mxu0
  %v4844 = vadd.f32 0.0, %v4843
  %4845 = vmatmul.bf16.gmra.mxu0 %v4653
  %v4846 = vpop.f32.mrf.mxu0
  %v4847 = vadd.f32 0.0, %v4846
  %v4848 = vpop.f32.mrf.mxu0
  %v4849 = vadd.f32 0.0, %v4848
  %4850 = vmatmul.bf16.gmra.mxu0 %v4654
  %v4851 = vpop.f32.mrf.mxu0
  %v4852 = vadd.f32 0.0, %v4851
  %v4853 = vpop.f32.mrf.mxu0
  %v4854 = vadd.f32 0.0, %v4853
  %4855 = vmatmul.bf16.gmra.mxu0 %v4655
  %v4856 = vpop.f32.mrf.mxu0
  %v4857 = vadd.f32 0.0, %v4856
  %v4858 = vpop.f32.mrf.mxu0
  %v4859 = vadd.f32 0.0, %v4858
  %4860 = vmatmul.bf16.gmra.mxu0 %v4656
  %v4861 = vpop.f32.mrf.mxu0
  %v4862 = vadd.f32 0.0, %v4861
  %v4863 = vpop.f32.mrf.mxu0
  %4864 = vdwg.mxu0
  %v4865 = vadd.f32 %v4444, %v4732
  %v4866 = vadd.f32 %v4446, %v4734
  %v4867 = vadd.f32 %v4449, %v4737
  %v4868 = vadd.f32 %v4451, %v4739
  %v4869 = vadd.f32 %v4454, %v4742
  %v4870 = vadd.f32 %v4456, %v4744
  %v4871 = vadd.f32 %v4459, %v4747
  %v4872 = vadd.f32 %v4461, %v4749
  %v4873 = vadd.f32 %v4464, %v4752
  %v4874 = vadd.f32 %v4466, %v4754
  %v4875 = vadd.f32 %v4469, %v4757
  %v4876 = vadd.f32 %v4471, %v4759
  %v4877 = vadd.f32 %v4474, %v4762
  %v4878 = vadd.f32 %v4476, %v4764
  %v4879 = vadd.f32 %v4479, %v4767
  %v4880 = vadd.f32 %v4481, %v4769
  %v4881 = vadd.f32 %v4484, %v4772
  %v4882 = vadd.f32 %v4486, %v4774
  %v4883 = vadd.f32 %v4489, %v4777
  %v4884 = vadd.f32 %v4491, %v4779
  %v4885 = vadd.f32 %v4494, %v4782
  %v4886 = vadd.f32 %v4496, %v4784
  %v4887 = vadd.f32 %v4499, %v4787
  %v4888 = vadd.f32 %v4501, %v4789
  %v4889 = vadd.f32 %v4504, %v4792
  %v4890 = vadd.f32 %v4506, %v4794
  %v4891 = vadd.f32 %v4509, %v4797
  %v4892 = vadd.f32 %v4511, %v4799
  %v4893 = vadd.f32 %v4514, %v4802
  %v4894 = vadd.f32 %v4516, %v4804
  %v4895 = vadd.f32 %v4519, %v4807
  %v4896 = vadd.f32 %v4521, %v4809
  %v4897 = vadd.f32 %v4524, %v4812
  %v4898 = vadd.f32 %v4526, %v4814
  %v4899 = vadd.f32 %v4529, %v4817
  %v4900 = vadd.f32 %v4531, %v4819
  %v4901 = vadd.f32 %v4534, %v4822
  %v4902 = vadd.f32 %v4536, %v4824
  %v4903 = vadd.f32 %v4539, %v4827
  %v4904 = vadd.f32 %v4541, %v4829
  %v4905 = vadd.f32 %v4544, %v4832
  %v4906 = vadd.f32 %v4546, %v4834
  %v4907 = vadd.f32 %v4549, %v4837
  %v4908 = vadd.f32 %v4551, %v4839
  %v4909 = vadd.f32 %v4554, %v4842
  %v4910 = vadd.f32 %v4556, %v4844
  %v4911 = vadd.f32 %v4559, %v4847
  %v4912 = vadd.f32 %v4561, %v4849
  %v4913 = vadd.f32 %v4564, %v4852
  %v4914 = vadd.f32 %v4566, %v4854
  %v4915 = vadd.f32 %v4569, %v4857
  %v4916 = vadd.f32 %v4571, %v4859
  %v4917 = vadd.f32 %v4574, %v4862
  %v4918 = vld [vmem:[#allocation4 + $0xf] sm:$0xff]
  %v4919 = vld [vmem:[#allocation4 + $0x17] sm:$0xff]
  %v4920 = vld [vmem:[#allocation4 + $0x1f] sm:$0xff]
  %v4921 = vld [vmem:[#allocation4 + $0x27] sm:$0xff]
  %v4922 = vld [vmem:[#allocation4 + $0x2f] sm:$0xff]
  %v4923 = vld [vmem:[#allocation4 + $0x37] sm:$0xff]
  %v4924 = vld [vmem:[#allocation4 + $0x3f] sm:$0xff]
  %v4925 = vld [vmem:[#allocation4 + $0x47] sm:$0xff]
  %v4926 = vld [vmem:[#allocation4 + $0x4f] sm:$0xff]
  %v4927 = vld [vmem:[#allocation4 + $0x57] sm:$0xff]
  %v4928 = vld [vmem:[#allocation4 + $0x5f] sm:$0xff]
  %v4929 = vld [vmem:[#allocation4 + $0x67] sm:$0xff]
  %v4930 = vld [vmem:[#allocation4 + $0x6f] sm:$0xff]
  %v4931 = vld [vmem:[#allocation4 + $0x77] sm:$0xff]
  %v4932 = vld [vmem:[#allocation4 + $0x7f] sm:$0xff]
  %v4933 = vld [vmem:[#allocation4 + $0x87] sm:$0xff]
  %v4934 = vld [vmem:[#allocation4 + $0x8f] sm:$0xff]
  %v4935 = vld [vmem:[#allocation4 + $0x97] sm:$0xff]
  %v4936 = vld [vmem:[#allocation4 + $0x9f] sm:$0xff]
  %v4937 = vld [vmem:[#allocation4 + $0xa7] sm:$0xff]
  %v4938 = vld [vmem:[#allocation4 + $0xaf] sm:$0xff]
  %v4939 = vld [vmem:[#allocation4 + $0xb7] sm:$0xff]
  %v4940 = vld [vmem:[#allocation4 + $0xbf] sm:$0xff]
  %v4941 = vld [vmem:[#allocation4 + $0xc7] sm:$0xff]
  %v4942 = vld [vmem:[#allocation4 + $0xcf] sm:$0xff]
  %v4943 = vld [vmem:[#allocation4 + $0xd7] sm:$0xff]
  %v4944 = vld [vmem:[#allocation4 + $0xdf] sm:$0xff]
  %v4945 = vld [vmem:[#allocation4 + $0xe7] sm:$0xff]
  %v4946 = vld [vmem:[#allocation4 + $0xef] sm:$0xff]
  %v4947 = vld [vmem:[#allocation4 + $0xf7] sm:$0xff]
  %v4948 = vld [vmem:[#allocation4 + $0xff] sm:$0xff]
  %v4949 = vld [vmem:[#allocation4 + $0x107] sm:$0xff]
  %v4950 = vld [vmem:[#allocation4 + $0x10f] sm:$0xff]
  %v4951 = vld [vmem:[#allocation4 + $0x117] sm:$0xff]
  %v4952 = vld [vmem:[#allocation4 + $0x11f] sm:$0xff]
  %v4953 = vld [vmem:[#allocation4 + $0x127] sm:$0xff]
  %v4954 = vld [vmem:[#allocation4 + $0x12f] sm:$0xff]
  %v4955 = vld [vmem:[#allocation4 + $0x137] sm:$0xff]
  %v4956 = vld [vmem:[#allocation4 + $0x13f] sm:$0xff]
  %v4957 = vld [vmem:[#allocation4 + $0x147] sm:$0xff]
  %v4958 = vld [vmem:[#allocation4 + $0x14f] sm:$0xff]
  %v4959 = vld [vmem:[#allocation4 + $0x157] sm:$0xff]
  %v4960 = vld [vmem:[#allocation4 + $0x15f] sm:$0xff]
  %v4961 = vld [vmem:[#allocation4 + $0x167] sm:$0xff]
  %v4962 = vld [vmem:[#allocation4 + $0x16f] sm:$0xff]
  %v4963 = vld [vmem:[#allocation4 + $0x177] sm:$0xff]
  %v4964 = vld [vmem:[#allocation4 + $0x17f] sm:$0xff]
  %v4965 = vld [vmem:[#allocation4 + $0x187] sm:$0xff]
  %v4966 = vld [vmem:[#allocation4 + $0x18f] sm:$0xff]
  %v4967 = vld [vmem:[#allocation4 + $0x197] sm:$0xff]
  %v4968 = vld [vmem:[#allocation4 + $0x19f] sm:$0xff]
  %v4969 = vld [vmem:[#allocation4 + $0x1a7] sm:$0xff]
  %v4970 = vld [vmem:[#allocation4 + $0x1af] sm:$0x3]
  %v4971 = vpack.c.bf16 %v4919, %v4918
  %v4972 = vpack.c.bf16 %v4921, %v4920
  %v4973 = vpack.c.bf16 %v4923, %v4922
  %v4974 = vpack.c.bf16 %v4925, %v4924
  %v4975 = vpack.c.bf16 %v4927, %v4926
  %v4976 = vpack.c.bf16 %v4929, %v4928
  %v4977 = vpack.c.bf16 %v4931, %v4930
  %v4978 = vpack.c.bf16 %v4933, %v4932
  %v4979 = vpack.c.bf16 %v4935, %v4934
  %v4980 = vpack.c.bf16 %v4937, %v4936
  %v4981 = vpack.c.bf16 %v4939, %v4938
  %v4982 = vpack.c.bf16 %v4941, %v4940
  %v4983 = vpack.c.bf16 %v4943, %v4942
  %v4984 = vpack.c.bf16 %v4945, %v4944
  %v4985 = vpack.c.bf16 %v4947, %v4946
  %v4986 = vpack.c.bf16 %v4949, %v4948
  %v4987 = vpack.c.bf16 %v4951, %v4950
  %v4988 = vpack.c.bf16 %v4953, %v4952
  %v4989 = vpack.c.bf16 %v4955, %v4954
  %v4990 = vpack.c.bf16 %v4957, %v4956
  %v4991 = vpack.c.bf16 %v4959, %v4958
  %v4992 = vpack.c.bf16 %v4961, %v4960
  %v4993 = vpack.c.bf16 %v4963, %v4962
  %v4994 = vpack.c.bf16 %v4965, %v4964
  %v4995 = vpack.c.bf16 %v4967, %v4966
  %v4996 = vpack.c.bf16 %v4969, %v4968
  %v4997 = vpack.c.bf16 %v4970, %v4970
  %s4998 = scalar_lea.vmem %s3, 192
  %v4999 = vld [vmem:[%s4998] sm:$0xf]
  %v5000 = vld [vmem:[%s4998 + $0x4] sm:$0xf]
  %v5001 = vld [vmem:[%s4998 + $0x8] sm:$0xf]
  %v5002 = vld [vmem:[%s4998 + $0xc] sm:$0xf]
  %v5003 = vld [vmem:[%s4998 + $0x10] sm:$0xf]
  %v5004 = vld [vmem:[%s4998 + $0x14] sm:$0xf]
  %v5005 = vld [vmem:[%s4998 + $0x18] sm:$0xf]
  %v5006 = vld [vmem:[%s4998 + $0x1c] sm:$0xf]
  %v5007 = vld [vmem:[%s4998 + $0x20] sm:$0xf]
  %v5008 = vld [vmem:[%s4998 + $0x24] sm:$0xf]
  %v5009 = vld [vmem:[%s4998 + $0x28] sm:$0xf]
  %v5010 = vld [vmem:[%s4998 + $0x2c] sm:$0xf]
  %v5011 = vld [vmem:[%s4998 + $0x30] sm:$0xf]
  %v5012 = vld [vmem:[%s4998 + $0x34] sm:$0xf]
  %v5013 = vld [vmem:[%s4998 + $0x38] sm:$0xf]
  %v5014 = vld [vmem:[%s4998 + $0x3c] sm:$0xf]
  %v5031 = vunpack.c.l.b16 %v4999
  %v5032 = vunpack.c.l.b16 %v5000
  %v5033 = vunpack.c.l.b16 %v5001
  %v5034 = vunpack.c.l.b16 %v5002
  %v5035 = vunpack.c.l.b16 %v5003
  %v5036 = vunpack.c.l.b16 %v5004
  %v5037 = vunpack.c.l.b16 %v5005
  %v5038 = vunpack.c.l.b16 %v5006
  %v5039 = vunpack.c.l.b16 %v5007
  %v5040 = vunpack.c.l.b16 %v5008
  %v5041 = vunpack.c.l.b16 %v5009
  %v5042 = vunpack.c.l.b16 %v5010
  %v5043 = vunpack.c.l.b16 %v5011
  %v5044 = vunpack.c.l.b16 %v5012
  %v5045 = vunpack.c.l.b16 %v5013
  %v5046 = vunpack.c.l.b16 %v5014
  %v5047 = vpack.c.b16 %v5032, %v5031
  %v5048 = vpack.c.b16 %v5034, %v5033
  %v5049 = vpack.c.b16 %v5036, %v5035
  %v5050 = vpack.c.b16 %v5038, %v5037
  %v5051 = vpack.c.b16 %v5040, %v5039
  %v5052 = vpack.c.b16 %v5042, %v5041
  %v5053 = vpack.c.b16 %v5044, %v5043
  %v5054 = vpack.c.b16 %v5046, %v5045
  %5063 = vmatpush.bf16.msra.mxu0 %v5054
  %5064 = vmatpush.bf16.msra.mxu0 %v5053
  %5065 = vmatpush.bf16.msra.mxu0 %v5052
  %5066 = vmatpush.bf16.msra.mxu0 %v5051
  %5067 = vmatpush.bf16.msra.mxu0 %v5050
  %5068 = vmatpush.bf16.msra.mxu0 %v5049
  %5069 = vmatpush.bf16.msra.mxu0 %v5048
  %5070 = vmatpush.bf16.msra.mxu0 %v5047
  %5071 = vmatmul.bf16.gmra.mxu0 %v4971
  %v5072 = vpop.f32.mrf.mxu0
  %v5073 = vadd.f32 0.0, %v5072
  %v5074 = vpop.f32.mrf.mxu0
  %v5075 = vadd.f32 0.0, %v5074
  %5076 = vmatmul.bf16.gmra.mxu0 %v4972
  %v5077 = vpop.f32.mrf.mxu0
  %v5078 = vadd.f32 0.0, %v5077
  %v5079 = vpop.f32.mrf.mxu0
  %v5080 = vadd.f32 0.0, %v5079
  %5081 = vmatmul.bf16.gmra.mxu0 %v4973
  %v5082 = vpop.f32.mrf.mxu0
  %v5083 = vadd.f32 0.0, %v5082
  %v5084 = vpop.f32.mrf.mxu0
  %v5085 = vadd.f32 0.0, %v5084
  %5086 = vmatmul.bf16.gmra.mxu0 %v4974
  %v5087 = vpop.f32.mrf.mxu0
  %v5088 = vadd.f32 0.0, %v5087
  %v5089 = vpop.f32.mrf.mxu0
  %v5090 = vadd.f32 0.0, %v5089
  %5091 = vmatmul.bf16.gmra.mxu0 %v4975
  %v5092 = vpop.f32.mrf.mxu0
  %v5093 = vadd.f32 0.0, %v5092
  %v5094 = vpop.f32.mrf.mxu0
  %v5095 = vadd.f32 0.0, %v5094
  %5096 = vmatmul.bf16.gmra.mxu0 %v4976
  %v5097 = vpop.f32.mrf.mxu0
  %v5098 = vadd.f32 0.0, %v5097
  %v5099 = vpop.f32.mrf.mxu0
  %v5100 = vadd.f32 0.0, %v5099
  %5101 = vmatmul.bf16.gmra.mxu0 %v4977
  %v5102 = vpop.f32.mrf.mxu0
  %v5103 = vadd.f32 0.0, %v5102
  %v5104 = vpop.f32.mrf.mxu0
  %v5105 = vadd.f32 0.0, %v5104
  %5106 = vmatmul.bf16.gmra.mxu0 %v4978
  %v5107 = vpop.f32.mrf.mxu0
  %v5108 = vadd.f32 0.0, %v5107
  %v5109 = vpop.f32.mrf.mxu0
  %v5110 = vadd.f32 0.0, %v5109
  %5111 = vmatmul.bf16.gmra.mxu0 %v4979
  %v5112 = vpop.f32.mrf.mxu0
  %v5113 = vadd.f32 0.0, %v5112
  %v5114 = vpop.f32.mrf.mxu0
  %v5115 = vadd.f32 0.0, %v5114
  %5116 = vmatmul.bf16.gmra.mxu0 %v4980
  %v5117 = vpop.f32.mrf.mxu0
  %v5118 = vadd.f32 0.0, %v5117
  %v5119 = vpop.f32.mrf.mxu0
  %v5120 = vadd.f32 0.0, %v5119
  %5121 = vmatmul.bf16.gmra.mxu0 %v4981
  %v5122 = vpop.f32.mrf.mxu0
  %v5123 = vadd.f32 0.0, %v5122
  %v5124 = vpop.f32.mrf.mxu0
  %v5125 = vadd.f32 0.0, %v5124
  %5126 = vmatmul.bf16.gmra.mxu0 %v4982
  %v5127 = vpop.f32.mrf.mxu0
  %v5128 = vadd.f32 0.0, %v5127
  %v5129 = vpop.f32.mrf.mxu0
  %v5130 = vadd.f32 0.0, %v5129
  %5131 = vmatmul.bf16.gmra.mxu0 %v4983
  %v5132 = vpop.f32.mrf.mxu0
  %v5133 = vadd.f32 0.0, %v5132
  %v5134 = vpop.f32.mrf.mxu0
  %v5135 = vadd.f32 0.0, %v5134
  %5136 = vmatmul.bf16.gmra.mxu0 %v4984
  %v5137 = vpop.f32.mrf.mxu0
  %v5138 = vadd.f32 0.0, %v5137
  %v5139 = vpop.f32.mrf.mxu0
  %v5140 = vadd.f32 0.0, %v5139
  %5141 = vmatmul.bf16.gmra.mxu0 %v4985
  %v5142 = vpop.f32.mrf.mxu0
  %v5143 = vadd.f32 0.0, %v5142
  %v5144 = vpop.f32.mrf.mxu0
  %v5145 = vadd.f32 0.0, %v5144
  %5146 = vmatmul.bf16.gmra.mxu0 %v4986
  %v5147 = vpop.f32.mrf.mxu0
  %v5148 = vadd.f32 0.0, %v5147
  %v5149 = vpop.f32.mrf.mxu0
  %v5150 = vadd.f32 0.0, %v5149
  %5151 = vmatmul.bf16.gmra.mxu0 %v4987
  %v5152 = vpop.f32.mrf.mxu0
  %v5153 = vadd.f32 0.0, %v5152
  %v5154 = vpop.f32.mrf.mxu0
  %v5155 = vadd.f32 0.0, %v5154
  %5156 = vmatmul.bf16.gmra.mxu0 %v4988
  %v5157 = vpop.f32.mrf.mxu0
  %v5158 = vadd.f32 0.0, %v5157
  %v5159 = vpop.f32.mrf.mxu0
  %v5160 = vadd.f32 0.0, %v5159
  %5161 = vmatmul.bf16.gmra.mxu0 %v4989
  %v5162 = vpop.f32.mrf.mxu0
  %v5163 = vadd.f32 0.0, %v5162
  %v5164 = vpop.f32.mrf.mxu0
  %v5165 = vadd.f32 0.0, %v5164
  %5166 = vmatmul.bf16.gmra.mxu0 %v4990
  %v5167 = vpop.f32.mrf.mxu0
  %v5168 = vadd.f32 0.0, %v5167
  %v5169 = vpop.f32.mrf.mxu0
  %v5170 = vadd.f32 0.0, %v5169
  %5171 = vmatmul.bf16.gmra.mxu0 %v4991
  %v5172 = vpop.f32.mrf.mxu0
  %v5173 = vadd.f32 0.0, %v5172
  %v5174 = vpop.f32.mrf.mxu0
  %v5175 = vadd.f32 0.0, %v5174
  %5176 = vmatmul.bf16.gmra.mxu0 %v4992
  %v5177 = vpop.f32.mrf.mxu0
  %v5178 = vadd.f32 0.0, %v5177
  %v5179 = vpop.f32.mrf.mxu0
  %v5180 = vadd.f32 0.0, %v5179
  %5181 = vmatmul.bf16.gmra.mxu0 %v4993
  %v5182 = vpop.f32.mrf.mxu0
  %v5183 = vadd.f32 0.0, %v5182
  %v5184 = vpop.f32.mrf.mxu0
  %v5185 = vadd.f32 0.0, %v5184
  %5186 = vmatmul.bf16.gmra.mxu0 %v4994
  %v5187 = vpop.f32.mrf.mxu0
  %v5188 = vadd.f32 0.0, %v5187
  %v5189 = vpop.f32.mrf.mxu0
  %v5190 = vadd.f32 0.0, %v5189
  %5191 = vmatmul.bf16.gmra.mxu0 %v4995
  %v5192 = vpop.f32.mrf.mxu0
  %v5193 = vadd.f32 0.0, %v5192
  %v5194 = vpop.f32.mrf.mxu0
  %v5195 = vadd.f32 0.0, %v5194
  %5196 = vmatmul.bf16.gmra.mxu0 %v4996
  %v5197 = vpop.f32.mrf.mxu0
  %v5198 = vadd.f32 0.0, %v5197
  %v5199 = vpop.f32.mrf.mxu0
  %v5200 = vadd.f32 0.0, %v5199
  %5201 = vmatmul.bf16.gmra.mxu0 %v4997
  %v5202 = vpop.f32.mrf.mxu0
  %v5203 = vadd.f32 0.0, %v5202
  %v5204 = vpop.f32.mrf.mxu0
  %5205 = vdwg.mxu0
  %v5206 = vadd.f32 %v4865, %v5073
  %v5207 = vadd.f32 %v4866, %v5075
  %v5208 = vadd.f32 %v4867, %v5078
  %v5209 = vadd.f32 %v4868, %v5080
  %v5210 = vadd.f32 %v4869, %v5083
  %v5211 = vadd.f32 %v4870, %v5085
  %v5212 = vadd.f32 %v4871, %v5088
  %v5213 = vadd.f32 %v4872, %v5090
  %v5214 = vadd.f32 %v4873, %v5093
  %v5215 = vadd.f32 %v4874, %v5095
  %v5216 = vadd.f32 %v4875, %v5098
  %v5217 = vadd.f32 %v4876, %v5100
  %v5218 = vadd.f32 %v4877, %v5103
  %v5219 = vadd.f32 %v4878, %v5105
  %v5220 = vadd.f32 %v4879, %v5108
  %v5221 = vadd.f32 %v4880, %v5110
  %v5222 = vadd.f32 %v4881, %v5113
  %v5223 = vadd.f32 %v4882, %v5115
  %v5224 = vadd.f32 %v4883, %v5118
  %v5225 = vadd.f32 %v4884, %v5120
  %v5226 = vadd.f32 %v4885, %v5123
  %v5227 = vadd.f32 %v4886, %v5125
  %v5228 = vadd.f32 %v4887, %v5128
  %v5229 = vadd.f32 %v4888, %v5130
  %v5230 = vadd.f32 %v4889, %v5133
  %v5231 = vadd.f32 %v4890, %v5135
  %v5232 = vadd.f32 %v4891, %v5138
  %v5233 = vadd.f32 %v4892, %v5140
  %v5234 = vadd.f32 %v4893, %v5143
  %v5235 = vadd.f32 %v4894, %v5145
  %v5236 = vadd.f32 %v4895, %v5148
  %v5237 = vadd.f32 %v4896, %v5150
  %v5238 = vadd.f32 %v4897, %v5153
  %v5239 = vadd.f32 %v4898, %v5155
  %v5240 = vadd.f32 %v4899, %v5158
  %v5241 = vadd.f32 %v4900, %v5160
  %v5242 = vadd.f32 %v4901, %v5163
  %v5243 = vadd.f32 %v4902, %v5165
  %v5244 = vadd.f32 %v4903, %v5168
  %v5245 = vadd.f32 %v4904, %v5170
  %v5246 = vadd.f32 %v4905, %v5173
  %v5247 = vadd.f32 %v4906, %v5175
  %v5248 = vadd.f32 %v4907, %v5178
  %v5249 = vadd.f32 %v4908, %v5180
  %v5250 = vadd.f32 %v4909, %v5183
  %v5251 = vadd.f32 %v4910, %v5185
  %v5252 = vadd.f32 %v4911, %v5188
  %v5253 = vadd.f32 %v4912, %v5190
  %v5254 = vadd.f32 %v4913, %v5193
  %v5255 = vadd.f32 %v4914, %v5195
  %v5256 = vadd.f32 %v4915, %v5198
  %v5257 = vadd.f32 %v4916, %v5200
  %v5258 = vadd.f32 %v4917, %v5203
  %v5259 = vld [vmem:[#allocation4 + $0x10] sm:$0xff]
  %v5260 = vld [vmem:[#allocation4 + $0x18] sm:$0xff]
  %v5261 = vld [vmem:[#allocation4 + $0x20] sm:$0xff]
  %v5262 = vld [vmem:[#allocation4 + $0x28] sm:$0xff]
  %v5263 = vld [vmem:[#allocation4 + $0x30] sm:$0xff]
  %v5264 = vld [vmem:[#allocation4 + $0x38] sm:$0xff]
  %v5265 = vld [vmem:[#allocation4 + $0x40] sm:$0xff]
  %v5266 = vld [vmem:[#allocation4 + $0x48] sm:$0xff]
  %v5267 = vld [vmem:[#allocation4 + $0x50] sm:$0xff]
  %v5268 = vld [vmem:[#allocation4 + $0x58] sm:$0xff]
  %v5269 = vld [vmem:[#allocation4 + $0x60] sm:$0xff]
  %v5270 = vld [vmem:[#allocation4 + $0x68] sm:$0xff]
  %v5271 = vld [vmem:[#allocation4 + $0x70] sm:$0xff]
  %v5272 = vld [vmem:[#allocation4 + $0x78] sm:$0xff]
  %v5273 = vld [vmem:[#allocation4 + $0x80] sm:$0xff]
  %v5274 = vld [vmem:[#allocation4 + $0x88] sm:$0xff]
  %v5275 = vld [vmem:[#allocation4 + $0x90] sm:$0xff]
  %v5276 = vld [vmem:[#allocation4 + $0x98] sm:$0xff]
  %v5277 = vld [vmem:[#allocation4 + $0xa0] sm:$0xff]
  %v5278 = vld [vmem:[#allocation4 + $0xa8] sm:$0xff]
  %v5279 = vld [vmem:[#allocation4 + $0xb0] sm:$0xff]
  %v5280 = vld [vmem:[#allocation4 + $0xb8] sm:$0xff]
  %v5281 = vld [vmem:[#allocation4 + $0xc0] sm:$0xff]
  %v5282 = vld [vmem:[#allocation4 + $0xc8] sm:$0xff]
  %v5283 = vld [vmem:[#allocation4 + $0xd0] sm:$0xff]
  %v5284 = vld [vmem:[#allocation4 + $0xd8] sm:$0xff]
  %v5285 = vld [vmem:[#allocation4 + $0xe0] sm:$0xff]
  %v5286 = vld [vmem:[#allocation4 + $0xe8] sm:$0xff]
  %v5287 = vld [vmem:[#allocation4 + $0xf0] sm:$0xff]
  %v5288 = vld [vmem:[#allocation4 + $0xf8] sm:$0xff]
  %v5289 = vld [vmem:[#allocation4 + $0x100] sm:$0xff]
  %v5290 = vld [vmem:[#allocation4 + $0x108] sm:$0xff]
  %v5291 = vld [vmem:[#allocation4 + $0x110] sm:$0xff]
  %v5292 = vld [vmem:[#allocation4 + $0x118] sm:$0xff]
  %v5293 = vld [vmem:[#allocation4 + $0x120] sm:$0xff]
  %v5294 = vld [vmem:[#allocation4 + $0x128] sm:$0xff]
  %v5295 = vld [vmem:[#allocation4 + $0x130] sm:$0xff]
  %v5296 = vld [vmem:[#allocation4 + $0x138] sm:$0xff]
  %v5297 = vld [vmem:[#allocation4 + $0x140] sm:$0xff]
  %v5298 = vld [vmem:[#allocation4 + $0x148] sm:$0xff]
  %v5299 = vld [vmem:[#allocation4 + $0x150] sm:$0xff]
  %v5300 = vld [vmem:[#allocation4 + $0x158] sm:$0xff]
  %v5301 = vld [vmem:[#allocation4 + $0x160] sm:$0xff]
  %v5302 = vld [vmem:[#allocation4 + $0x168] sm:$0xff]
  %v5303 = vld [vmem:[#allocation4 + $0x170] sm:$0xff]
  %v5304 = vld [vmem:[#allocation4 + $0x178] sm:$0xff]
  %v5305 = vld [vmem:[#allocation4 + $0x180] sm:$0xff]
  %v5306 = vld [vmem:[#allocation4 + $0x188] sm:$0xff]
  %v5307 = vld [vmem:[#allocation4 + $0x190] sm:$0xff]
  %v5308 = vld [vmem:[#allocation4 + $0x198] sm:$0xff]
  %v5309 = vld [vmem:[#allocation4 + $0x1a0] sm:$0xff]
  %v5310 = vld [vmem:[#allocation4 + $0x1a8] sm:$0xff]
  %v5311 = vld [vmem:[#allocation4 + $0x1b0] sm:$0x3]
  %v5312 = vpack.c.bf16 %v5260, %v5259
  %v5313 = vpack.c.bf16 %v5262, %v5261
  %v5314 = vpack.c.bf16 %v5264, %v5263
  %v5315 = vpack.c.bf16 %v5266, %v5265
  %v5316 = vpack.c.bf16 %v5268, %v5267
  %v5317 = vpack.c.bf16 %v5270, %v5269
  %v5318 = vpack.c.bf16 %v5272, %v5271
  %v5319 = vpack.c.bf16 %v5274, %v5273
  %v5320 = vpack.c.bf16 %v5276, %v5275
  %v5321 = vpack.c.bf16 %v5278, %v5277
  %v5322 = vpack.c.bf16 %v5280, %v5279
  %v5323 = vpack.c.bf16 %v5282, %v5281
  %v5324 = vpack.c.bf16 %v5284, %v5283
  %v5325 = vpack.c.bf16 %v5286, %v5285
  %v5326 = vpack.c.bf16 %v5288, %v5287
  %v5327 = vpack.c.bf16 %v5290, %v5289
  %v5328 = vpack.c.bf16 %v5292, %v5291
  %v5329 = vpack.c.bf16 %v5294, %v5293
  %v5330 = vpack.c.bf16 %v5296, %v5295
  %v5331 = vpack.c.bf16 %v5298, %v5297
  %v5332 = vpack.c.bf16 %v5300, %v5299
  %v5333 = vpack.c.bf16 %v5302, %v5301
  %v5334 = vpack.c.bf16 %v5304, %v5303
  %v5335 = vpack.c.bf16 %v5306, %v5305
  %v5336 = vpack.c.bf16 %v5308, %v5307
  %v5337 = vpack.c.bf16 %v5310, %v5309
  %v5338 = vpack.c.bf16 %v5311, %v5311
  %s5339 = scalar_lea.vmem %s3, 256
  %v5340 = vld [vmem:[%s5339] sm:$0xf]
  %v5341 = vld [vmem:[%s5339 + $0x4] sm:$0xf]
  %v5342 = vld [vmem:[%s5339 + $0x8] sm:$0xf]
  %v5343 = vld [vmem:[%s5339 + $0xc] sm:$0xf]
  %v5344 = vld [vmem:[%s5339 + $0x10] sm:$0xf]
  %v5345 = vld [vmem:[%s5339 + $0x14] sm:$0xf]
  %v5346 = vld [vmem:[%s5339 + $0x18] sm:$0xf]
  %v5347 = vld [vmem:[%s5339 + $0x1c] sm:$0xf]
  %v5348 = vld [vmem:[%s5339 + $0x20] sm:$0xf]
  %v5349 = vld [vmem:[%s5339 + $0x24] sm:$0xf]
  %v5350 = vld [vmem:[%s5339 + $0x28] sm:$0xf]
  %v5351 = vld [vmem:[%s5339 + $0x2c] sm:$0xf]
  %v5352 = vld [vmem:[%s5339 + $0x30] sm:$0xf]
  %v5353 = vld [vmem:[%s5339 + $0x34] sm:$0xf]
  %v5354 = vld [vmem:[%s5339 + $0x38] sm:$0xf]
  %v5355 = vld [vmem:[%s5339 + $0x3c] sm:$0xf]
  %v5372 = vunpack.c.l.b16 %v5340
  %v5373 = vunpack.c.l.b16 %v5341
  %v5374 = vunpack.c.l.b16 %v5342
  %v5375 = vunpack.c.l.b16 %v5343
  %v5376 = vunpack.c.l.b16 %v5344
  %v5377 = vunpack.c.l.b16 %v5345
  %v5378 = vunpack.c.l.b16 %v5346
  %v5379 = vunpack.c.l.b16 %v5347
  %v5380 = vunpack.c.l.b16 %v5348
  %v5381 = vunpack.c.l.b16 %v5349
  %v5382 = vunpack.c.l.b16 %v5350
  %v5383 = vunpack.c.l.b16 %v5351
  %v5384 = vunpack.c.l.b16 %v5352
  %v5385 = vunpack.c.l.b16 %v5353
  %v5386 = vunpack.c.l.b16 %v5354
  %v5387 = vunpack.c.l.b16 %v5355
  %v5388 = vpack.c.b16 %v5373, %v5372
  %v5389 = vpack.c.b16 %v5375, %v5374
  %v5390 = vpack.c.b16 %v5377, %v5376
  %v5391 = vpack.c.b16 %v5379, %v5378
  %v5392 = vpack.c.b16 %v5381, %v5380
  %v5393 = vpack.c.b16 %v5383, %v5382
  %v5394 = vpack.c.b16 %v5385, %v5384
  %v5395 = vpack.c.b16 %v5387, %v5386
  %5404 = vmatpush.bf16.msra.mxu0 %v5395
  %5405 = vmatpush.bf16.msra.mxu0 %v5394
  %5406 = vmatpush.bf16.msra.mxu0 %v5393
  %5407 = vmatpush.bf16.msra.mxu0 %v5392
  %5408 = vmatpush.bf16.msra.mxu0 %v5391
  %5409 = vmatpush.bf16.msra.mxu0 %v5390
  %5410 = vmatpush.bf16.msra.mxu0 %v5389
  %5411 = vmatpush.bf16.msra.mxu0 %v5388
  %5412 = vmatmul.bf16.gmra.mxu0 %v5312
  %v5413 = vpop.f32.mrf.mxu0
  %v5414 = vadd.f32 0.0, %v5413
  %v5415 = vpop.f32.mrf.mxu0
  %v5416 = vadd.f32 0.0, %v5415
  %5417 = vmatmul.bf16.gmra.mxu0 %v5313
  %v5418 = vpop.f32.mrf.mxu0
  %v5419 = vadd.f32 0.0, %v5418
  %v5420 = vpop.f32.mrf.mxu0
  %v5421 = vadd.f32 0.0, %v5420
  %5422 = vmatmul.bf16.gmra.mxu0 %v5314
  %v5423 = vpop.f32.mrf.mxu0
  %v5424 = vadd.f32 0.0, %v5423
  %v5425 = vpop.f32.mrf.mxu0
  %v5426 = vadd.f32 0.0, %v5425
  %5427 = vmatmul.bf16.gmra.mxu0 %v5315
  %v5428 = vpop.f32.mrf.mxu0
  %v5429 = vadd.f32 0.0, %v5428
  %v5430 = vpop.f32.mrf.mxu0
  %v5431 = vadd.f32 0.0, %v5430
  %5432 = vmatmul.bf16.gmra.mxu0 %v5316
  %v5433 = vpop.f32.mrf.mxu0
  %v5434 = vadd.f32 0.0, %v5433
  %v5435 = vpop.f32.mrf.mxu0
  %v5436 = vadd.f32 0.0, %v5435
  %5437 = vmatmul.bf16.gmra.mxu0 %v5317
  %v5438 = vpop.f32.mrf.mxu0
  %v5439 = vadd.f32 0.0, %v5438
  %v5440 = vpop.f32.mrf.mxu0
  %v5441 = vadd.f32 0.0, %v5440
  %5442 = vmatmul.bf16.gmra.mxu0 %v5318
  %v5443 = vpop.f32.mrf.mxu0
  %v5444 = vadd.f32 0.0, %v5443
  %v5445 = vpop.f32.mrf.mxu0
  %v5446 = vadd.f32 0.0, %v5445
  %5447 = vmatmul.bf16.gmra.mxu0 %v5319
  %v5448 = vpop.f32.mrf.mxu0
  %v5449 = vadd.f32 0.0, %v5448
  %v5450 = vpop.f32.mrf.mxu0
  %v5451 = vadd.f32 0.0, %v5450
  %5452 = vmatmul.bf16.gmra.mxu0 %v5320
  %v5453 = vpop.f32.mrf.mxu0
  %v5454 = vadd.f32 0.0, %v5453
  %v5455 = vpop.f32.mrf.mxu0
  %v5456 = vadd.f32 0.0, %v5455
  %5457 = vmatmul.bf16.gmra.mxu0 %v5321
  %v5458 = vpop.f32.mrf.mxu0
  %v5459 = vadd.f32 0.0, %v5458
  %v5460 = vpop.f32.mrf.mxu0
  %v5461 = vadd.f32 0.0, %v5460
  %5462 = vmatmul.bf16.gmra.mxu0 %v5322
  %v5463 = vpop.f32.mrf.mxu0
  %v5464 = vadd.f32 0.0, %v5463
  %v5465 = vpop.f32.mrf.mxu0
  %v5466 = vadd.f32 0.0, %v5465
  %5467 = vmatmul.bf16.gmra.mxu0 %v5323
  %v5468 = vpop.f32.mrf.mxu0
  %v5469 = vadd.f32 0.0, %v5468
  %v5470 = vpop.f32.mrf.mxu0
  %v5471 = vadd.f32 0.0, %v5470
  %5472 = vmatmul.bf16.gmra.mxu0 %v5324
  %v5473 = vpop.f32.mrf.mxu0
  %v5474 = vadd.f32 0.0, %v5473
  %v5475 = vpop.f32.mrf.mxu0
  %v5476 = vadd.f32 0.0, %v5475
  %5477 = vmatmul.bf16.gmra.mxu0 %v5325
  %v5478 = vpop.f32.mrf.mxu0
  %v5479 = vadd.f32 0.0, %v5478
  %v5480 = vpop.f32.mrf.mxu0
  %v5481 = vadd.f32 0.0, %v5480
  %5482 = vmatmul.bf16.gmra.mxu0 %v5326
  %v5483 = vpop.f32.mrf.mxu0
  %v5484 = vadd.f32 0.0, %v5483
  %v5485 = vpop.f32.mrf.mxu0
  %v5486 = vadd.f32 0.0, %v5485
  %5487 = vmatmul.bf16.gmra.mxu0 %v5327
  %v5488 = vpop.f32.mrf.mxu0
  %v5489 = vadd.f32 0.0, %v5488
  %v5490 = vpop.f32.mrf.mxu0
  %v5491 = vadd.f32 0.0, %v5490
  %5492 = vmatmul.bf16.gmra.mxu0 %v5328
  %v5493 = vpop.f32.mrf.mxu0
  %v5494 = vadd.f32 0.0, %v5493
  %v5495 = vpop.f32.mrf.mxu0
  %v5496 = vadd.f32 0.0, %v5495
  %5497 = vmatmul.bf16.gmra.mxu0 %v5329
  %v5498 = vpop.f32.mrf.mxu0
  %v5499 = vadd.f32 0.0, %v5498
  %v5500 = vpop.f32.mrf.mxu0
  %v5501 = vadd.f32 0.0, %v5500
  %5502 = vmatmul.bf16.gmra.mxu0 %v5330
  %v5503 = vpop.f32.mrf.mxu0
  %v5504 = vadd.f32 0.0, %v5503
  %v5505 = vpop.f32.mrf.mxu0
  %v5506 = vadd.f32 0.0, %v5505
  %5507 = vmatmul.bf16.gmra.mxu0 %v5331
  %v5508 = vpop.f32.mrf.mxu0
  %v5509 = vadd.f32 0.0, %v5508
  %v5510 = vpop.f32.mrf.mxu0
  %v5511 = vadd.f32 0.0, %v5510
  %5512 = vmatmul.bf16.gmra.mxu0 %v5332
  %v5513 = vpop.f32.mrf.mxu0
  %v5514 = vadd.f32 0.0, %v5513
  %v5515 = vpop.f32.mrf.mxu0
  %v5516 = vadd.f32 0.0, %v5515
  %5517 = vmatmul.bf16.gmra.mxu0 %v5333
  %v5518 = vpop.f32.mrf.mxu0
  %v5519 = vadd.f32 0.0, %v5518
  %v5520 = vpop.f32.mrf.mxu0
  %v5521 = vadd.f32 0.0, %v5520
  %5522 = vmatmul.bf16.gmra.mxu0 %v5334
  %v5523 = vpop.f32.mrf.mxu0
  %v5524 = vadd.f32 0.0, %v5523
  %v5525 = vpop.f32.mrf.mxu0
  %v5526 = vadd.f32 0.0, %v5525
  %5527 = vmatmul.bf16.gmra.mxu0 %v5335
  %v5528 = vpop.f32.mrf.mxu0
  %v5529 = vadd.f32 0.0, %v5528
  %v5530 = vpop.f32.mrf.mxu0
  %v5531 = vadd.f32 0.0, %v5530
  %5532 = vmatmul.bf16.gmra.mxu0 %v5336
  %v5533 = vpop.f32.mrf.mxu0
  %v5534 = vadd.f32 0.0, %v5533
  %v5535 = vpop.f32.mrf.mxu0
  %v5536 = vadd.f32 0.0, %v5535
  %5537 = vmatmul.bf16.gmra.mxu0 %v5337
  %v5538 = vpop.f32.mrf.mxu0
  %v5539 = vadd.f32 0.0, %v5538
  %v5540 = vpop.f32.mrf.mxu0
  %v5541 = vadd.f32 0.0, %v5540
  %5542 = vmatmul.bf16.gmra.mxu0 %v5338
  %v5543 = vpop.f32.mrf.mxu0
  %v5544 = vadd.f32 0.0, %v5543
  %v5545 = vpop.f32.mrf.mxu0
  %5546 = vdwg.mxu0
  %v5547 = vadd.f32 %v5206, %v5414
  %v5548 = vadd.f32 %v5207, %v5416
  %v5549 = vadd.f32 %v5208, %v5419
  %v5550 = vadd.f32 %v5209, %v5421
  %v5551 = vadd.f32 %v5210, %v5424
  %v5552 = vadd.f32 %v5211, %v5426
  %v5553 = vadd.f32 %v5212, %v5429
  %v5554 = vadd.f32 %v5213, %v5431
  %v5555 = vadd.f32 %v5214, %v5434
  %v5556 = vadd.f32 %v5215, %v5436
  %v5557 = vadd.f32 %v5216, %v5439
  %v5558 = vadd.f32 %v5217, %v5441
  %v5559 = vadd.f32 %v5218, %v5444
  %v5560 = vadd.f32 %v5219, %v5446
  %v5561 = vadd.f32 %v5220, %v5449
  %v5562 = vadd.f32 %v5221, %v5451
  %v5563 = vadd.f32 %v5222, %v5454
  %v5564 = vadd.f32 %v5223, %v5456
  %v5565 = vadd.f32 %v5224, %v5459
  %v5566 = vadd.f32 %v5225, %v5461
  %v5567 = vadd.f32 %v5226, %v5464
  %v5568 = vadd.f32 %v5227, %v5466
  %v5569 = vadd.f32 %v5228, %v5469
  %v5570 = vadd.f32 %v5229, %v5471
  %v5571 = vadd.f32 %v5230, %v5474
  %v5572 = vadd.f32 %v5231, %v5476
  %v5573 = vadd.f32 %v5232, %v5479
  %v5574 = vadd.f32 %v5233, %v5481
  %v5575 = vadd.f32 %v5234, %v5484
  %v5576 = vadd.f32 %v5235, %v5486
  %v5577 = vadd.f32 %v5236, %v5489
  %v5578 = vadd.f32 %v5237, %v5491
  %v5579 = vadd.f32 %v5238, %v5494
  %v5580 = vadd.f32 %v5239, %v5496
  %v5581 = vadd.f32 %v5240, %v5499
  %v5582 = vadd.f32 %v5241, %v5501
  %v5583 = vadd.f32 %v5242, %v5504
  %v5584 = vadd.f32 %v5243, %v5506
  %v5585 = vadd.f32 %v5244, %v5509
  %v5586 = vadd.f32 %v5245, %v5511
  %v5587 = vadd.f32 %v5246, %v5514
  %v5588 = vadd.f32 %v5247, %v5516
  %v5589 = vadd.f32 %v5248, %v5519
  %v5590 = vadd.f32 %v5249, %v5521
  %v5591 = vadd.f32 %v5250, %v5524
  %v5592 = vadd.f32 %v5251, %v5526
  %v5593 = vadd.f32 %v5252, %v5529
  %v5594 = vadd.f32 %v5253, %v5531
  %v5595 = vadd.f32 %v5254, %v5534
  %v5596 = vadd.f32 %v5255, %v5536
  %v5597 = vadd.f32 %v5256, %v5539
  %v5598 = vadd.f32 %v5257, %v5541
  %v5599 = vadd.f32 %v5258, %v5544
  %v5600 = vld [vmem:[#allocation4 + $0x11] sm:$0xff]
  %v5601 = vld [vmem:[#allocation4 + $0x19] sm:$0xff]
  %v5602 = vld [vmem:[#allocation4 + $0x21] sm:$0xff]
  %v5603 = vld [vmem:[#allocation4 + $0x29] sm:$0xff]
  %v5604 = vld [vmem:[#allocation4 + $0x31] sm:$0xff]
  %v5605 = vld [vmem:[#allocation4 + $0x39] sm:$0xff]
  %v5606 = vld [vmem:[#allocation4 + $0x41] sm:$0xff]
  %v5607 = vld [vmem:[#allocation4 + $0x49] sm:$0xff]
  %v5608 = vld [vmem:[#allocation4 + $0x51] sm:$0xff]
  %v5609 = vld [vmem:[#allocation4 + $0x59] sm:$0xff]
  %v5610 = vld [vmem:[#allocation4 + $0x61] sm:$0xff]
  %v5611 = vld [vmem:[#allocation4 + $0x69] sm:$0xff]
  %v5612 = vld [vmem:[#allocation4 + $0x71] sm:$0xff]
  %v5613 = vld [vmem:[#allocation4 + $0x79] sm:$0xff]
  %v5614 = vld [vmem:[#allocation4 + $0x81] sm:$0xff]
  %v5615 = vld [vmem:[#allocation4 + $0x89] sm:$0xff]
  %v5616 = vld [vmem:[#allocation4 + $0x91] sm:$0xff]
  %v5617 = vld [vmem:[#allocation4 + $0x99] sm:$0xff]
  %v5618 = vld [vmem:[#allocation4 + $0xa1] sm:$0xff]
  %v5619 = vld [vmem:[#allocation4 + $0xa9] sm:$0xff]
  %v5620 = vld [vmem:[#allocation4 + $0xb1] sm:$0xff]
  %v5621 = vld [vmem:[#allocation4 + $0xb9] sm:$0xff]
  %v5622 = vld [vmem:[#allocation4 + $0xc1] sm:$0xff]
  %v5623 = vld [vmem:[#allocation4 + $0xc9] sm:$0xff]
  %v5624 = vld [vmem:[#allocation4 + $0xd1] sm:$0xff]
  %v5625 = vld [vmem:[#allocation4 + $0xd9] sm:$0xff]
  %v5626 = vld [vmem:[#allocation4 + $0xe1] sm:$0xff]
  %v5627 = vld [vmem:[#allocation4 + $0xe9] sm:$0xff]
  %v5628 = vld [vmem:[#allocation4 + $0xf1] sm:$0xff]
  %v5629 = vld [vmem:[#allocation4 + $0xf9] sm:$0xff]
  %v5630 = vld [vmem:[#allocation4 + $0x101] sm:$0xff]
  %v5631 = vld [vmem:[#allocation4 + $0x109] sm:$0xff]
  %v5632 = vld [vmem:[#allocation4 + $0x111] sm:$0xff]
  %v5633 = vld [vmem:[#allocation4 + $0x119] sm:$0xff]
  %v5634 = vld [vmem:[#allocation4 + $0x121] sm:$0xff]
  %v5635 = vld [vmem:[#allocation4 + $0x129] sm:$0xff]
  %v5636 = vld [vmem:[#allocation4 + $0x131] sm:$0xff]
  %v5637 = vld [vmem:[#allocation4 + $0x139] sm:$0xff]
  %v5638 = vld [vmem:[#allocation4 + $0x141] sm:$0xff]
  %v5639 = vld [vmem:[#allocation4 + $0x149] sm:$0xff]
  %v5640 = vld [vmem:[#allocation4 + $0x151] sm:$0xff]
  %v5641 = vld [vmem:[#allocation4 + $0x159] sm:$0xff]
  %v5642 = vld [vmem:[#allocation4 + $0x161] sm:$0xff]
  %v5643 = vld [vmem:[#allocation4 + $0x169] sm:$0xff]
  %v5644 = vld [vmem:[#allocation4 + $0x171] sm:$0xff]
  %v5645 = vld [vmem:[#allocation4 + $0x179] sm:$0xff]
  %v5646 = vld [vmem:[#allocation4 + $0x181] sm:$0xff]
  %v5647 = vld [vmem:[#allocation4 + $0x189] sm:$0xff]
  %v5648 = vld [vmem:[#allocation4 + $0x191] sm:$0xff]
  %v5649 = vld [vmem:[#allocation4 + $0x199] sm:$0xff]
  %v5650 = vld [vmem:[#allocation4 + $0x1a1] sm:$0xff]
  %v5651 = vld [vmem:[#allocation4 + $0x1a9] sm:$0xff]
  %v5652 = vld [vmem:[#allocation4 + $0x1b1] sm:$0x3]
  %v5653 = vpack.c.bf16 %v5601, %v5600
  %v5654 = vpack.c.bf16 %v5603, %v5602
  %v5655 = vpack.c.bf16 %v5605, %v5604
  %v5656 = vpack.c.bf16 %v5607, %v5606
  %v5657 = vpack.c.bf16 %v5609, %v5608
  %v5658 = vpack.c.bf16 %v5611, %v5610
  %v5659 = vpack.c.bf16 %v5613, %v5612
  %v5660 = vpack.c.bf16 %v5615, %v5614
  %v5661 = vpack.c.bf16 %v5617, %v5616
  %v5662 = vpack.c.bf16 %v5619, %v5618
  %v5663 = vpack.c.bf16 %v5621, %v5620
  %v5664 = vpack.c.bf16 %v5623, %v5622
  %v5665 = vpack.c.bf16 %v5625, %v5624
  %v5666 = vpack.c.bf16 %v5627, %v5626
  %v5667 = vpack.c.bf16 %v5629, %v5628
  %v5668 = vpack.c.bf16 %v5631, %v5630
  %v5669 = vpack.c.bf16 %v5633, %v5632
  %v5670 = vpack.c.bf16 %v5635, %v5634
  %v5671 = vpack.c.bf16 %v5637, %v5636
  %v5672 = vpack.c.bf16 %v5639, %v5638
  %v5673 = vpack.c.bf16 %v5641, %v5640
  %v5674 = vpack.c.bf16 %v5643, %v5642
  %v5675 = vpack.c.bf16 %v5645, %v5644
  %v5676 = vpack.c.bf16 %v5647, %v5646
  %v5677 = vpack.c.bf16 %v5649, %v5648
  %v5678 = vpack.c.bf16 %v5651, %v5650
  %v5679 = vpack.c.bf16 %v5652, %v5652
  %s5680 = scalar_lea.vmem %s3, 320
  %v5681 = vld [vmem:[%s5680] sm:$0xf]
  %v5682 = vld [vmem:[%s5680 + $0x4] sm:$0xf]
  %v5683 = vld [vmem:[%s5680 + $0x8] sm:$0xf]
  %v5684 = vld [vmem:[%s5680 + $0xc] sm:$0xf]
  %v5685 = vld [vmem:[%s5680 + $0x10] sm:$0xf]
  %v5686 = vld [vmem:[%s5680 + $0x14] sm:$0xf]
  %v5687 = vld [vmem:[%s5680 + $0x18] sm:$0xf]
  %v5688 = vld [vmem:[%s5680 + $0x1c] sm:$0xf]
  %v5689 = vld [vmem:[%s5680 + $0x20] sm:$0xf]
  %v5690 = vld [vmem:[%s5680 + $0x24] sm:$0xf]
  %v5691 = vld [vmem:[%s5680 + $0x28] sm:$0xf]
  %v5692 = vld [vmem:[%s5680 + $0x2c] sm:$0xf]
  %v5693 = vld [vmem:[%s5680 + $0x30] sm:$0xf]
  %v5694 = vld [vmem:[%s5680 + $0x34] sm:$0xf]
  %v5695 = vld [vmem:[%s5680 + $0x38] sm:$0xf]
  %v5696 = vld [vmem:[%s5680 + $0x3c] sm:$0xf]
  %v5713 = vunpack.c.l.b16 %v5681
  %v5714 = vunpack.c.l.b16 %v5682
  %v5715 = vunpack.c.l.b16 %v5683
  %v5716 = vunpack.c.l.b16 %v5684
  %v5717 = vunpack.c.l.b16 %v5685
  %v5718 = vunpack.c.l.b16 %v5686
  %v5719 = vunpack.c.l.b16 %v5687
  %v5720 = vunpack.c.l.b16 %v5688
  %v5721 = vunpack.c.l.b16 %v5689
  %v5722 = vunpack.c.l.b16 %v5690
  %v5723 = vunpack.c.l.b16 %v5691
  %v5724 = vunpack.c.l.b16 %v5692
  %v5725 = vunpack.c.l.b16 %v5693
  %v5726 = vunpack.c.l.b16 %v5694
  %v5727 = vunpack.c.l.b16 %v5695
  %v5728 = vunpack.c.l.b16 %v5696
  %v5729 = vpack.c.b16 %v5714, %v5713
  %v5730 = vpack.c.b16 %v5716, %v5715
  %v5731 = vpack.c.b16 %v5718, %v5717
  %v5732 = vpack.c.b16 %v5720, %v5719
  %v5733 = vpack.c.b16 %v5722, %v5721
  %v5734 = vpack.c.b16 %v5724, %v5723
  %v5735 = vpack.c.b16 %v5726, %v5725
  %v5736 = vpack.c.b16 %v5728, %v5727
  %5745 = vmatpush.bf16.msra.mxu0 %v5736
  %5746 = vmatpush.bf16.msra.mxu0 %v5735
  %5747 = vmatpush.bf16.msra.mxu0 %v5734
  %5748 = vmatpush.bf16.msra.mxu0 %v5733
  %5749 = vmatpush.bf16.msra.mxu0 %v5732
  %5750 = vmatpush.bf16.msra.mxu0 %v5731
  %5751 = vmatpush.bf16.msra.mxu0 %v5730
  %5752 = vmatpush.bf16.msra.mxu0 %v5729
  %5753 = vmatmul.bf16.gmra.mxu0 %v5653
  %v5754 = vpop.f32.mrf.mxu0
  %v5755 = vadd.f32 0.0, %v5754
  %v5756 = vpop.f32.mrf.mxu0
  %v5757 = vadd.f32 0.0, %v5756
  %5758 = vmatmul.bf16.gmra.mxu0 %v5654
  %v5759 = vpop.f32.mrf.mxu0
  %v5760 = vadd.f32 0.0, %v5759
  %v5761 = vpop.f32.mrf.mxu0
  %v5762 = vadd.f32 0.0, %v5761
  %5763 = vmatmul.bf16.gmra.mxu0 %v5655
  %v5764 = vpop.f32.mrf.mxu0
  %v5765 = vadd.f32 0.0, %v5764
  %v5766 = vpop.f32.mrf.mxu0
  %v5767 = vadd.f32 0.0, %v5766
  %5768 = vmatmul.bf16.gmra.mxu0 %v5656
  %v5769 = vpop.f32.mrf.mxu0
  %v5770 = vadd.f32 0.0, %v5769
  %v5771 = vpop.f32.mrf.mxu0
  %v5772 = vadd.f32 0.0, %v5771
  %5773 = vmatmul.bf16.gmra.mxu0 %v5657
  %v5774 = vpop.f32.mrf.mxu0
  %v5775 = vadd.f32 0.0, %v5774
  %v5776 = vpop.f32.mrf.mxu0
  %v5777 = vadd.f32 0.0, %v5776
  %5778 = vmatmul.bf16.gmra.mxu0 %v5658
  %v5779 = vpop.f32.mrf.mxu0
  %v5780 = vadd.f32 0.0, %v5779
  %v5781 = vpop.f32.mrf.mxu0
  %v5782 = vadd.f32 0.0, %v5781
  %5783 = vmatmul.bf16.gmra.mxu0 %v5659
  %v5784 = vpop.f32.mrf.mxu0
  %v5785 = vadd.f32 0.0, %v5784
  %v5786 = vpop.f32.mrf.mxu0
  %v5787 = vadd.f32 0.0, %v5786
  %5788 = vmatmul.bf16.gmra.mxu0 %v5660
  %v5789 = vpop.f32.mrf.mxu0
  %v5790 = vadd.f32 0.0, %v5789
  %v5791 = vpop.f32.mrf.mxu0
  %v5792 = vadd.f32 0.0, %v5791
  %5793 = vmatmul.bf16.gmra.mxu0 %v5661
  %v5794 = vpop.f32.mrf.mxu0
  %v5795 = vadd.f32 0.0, %v5794
  %v5796 = vpop.f32.mrf.mxu0
  %v5797 = vadd.f32 0.0, %v5796
  %5798 = vmatmul.bf16.gmra.mxu0 %v5662
  %v5799 = vpop.f32.mrf.mxu0
  %v5800 = vadd.f32 0.0, %v5799
  %v5801 = vpop.f32.mrf.mxu0
  %v5802 = vadd.f32 0.0, %v5801
  %5803 = vmatmul.bf16.gmra.mxu0 %v5663
  %v5804 = vpop.f32.mrf.mxu0
  %v5805 = vadd.f32 0.0, %v5804
  %v5806 = vpop.f32.mrf.mxu0
  %v5807 = vadd.f32 0.0, %v5806
  %5808 = vmatmul.bf16.gmra.mxu0 %v5664
  %v5809 = vpop.f32.mrf.mxu0
  %v5810 = vadd.f32 0.0, %v5809
  %v5811 = vpop.f32.mrf.mxu0
  %v5812 = vadd.f32 0.0, %v5811
  %5813 = vmatmul.bf16.gmra.mxu0 %v5665
  %v5814 = vpop.f32.mrf.mxu0
  %v5815 = vadd.f32 0.0, %v5814
  %v5816 = vpop.f32.mrf.mxu0
  %v5817 = vadd.f32 0.0, %v5816
  %5818 = vmatmul.bf16.gmra.mxu0 %v5666
  %v5819 = vpop.f32.mrf.mxu0
  %v5820 = vadd.f32 0.0, %v5819
  %v5821 = vpop.f32.mrf.mxu0
  %v5822 = vadd.f32 0.0, %v5821
  %5823 = vmatmul.bf16.gmra.mxu0 %v5667
  %v5824 = vpop.f32.mrf.mxu0
  %v5825 = vadd.f32 0.0, %v5824
  %v5826 = vpop.f32.mrf.mxu0
  %v5827 = vadd.f32 0.0, %v5826
  %5828 = vmatmul.bf16.gmra.mxu0 %v5668
  %v5829 = vpop.f32.mrf.mxu0
  %v5830 = vadd.f32 0.0, %v5829
  %v5831 = vpop.f32.mrf.mxu0
  %v5832 = vadd.f32 0.0, %v5831
  %5833 = vmatmul.bf16.gmra.mxu0 %v5669
  %v5834 = vpop.f32.mrf.mxu0
  %v5835 = vadd.f32 0.0, %v5834
  %v5836 = vpop.f32.mrf.mxu0
  %v5837 = vadd.f32 0.0, %v5836
  %5838 = vmatmul.bf16.gmra.mxu0 %v5670
  %v5839 = vpop.f32.mrf.mxu0
  %v5840 = vadd.f32 0.0, %v5839
  %v5841 = vpop.f32.mrf.mxu0
  %v5842 = vadd.f32 0.0, %v5841
  %5843 = vmatmul.bf16.gmra.mxu0 %v5671
  %v5844 = vpop.f32.mrf.mxu0
  %v5845 = vadd.f32 0.0, %v5844
  %v5846 = vpop.f32.mrf.mxu0
  %v5847 = vadd.f32 0.0, %v5846
  %5848 = vmatmul.bf16.gmra.mxu0 %v5672
  %v5849 = vpop.f32.mrf.mxu0
  %v5850 = vadd.f32 0.0, %v5849
  %v5851 = vpop.f32.mrf.mxu0
  %v5852 = vadd.f32 0.0, %v5851
  %5853 = vmatmul.bf16.gmra.mxu0 %v5673
  %v5854 = vpop.f32.mrf.mxu0
  %v5855 = vadd.f32 0.0, %v5854
  %v5856 = vpop.f32.mrf.mxu0
  %v5857 = vadd.f32 0.0, %v5856
  %5858 = vmatmul.bf16.gmra.mxu0 %v5674
  %v5859 = vpop.f32.mrf.mxu0
  %v5860 = vadd.f32 0.0, %v5859
  %v5861 = vpop.f32.mrf.mxu0
  %v5862 = vadd.f32 0.0, %v5861
  %5863 = vmatmul.bf16.gmra.mxu0 %v5675
  %v5864 = vpop.f32.mrf.mxu0
  %v5865 = vadd.f32 0.0, %v5864
  %v5866 = vpop.f32.mrf.mxu0
  %v5867 = vadd.f32 0.0, %v5866
  %5868 = vmatmul.bf16.gmra.mxu0 %v5676
  %v5869 = vpop.f32.mrf.mxu0
  %v5870 = vadd.f32 0.0, %v5869
  %v5871 = vpop.f32.mrf.mxu0
  %v5872 = vadd.f32 0.0, %v5871
  %5873 = vmatmul.bf16.gmra.mxu0 %v5677
  %v5874 = vpop.f32.mrf.mxu0
  %v5875 = vadd.f32 0.0, %v5874
  %v5876 = vpop.f32.mrf.mxu0
  %v5877 = vadd.f32 0.0, %v5876
  %5878 = vmatmul.bf16.gmra.mxu0 %v5678
  %v5879 = vpop.f32.mrf.mxu0
  %v5880 = vadd.f32 0.0, %v5879
  %v5881 = vpop.f32.mrf.mxu0
  %v5882 = vadd.f32 0.0, %v5881
  %5883 = vmatmul.bf16.gmra.mxu0 %v5679
  %v5884 = vpop.f32.mrf.mxu0
  %v5885 = vadd.f32 0.0, %v5884
  %v5886 = vpop.f32.mrf.mxu0
  %5887 = vdwg.mxu0
  %v5888 = vadd.f32 %v5547, %v5755
  %v5889 = vadd.f32 %v5548, %v5757
  %v5890 = vadd.f32 %v5549, %v5760
  %v5891 = vadd.f32 %v5550, %v5762
  %v5892 = vadd.f32 %v5551, %v5765
  %v5893 = vadd.f32 %v5552, %v5767
  %v5894 = vadd.f32 %v5553, %v5770
  %v5895 = vadd.f32 %v5554, %v5772
  %v5896 = vadd.f32 %v5555, %v5775
  %v5897 = vadd.f32 %v5556, %v5777
  %v5898 = vadd.f32 %v5557, %v5780
  %v5899 = vadd.f32 %v5558, %v5782
  %v5900 = vadd.f32 %v5559, %v5785
  %v5901 = vadd.f32 %v5560, %v5787
  %v5902 = vadd.f32 %v5561, %v5790
  %v5903 = vadd.f32 %v5562, %v5792
  %v5904 = vadd.f32 %v5563, %v5795
  %v5905 = vadd.f32 %v5564, %v5797
  %v5906 = vadd.f32 %v5565, %v5800
  %v5907 = vadd.f32 %v5566, %v5802
  %v5908 = vadd.f32 %v5567, %v5805
  %v5909 = vadd.f32 %v5568, %v5807
  %v5910 = vadd.f32 %v5569, %v5810
  %v5911 = vadd.f32 %v5570, %v5812
  %v5912 = vadd.f32 %v5571, %v5815
  %v5913 = vadd.f32 %v5572, %v5817
  %v5914 = vadd.f32 %v5573, %v5820
  %v5915 = vadd.f32 %v5574, %v5822
  %v5916 = vadd.f32 %v5575, %v5825
  %v5917 = vadd.f32 %v5576, %v5827
  %v5918 = vadd.f32 %v5577, %v5830
  %v5919 = vadd.f32 %v5578, %v5832
  %v5920 = vadd.f32 %v5579, %v5835
  %v5921 = vadd.f32 %v5580, %v5837
  %v5922 = vadd.f32 %v5581, %v5840
  %v5923 = vadd.f32 %v5582, %v5842
  %v5924 = vadd.f32 %v5583, %v5845
  %v5925 = vadd.f32 %v5584, %v5847
  %v5926 = vadd.f32 %v5585, %v5850
  %v5927 = vadd.f32 %v5586, %v5852
  %v5928 = vadd.f32 %v5587, %v5855
  %v5929 = vadd.f32 %v5588, %v5857
  %v5930 = vadd.f32 %v5589, %v5860
  %v5931 = vadd.f32 %v5590, %v5862
  %v5932 = vadd.f32 %v5591, %v5865
  %v5933 = vadd.f32 %v5592, %v5867
  %v5934 = vadd.f32 %v5593, %v5870
  %v5935 = vadd.f32 %v5594, %v5872
  %v5936 = vadd.f32 %v5595, %v5875
  %v5937 = vadd.f32 %v5596, %v5877
  %v5938 = vadd.f32 %v5597, %v5880
  %v5939 = vadd.f32 %v5598, %v5882
  %v5940 = vadd.f32 %v5599, %v5885
  %v5941 = vld [vmem:[#allocation4 + $0x1e] sm:$0xff]
  %v5942 = vld [vmem:[#allocation4 + $0x26] sm:$0xff]
  %v5943 = vld [vmem:[#allocation4 + $0x2e] sm:$0xff]
  %v5944 = vld [vmem:[#allocation4 + $0x36] sm:$0xff]
  %v5945 = vld [vmem:[#allocation4 + $0x3e] sm:$0xff]
  %v5946 = vld [vmem:[#allocation4 + $0x46] sm:$0xff]
  %v5947 = vld [vmem:[#allocation4 + $0x4e] sm:$0xff]
  %v5948 = vld [vmem:[#allocation4 + $0x56] sm:$0xff]
  %v5949 = vld [vmem:[#allocation4 + $0x5e] sm:$0xff]
  %v5950 = vld [vmem:[#allocation4 + $0x66] sm:$0xff]
  %v5951 = vld [vmem:[#allocation4 + $0x6e] sm:$0xff]
  %v5952 = vld [vmem:[#allocation4 + $0x76] sm:$0xff]
  %v5953 = vld [vmem:[#allocation4 + $0x7e] sm:$0xff]
  %v5954 = vld [vmem:[#allocation4 + $0x86] sm:$0xff]
  %v5955 = vld [vmem:[#allocation4 + $0x8e] sm:$0xff]
  %v5956 = vld [vmem:[#allocation4 + $0x96] sm:$0xff]
  %v5957 = vld [vmem:[#allocation4 + $0x9e] sm:$0xff]
  %v5958 = vld [vmem:[#allocation4 + $0xa6] sm:$0xff]
  %v5959 = vld [vmem:[#allocation4 + $0xae] sm:$0xff]
  %v5960 = vld [vmem:[#allocation4 + $0xb6] sm:$0xff]
  %v5961 = vld [vmem:[#allocation4 + $0xbe] sm:$0xff]
  %v5962 = vld [vmem:[#allocation4 + $0xc6] sm:$0xff]
  %v5963 = vld [vmem:[#allocation4 + $0xce] sm:$0xff]
  %v5964 = vld [vmem:[#allocation4 + $0xd6] sm:$0xff]
  %v5965 = vld [vmem:[#allocation4 + $0xde] sm:$0xff]
  %v5966 = vld [vmem:[#allocation4 + $0xe6] sm:$0xff]
  %v5967 = vld [vmem:[#allocation4 + $0xee] sm:$0xff]
  %v5968 = vld [vmem:[#allocation4 + $0xf6] sm:$0xff]
  %v5969 = vld [vmem:[#allocation4 + $0xfe] sm:$0xff]
  %v5970 = vld [vmem:[#allocation4 + $0x106] sm:$0xff]
  %v5971 = vld [vmem:[#allocation4 + $0x10e] sm:$0xff]
  %v5972 = vld [vmem:[#allocation4 + $0x116] sm:$0xff]
  %v5973 = vld [vmem:[#allocation4 + $0x11e] sm:$0xff]
  %v5974 = vld [vmem:[#allocation4 + $0x126] sm:$0xff]
  %v5975 = vld [vmem:[#allocation4 + $0x12e] sm:$0xff]
  %v5976 = vld [vmem:[#allocation4 + $0x136] sm:$0xff]
  %v5977 = vld [vmem:[#allocation4 + $0x13e] sm:$0xff]
  %v5978 = vld [vmem:[#allocation4 + $0x146] sm:$0xff]
  %v5979 = vld [vmem:[#allocation4 + $0x14e] sm:$0xff]
  %v5980 = vld [vmem:[#allocation4 + $0x156] sm:$0xff]
  %v5981 = vld [vmem:[#allocation4 + $0x15e] sm:$0xff]
  %v5982 = vld [vmem:[#allocation4 + $0x166] sm:$0xff]
  %v5983 = vld [vmem:[#allocation4 + $0x16e] sm:$0xff]
  %v5984 = vld [vmem:[#allocation4 + $0x176] sm:$0xff]
  %v5985 = vld [vmem:[#allocation4 + $0x17e] sm:$0xff]
  %v5986 = vld [vmem:[#allocation4 + $0x186] sm:$0xff]
  %v5987 = vld [vmem:[#allocation4 + $0x18e] sm:$0xff]
  %v5988 = vld [vmem:[#allocation4 + $0x196] sm:$0xff]
  %v5989 = vld [vmem:[#allocation4 + $0x19e] sm:$0xff]
  %v5990 = vld [vmem:[#allocation4 + $0x1a6] sm:$0xff]
  %v5991 = vld [vmem:[#allocation4 + $0x1ae] sm:$0xff]
  %v5992 = vld [vmem:[#allocation4 + $0x1b6] sm:$0xff]
  %v5993 = vld [vmem:[#allocation4 + $0x1be] sm:$0x3]
  %v5994 = vpack.c.bf16 %v5942, %v5941
  %v5995 = vpack.c.bf16 %v5944, %v5943
  %v5996 = vpack.c.bf16 %v5946, %v5945
  %v5997 = vpack.c.bf16 %v5948, %v5947
  %v5998 = vpack.c.bf16 %v5950, %v5949
  %v5999 = vpack.c.bf16 %v5952, %v5951
  %v6000 = vpack.c.bf16 %v5954, %v5953
  %v6001 = vpack.c.bf16 %v5956, %v5955
  %v6002 = vpack.c.bf16 %v5958, %v5957
  %v6003 = vpack.c.bf16 %v5960, %v5959
  %v6004 = vpack.c.bf16 %v5962, %v5961
  %v6005 = vpack.c.bf16 %v5964, %v5963
  %v6006 = vpack.c.bf16 %v5966, %v5965
  %v6007 = vpack.c.bf16 %v5968, %v5967
  %v6008 = vpack.c.bf16 %v5970, %v5969
  %v6009 = vpack.c.bf16 %v5972, %v5971
  %v6010 = vpack.c.bf16 %v5974, %v5973
  %v6011 = vpack.c.bf16 %v5976, %v5975
  %v6012 = vpack.c.bf16 %v5978, %v5977
  %v6013 = vpack.c.bf16 %v5980, %v5979
  %v6014 = vpack.c.bf16 %v5982, %v5981
  %v6015 = vpack.c.bf16 %v5984, %v5983
  %v6016 = vpack.c.bf16 %v5986, %v5985
  %v6017 = vpack.c.bf16 %v5988, %v5987
  %v6018 = vpack.c.bf16 %v5990, %v5989
  %v6019 = vpack.c.bf16 %v5992, %v5991
  %v6020 = vpack.c.bf16 %v5993, %v5993
  %s6021 = scalar_lea.vmem %s3, 384
  %v6022 = vld [vmem:[%s6021] sm:$0xf]
  %v6023 = vld [vmem:[%s6021 + $0x4] sm:$0xf]
  %v6024 = vld [vmem:[%s6021 + $0x8] sm:$0xf]
  %v6025 = vld [vmem:[%s6021 + $0xc] sm:$0xf]
  %v6026 = vld [vmem:[%s6021 + $0x10] sm:$0xf]
  %v6027 = vld [vmem:[%s6021 + $0x14] sm:$0xf]
  %v6028 = vld [vmem:[%s6021 + $0x18] sm:$0xf]
  %v6029 = vld [vmem:[%s6021 + $0x1c] sm:$0xf]
  %v6030 = vld [vmem:[%s6021 + $0x20] sm:$0xf]
  %v6031 = vld [vmem:[%s6021 + $0x24] sm:$0xf]
  %v6032 = vld [vmem:[%s6021 + $0x28] sm:$0xf]
  %v6033 = vld [vmem:[%s6021 + $0x2c] sm:$0xf]
  %v6034 = vld [vmem:[%s6021 + $0x30] sm:$0xf]
  %v6035 = vld [vmem:[%s6021 + $0x34] sm:$0xf]
  %v6036 = vld [vmem:[%s6021 + $0x38] sm:$0xf]
  %v6037 = vld [vmem:[%s6021 + $0x3c] sm:$0xf]
  %v6054 = vunpack.c.l.b16 %v6022
  %v6055 = vunpack.c.l.b16 %v6023
  %v6056 = vunpack.c.l.b16 %v6024
  %v6057 = vunpack.c.l.b16 %v6025
  %v6058 = vunpack.c.l.b16 %v6026
  %v6059 = vunpack.c.l.b16 %v6027
  %v6060 = vunpack.c.l.b16 %v6028
  %v6061 = vunpack.c.l.b16 %v6029
  %v6062 = vunpack.c.l.b16 %v6030
  %v6063 = vunpack.c.l.b16 %v6031
  %v6064 = vunpack.c.l.b16 %v6032
  %v6065 = vunpack.c.l.b16 %v6033
  %v6066 = vunpack.c.l.b16 %v6034
  %v6067 = vunpack.c.l.b16 %v6035
  %v6068 = vunpack.c.l.b16 %v6036
  %v6069 = vunpack.c.l.b16 %v6037
  %v6070 = vpack.c.b16 %v6055, %v6054
  %v6071 = vpack.c.b16 %v6057, %v6056
  %v6072 = vpack.c.b16 %v6059, %v6058
  %v6073 = vpack.c.b16 %v6061, %v6060
  %v6074 = vpack.c.b16 %v6063, %v6062
  %v6075 = vpack.c.b16 %v6065, %v6064
  %v6076 = vpack.c.b16 %v6067, %v6066
  %v6077 = vpack.c.b16 %v6069, %v6068
  %6086 = vmatpush.bf16.msra.mxu0 %v6077
  %6087 = vmatpush.bf16.msra.mxu0 %v6076
  %6088 = vmatpush.bf16.msra.mxu0 %v6075
  %6089 = vmatpush.bf16.msra.mxu0 %v6074
  %6090 = vmatpush.bf16.msra.mxu0 %v6073
  %6091 = vmatpush.bf16.msra.mxu0 %v6072
  %6092 = vmatpush.bf16.msra.mxu0 %v6071
  %6093 = vmatpush.bf16.msra.mxu0 %v6070
  %6094 = vmatmul.bf16.gmra.mxu0 %v5994
  %v6095 = vpop.f32.mrf.mxu0
  %v6096 = vadd.f32 0.0, %v6095
  %v6097 = vpop.f32.mrf.mxu0
  %v6098 = vadd.f32 0.0, %v6097
  %6099 = vmatmul.bf16.gmra.mxu0 %v5995
  %v6100 = vpop.f32.mrf.mxu0
  %v6101 = vadd.f32 0.0, %v6100
  %v6102 = vpop.f32.mrf.mxu0
  %v6103 = vadd.f32 0.0, %v6102
  %6104 = vmatmul.bf16.gmra.mxu0 %v5996
  %v6105 = vpop.f32.mrf.mxu0
  %v6106 = vadd.f32 0.0, %v6105
  %v6107 = vpop.f32.mrf.mxu0
  %v6108 = vadd.f32 0.0, %v6107
  %6109 = vmatmul.bf16.gmra.mxu0 %v5997
  %v6110 = vpop.f32.mrf.mxu0
  %v6111 = vadd.f32 0.0, %v6110
  %v6112 = vpop.f32.mrf.mxu0
  %v6113 = vadd.f32 0.0, %v6112
  %6114 = vmatmul.bf16.gmra.mxu0 %v5998
  %v6115 = vpop.f32.mrf.mxu0
  %v6116 = vadd.f32 0.0, %v6115
  %v6117 = vpop.f32.mrf.mxu0
  %v6118 = vadd.f32 0.0, %v6117
  %6119 = vmatmul.bf16.gmra.mxu0 %v5999
  %v6120 = vpop.f32.mrf.mxu0
  %v6121 = vadd.f32 0.0, %v6120
  %v6122 = vpop.f32.mrf.mxu0
  %v6123 = vadd.f32 0.0, %v6122
  %6124 = vmatmul.bf16.gmra.mxu0 %v6000
  %v6125 = vpop.f32.mrf.mxu0
  %v6126 = vadd.f32 0.0, %v6125
  %v6127 = vpop.f32.mrf.mxu0
  %v6128 = vadd.f32 0.0, %v6127
  %6129 = vmatmul.bf16.gmra.mxu0 %v6001
  %v6130 = vpop.f32.mrf.mxu0
  %v6131 = vadd.f32 0.0, %v6130
  %v6132 = vpop.f32.mrf.mxu0
  %v6133 = vadd.f32 0.0, %v6132
  %6134 = vmatmul.bf16.gmra.mxu0 %v6002
  %v6135 = vpop.f32.mrf.mxu0
  %v6136 = vadd.f32 0.0, %v6135
  %v6137 = vpop.f32.mrf.mxu0
  %v6138 = vadd.f32 0.0, %v6137
  %6139 = vmatmul.bf16.gmra.mxu0 %v6003
  %v6140 = vpop.f32.mrf.mxu0
  %v6141 = vadd.f32 0.0, %v6140
  %v6142 = vpop.f32.mrf.mxu0
  %v6143 = vadd.f32 0.0, %v6142
  %6144 = vmatmul.bf16.gmra.mxu0 %v6004
  %v6145 = vpop.f32.mrf.mxu0
  %v6146 = vadd.f32 0.0, %v6145
  %v6147 = vpop.f32.mrf.mxu0
  %v6148 = vadd.f32 0.0, %v6147
  %6149 = vmatmul.bf16.gmra.mxu0 %v6005
  %v6150 = vpop.f32.mrf.mxu0
  %v6151 = vadd.f32 0.0, %v6150
  %v6152 = vpop.f32.mrf.mxu0
  %v6153 = vadd.f32 0.0, %v6152
  %6154 = vmatmul.bf16.gmra.mxu0 %v6006
  %v6155 = vpop.f32.mrf.mxu0
  %v6156 = vadd.f32 0.0, %v6155
  %v6157 = vpop.f32.mrf.mxu0
  %v6158 = vadd.f32 0.0, %v6157
  %6159 = vmatmul.bf16.gmra.mxu0 %v6007
  %v6160 = vpop.f32.mrf.mxu0
  %v6161 = vadd.f32 0.0, %v6160
  %v6162 = vpop.f32.mrf.mxu0
  %v6163 = vadd.f32 0.0, %v6162
  %6164 = vmatmul.bf16.gmra.mxu0 %v6008
  %v6165 = vpop.f32.mrf.mxu0
  %v6166 = vadd.f32 0.0, %v6165
  %v6167 = vpop.f32.mrf.mxu0
  %v6168 = vadd.f32 0.0, %v6167
  %6169 = vmatmul.bf16.gmra.mxu0 %v6009
  %v6170 = vpop.f32.mrf.mxu0
  %v6171 = vadd.f32 0.0, %v6170
  %v6172 = vpop.f32.mrf.mxu0
  %v6173 = vadd.f32 0.0, %v6172
  %6174 = vmatmul.bf16.gmra.mxu0 %v6010
  %v6175 = vpop.f32.mrf.mxu0
  %v6176 = vadd.f32 0.0, %v6175
  %v6177 = vpop.f32.mrf.mxu0
  %v6178 = vadd.f32 0.0, %v6177
  %6179 = vmatmul.bf16.gmra.mxu0 %v6011
  %v6180 = vpop.f32.mrf.mxu0
  %v6181 = vadd.f32 0.0, %v6180
  %v6182 = vpop.f32.mrf.mxu0
  %v6183 = vadd.f32 0.0, %v6182
  %6184 = vmatmul.bf16.gmra.mxu0 %v6012
  %v6185 = vpop.f32.mrf.mxu0
  %v6186 = vadd.f32 0.0, %v6185
  %v6187 = vpop.f32.mrf.mxu0
  %v6188 = vadd.f32 0.0, %v6187
  %6189 = vmatmul.bf16.gmra.mxu0 %v6013
  %v6190 = vpop.f32.mrf.mxu0
  %v6191 = vadd.f32 0.0, %v6190
  %v6192 = vpop.f32.mrf.mxu0
  %v6193 = vadd.f32 0.0, %v6192
  %6194 = vmatmul.bf16.gmra.mxu0 %v6014
  %v6195 = vpop.f32.mrf.mxu0
  %v6196 = vadd.f32 0.0, %v6195
  %v6197 = vpop.f32.mrf.mxu0
  %v6198 = vadd.f32 0.0, %v6197
  %6199 = vmatmul.bf16.gmra.mxu0 %v6015
  %v6200 = vpop.f32.mrf.mxu0
  %v6201 = vadd.f32 0.0, %v6200
  %v6202 = vpop.f32.mrf.mxu0
  %v6203 = vadd.f32 0.0, %v6202
  %6204 = vmatmul.bf16.gmra.mxu0 %v6016
  %v6205 = vpop.f32.mrf.mxu0
  %v6206 = vadd.f32 0.0, %v6205
  %v6207 = vpop.f32.mrf.mxu0
  %v6208 = vadd.f32 0.0, %v6207
  %6209 = vmatmul.bf16.gmra.mxu0 %v6017
  %v6210 = vpop.f32.mrf.mxu0
  %v6211 = vadd.f32 0.0, %v6210
  %v6212 = vpop.f32.mrf.mxu0
  %v6213 = vadd.f32 0.0, %v6212
  %6214 = vmatmul.bf16.gmra.mxu0 %v6018
  %v6215 = vpop.f32.mrf.mxu0
  %v6216 = vadd.f32 0.0, %v6215
  %v6217 = vpop.f32.mrf.mxu0
  %v6218 = vadd.f32 0.0, %v6217
  %6219 = vmatmul.bf16.gmra.mxu0 %v6019
  %v6220 = vpop.f32.mrf.mxu0
  %v6221 = vadd.f32 0.0, %v6220
  %v6222 = vpop.f32.mrf.mxu0
  %v6223 = vadd.f32 0.0, %v6222
  %6224 = vmatmul.bf16.gmra.mxu0 %v6020
  %v6225 = vpop.f32.mrf.mxu0
  %v6226 = vadd.f32 0.0, %v6225
  %v6227 = vpop.f32.mrf.mxu0
  %6228 = vdwg.mxu0
  %v6229 = vadd.f32 %v5888, %v6096
  %v6230 = vadd.f32 %v5889, %v6098
  %v6231 = vadd.f32 %v5890, %v6101
  %v6232 = vadd.f32 %v5891, %v6103
  %v6233 = vadd.f32 %v5892, %v6106
  %v6234 = vadd.f32 %v5893, %v6108
  %v6235 = vadd.f32 %v5894, %v6111
  %v6236 = vadd.f32 %v5895, %v6113
  %v6237 = vadd.f32 %v5896, %v6116
  %v6238 = vadd.f32 %v5897, %v6118
  %v6239 = vadd.f32 %v5898, %v6121
  %v6240 = vadd.f32 %v5899, %v6123
  %v6241 = vadd.f32 %v5900, %v6126
  %v6242 = vadd.f32 %v5901, %v6128
  %v6243 = vadd.f32 %v5902, %v6131
  %v6244 = vadd.f32 %v5903, %v6133
  %v6245 = vadd.f32 %v5904, %v6136
  %v6246 = vadd.f32 %v5905, %v6138
  %v6247 = vadd.f32 %v5906, %v6141
  %v6248 = vadd.f32 %v5907, %v6143
  %v6249 = vadd.f32 %v5908, %v6146
  %v6250 = vadd.f32 %v5909, %v6148
  %v6251 = vadd.f32 %v5910, %v6151
  %v6252 = vadd.f32 %v5911, %v6153
  %v6253 = vadd.f32 %v5912, %v6156
  %v6254 = vadd.f32 %v5913, %v6158
  %v6255 = vadd.f32 %v5914, %v6161
  %v6256 = vadd.f32 %v5915, %v6163
  %v6257 = vadd.f32 %v5916, %v6166
  %v6258 = vadd.f32 %v5917, %v6168
  %v6259 = vadd.f32 %v5918, %v6171
  %v6260 = vadd.f32 %v5919, %v6173
  %v6261 = vadd.f32 %v5920, %v6176
  %v6262 = vadd.f32 %v5921, %v6178
  %v6263 = vadd.f32 %v5922, %v6181
  %v6264 = vadd.f32 %v5923, %v6183
  %v6265 = vadd.f32 %v5924, %v6186
  %v6266 = vadd.f32 %v5925, %v6188
  %v6267 = vadd.f32 %v5926, %v6191
  %v6268 = vadd.f32 %v5927, %v6193
  %v6269 = vadd.f32 %v5928, %v6196
  %v6270 = vadd.f32 %v5929, %v6198
  %v6271 = vadd.f32 %v5930, %v6201
  %v6272 = vadd.f32 %v5931, %v6203
  %v6273 = vadd.f32 %v5932, %v6206
  %v6274 = vadd.f32 %v5933, %v6208
  %v6275 = vadd.f32 %v5934, %v6211
  %v6276 = vadd.f32 %v5935, %v6213
  %v6277 = vadd.f32 %v5936, %v6216
  %v6278 = vadd.f32 %v5937, %v6218
  %v6279 = vadd.f32 %v5938, %v6221
  %v6280 = vadd.f32 %v5939, %v6223
  %v6281 = vadd.f32 %v5940, %v6226
  %v6282 = vld [vmem:[#allocation4 + $0x1f] sm:$0xff]
  %v6283 = vld [vmem:[#allocation4 + $0x27] sm:$0xff]
  %v6284 = vld [vmem:[#allocation4 + $0x2f] sm:$0xff]
  %v6285 = vld [vmem:[#allocation4 + $0x37] sm:$0xff]
  %v6286 = vld [vmem:[#allocation4 + $0x3f] sm:$0xff]
  %v6287 = vld [vmem:[#allocation4 + $0x47] sm:$0xff]
  %v6288 = vld [vmem:[#allocation4 + $0x4f] sm:$0xff]
  %v6289 = vld [vmem:[#allocation4 + $0x57] sm:$0xff]
  %v6290 = vld [vmem:[#allocation4 + $0x5f] sm:$0xff]
  %v6291 = vld [vmem:[#allocation4 + $0x67] sm:$0xff]
  %v6292 = vld [vmem:[#allocation4 + $0x6f] sm:$0xff]
  %v6293 = vld [vmem:[#allocation4 + $0x77] sm:$0xff]
  %v6294 = vld [vmem:[#allocation4 + $0x7f] sm:$0xff]
  %v6295 = vld [vmem:[#allocation4 + $0x87] sm:$0xff]
  %v6296 = vld [vmem:[#allocation4 + $0x8f] sm:$0xff]
  %v6297 = vld [vmem:[#allocation4 + $0x97] sm:$0xff]
  %v6298 = vld [vmem:[#allocation4 + $0x9f] sm:$0xff]
  %v6299 = vld [vmem:[#allocation4 + $0xa7] sm:$0xff]
  %v6300 = vld [vmem:[#allocation4 + $0xaf] sm:$0xff]
  %v6301 = vld [vmem:[#allocation4 + $0xb7] sm:$0xff]
  %v6302 = vld [vmem:[#allocation4 + $0xbf] sm:$0xff]
  %v6303 = vld [vmem:[#allocation4 + $0xc7] sm:$0xff]
  %v6304 = vld [vmem:[#allocation4 + $0xcf] sm:$0xff]
  %v6305 = vld [vmem:[#allocation4 + $0xd7] sm:$0xff]
  %v6306 = vld [vmem:[#allocation4 + $0xdf] sm:$0xff]
  %v6307 = vld [vmem:[#allocation4 + $0xe7] sm:$0xff]
  %v6308 = vld [vmem:[#allocation4 + $0xef] sm:$0xff]
  %v6309 = vld [vmem:[#allocation4 + $0xf7] sm:$0xff]
  %v6310 = vld [vmem:[#allocation4 + $0xff] sm:$0xff]
  %v6311 = vld [vmem:[#allocation4 + $0x107] sm:$0xff]
  %v6312 = vld [vmem:[#allocation4 + $0x10f] sm:$0xff]
  %v6313 = vld [vmem:[#allocation4 + $0x117] sm:$0xff]
  %v6314 = vld [vmem:[#allocation4 + $0x11f] sm:$0xff]
  %v6315 = vld [vmem:[#allocation4 + $0x127] sm:$0xff]
  %v6316 = vld [vmem:[#allocation4 + $0x12f] sm:$0xff]
  %v6317 = vld [vmem:[#allocation4 + $0x137] sm:$0xff]
  %v6318 = vld [vmem:[#allocation4 + $0x13f] sm:$0xff]
  %v6319 = vld [vmem:[#allocation4 + $0x147] sm:$0xff]
  %v6320 = vld [vmem:[#allocation4 + $0x14f] sm:$0xff]
  %v6321 = vld [vmem:[#allocation4 + $0x157] sm:$0xff]
  %v6322 = vld [vmem:[#allocation4 + $0x15f] sm:$0xff]
  %v6323 = vld [vmem:[#allocation4 + $0x167] sm:$0xff]
  %v6324 = vld [vmem:[#allocation4 + $0x16f] sm:$0xff]
  %v6325 = vld [vmem:[#allocation4 + $0x177] sm:$0xff]
  %v6326 = vld [vmem:[#allocation4 + $0x17f] sm:$0xff]
  %v6327 = vld [vmem:[#allocation4 + $0x187] sm:$0xff]
  %v6328 = vld [vmem:[#allocation4 + $0x18f] sm:$0xff]
  %v6329 = vld [vmem:[#allocation4 + $0x197] sm:$0xff]
  %v6330 = vld [vmem:[#allocation4 + $0x19f] sm:$0xff]
  %v6331 = vld [vmem:[#allocation4 + $0x1a7] sm:$0xff]
  %v6332 = vld [vmem:[#allocation4 + $0x1af] sm:$0xff]
  %v6333 = vld [vmem:[#allocation4 + $0x1b7] sm:$0xff]
  %v6334 = vld [vmem:[#allocation4 + $0x1bf] sm:$0x3]
  %v6335 = vpack.c.bf16 %v6283, %v6282
  %v6336 = vpack.c.bf16 %v6285, %v6284
  %v6337 = vpack.c.bf16 %v6287, %v6286
  %v6338 = vpack.c.bf16 %v6289, %v6288
  %v6339 = vpack.c.bf16 %v6291, %v6290
  %v6340 = vpack.c.bf16 %v6293, %v6292
  %v6341 = vpack.c.bf16 %v6295, %v6294
  %v6342 = vpack.c.bf16 %v6297, %v6296
  %v6343 = vpack.c.bf16 %v6299, %v6298
  %v6344 = vpack.c.bf16 %v6301, %v6300
  %v6345 = vpack.c.bf16 %v6303, %v6302
  %v6346 = vpack.c.bf16 %v6305, %v6304
  %v6347 = vpack.c.bf16 %v6307, %v6306
  %v6348 = vpack.c.bf16 %v6309, %v6308
  %v6349 = vpack.c.bf16 %v6311, %v6310
  %v6350 = vpack.c.bf16 %v6313, %v6312
  %v6351 = vpack.c.bf16 %v6315, %v6314
  %v6352 = vpack.c.bf16 %v6317, %v6316
  %v6353 = vpack.c.bf16 %v6319, %v6318
  %v6354 = vpack.c.bf16 %v6321, %v6320
  %v6355 = vpack.c.bf16 %v6323, %v6322
  %v6356 = vpack.c.bf16 %v6325, %v6324
  %v6357 = vpack.c.bf16 %v6327, %v6326
  %v6358 = vpack.c.bf16 %v6329, %v6328
  %v6359 = vpack.c.bf16 %v6331, %v6330
  %v6360 = vpack.c.bf16 %v6333, %v6332
  %v6361 = vpack.c.bf16 %v6334, %v6334
  %s6362 = scalar_lea.vmem %s3, 448
  %v6363 = vld [vmem:[%s6362] sm:$0xf]
  %v6364 = vld [vmem:[%s6362 + $0x4] sm:$0xf]
  %v6365 = vld [vmem:[%s6362 + $0x8] sm:$0xf]
  %v6366 = vld [vmem:[%s6362 + $0xc] sm:$0xf]
  %v6367 = vld [vmem:[%s6362 + $0x10] sm:$0xf]
  %v6368 = vld [vmem:[%s6362 + $0x14] sm:$0xf]
  %v6369 = vld [vmem:[%s6362 + $0x18] sm:$0xf]
  %v6370 = vld [vmem:[%s6362 + $0x1c] sm:$0xf]
  %v6371 = vld [vmem:[%s6362 + $0x20] sm:$0xf]
  %v6372 = vld [vmem:[%s6362 + $0x24] sm:$0xf]
  %v6373 = vld [vmem:[%s6362 + $0x28] sm:$0xf]
  %v6374 = vld [vmem:[%s6362 + $0x2c] sm:$0xf]
  %v6375 = vld [vmem:[%s6362 + $0x30] sm:$0xf]
  %v6376 = vld [vmem:[%s6362 + $0x34] sm:$0xf]
  %v6377 = vld [vmem:[%s6362 + $0x38] sm:$0xf]
  %v6378 = vld [vmem:[%s6362 + $0x3c] sm:$0xf]
  %v6395 = vunpack.c.l.b16 %v6363
  %v6396 = vunpack.c.l.b16 %v6364
  %v6397 = vunpack.c.l.b16 %v6365
  %v6398 = vunpack.c.l.b16 %v6366
  %v6399 = vunpack.c.l.b16 %v6367
  %v6400 = vunpack.c.l.b16 %v6368
  %v6401 = vunpack.c.l.b16 %v6369
  %v6402 = vunpack.c.l.b16 %v6370
  %v6403 = vunpack.c.l.b16 %v6371
  %v6404 = vunpack.c.l.b16 %v6372
  %v6405 = vunpack.c.l.b16 %v6373
  %v6406 = vunpack.c.l.b16 %v6374
  %v6407 = vunpack.c.l.b16 %v6375
  %v6408 = vunpack.c.l.b16 %v6376
  %v6409 = vunpack.c.l.b16 %v6377
  %v6410 = vunpack.c.l.b16 %v6378
  %v6411 = vpack.c.b16 %v6396, %v6395
  %v6412 = vpack.c.b16 %v6398, %v6397
  %v6413 = vpack.c.b16 %v6400, %v6399
  %v6414 = vpack.c.b16 %v6402, %v6401
  %v6415 = vpack.c.b16 %v6404, %v6403
  %v6416 = vpack.c.b16 %v6406, %v6405
  %v6417 = vpack.c.b16 %v6408, %v6407
  %v6418 = vpack.c.b16 %v6410, %v6409
  %6427 = vmatpush.bf16.msra.mxu0 %v6418
  %6428 = vmatpush.bf16.msra.mxu0 %v6417
  %6429 = vmatpush.bf16.msra.mxu0 %v6416
  %6430 = vmatpush.bf16.msra.mxu0 %v6415
  %6431 = vmatpush.bf16.msra.mxu0 %v6414
  %6432 = vmatpush.bf16.msra.mxu0 %v6413
  %6433 = vmatpush.bf16.msra.mxu0 %v6412
  %6434 = vmatpush.bf16.msra.mxu0 %v6411
  %6435 = vmatmul.bf16.gmra.mxu0 %v6335
  %v6436 = vpop.f32.mrf.mxu0
  %v6437 = vadd.f32 0.0, %v6436
  %v6438 = vpop.f32.mrf.mxu0
  %v6439 = vadd.f32 0.0, %v6438
  %6440 = vmatmul.bf16.gmra.mxu0 %v6336
  %v6441 = vpop.f32.mrf.mxu0
  %v6442 = vadd.f32 0.0, %v6441
  %v6443 = vpop.f32.mrf.mxu0
  %v6444 = vadd.f32 0.0, %v6443
  %6445 = vmatmul.bf16.gmra.mxu0 %v6337
  %v6446 = vpop.f32.mrf.mxu0
  %v6447 = vadd.f32 0.0, %v6446
  %v6448 = vpop.f32.mrf.mxu0
  %v6449 = vadd.f32 0.0, %v6448
  %6450 = vmatmul.bf16.gmra.mxu0 %v6338
  %v6451 = vpop.f32.mrf.mxu0
  %v6452 = vadd.f32 0.0, %v6451
  %v6453 = vpop.f32.mrf.mxu0
  %v6454 = vadd.f32 0.0, %v6453
  %6455 = vmatmul.bf16.gmra.mxu0 %v6339
  %v6456 = vpop.f32.mrf.mxu0
  %v6457 = vadd.f32 0.0, %v6456
  %v6458 = vpop.f32.mrf.mxu0
  %v6459 = vadd.f32 0.0, %v6458
  %6460 = vmatmul.bf16.gmra.mxu0 %v6340
  %v6461 = vpop.f32.mrf.mxu0
  %v6462 = vadd.f32 0.0, %v6461
  %v6463 = vpop.f32.mrf.mxu0
  %v6464 = vadd.f32 0.0, %v6463
  %6465 = vmatmul.bf16.gmra.mxu0 %v6341
  %v6466 = vpop.f32.mrf.mxu0
  %v6467 = vadd.f32 0.0, %v6466
  %v6468 = vpop.f32.mrf.mxu0
  %v6469 = vadd.f32 0.0, %v6468
  %6470 = vmatmul.bf16.gmra.mxu0 %v6342
  %v6471 = vpop.f32.mrf.mxu0
  %v6472 = vadd.f32 0.0, %v6471
  %v6473 = vpop.f32.mrf.mxu0
  %v6474 = vadd.f32 0.0, %v6473
  %6475 = vmatmul.bf16.gmra.mxu0 %v6343
  %v6476 = vpop.f32.mrf.mxu0
  %v6477 = vadd.f32 0.0, %v6476
  %v6478 = vpop.f32.mrf.mxu0
  %v6479 = vadd.f32 0.0, %v6478
  %6480 = vmatmul.bf16.gmra.mxu0 %v6344
  %v6481 = vpop.f32.mrf.mxu0
  %v6482 = vadd.f32 0.0, %v6481
  %v6483 = vpop.f32.mrf.mxu0
  %v6484 = vadd.f32 0.0, %v6483
  %6485 = vmatmul.bf16.gmra.mxu0 %v6345
  %v6486 = vpop.f32.mrf.mxu0
  %v6487 = vadd.f32 0.0, %v6486
  %v6488 = vpop.f32.mrf.mxu0
  %v6489 = vadd.f32 0.0, %v6488
  %6490 = vmatmul.bf16.gmra.mxu0 %v6346
  %v6491 = vpop.f32.mrf.mxu0
  %v6492 = vadd.f32 0.0, %v6491
  %v6493 = vpop.f32.mrf.mxu0
  %v6494 = vadd.f32 0.0, %v6493
  %6495 = vmatmul.bf16.gmra.mxu0 %v6347
  %v6496 = vpop.f32.mrf.mxu0
  %v6497 = vadd.f32 0.0, %v6496
  %v6498 = vpop.f32.mrf.mxu0
  %v6499 = vadd.f32 0.0, %v6498
  %6500 = vmatmul.bf16.gmra.mxu0 %v6348
  %v6501 = vpop.f32.mrf.mxu0
  %v6502 = vadd.f32 0.0, %v6501
  %v6503 = vpop.f32.mrf.mxu0
  %v6504 = vadd.f32 0.0, %v6503
  %6505 = vmatmul.bf16.gmra.mxu0 %v6349
  %v6506 = vpop.f32.mrf.mxu0
  %v6507 = vadd.f32 0.0, %v6506
  %v6508 = vpop.f32.mrf.mxu0
  %v6509 = vadd.f32 0.0, %v6508
  %6510 = vmatmul.bf16.gmra.mxu0 %v6350
  %v6511 = vpop.f32.mrf.mxu0
  %v6512 = vadd.f32 0.0, %v6511
  %v6513 = vpop.f32.mrf.mxu0
  %v6514 = vadd.f32 0.0, %v6513
  %6515 = vmatmul.bf16.gmra.mxu0 %v6351
  %v6516 = vpop.f32.mrf.mxu0
  %v6517 = vadd.f32 0.0, %v6516
  %v6518 = vpop.f32.mrf.mxu0
  %v6519 = vadd.f32 0.0, %v6518
  %6520 = vmatmul.bf16.gmra.mxu0 %v6352
  %v6521 = vpop.f32.mrf.mxu0
  %v6522 = vadd.f32 0.0, %v6521
  %v6523 = vpop.f32.mrf.mxu0
  %v6524 = vadd.f32 0.0, %v6523
  %6525 = vmatmul.bf16.gmra.mxu0 %v6353
  %v6526 = vpop.f32.mrf.mxu0
  %v6527 = vadd.f32 0.0, %v6526
  %v6528 = vpop.f32.mrf.mxu0
  %v6529 = vadd.f32 0.0, %v6528
  %6530 = vmatmul.bf16.gmra.mxu0 %v6354
  %v6531 = vpop.f32.mrf.mxu0
  %v6532 = vadd.f32 0.0, %v6531
  %v6533 = vpop.f32.mrf.mxu0
  %v6534 = vadd.f32 0.0, %v6533
  %6535 = vmatmul.bf16.gmra.mxu0 %v6355
  %v6536 = vpop.f32.mrf.mxu0
  %v6537 = vadd.f32 0.0, %v6536
  %v6538 = vpop.f32.mrf.mxu0
  %v6539 = vadd.f32 0.0, %v6538
  %6540 = vmatmul.bf16.gmra.mxu0 %v6356
  %v6541 = vpop.f32.mrf.mxu0
  %v6542 = vadd.f32 0.0, %v6541
  %v6543 = vpop.f32.mrf.mxu0
  %v6544 = vadd.f32 0.0, %v6543
  %6545 = vmatmul.bf16.gmra.mxu0 %v6357
  %v6546 = vpop.f32.mrf.mxu0
  %v6547 = vadd.f32 0.0, %v6546
  %v6548 = vpop.f32.mrf.mxu0
  %v6549 = vadd.f32 0.0, %v6548
  %6550 = vmatmul.bf16.gmra.mxu0 %v6358
  %v6551 = vpop.f32.mrf.mxu0
  %v6552 = vadd.f32 0.0, %v6551
  %v6553 = vpop.f32.mrf.mxu0
  %v6554 = vadd.f32 0.0, %v6553
  %6555 = vmatmul.bf16.gmra.mxu0 %v6359
  %v6556 = vpop.f32.mrf.mxu0
  %v6557 = vadd.f32 0.0, %v6556
  %v6558 = vpop.f32.mrf.mxu0
  %v6559 = vadd.f32 0.0, %v6558
  %6560 = vmatmul.bf16.gmra.mxu0 %v6360
  %v6561 = vpop.f32.mrf.mxu0
  %v6562 = vadd.f32 0.0, %v6561
  %v6563 = vpop.f32.mrf.mxu0
  %v6564 = vadd.f32 0.0, %v6563
  %6565 = vmatmul.bf16.gmra.mxu0 %v6361
  %v6566 = vpop.f32.mrf.mxu0
  %v6567 = vadd.f32 0.0, %v6566
  %v6568 = vpop.f32.mrf.mxu0
  %6569 = vdwg.mxu0
  %v6570 = vadd.f32 %v6229, %v6437
  %v6571 = vadd.f32 %v6230, %v6439
  %v6572 = vadd.f32 %v6231, %v6442
  %v6573 = vadd.f32 %v6232, %v6444
  %v6574 = vadd.f32 %v6233, %v6447
  %v6575 = vadd.f32 %v6234, %v6449
  %v6576 = vadd.f32 %v6235, %v6452
  %v6577 = vadd.f32 %v6236, %v6454
  %v6578 = vadd.f32 %v6237, %v6457
  %v6579 = vadd.f32 %v6238, %v6459
  %v6580 = vadd.f32 %v6239, %v6462
  %v6581 = vadd.f32 %v6240, %v6464
  %v6582 = vadd.f32 %v6241, %v6467
  %v6583 = vadd.f32 %v6242, %v6469
  %v6584 = vadd.f32 %v6243, %v6472
  %v6585 = vadd.f32 %v6244, %v6474
  %v6586 = vadd.f32 %v6245, %v6477
  %v6587 = vadd.f32 %v6246, %v6479
  %v6588 = vadd.f32 %v6247, %v6482
  %v6589 = vadd.f32 %v6248, %v6484
  %v6590 = vadd.f32 %v6249, %v6487
  %v6591 = vadd.f32 %v6250, %v6489
  %v6592 = vadd.f32 %v6251, %v6492
  %v6593 = vadd.f32 %v6252, %v6494
  %v6594 = vadd.f32 %v6253, %v6497
  %v6595 = vadd.f32 %v6254, %v6499
  %v6596 = vadd.f32 %v6255, %v6502
  %v6597 = vadd.f32 %v6256, %v6504
  %v6598 = vadd.f32 %v6257, %v6507
  %v6599 = vadd.f32 %v6258, %v6509
  %v6600 = vadd.f32 %v6259, %v6512
  %v6601 = vadd.f32 %v6260, %v6514
  %v6602 = vadd.f32 %v6261, %v6517
  %v6603 = vadd.f32 %v6262, %v6519
  %v6604 = vadd.f32 %v6263, %v6522
  %v6605 = vadd.f32 %v6264, %v6524
  %v6606 = vadd.f32 %v6265, %v6527
  %v6607 = vadd.f32 %v6266, %v6529
  %v6608 = vadd.f32 %v6267, %v6532
  %v6609 = vadd.f32 %v6268, %v6534
  %v6610 = vadd.f32 %v6269, %v6537
  %v6611 = vadd.f32 %v6270, %v6539
  %v6612 = vadd.f32 %v6271, %v6542
  %v6613 = vadd.f32 %v6272, %v6544
  %v6614 = vadd.f32 %v6273, %v6547
  %v6615 = vadd.f32 %v6274, %v6549
  %v6616 = vadd.f32 %v6275, %v6552
  %v6617 = vadd.f32 %v6276, %v6554
  %v6618 = vadd.f32 %v6277, %v6557
  %v6619 = vadd.f32 %v6278, %v6559
  %v6620 = vadd.f32 %v6279, %v6562
  %v6621 = vadd.f32 %v6280, %v6564
  %v6622 = vadd.f32 %v6281, %v6567
  %v6623 = vld [vmem:[#allocation4 + $0x20] sm:$0xff]
  %v6624 = vld [vmem:[#allocation4 + $0x28] sm:$0xff]
  %v6625 = vld [vmem:[#allocation4 + $0x30] sm:$0xff]
  %v6626 = vld [vmem:[#allocation4 + $0x38] sm:$0xff]
  %v6627 = vld [vmem:[#allocation4 + $0x40] sm:$0xff]
  %v6628 = vld [vmem:[#allocation4 + $0x48] sm:$0xff]
  %v6629 = vld [vmem:[#allocation4 + $0x50] sm:$0xff]
  %v6630 = vld [vmem:[#allocation4 + $0x58] sm:$0xff]
  %v6631 = vld [vmem:[#allocation4 + $0x60] sm:$0xff]
  %v6632 = vld [vmem:[#allocation4 + $0x68] sm:$0xff]
  %v6633 = vld [vmem:[#allocation4 + $0x70] sm:$0xff]
  %v6634 = vld [vmem:[#allocation4 + $0x78] sm:$0xff]
  %v6635 = vld [vmem:[#allocation4 + $0x80] sm:$0xff]
  %v6636 = vld [vmem:[#allocation4 + $0x88] sm:$0xff]
  %v6637 = vld [vmem:[#allocation4 + $0x90] sm:$0xff]
  %v6638 = vld [vmem:[#allocation4 + $0x98] sm:$0xff]
  %v6639 = vld [vmem:[#allocation4 + $0xa0] sm:$0xff]
  %v6640 = vld [vmem:[#allocation4 + $0xa8] sm:$0xff]
  %v6641 = vld [vmem:[#allocation4 + $0xb0] sm:$0xff]
  %v6642 = vld [vmem:[#allocation4 + $0xb8] sm:$0xff]
  %v6643 = vld [vmem:[#allocation4 + $0xc0] sm:$0xff]
  %v6644 = vld [vmem:[#allocation4 + $0xc8] sm:$0xff]
  %v6645 = vld [vmem:[#allocation4 + $0xd0] sm:$0xff]
  %v6646 = vld [vmem:[#allocation4 + $0xd8] sm:$0xff]
  %v6647 = vld [vmem:[#allocation4 + $0xe0] sm:$0xff]
  %v6648 = vld [vmem:[#allocation4 + $0xe8] sm:$0xff]
  %v6649 = vld [vmem:[#allocation4 + $0xf0] sm:$0xff]
  %v6650 = vld [vmem:[#allocation4 + $0xf8] sm:$0xff]
  %v6651 = vld [vmem:[#allocation4 + $0x100] sm:$0xff]
  %v6652 = vld [vmem:[#allocation4 + $0x108] sm:$0xff]
  %v6653 = vld [vmem:[#allocation4 + $0x110] sm:$0xff]
  %v6654 = vld [vmem:[#allocation4 + $0x118] sm:$0xff]
  %v6655 = vld [vmem:[#allocation4 + $0x120] sm:$0xff]
  %v6656 = vld [vmem:[#allocation4 + $0x128] sm:$0xff]
  %v6657 = vld [vmem:[#allocation4 + $0x130] sm:$0xff]
  %v6658 = vld [vmem:[#allocation4 + $0x138] sm:$0xff]
  %v6659 = vld [vmem:[#allocation4 + $0x140] sm:$0xff]
  %v6660 = vld [vmem:[#allocation4 + $0x148] sm:$0xff]
  %v6661 = vld [vmem:[#allocation4 + $0x150] sm:$0xff]
  %v6662 = vld [vmem:[#allocation4 + $0x158] sm:$0xff]
  %v6663 = vld [vmem:[#allocation4 + $0x160] sm:$0xff]
  %v6664 = vld [vmem:[#allocation4 + $0x168] sm:$0xff]
  %v6665 = vld [vmem:[#allocation4 + $0x170] sm:$0xff]
  %v6666 = vld [vmem:[#allocation4 + $0x178] sm:$0xff]
  %v6667 = vld [vmem:[#allocation4 + $0x180] sm:$0xff]
  %v6668 = vld [vmem:[#allocation4 + $0x188] sm:$0xff]
  %v6669 = vld [vmem:[#allocation4 + $0x190] sm:$0xff]
  %v6670 = vld [vmem:[#allocation4 + $0x198] sm:$0xff]
  %v6671 = vld [vmem:[#allocation4 + $0x1a0] sm:$0xff]
  %v6672 = vld [vmem:[#allocation4 + $0x1a8] sm:$0xff]
  %v6673 = vld [vmem:[#allocation4 + $0x1b0] sm:$0xff]
  %v6674 = vld [vmem:[#allocation4 + $0x1b8] sm:$0xff]
  %v6675 = vld [vmem:[#allocation4 + $0x1c0] sm:$0x3]
  %v6676 = vpack.c.bf16 %v6624, %v6623
  %v6677 = vpack.c.bf16 %v6626, %v6625
  %v6678 = vpack.c.bf16 %v6628, %v6627
  %v6679 = vpack.c.bf16 %v6630, %v6629
  %v6680 = vpack.c.bf16 %v6632, %v6631
  %v6681 = vpack.c.bf16 %v6634, %v6633
  %v6682 = vpack.c.bf16 %v6636, %v6635
  %v6683 = vpack.c.bf16 %v6638, %v6637
  %v6684 = vpack.c.bf16 %v6640, %v6639
  %v6685 = vpack.c.bf16 %v6642, %v6641
  %v6686 = vpack.c.bf16 %v6644, %v6643
  %v6687 = vpack.c.bf16 %v6646, %v6645
  %v6688 = vpack.c.bf16 %v6648, %v6647
  %v6689 = vpack.c.bf16 %v6650, %v6649
  %v6690 = vpack.c.bf16 %v6652, %v6651
  %v6691 = vpack.c.bf16 %v6654, %v6653
  %v6692 = vpack.c.bf16 %v6656, %v6655
  %v6693 = vpack.c.bf16 %v6658, %v6657
  %v6694 = vpack.c.bf16 %v6660, %v6659
  %v6695 = vpack.c.bf16 %v6662, %v6661
  %v6696 = vpack.c.bf16 %v6664, %v6663
  %v6697 = vpack.c.bf16 %v6666, %v6665
  %v6698 = vpack.c.bf16 %v6668, %v6667
  %v6699 = vpack.c.bf16 %v6670, %v6669
  %v6700 = vpack.c.bf16 %v6672, %v6671
  %v6701 = vpack.c.bf16 %v6674, %v6673
  %v6702 = vpack.c.bf16 %v6675, %v6675
  %s6703 = scalar_lea.vmem %s3, 512
  %v6704 = vld [vmem:[%s6703] sm:$0xf]
  %v6705 = vld [vmem:[%s6703 + $0x4] sm:$0xf]
  %v6706 = vld [vmem:[%s6703 + $0x8] sm:$0xf]
  %v6707 = vld [vmem:[%s6703 + $0xc] sm:$0xf]
  %v6708 = vld [vmem:[%s6703 + $0x10] sm:$0xf]
  %v6709 = vld [vmem:[%s6703 + $0x14] sm:$0xf]
  %v6710 = vld [vmem:[%s6703 + $0x18] sm:$0xf]
  %v6711 = vld [vmem:[%s6703 + $0x1c] sm:$0xf]
  %v6712 = vld [vmem:[%s6703 + $0x20] sm:$0xf]
  %v6713 = vld [vmem:[%s6703 + $0x24] sm:$0xf]
  %v6714 = vld [vmem:[%s6703 + $0x28] sm:$0xf]
  %v6715 = vld [vmem:[%s6703 + $0x2c] sm:$0xf]
  %v6716 = vld [vmem:[%s6703 + $0x30] sm:$0xf]
  %v6717 = vld [vmem:[%s6703 + $0x34] sm:$0xf]
  %v6718 = vld [vmem:[%s6703 + $0x38] sm:$0xf]
  %v6719 = vld [vmem:[%s6703 + $0x3c] sm:$0xf]
  %v6736 = vunpack.c.l.b16 %v6704
  %v6737 = vunpack.c.l.b16 %v6705
  %v6738 = vunpack.c.l.b16 %v6706
  %v6739 = vunpack.c.l.b16 %v6707
  %v6740 = vunpack.c.l.b16 %v6708
  %v6741 = vunpack.c.l.b16 %v6709
  %v6742 = vunpack.c.l.b16 %v6710
  %v6743 = vunpack.c.l.b16 %v6711
  %v6744 = vunpack.c.l.b16 %v6712
  %v6745 = vunpack.c.l.b16 %v6713
  %v6746 = vunpack.c.l.b16 %v6714
  %v6747 = vunpack.c.l.b16 %v6715
  %v6748 = vunpack.c.l.b16 %v6716
  %v6749 = vunpack.c.l.b16 %v6717
  %v6750 = vunpack.c.l.b16 %v6718
  %v6751 = vunpack.c.l.b16 %v6719
  %v6752 = vpack.c.b16 %v6737, %v6736
  %v6753 = vpack.c.b16 %v6739, %v6738
  %v6754 = vpack.c.b16 %v6741, %v6740
  %v6755 = vpack.c.b16 %v6743, %v6742
  %v6756 = vpack.c.b16 %v6745, %v6744
  %v6757 = vpack.c.b16 %v6747, %v6746
  %v6758 = vpack.c.b16 %v6749, %v6748
  %v6759 = vpack.c.b16 %v6751, %v6750
  %6768 = vmatpush.bf16.msra.mxu0 %v6759
  %6769 = vmatpush.bf16.msra.mxu0 %v6758
  %6770 = vmatpush.bf16.msra.mxu0 %v6757
  %6771 = vmatpush.bf16.msra.mxu0 %v6756
  %6772 = vmatpush.bf16.msra.mxu0 %v6755
  %6773 = vmatpush.bf16.msra.mxu0 %v6754
  %6774 = vmatpush.bf16.msra.mxu0 %v6753
  %6775 = vmatpush.bf16.msra.mxu0 %v6752
  %6776 = vmatmul.bf16.gmra.mxu0 %v6676
  %v6777 = vpop.f32.mrf.mxu0
  %v6778 = vadd.f32 0.0, %v6777
  %v6779 = vpop.f32.mrf.mxu0
  %v6780 = vadd.f32 0.0, %v6779
  %6781 = vmatmul.bf16.gmra.mxu0 %v6677
  %v6782 = vpop.f32.mrf.mxu0
  %v6783 = vadd.f32 0.0, %v6782
  %v6784 = vpop.f32.mrf.mxu0
  %v6785 = vadd.f32 0.0, %v6784
  %6786 = vmatmul.bf16.gmra.mxu0 %v6678
  %v6787 = vpop.f32.mrf.mxu0
  %v6788 = vadd.f32 0.0, %v6787
  %v6789 = vpop.f32.mrf.mxu0
  %v6790 = vadd.f32 0.0, %v6789
  %6791 = vmatmul.bf16.gmra.mxu0 %v6679
  %v6792 = vpop.f32.mrf.mxu0
  %v6793 = vadd.f32 0.0, %v6792
  %v6794 = vpop.f32.mrf.mxu0
  %v6795 = vadd.f32 0.0, %v6794
  %6796 = vmatmul.bf16.gmra.mxu0 %v6680
  %v6797 = vpop.f32.mrf.mxu0
  %v6798 = vadd.f32 0.0, %v6797
  %v6799 = vpop.f32.mrf.mxu0
  %v6800 = vadd.f32 0.0, %v6799
  %6801 = vmatmul.bf16.gmra.mxu0 %v6681
  %v6802 = vpop.f32.mrf.mxu0
  %v6803 = vadd.f32 0.0, %v6802
  %v6804 = vpop.f32.mrf.mxu0
  %v6805 = vadd.f32 0.0, %v6804
  %6806 = vmatmul.bf16.gmra.mxu0 %v6682
  %v6807 = vpop.f32.mrf.mxu0
  %v6808 = vadd.f32 0.0, %v6807
  %v6809 = vpop.f32.mrf.mxu0
  %v6810 = vadd.f32 0.0, %v6809
  %6811 = vmatmul.bf16.gmra.mxu0 %v6683
  %v6812 = vpop.f32.mrf.mxu0
  %v6813 = vadd.f32 0.0, %v6812
  %v6814 = vpop.f32.mrf.mxu0
  %v6815 = vadd.f32 0.0, %v6814
  %6816 = vmatmul.bf16.gmra.mxu0 %v6684
  %v6817 = vpop.f32.mrf.mxu0
  %v6818 = vadd.f32 0.0, %v6817
  %v6819 = vpop.f32.mrf.mxu0
  %v6820 = vadd.f32 0.0, %v6819
  %6821 = vmatmul.bf16.gmra.mxu0 %v6685
  %v6822 = vpop.f32.mrf.mxu0
  %v6823 = vadd.f32 0.0, %v6822
  %v6824 = vpop.f32.mrf.mxu0
  %v6825 = vadd.f32 0.0, %v6824
  %6826 = vmatmul.bf16.gmra.mxu0 %v6686
  %v6827 = vpop.f32.mrf.mxu0
  %v6828 = vadd.f32 0.0, %v6827
  %v6829 = vpop.f32.mrf.mxu0
  %v6830 = vadd.f32 0.0, %v6829
  %6831 = vmatmul.bf16.gmra.mxu0 %v6687
  %v6832 = vpop.f32.mrf.mxu0
  %v6833 = vadd.f32 0.0, %v6832
  %v6834 = vpop.f32.mrf.mxu0
  %v6835 = vadd.f32 0.0, %v6834
  %6836 = vmatmul.bf16.gmra.mxu0 %v6688
  %v6837 = vpop.f32.mrf.mxu0
  %v6838 = vadd.f32 0.0, %v6837
  %v6839 = vpop.f32.mrf.mxu0
  %v6840 = vadd.f32 0.0, %v6839
  %6841 = vmatmul.bf16.gmra.mxu0 %v6689
  %v6842 = vpop.f32.mrf.mxu0
  %v6843 = vadd.f32 0.0, %v6842
  %v6844 = vpop.f32.mrf.mxu0
  %v6845 = vadd.f32 0.0, %v6844
  %6846 = vmatmul.bf16.gmra.mxu0 %v6690
  %v6847 = vpop.f32.mrf.mxu0
  %v6848 = vadd.f32 0.0, %v6847
  %v6849 = vpop.f32.mrf.mxu0
  %v6850 = vadd.f32 0.0, %v6849
  %6851 = vmatmul.bf16.gmra.mxu0 %v6691
  %v6852 = vpop.f32.mrf.mxu0
  %v6853 = vadd.f32 0.0, %v6852
  %v6854 = vpop.f32.mrf.mxu0
  %v6855 = vadd.f32 0.0, %v6854
  %6856 = vmatmul.bf16.gmra.mxu0 %v6692
  %v6857 = vpop.f32.mrf.mxu0
  %v6858 = vadd.f32 0.0, %v6857
  %v6859 = vpop.f32.mrf.mxu0
  %v6860 = vadd.f32 0.0, %v6859
  %6861 = vmatmul.bf16.gmra.mxu0 %v6693
  %v6862 = vpop.f32.mrf.mxu0
  %v6863 = vadd.f32 0.0, %v6862
  %v6864 = vpop.f32.mrf.mxu0
  %v6865 = vadd.f32 0.0, %v6864
  %6866 = vmatmul.bf16.gmra.mxu0 %v6694
  %v6867 = vpop.f32.mrf.mxu0
  %v6868 = vadd.f32 0.0, %v6867
  %v6869 = vpop.f32.mrf.mxu0
  %v6870 = vadd.f32 0.0, %v6869
  %6871 = vmatmul.bf16.gmra.mxu0 %v6695
  %v6872 = vpop.f32.mrf.mxu0
  %v6873 = vadd.f32 0.0, %v6872
  %v6874 = vpop.f32.mrf.mxu0
  %v6875 = vadd.f32 0.0, %v6874
  %6876 = vmatmul.bf16.gmra.mxu0 %v6696
  %v6877 = vpop.f32.mrf.mxu0
  %v6878 = vadd.f32 0.0, %v6877
  %v6879 = vpop.f32.mrf.mxu0
  %v6880 = vadd.f32 0.0, %v6879
  %6881 = vmatmul.bf16.gmra.mxu0 %v6697
  %v6882 = vpop.f32.mrf.mxu0
  %v6883 = vadd.f32 0.0, %v6882
  %v6884 = vpop.f32.mrf.mxu0
  %v6885 = vadd.f32 0.0, %v6884
  %6886 = vmatmul.bf16.gmra.mxu0 %v6698
  %v6887 = vpop.f32.mrf.mxu0
  %v6888 = vadd.f32 0.0, %v6887
  %v6889 = vpop.f32.mrf.mxu0
  %v6890 = vadd.f32 0.0, %v6889
  %6891 = vmatmul.bf16.gmra.mxu0 %v6699
  %v6892 = vpop.f32.mrf.mxu0
  %v6893 = vadd.f32 0.0, %v6892
  %v6894 = vpop.f32.mrf.mxu0
  %v6895 = vadd.f32 0.0, %v6894
  %6896 = vmatmul.bf16.gmra.mxu0 %v6700
  %v6897 = vpop.f32.mrf.mxu0
  %v6898 = vadd.f32 0.0, %v6897
  %v6899 = vpop.f32.mrf.mxu0
  %v6900 = vadd.f32 0.0, %v6899
  %6901 = vmatmul.bf16.gmra.mxu0 %v6701
  %v6902 = vpop.f32.mrf.mxu0
  %v6903 = vadd.f32 0.0, %v6902
  %v6904 = vpop.f32.mrf.mxu0
  %v6905 = vadd.f32 0.0, %v6904
  %6906 = vmatmul.bf16.gmra.mxu0 %v6702
  %v6907 = vpop.f32.mrf.mxu0
  %v6908 = vadd.f32 0.0, %v6907
  %v6909 = vpop.f32.mrf.mxu0
  %6910 = vdwg.mxu0
  %v6911 = vadd.f32 %v6570, %v6778
  %v6912 = vadd.f32 %v6571, %v6780
  %v6913 = vadd.f32 %v6572, %v6783
  %v6914 = vadd.f32 %v6573, %v6785
  %v6915 = vadd.f32 %v6574, %v6788
  %v6916 = vadd.f32 %v6575, %v6790
  %v6917 = vadd.f32 %v6576, %v6793
  %v6918 = vadd.f32 %v6577, %v6795
  %v6919 = vadd.f32 %v6578, %v6798
  %v6920 = vadd.f32 %v6579, %v6800
  %v6921 = vadd.f32 %v6580, %v6803
  %v6922 = vadd.f32 %v6581, %v6805
  %v6923 = vadd.f32 %v6582, %v6808
  %v6924 = vadd.f32 %v6583, %v6810
  %v6925 = vadd.f32 %v6584, %v6813
  %v6926 = vadd.f32 %v6585, %v6815
  %v6927 = vadd.f32 %v6586, %v6818
  %v6928 = vadd.f32 %v6587, %v6820
  %v6929 = vadd.f32 %v6588, %v6823
  %v6930 = vadd.f32 %v6589, %v6825
  %v6931 = vadd.f32 %v6590, %v6828
  %v6932 = vadd.f32 %v6591, %v6830
  %v6933 = vadd.f32 %v6592, %v6833
  %v6934 = vadd.f32 %v6593, %v6835
  %v6935 = vadd.f32 %v6594, %v6838
  %v6936 = vadd.f32 %v6595, %v6840
  %v6937 = vadd.f32 %v6596, %v6843
  %v6938 = vadd.f32 %v6597, %v6845
  %v6939 = vadd.f32 %v6598, %v6848
  %v6940 = vadd.f32 %v6599, %v6850
  %v6941 = vadd.f32 %v6600, %v6853
  %v6942 = vadd.f32 %v6601, %v6855
  %v6943 = vadd.f32 %v6602, %v6858
  %v6944 = vadd.f32 %v6603, %v6860
  %v6945 = vadd.f32 %v6604, %v6863
  %v6946 = vadd.f32 %v6605, %v6865
  %v6947 = vadd.f32 %v6606, %v6868
  %v6948 = vadd.f32 %v6607, %v6870
  %v6949 = vadd.f32 %v6608, %v6873
  %v6950 = vadd.f32 %v6609, %v6875
  %v6951 = vadd.f32 %v6610, %v6878
  %v6952 = vadd.f32 %v6611, %v6880
  %v6953 = vadd.f32 %v6612, %v6883
  %v6954 = vadd.f32 %v6613, %v6885
  %v6955 = vadd.f32 %v6614, %v6888
  %v6956 = vadd.f32 %v6615, %v6890
  %v6957 = vadd.f32 %v6616, %v6893
  %v6958 = vadd.f32 %v6617, %v6895
  %v6959 = vadd.f32 %v6618, %v6898
  %v6960 = vadd.f32 %v6619, %v6900
  %v6961 = vadd.f32 %v6620, %v6903
  %v6962 = vadd.f32 %v6621, %v6905
  %v6963 = vadd.f32 %v6622, %v6908
  %6964 = vst [vmem:[#allocation2] sm:$0xff] %v6911
  %6965 = vst [vmem:[#allocation2 + $0x8] sm:$0xff] %v6912
  %6966 = vst [vmem:[#allocation2 + $0x10] sm:$0xff] %v6913
  %6967 = vst [vmem:[#allocation2 + $0x18] sm:$0xff] %v6914
  %6968 = vst [vmem:[#allocation2 + $0x20] sm:$0xff] %v6915
  %6969 = vst [vmem:[#allocation2 + $0x28] sm:$0xff] %v6916
  %6970 = vst [vmem:[#allocation2 + $0x30] sm:$0xff] %v6917
  %6971 = vst [vmem:[#allocation2 + $0x38] sm:$0xff] %v6918
  %6972 = vst [vmem:[#allocation2 + $0x40] sm:$0xff] %v6919
  %6973 = vst [vmem:[#allocation2 + $0x48] sm:$0xff] %v6920
  %6974 = vst [vmem:[#allocation2 + $0x50] sm:$0xff] %v6921
  %6975 = vst [vmem:[#allocation2 + $0x58] sm:$0xff] %v6922
  %6976 = vst [vmem:[#allocation2 + $0x60] sm:$0xff] %v6923
  %6977 = vst [vmem:[#allocation2 + $0x68] sm:$0xff] %v6924
  %6978 = vst [vmem:[#allocation2 + $0x70] sm:$0xff] %v6925
  %6979 = vst [vmem:[#allocation2 + $0x78] sm:$0xff] %v6926
  %6980 = vst [vmem:[#allocation2 + $0x80] sm:$0xff] %v6927
  %6981 = vst [vmem:[#allocation2 + $0x88] sm:$0xff] %v6928
  %6982 = vst [vmem:[#allocation2 + $0x90] sm:$0xff] %v6929
  %6983 = vst [vmem:[#allocation2 + $0x98] sm:$0xff] %v6930
  %6984 = vst [vmem:[#allocation2 + $0xa0] sm:$0xff] %v6931
  %6985 = vst [vmem:[#allocation2 + $0xa8] sm:$0xff] %v6932
  %6986 = vst [vmem:[#allocation2 + $0xb0] sm:$0xff] %v6933
  %6987 = vst [vmem:[#allocation2 + $0xb8] sm:$0xff] %v6934
  %6988 = vst [vmem:[#allocation2 + $0xc0] sm:$0xff] %v6935
  %6989 = vst [vmem:[#allocation2 + $0xc8] sm:$0xff] %v6936
  %6990 = vst [vmem:[#allocation2 + $0xd0] sm:$0xff] %v6937
  %6991 = vst [vmem:[#allocation2 + $0xd8] sm:$0xff] %v6938
  %6992 = vst [vmem:[#allocation2 + $0xe0] sm:$0xff] %v6939
  %6993 = vst [vmem:[#allocation2 + $0xe8] sm:$0xff] %v6940
  %6994 = vst [vmem:[#allocation2 + $0xf0] sm:$0xff] %v6941
  %6995 = vst [vmem:[#allocation2 + $0xf8] sm:$0xff] %v6942
  %6996 = vst [vmem:[#allocation2 + $0x100] sm:$0xff] %v6943
  %6997 = vst [vmem:[#allocation2 + $0x108] sm:$0xff] %v6944
  %6998 = vst [vmem:[#allocation2 + $0x110] sm:$0xff] %v6945
  %6999 = vst [vmem:[#allocation2 + $0x118] sm:$0xff] %v6946
  %7000 = vst [vmem:[#allocation2 + $0x120] sm:$0xff] %v6947
  %7001 = vst [vmem:[#allocation2 + $0x128] sm:$0xff] %v6948
  %7002 = vst [vmem:[#allocation2 + $0x130] sm:$0xff] %v6949
  %7003 = vst [vmem:[#allocation2 + $0x138] sm:$0xff] %v6950
  %7004 = vst [vmem:[#allocation2 + $0x140] sm:$0xff] %v6951
  %7005 = vst [vmem:[#allocation2 + $0x148] sm:$0xff] %v6952
  %7006 = vst [vmem:[#allocation2 + $0x150] sm:$0xff] %v6953
  %7007 = vst [vmem:[#allocation2 + $0x158] sm:$0xff] %v6954
  %7008 = vst [vmem:[#allocation2 + $0x160] sm:$0xff] %v6955
  %7009 = vst [vmem:[#allocation2 + $0x168] sm:$0xff] %v6956
  %7010 = vst [vmem:[#allocation2 + $0x170] sm:$0xff] %v6957
  %7011 = vst [vmem:[#allocation2 + $0x178] sm:$0xff] %v6958
  %7012 = vst [vmem:[#allocation2 + $0x180] sm:$0xff] %v6959
  %7013 = vst [vmem:[#allocation2 + $0x188] sm:$0xff] %v6960
  %7014 = vst [vmem:[#allocation2 + $0x190] sm:$0xff] %v6961
  %7015 = vst [vmem:[#allocation2 + $0x198] sm:$0xff] %v6962
  %7016 = vst [vmem:[#allocation2 + $0x1a0] sm:$0x3] %v6963
  %v7017 = vld [vmem:[#allocation2] sm:$0xff]
  %v7018 = vld [vmem:[#allocation2 + $0x8] sm:$0xff]
  %v7019 = vld [vmem:[#allocation2 + $0x10] sm:$0xff]
  %v7020 = vld [vmem:[#allocation2 + $0x18] sm:$0xff]
  %v7021 = vld [vmem:[#allocation2 + $0x20] sm:$0xff]
  %v7022 = vld [vmem:[#allocation2 + $0x28] sm:$0xff]
  %v7023 = vld [vmem:[#allocation2 + $0x30] sm:$0xff]
  %v7024 = vld [vmem:[#allocation2 + $0x38] sm:$0xff]
  %v7025 = vld [vmem:[#allocation2 + $0x40] sm:$0xff]
  %v7026 = vld [vmem:[#allocation2 + $0x48] sm:$0xff]
  %v7027 = vld [vmem:[#allocation2 + $0x50] sm:$0xff]
  %v7028 = vld [vmem:[#allocation2 + $0x58] sm:$0xff]
  %v7029 = vld [vmem:[#allocation2 + $0x60] sm:$0xff]
  %v7030 = vld [vmem:[#allocation2 + $0x68] sm:$0xff]
  %v7031 = vld [vmem:[#allocation2 + $0x70] sm:$0xff]
  %v7032 = vld [vmem:[#allocation2 + $0x78] sm:$0xff]
  %v7033 = vld [vmem:[#allocation2 + $0x80] sm:$0xff]
  %v7034 = vld [vmem:[#allocation2 + $0x88] sm:$0xff]
  %v7035 = vld [vmem:[#allocation2 + $0x90] sm:$0xff]
  %v7036 = vld [vmem:[#allocation2 + $0x98] sm:$0xff]
  %v7037 = vld [vmem:[#allocation2 + $0xa0] sm:$0xff]
  %v7038 = vld [vmem:[#allocation2 + $0xa8] sm:$0xff]
  %v7039 = vld [vmem:[#allocation2 + $0xb0] sm:$0xff]
  %v7040 = vld [vmem:[#allocation2 + $0xb8] sm:$0xff]
  %v7041 = vld [vmem:[#allocation2 + $0xc0] sm:$0xff]
  %v7042 = vld [vmem:[#allocation2 + $0xc8] sm:$0xff]
  %v7043 = vld [vmem:[#allocation2 + $0xd0] sm:$0xff]
  %v7044 = vld [vmem:[#allocation2 + $0xd8] sm:$0xff]
  %v7045 = vld [vmem:[#allocation2 + $0xe0] sm:$0xff]
  %v7046 = vld [vmem:[#allocation2 + $0xe8] sm:$0xff]
  %v7047 = vld [vmem:[#allocation2 + $0xf0] sm:$0xff]
  %v7048 = vld [vmem:[#allocation2 + $0xf8] sm:$0xff]
  %v7049 = vld [vmem:[#allocation2 + $0x100] sm:$0xff]
  %v7050 = vld [vmem:[#allocation2 + $0x108] sm:$0xff]
  %v7051 = vld [vmem:[#allocation2 + $0x110] sm:$0xff]
  %v7052 = vld [vmem:[#allocation2 + $0x118] sm:$0xff]
  %v7053 = vld [vmem:[#allocation2 + $0x120] sm:$0xff]
  %v7054 = vld [vmem:[#allocation2 + $0x128] sm:$0xff]
  %v7055 = vld [vmem:[#allocation2 + $0x130] sm:$0xff]
  %v7056 = vld [vmem:[#allocation2 + $0x138] sm:$0xff]
  %v7057 = vld [vmem:[#allocation2 + $0x140] sm:$0xff]
  %v7058 = vld [vmem:[#allocation2 + $0x148] sm:$0xff]
  %v7059 = vld [vmem:[#allocation2 + $0x150] sm:$0xff]
  %v7060 = vld [vmem:[#allocation2 + $0x158] sm:$0xff]
  %v7061 = vld [vmem:[#allocation2 + $0x160] sm:$0xff]
  %v7062 = vld [vmem:[#allocation2 + $0x168] sm:$0xff]
  %v7063 = vld [vmem:[#allocation2 + $0x170] sm:$0xff]
  %v7064 = vld [vmem:[#allocation2 + $0x178] sm:$0xff]
  %v7065 = vld [vmem:[#allocation2 + $0x180] sm:$0xff]
  %v7066 = vld [vmem:[#allocation2 + $0x188] sm:$0xff]
  %v7067 = vld [vmem:[#allocation2 + $0x190] sm:$0xff]
  %v7068 = vld [vmem:[#allocation2 + $0x198] sm:$0xff]
  %v7069 = vld [vmem:[#allocation2 + $0x1a0] sm:$0x1]
  %v7070 = vld [vmem:[#allocation2 + $0x1] sm:$0xff]
  %v7071 = vld [vmem:[#allocation2 + $0x9] sm:$0xff]
  %v7072 = vld [vmem:[#allocation2 + $0x11] sm:$0xff]
  %v7073 = vld [vmem:[#allocation2 + $0x19] sm:$0xff]
  %v7074 = vld [vmem:[#allocation2 + $0x21] sm:$0xff]
  %v7075 = vld [vmem:[#allocation2 + $0x29] sm:$0xff]
  %v7076 = vld [vmem:[#allocation2 + $0x31] sm:$0xff]
  %v7077 = vld [vmem:[#allocation2 + $0x39] sm:$0xff]
  %v7078 = vld [vmem:[#allocation2 + $0x41] sm:$0xff]
  %v7079 = vld [vmem:[#allocation2 + $0x49] sm:$0xff]
  %v7080 = vld [vmem:[#allocation2 + $0x51] sm:$0xff]
  %v7081 = vld [vmem:[#allocation2 + $0x59] sm:$0xff]
  %v7082 = vld [vmem:[#allocation2 + $0x61] sm:$0xff]
  %v7083 = vld [vmem:[#allocation2 + $0x69] sm:$0xff]
  %v7084 = vld [vmem:[#allocation2 + $0x71] sm:$0xff]
  %v7085 = vld [vmem:[#allocation2 + $0x79] sm:$0xff]
  %v7086 = vld [vmem:[#allocation2 + $0x81] sm:$0xff]
  %v7087 = vld [vmem:[#allocation2 + $0x89] sm:$0xff]
  %v7088 = vld [vmem:[#allocation2 + $0x91] sm:$0xff]
  %v7089 = vld [vmem:[#allocation2 + $0x99] sm:$0xff]
  %v7090 = vld [vmem:[#allocation2 + $0xa1] sm:$0xff]
  %v7091 = vld [vmem:[#allocation2 + $0xa9] sm:$0xff]
  %v7092 = vld [vmem:[#allocation2 + $0xb1] sm:$0xff]
  %v7093 = vld [vmem:[#allocation2 + $0xb9] sm:$0xff]
  %v7094 = vld [vmem:[#allocation2 + $0xc1] sm:$0xff]
  %v7095 = vld [vmem:[#allocation2 + $0xc9] sm:$0xff]
  %v7096 = vld [vmem:[#allocation2 + $0xd1] sm:$0xff]
  %v7097 = vld [vmem:[#allocation2 + $0xd9] sm:$0xff]
  %v7098 = vld [vmem:[#allocation2 + $0xe1] sm:$0xff]
  %v7099 = vld [vmem:[#allocation2 + $0xe9] sm:$0xff]
  %v7100 = vld [vmem:[#allocation2 + $0xf1] sm:$0xff]
  %v7101 = vld [vmem:[#allocation2 + $0xf9] sm:$0xff]
  %v7102 = vld [vmem:[#allocation2 + $0x101] sm:$0xff]
  %v7103 = vld [vmem:[#allocation2 + $0x109] sm:$0xff]
  %v7104 = vld [vmem:[#allocation2 + $0x111] sm:$0xff]
  %v7105 = vld [vmem:[#allocation2 + $0x119] sm:$0xff]
  %v7106 = vld [vmem:[#allocation2 + $0x121] sm:$0xff]
  %v7107 = vld [vmem:[#allocation2 + $0x129] sm:$0xff]
  %v7108 = vld [vmem:[#allocation2 + $0x131] sm:$0xff]
  %v7109 = vld [vmem:[#allocation2 + $0x139] sm:$0xff]
  %v7110 = vld [vmem:[#allocation2 + $0x141] sm:$0xff]
  %v7111 = vld [vmem:[#allocation2 + $0x149] sm:$0xff]
  %v7112 = vld [vmem:[#allocation2 + $0x151] sm:$0xff]
  %v7113 = vld [vmem:[#allocation2 + $0x159] sm:$0xff]
  %v7114 = vld [vmem:[#allocation2 + $0x161] sm:$0xff]
  %v7115 = vld [vmem:[#allocation2 + $0x169] sm:$0xff]
  %v7116 = vld [vmem:[#allocation2 + $0x171] sm:$0xff]
  %v7117 = vld [vmem:[#allocation2 + $0x179] sm:$0xff]
  %v7118 = vld [vmem:[#allocation2 + $0x181] sm:$0xff]
  %v7119 = vld [vmem:[#allocation2 + $0x189] sm:$0xff]
  %v7120 = vld [vmem:[#allocation2 + $0x191] sm:$0xff]
  %v7121 = vld [vmem:[#allocation2 + $0x199] sm:$0xff]
  %v7122 = vld [vmem:[#allocation2 + $0x1a1] sm:$0x1]
  %v7123 = vmax.f32 %v7017, %v7070
  %v7124 = vmax.f32 %v7018, %v7071
  %v7125 = vmax.f32 %v7019, %v7072
  %v7126 = vmax.f32 %v7020, %v7073
  %v7127 = vmax.f32 %v7021, %v7074
  %v7128 = vmax.f32 %v7022, %v7075
  %v7129 = vmax.f32 %v7023, %v7076
  %v7130 = vmax.f32 %v7024, %v7077
  %v7131 = vmax.f32 %v7025, %v7078
  %v7132 = vmax.f32 %v7026, %v7079
  %v7133 = vmax.f32 %v7027, %v7080
  %v7134 = vmax.f32 %v7028, %v7081
  %v7135 = vmax.f32 %v7029, %v7082
  %v7136 = vmax.f32 %v7030, %v7083
  %v7137 = vmax.f32 %v7031, %v7084
  %v7138 = vmax.f32 %v7032, %v7085
  %v7139 = vmax.f32 %v7033, %v7086
  %v7140 = vmax.f32 %v7034, %v7087
  %v7141 = vmax.f32 %v7035, %v7088
  %v7142 = vmax.f32 %v7036, %v7089
  %v7143 = vmax.f32 %v7037, %v7090
  %v7144 = vmax.f32 %v7038, %v7091
  %v7145 = vmax.f32 %v7039, %v7092
  %v7146 = vmax.f32 %v7040, %v7093
  %v7147 = vmax.f32 %v7041, %v7094
  %v7148 = vmax.f32 %v7042, %v7095
  %v7149 = vmax.f32 %v7043, %v7096
  %v7150 = vmax.f32 %v7044, %v7097
  %v7151 = vmax.f32 %v7045, %v7098
  %v7152 = vmax.f32 %v7046, %v7099
  %v7153 = vmax.f32 %v7047, %v7100
  %v7154 = vmax.f32 %v7048, %v7101
  %v7155 = vmax.f32 %v7049, %v7102
  %v7156 = vmax.f32 %v7050, %v7103
  %v7157 = vmax.f32 %v7051, %v7104
  %v7158 = vmax.f32 %v7052, %v7105
  %v7159 = vmax.f32 %v7053, %v7106
  %v7160 = vmax.f32 %v7054, %v7107
  %v7161 = vmax.f32 %v7055, %v7108
  %v7162 = vmax.f32 %v7056, %v7109
  %v7163 = vmax.f32 %v7057, %v7110
  %v7164 = vmax.f32 %v7058, %v7111
  %v7165 = vmax.f32 %v7059, %v7112
  %v7166 = vmax.f32 %v7060, %v7113
  %v7167 = vmax.f32 %v7061, %v7114
  %v7168 = vmax.f32 %v7062, %v7115
  %v7169 = vmax.f32 %v7063, %v7116
  %v7170 = vmax.f32 %v7064, %v7117
  %v7171 = vmax.f32 %v7065, %v7118
  %v7172 = vmax.f32 %v7066, %v7119
  %v7173 = vmax.f32 %v7067, %v7120
  %v7174 = vmax.f32 %v7068, %v7121
  %v7175 = vmax.f32 %v7069, %v7122
  %7176 = vst [vmem:[#allocation3] sm:$0xff] %v7123
  %7177 = vst [vmem:[#allocation3 + $0x8] sm:$0xff] %v7124
  %7178 = vst [vmem:[#allocation3 + $0x10] sm:$0xff] %v7125
  %7179 = vst [vmem:[#allocation3 + $0x18] sm:$0xff] %v7126
  %7180 = vst [vmem:[#allocation3 + $0x20] sm:$0xff] %v7127
  %7181 = vst [vmem:[#allocation3 + $0x28] sm:$0xff] %v7128
  %7182 = vst [vmem:[#allocation3 + $0x30] sm:$0xff] %v7129
  %7183 = vst [vmem:[#allocation3 + $0x38] sm:$0xff] %v7130
  %7184 = vst [vmem:[#allocation3 + $0x40] sm:$0xff] %v7131
  %7185 = vst [vmem:[#allocation3 + $0x48] sm:$0xff] %v7132
  %7186 = vst [vmem:[#allocation3 + $0x50] sm:$0xff] %v7133
  %7187 = vst [vmem:[#allocation3 + $0x58] sm:$0xff] %v7134
  %7188 = vst [vmem:[#allocation3 + $0x60] sm:$0xff] %v7135
  %7189 = vst [vmem:[#allocation3 + $0x68] sm:$0xff] %v7136
  %7190 = vst [vmem:[#allocation3 + $0x70] sm:$0xff] %v7137
  %7191 = vst [vmem:[#allocation3 + $0x78] sm:$0xff] %v7138
  %7192 = vst [vmem:[#allocation3 + $0x80] sm:$0xff] %v7139
  %7193 = vst [vmem:[#allocation3 + $0x88] sm:$0xff] %v7140
  %7194 = vst [vmem:[#allocation3 + $0x90] sm:$0xff] %v7141
  %7195 = vst [vmem:[#allocation3 + $0x98] sm:$0xff] %v7142
  %7196 = vst [vmem:[#allocation3 + $0xa0] sm:$0xff] %v7143
  %7197 = vst [vmem:[#allocation3 + $0xa8] sm:$0xff] %v7144
  %7198 = vst [vmem:[#allocation3 + $0xb0] sm:$0xff] %v7145
  %7199 = vst [vmem:[#allocation3 + $0xb8] sm:$0xff] %v7146
  %7200 = vst [vmem:[#allocation3 + $0xc0] sm:$0xff] %v7147
  %7201 = vst [vmem:[#allocation3 + $0xc8] sm:$0xff] %v7148
  %7202 = vst [vmem:[#allocation3 + $0xd0] sm:$0xff] %v7149
  %7203 = vst [vmem:[#allocation3 + $0xd8] sm:$0xff] %v7150
  %7204 = vst [vmem:[#allocation3 + $0xe0] sm:$0xff] %v7151
  %7205 = vst [vmem:[#allocation3 + $0xe8] sm:$0xff] %v7152
  %7206 = vst [vmem:[#allocation3 + $0xf0] sm:$0xff] %v7153
  %7207 = vst [vmem:[#allocation3 + $0xf8] sm:$0xff] %v7154
  %7208 = vst [vmem:[#allocation3 + $0x100] sm:$0xff] %v7155
  %7209 = vst [vmem:[#allocation3 + $0x108] sm:$0xff] %v7156
  %7210 = vst [vmem:[#allocation3 + $0x110] sm:$0xff] %v7157
  %7211 = vst [vmem:[#allocation3 + $0x118] sm:$0xff] %v7158
  %7212 = vst [vmem:[#allocation3 + $0x120] sm:$0xff] %v7159
  %7213 = vst [vmem:[#allocation3 + $0x128] sm:$0xff] %v7160
  %7214 = vst [vmem:[#allocation3 + $0x130] sm:$0xff] %v7161
  %7215 = vst [vmem:[#allocation3 + $0x138] sm:$0xff] %v7162
  %7216 = vst [vmem:[#allocation3 + $0x140] sm:$0xff] %v7163
  %7217 = vst [vmem:[#allocation3 + $0x148] sm:$0xff] %v7164
  %7218 = vst [vmem:[#allocation3 + $0x150] sm:$0xff] %v7165
  %7219 = vst [vmem:[#allocation3 + $0x158] sm:$0xff] %v7166
  %7220 = vst [vmem:[#allocation3 + $0x160] sm:$0xff] %v7167
  %7221 = vst [vmem:[#allocation3 + $0x168] sm:$0xff] %v7168
  %7222 = vst [vmem:[#allocation3 + $0x170] sm:$0xff] %v7169
  %7223 = vst [vmem:[#allocation3 + $0x178] sm:$0xff] %v7170
  %7224 = vst [vmem:[#allocation3 + $0x180] sm:$0xff] %v7171
  %7225 = vst [vmem:[#allocation3 + $0x188] sm:$0xff] %v7172
  %7226 = vst [vmem:[#allocation3 + $0x190] sm:$0xff] %v7173
  %7227 = vst [vmem:[#allocation3 + $0x198] sm:$0xff] %v7174
  %7228 = vst [vmem:[#allocation3 + $0x1a0] sm:$0x1] %v7175
  %v7229 = vld [vmem:[#allocation3] sm:$0xff]
  %v7230 = vld [vmem:[#allocation3 + $0x8] sm:$0xff]
  %v7231 = vld [vmem:[#allocation3 + $0x10] sm:$0xff]
  %v7232 = vld [vmem:[#allocation3 + $0x18] sm:$0xff]
  %v7233 = vld [vmem:[#allocation3 + $0x20] sm:$0xff]
  %v7234 = vld [vmem:[#allocation3 + $0x28] sm:$0xff]
  %v7235 = vld [vmem:[#allocation3 + $0x30] sm:$0xff]
  %v7236 = vld [vmem:[#allocation3 + $0x38] sm:$0xff]
  %v7237 = vld [vmem:[#allocation3 + $0x40] sm:$0xff]
  %v7238 = vld [vmem:[#allocation3 + $0x48] sm:$0xff]
  %v7239 = vld [vmem:[#allocation3 + $0x50] sm:$0xff]
  %v7240 = vld [vmem:[#allocation3 + $0x58] sm:$0xff]
  %v7241 = vld [vmem:[#allocation3 + $0x60] sm:$0xff]
  %v7242 = vld [vmem:[#allocation3 + $0x68] sm:$0xff]
  %v7243 = vld [vmem:[#allocation3 + $0x70] sm:$0xff]
  %v7244 = vld [vmem:[#allocation3 + $0x78] sm:$0xff]
  %v7245 = vld [vmem:[#allocation3 + $0x80] sm:$0xff]
  %v7246 = vld [vmem:[#allocation3 + $0x88] sm:$0xff]
  %v7247 = vld [vmem:[#allocation3 + $0x90] sm:$0xff]
  %v7248 = vld [vmem:[#allocation3 + $0x98] sm:$0xff]
  %v7249 = vld [vmem:[#allocation3 + $0xa0] sm:$0xff]
  %v7250 = vld [vmem:[#allocation3 + $0xa8] sm:$0xff]
  %v7251 = vld [vmem:[#allocation3 + $0xb0] sm:$0xff]
  %v7252 = vld [vmem:[#allocation3 + $0xb8] sm:$0xff]
  %v7253 = vld [vmem:[#allocation3 + $0xc0] sm:$0xff]
  %v7254 = vld [vmem:[#allocation3 + $0xc8] sm:$0xff]
  %v7255 = vld [vmem:[#allocation3 + $0xd0] sm:$0xff]
  %v7256 = vld [vmem:[#allocation3 + $0xd8] sm:$0xff]
  %v7257 = vld [vmem:[#allocation3 + $0xe0] sm:$0xff]
  %v7258 = vld [vmem:[#allocation3 + $0xe8] sm:$0xff]
  %v7259 = vld [vmem:[#allocation3 + $0xf0] sm:$0xff]
  %v7260 = vld [vmem:[#allocation3 + $0xf8] sm:$0xff]
  %v7261 = vld [vmem:[#allocation3 + $0x100] sm:$0xff]
  %v7262 = vld [vmem:[#allocation3 + $0x108] sm:$0xff]
  %v7263 = vld [vmem:[#allocation3 + $0x110] sm:$0xff]
  %v7264 = vld [vmem:[#allocation3 + $0x118] sm:$0xff]
  %v7265 = vld [vmem:[#allocation3 + $0x120] sm:$0xff]
  %v7266 = vld [vmem:[#allocation3 + $0x128] sm:$0xff]
  %v7267 = vld [vmem:[#allocation3 + $0x130] sm:$0xff]
  %v7268 = vld [vmem:[#allocation3 + $0x138] sm:$0xff]
  %v7269 = vld [vmem:[#allocation3 + $0x140] sm:$0xff]
  %v7270 = vld [vmem:[#allocation3 + $0x148] sm:$0xff]
  %v7271 = vld [vmem:[#allocation3 + $0x150] sm:$0xff]
  %v7272 = vld [vmem:[#allocation3 + $0x158] sm:$0xff]
  %v7273 = vld [vmem:[#allocation3 + $0x160] sm:$0xff]
  %v7274 = vld [vmem:[#allocation3 + $0x168] sm:$0xff]
  %v7275 = vld [vmem:[#allocation3 + $0x170] sm:$0xff]
  %v7276 = vld [vmem:[#allocation3 + $0x178] sm:$0xff]
  %v7277 = vld [vmem:[#allocation3 + $0x180] sm:$0xff]
  %v7278 = vld [vmem:[#allocation3 + $0x188] sm:$0xff]
  %v7279 = vld [vmem:[#allocation3 + $0x190] sm:$0x3]
  %v7280 = vld [vmem:[#allocation3 + $0xf] sm:$0xff]
  %v7281 = vld [vmem:[#allocation3 + $0x17] sm:$0xff]
  %v7282 = vld [vmem:[#allocation3 + $0x1f] sm:$0xff]
  %v7283 = vld [vmem:[#allocation3 + $0x27] sm:$0xff]
  %v7284 = vld [vmem:[#allocation3 + $0x2f] sm:$0xff]
  %v7285 = vld [vmem:[#allocation3 + $0x37] sm:$0xff]
  %v7286 = vld [vmem:[#allocation3 + $0x3f] sm:$0xff]
  %v7287 = vld [vmem:[#allocation3 + $0x47] sm:$0xff]
  %v7288 = vld [vmem:[#allocation3 + $0x4f] sm:$0xff]
  %v7289 = vld [vmem:[#allocation3 + $0x57] sm:$0xff]
  %v7290 = vld [vmem:[#allocation3 + $0x5f] sm:$0xff]
  %v7291 = vld [vmem:[#allocation3 + $0x67] sm:$0xff]
  %v7292 = vld [vmem:[#allocation3 + $0x6f] sm:$0xff]
  %v7293 = vld [vmem:[#allocation3 + $0x77] sm:$0xff]
  %v7294 = vld [vmem:[#allocation3 + $0x7f] sm:$0xff]
  %v7295 = vld [vmem:[#allocation3 + $0x87] sm:$0xff]
  %v7296 = vld [vmem:[#allocation3 + $0x8f] sm:$0xff]
  %v7297 = vld [vmem:[#allocation3 + $0x97] sm:$0xff]
  %v7298 = vld [vmem:[#allocation3 + $0x9f] sm:$0xff]
  %v7299 = vld [vmem:[#allocation3 + $0xa7] sm:$0xff]
  %v7300 = vld [vmem:[#allocation3 + $0xaf] sm:$0xff]
  %v7301 = vld [vmem:[#allocation3 + $0xb7] sm:$0xff]
  %v7302 = vld [vmem:[#allocation3 + $0xbf] sm:$0xff]
  %v7303 = vld [vmem:[#allocation3 + $0xc7] sm:$0xff]
  %v7304 = vld [vmem:[#allocation3 + $0xcf] sm:$0xff]
  %v7305 = vld [vmem:[#allocation3 + $0xd7] sm:$0xff]
  %v7306 = vld [vmem:[#allocation3 + $0xdf] sm:$0xff]
  %v7307 = vld [vmem:[#allocation3 + $0xe7] sm:$0xff]
  %v7308 = vld [vmem:[#allocation3 + $0xef] sm:$0xff]
  %v7309 = vld [vmem:[#allocation3 + $0xf7] sm:$0xff]
  %v7310 = vld [vmem:[#allocation3 + $0xff] sm:$0xff]
  %v7311 = vld [vmem:[#allocation3 + $0x107] sm:$0xff]
  %v7312 = vld [vmem:[#allocation3 + $0x10f] sm:$0xff]
  %v7313 = vld [vmem:[#allocation3 + $0x117] sm:$0xff]
  %v7314 = vld [vmem:[#allocation3 + $0x11f] sm:$0xff]
  %v7315 = vld [vmem:[#allocation3 + $0x127] sm:$0xff]
  %v7316 = vld [vmem:[#allocation3 + $0x12f] sm:$0xff]
  %v7317 = vld [vmem:[#allocation3 + $0x137] sm:$0xff]
  %v7318 = vld [vmem:[#allocation3 + $0x13f] sm:$0xff]
  %v7319 = vld [vmem:[#allocation3 + $0x147] sm:$0xff]
  %v7320 = vld [vmem:[#allocation3 + $0x14f] sm:$0xff]
  %v7321 = vld [vmem:[#allocation3 + $0x157] sm:$0xff]
  %v7322 = vld [vmem:[#allocation3 + $0x15f] sm:$0xff]
  %v7323 = vld [vmem:[#allocation3 + $0x167] sm:$0xff]
  %v7324 = vld [vmem:[#allocation3 + $0x16f] sm:$0xff]
  %v7325 = vld [vmem:[#allocation3 + $0x177] sm:$0xff]
  %v7326 = vld [vmem:[#allocation3 + $0x17f] sm:$0xff]
  %v7327 = vld [vmem:[#allocation3 + $0x187] sm:$0xff]
  %v7328 = vld [vmem:[#allocation3 + $0x18f] sm:$0xff]
  %v7329 = vld [vmem:[#allocation3 + $0x197] sm:$0xff]
  %v7330 = vld [vmem:[#allocation3 + $0x19f] sm:$0x3]
  %v7331 = vmax.f32 %v7229, %v7280
  %v7332 = vmax.f32 %v7230, %v7281
  %v7333 = vmax.f32 %v7231, %v7282
  %v7334 = vmax.f32 %v7232, %v7283
  %v7335 = vmax.f32 %v7233, %v7284
  %v7336 = vmax.f32 %v7234, %v7285
  %v7337 = vmax.f32 %v7235, %v7286
  %v7338 = vmax.f32 %v7236, %v7287
  %v7339 = vmax.f32 %v7237, %v7288
  %v7340 = vmax.f32 %v7238, %v7289
  %v7341 = vmax.f32 %v7239, %v7290
  %v7342 = vmax.f32 %v7240, %v7291
  %v7343 = vmax.f32 %v7241, %v7292
  %v7344 = vmax.f32 %v7242, %v7293
  %v7345 = vmax.f32 %v7243, %v7294
  %v7346 = vmax.f32 %v7244, %v7295
  %v7347 = vmax.f32 %v7245, %v7296
  %v7348 = vmax.f32 %v7246, %v7297
  %v7349 = vmax.f32 %v7247, %v7298
  %v7350 = vmax.f32 %v7248, %v7299
  %v7351 = vmax.f32 %v7249, %v7300
  %v7352 = vmax.f32 %v7250, %v7301
  %v7353 = vmax.f32 %v7251, %v7302
  %v7354 = vmax.f32 %v7252, %v7303
  %v7355 = vmax.f32 %v7253, %v7304
  %v7356 = vmax.f32 %v7254, %v7305
  %v7357 = vmax.f32 %v7255, %v7306
  %v7358 = vmax.f32 %v7256, %v7307
  %v7359 = vmax.f32 %v7257, %v7308
  %v7360 = vmax.f32 %v7258, %v7309
  %v7361 = vmax.f32 %v7259, %v7310
  %v7362 = vmax.f32 %v7260, %v7311
  %v7363 = vmax.f32 %v7261, %v7312
  %v7364 = vmax.f32 %v7262, %v7313
  %v7365 = vmax.f32 %v7263, %v7314
  %v7366 = vmax.f32 %v7264, %v7315
  %v7367 = vmax.f32 %v7265, %v7316
  %v7368 = vmax.f32 %v7266, %v7317
  %v7369 = vmax.f32 %v7267, %v7318
  %v7370 = vmax.f32 %v7268, %v7319
  %v7371 = vmax.f32 %v7269, %v7320
  %v7372 = vmax.f32 %v7270, %v7321
  %v7373 = vmax.f32 %v7271, %v7322
  %v7374 = vmax.f32 %v7272, %v7323
  %v7375 = vmax.f32 %v7273, %v7324
  %v7376 = vmax.f32 %v7274, %v7325
  %v7377 = vmax.f32 %v7275, %v7326
  %v7378 = vmax.f32 %v7276, %v7327
  %v7379 = vmax.f32 %v7277, %v7328
  %v7380 = vmax.f32 %v7278, %v7329
  %v7381 = vmax.f32 %v7279, %v7330
  %7382 = vst [vmem:[#allocation2] sm:$0xff] %v7331
  %7383 = vst [vmem:[#allocation2 + $0x8] sm:$0xff] %v7332
  %7384 = vst [vmem:[#allocation2 + $0x10] sm:$0xff] %v7333
  %7385 = vst [vmem:[#allocation2 + $0x18] sm:$0xff] %v7334
  %7386 = vst [vmem:[#allocation2 + $0x20] sm:$0xff] %v7335
  %7387 = vst [vmem:[#allocation2 + $0x28] sm:$0xff] %v7336
  %7388 = vst [vmem:[#allocation2 + $0x30] sm:$0xff] %v7337
  %7389 = vst [vmem:[#allocation2 + $0x38] sm:$0xff] %v7338
  %7390 = vst [vmem:[#allocation2 + $0x40] sm:$0xff] %v7339
  %7391 = vst [vmem:[#allocation2 + $0x48] sm:$0xff] %v7340
  %7392 = vst [vmem:[#allocation2 + $0x50] sm:$0xff] %v7341
  %7393 = vst [vmem:[#allocation2 + $0x58] sm:$0xff] %v7342
  %7394 = vst [vmem:[#allocation2 + $0x60] sm:$0xff] %v7343
  %7395 = vst [vmem:[#allocation2 + $0x68] sm:$0xff] %v7344
  %7396 = vst [vmem:[#allocation2 + $0x70] sm:$0xff] %v7345
  %7397 = vst [vmem:[#allocation2 + $0x78] sm:$0xff] %v7346
  %7398 = vst [vmem:[#allocation2 + $0x80] sm:$0xff] %v7347
  %7399 = vst [vmem:[#allocation2 + $0x88] sm:$0xff] %v7348
  %7400 = vst [vmem:[#allocation2 + $0x90] sm:$0xff] %v7349
  %7401 = vst [vmem:[#allocation2 + $0x98] sm:$0xff] %v7350
  %7402 = vst [vmem:[#allocation2 + $0xa0] sm:$0xff] %v7351
  %7403 = vst [vmem:[#allocation2 + $0xa8] sm:$0xff] %v7352
  %7404 = vst [vmem:[#allocation2 + $0xb0] sm:$0xff] %v7353
  %7405 = vst [vmem:[#allocation2 + $0xb8] sm:$0xff] %v7354
  %7406 = vst [vmem:[#allocation2 + $0xc0] sm:$0xff] %v7355
  %7407 = vst [vmem:[#allocation2 + $0xc8] sm:$0xff] %v7356
  %7408 = vst [vmem:[#allocation2 + $0xd0] sm:$0xff] %v7357
  %7409 = vst [vmem:[#allocation2 + $0xd8] sm:$0xff] %v7358
  %7410 = vst [vmem:[#allocation2 + $0xe0] sm:$0xff] %v7359
  %7411 = vst [vmem:[#allocation2 + $0xe8] sm:$0xff] %v7360
  %7412 = vst [vmem:[#allocation2 + $0xf0] sm:$0xff] %v7361
  %7413 = vst [vmem:[#allocation2 + $0xf8] sm:$0xff] %v7362
  %7414 = vst [vmem:[#allocation2 + $0x100] sm:$0xff] %v7363
  %7415 = vst [vmem:[#allocation2 + $0x108] sm:$0xff] %v7364
  %7416 = vst [vmem:[#allocation2 + $0x110] sm:$0xff] %v7365
  %7417 = vst [vmem:[#allocation2 + $0x118] sm:$0xff] %v7366
  %7418 = vst [vmem:[#allocation2 + $0x120] sm:$0xff] %v7367
  %7419 = vst [vmem:[#allocation2 + $0x128] sm:$0xff] %v7368
  %7420 = vst [vmem:[#allocation2 + $0x130] sm:$0xff] %v7369
  %7421 = vst [vmem:[#allocation2 + $0x138] sm:$0xff] %v7370
  %7422 = vst [vmem:[#allocation2 + $0x140] sm:$0xff] %v7371
  %7423 = vst [vmem:[#allocation2 + $0x148] sm:$0xff] %v7372
  %7424 = vst [vmem:[#allocation2 + $0x150] sm:$0xff] %v7373
  %7425 = vst [vmem:[#allocation2 + $0x158] sm:$0xff] %v7374
  %7426 = vst [vmem:[#allocation2 + $0x160] sm:$0xff] %v7375
  %7427 = vst [vmem:[#allocation2 + $0x168] sm:$0xff] %v7376
  %7428 = vst [vmem:[#allocation2 + $0x170] sm:$0xff] %v7377
  %7429 = vst [vmem:[#allocation2 + $0x178] sm:$0xff] %v7378
  %7430 = vst [vmem:[#allocation2 + $0x180] sm:$0xff] %v7379
  %7431 = vst [vmem:[#allocation2 + $0x188] sm:$0xff] %v7380
  %7432 = vst [vmem:[#allocation2 + $0x190] sm:$0x3] %v7381
  %v7433 = vld [vmem:[#allocation2] ss:$2 sm:$0x3f]
  %7434 = vst [vmem:[#allocation5] sm:$0x3f] %v7433
  %s7435 = scalar_lea.vmem [#allocation2], 30
  %v7436 = vld [vmem:[%s7435] ss:$2 sm:$0x3f]
  %7437 = vst [vmem:[#allocation5 + $0x6] sm:$0x3f] %v7436
  %v7438 = vld [vmem:[%s3596] ss:$2 sm:$0x3f]
  %7439 = vst [vmem:[#allocation5 + $0xc] sm:$0x3f] %v7438
  %s7440 = scalar_lea.vmem [#allocation2], 90
  %v7441 = vld [vmem:[%s7440] ss:$2 sm:$0x3f]
  %7442 = vst [vmem:[#allocation5 + $0x12] sm:$0x3f] %v7441
  %v7443 = vld [vmem:[%s3602] ss:$2 sm:$0x3f]
  %7444 = vst [vmem:[#allocation5 + $0x18] sm:$0x3f] %v7443
  %s7445 = scalar_lea.vmem [#allocation2], 150
  %v7446 = vld [vmem:[%s7445] ss:$2 sm:$0x3f]
  %7447 = vst [vmem:[#allocation5 + $0x1e] sm:$0x3f] %v7446
  %s7448 = scalar_lea.vmem [#allocation2], 225
  %v7449 = vld [vmem:[%s7448] ss:$2 sm:$0x3f]
  %7450 = vst [vmem:[#allocation5 + $0x24] sm:$0x3f] %v7449
  %s7451 = scalar_lea.vmem [#allocation2], 255
  %v7452 = vld [vmem:[%s7451] ss:$2 sm:$0x3f]
  %7453 = vst [vmem:[#allocation5 + $0x2a] sm:$0x3f] %v7452
  %s7454 = scalar_lea.vmem [#allocation2], 285
  %v7455 = vld [vmem:[%s7454] ss:$2 sm:$0x3f]
  %7456 = vst [vmem:[#allocation5 + $0x30] sm:$0x3f] %v7455
  %s7457 = scalar_lea.vmem [#allocation2], 315
  %v7458 = vld [vmem:[%s7457] ss:$2 sm:$0x3f]
  %7459 = vst [vmem:[#allocation5 + $0x36] sm:$0x3f] %v7458
  %s7460 = scalar_lea.vmem [#allocation2], 345
  %v7461 = vld [vmem:[%s7460] ss:$2 sm:$0x3f]
  %7462 = vst [vmem:[#allocation5 + $0x3c] sm:$0x3f] %v7461
  %s7463 = scalar_lea.vmem [#allocation2], 375
  %v7464 = vld [vmem:[%s7463] ss:$2 sm:$0x3f]
  %7465 = vst [vmem:[#allocation5 + $0x42] sm:$0x3f] %v7464
  %v7466 = vld [vmem:[#allocation5] sm:$0xff]
  %v7467 = vld [vmem:[#allocation5 + $0x8] sm:$0xff]
  %v7468 = vld [vmem:[#allocation5 + $0x10] sm:$0xff]
  %v7469 = vld [vmem:[#allocation5 + $0x18] sm:$0xff]
  %v7470 = vld [vmem:[#allocation5 + $0x20] sm:$0xff]
  %v7471 = vld [vmem:[#allocation5 + $0x28] sm:$0xff]
  %v7472 = vld [vmem:[#allocation5 + $0x30] sm:$0xff]
  %v7473 = vld [vmem:[#allocation5 + $0x38] sm:$0xff]
  %v7474 = vld [vmem:[#allocation5 + $0x40] sm:$0xff]
  %v7475 = vld [vmem:[%s4] sm:$0x1]
  %v7477 = vperm.slane %v7475, 0
  %v7479 = vadd.f32 %v7466, %v7477
  %v7480 = vadd.f32 %v7467, %v7477
  %v7481 = vadd.f32 %v7468, %v7477
  %v7482 = vadd.f32 %v7469, %v7477
  %v7483 = vadd.f32 %v7470, %v7477
  %v7484 = vadd.f32 %v7471, %v7477
  %v7485 = vadd.f32 %v7472, %v7477
  %v7486 = vadd.f32 %v7473, %v7477
  %v7487 = vadd.f32 %v7474, %v7477
  %v7488 = vmax.f32 %v7479, 0.0
  %v7489 = vmax.f32 %v7480, 0.0
  %v7490 = vmax.f32 %v7481, 0.0
  %v7491 = vmax.f32 %v7482, 0.0
  %v7492 = vmax.f32 %v7483, 0.0
  %v7493 = vmax.f32 %v7484, 0.0
  %v7494 = vmax.f32 %v7485, 0.0
  %v7495 = vmax.f32 %v7486, 0.0
  %v7496 = vmax.f32 %v7487, 0.0
  %7497 = vst [vmem:[#allocation5] sm:$0xff] %v7488
  %7498 = vst [vmem:[#allocation5 + $0x8] sm:$0xff] %v7489
  %7499 = vst [vmem:[#allocation5 + $0x10] sm:$0xff] %v7490
  %7500 = vst [vmem:[#allocation5 + $0x18] sm:$0xff] %v7491
  %7501 = vst [vmem:[#allocation5 + $0x20] sm:$0xff] %v7492
  %7502 = vst [vmem:[#allocation5 + $0x28] sm:$0xff] %v7493
  %7503 = vst [vmem:[#allocation5 + $0x30] sm:$0xff] %v7494
  %7504 = vst [vmem:[#allocation5 + $0x38] sm:$0xff] %v7495
  %7505 = vst [vmem:[#allocation5 + $0x40] sm:$0xff] %v7496
  %v7506 = vld [vmem:[#allocation5] sm:$0xff]
  %v7507 = vld [vmem:[#allocation5 + $0x8] sm:$0xff]
  %v7508 = vld [vmem:[#allocation5 + $0x10] sm:$0xff]
  %v7509 = vld [vmem:[#allocation5 + $0x18] sm:$0xff]
  %v7510 = vld [vmem:[#allocation5 + $0x20] sm:$0xff]
  %v7511 = vld [vmem:[#allocation5 + $0x28] sm:$0xff]
  %v7512 = vld [vmem:[#allocation5 + $0x30] sm:$0xff]
  %v7513 = vld [vmem:[#allocation5 + $0x38] sm:$0x3]
  %v7514 = vpack.c.bf16 %v7507, %v7506
  %v7515 = vpack.c.bf16 %v7509, %v7508
  %v7516 = vpack.c.bf16 %v7511, %v7510
  %v7517 = vpack.c.bf16 %v7513, %v7512
  %v7518 = vld [vmem:[%s5] sm:$0xf]
  %v7519 = vld [vmem:[%s5 + $0x4] sm:$0xf]
  %v7520 = vld [vmem:[%s5 + $0x8] sm:$0xf]
  %v7521 = vld [vmem:[%s5 + $0xc] sm:$0xf]
  %v7522 = vld [vmem:[%s5 + $0x10] sm:$0xf]
  %v7523 = vld [vmem:[%s5 + $0x14] sm:$0xf]
  %v7524 = vld [vmem:[%s5 + $0x18] sm:$0xf]
  %v7525 = vld [vmem:[%s5 + $0x1c] sm:$0xf]
  %v7526 = vld [vmem:[%s5 + $0x20] sm:$0xf]
  %v7527 = vld [vmem:[%s5 + $0x24] sm:$0xf]
  %v7528 = vld [vmem:[%s5 + $0x28] sm:$0xf]
  %v7529 = vld [vmem:[%s5 + $0x2c] sm:$0xf]
  %v7530 = vld [vmem:[%s5 + $0x30] sm:$0xf]
  %v7531 = vld [vmem:[%s5 + $0x34] sm:$0xf]
  %v7532 = vld [vmem:[%s5 + $0x38] sm:$0xf]
  %v7533 = vld [vmem:[%s5 + $0x3c] sm:$0xf]
  %v7534 = vld [vmem:[#allocation5 + $0x1] sm:$0xff]
  %v7535 = vld [vmem:[#allocation5 + $0x9] sm:$0xff]
  %v7536 = vld [vmem:[#allocation5 + $0x11] sm:$0xff]
  %v7537 = vld [vmem:[#allocation5 + $0x19] sm:$0xff]
  %v7538 = vld [vmem:[#allocation5 + $0x21] sm:$0xff]
  %v7539 = vld [vmem:[#allocation5 + $0x29] sm:$0xff]
  %v7540 = vld [vmem:[#allocation5 + $0x31] sm:$0xff]
  %v7541 = vld [vmem:[#allocation5 + $0x39] sm:$0x3]
  %v7542 = vpack.c.bf16 %v7535, %v7534
  %v7543 = vpack.c.bf16 %v7537, %v7536
  %v7544 = vpack.c.bf16 %v7539, %v7538
  %v7545 = vpack.c.bf16 %v7541, %v7540
  %s7546 = scalar_lea.vmem %s5, 64
  %v7547 = vld [vmem:[%s7546] sm:$0xf]
  %v7548 = vld [vmem:[%s7546 + $0x4] sm:$0xf]
  %v7549 = vld [vmem:[%s7546 + $0x8] sm:$0xf]
  %v7550 = vld [vmem:[%s7546 + $0xc] sm:$0xf]
  %v7551 = vld [vmem:[%s7546 + $0x10] sm:$0xf]
  %v7552 = vld [vmem:[%s7546 + $0x14] sm:$0xf]
  %v7553 = vld [vmem:[%s7546 + $0x18] sm:$0xf]
  %v7554 = vld [vmem:[%s7546 + $0x1c] sm:$0xf]
  %v7555 = vld [vmem:[%s7546 + $0x20] sm:$0xf]
  %v7556 = vld [vmem:[%s7546 + $0x24] sm:$0xf]
  %v7557 = vld [vmem:[%s7546 + $0x28] sm:$0xf]
  %v7558 = vld [vmem:[%s7546 + $0x2c] sm:$0xf]
  %v7559 = vld [vmem:[%s7546 + $0x30] sm:$0xf]
  %v7560 = vld [vmem:[%s7546 + $0x34] sm:$0xf]
  %v7561 = vld [vmem:[%s7546 + $0x38] sm:$0xf]
  %v7562 = vld [vmem:[%s7546 + $0x3c] sm:$0xf]
  %v7579 = vunpack.c.l.b16 %v7547
  %v7580 = vunpack.c.l.b16 %v7548
  %v7581 = vunpack.c.l.b16 %v7549
  %v7582 = vunpack.c.l.b16 %v7550
  %v7583 = vunpack.c.l.b16 %v7551
  %v7584 = vunpack.c.l.b16 %v7552
  %v7585 = vunpack.c.l.b16 %v7553
  %v7586 = vunpack.c.l.b16 %v7554
  %v7587 = vunpack.c.l.b16 %v7555
  %v7588 = vunpack.c.l.b16 %v7556
  %v7589 = vunpack.c.l.b16 %v7557
  %v7590 = vunpack.c.l.b16 %v7558
  %v7591 = vunpack.c.l.b16 %v7559
  %v7592 = vunpack.c.l.b16 %v7560
  %v7593 = vunpack.c.l.b16 %v7561
  %v7594 = vunpack.c.l.b16 %v7562
  %v7595 = vpack.c.b16 %v7580, %v7579
  %v7596 = vpack.c.b16 %v7582, %v7581
  %v7597 = vpack.c.b16 %v7584, %v7583
  %v7598 = vpack.c.b16 %v7586, %v7585
  %v7599 = vpack.c.b16 %v7588, %v7587
  %v7600 = vpack.c.b16 %v7590, %v7589
  %v7601 = vpack.c.b16 %v7592, %v7591
  %v7602 = vpack.c.b16 %v7594, %v7593
  %7611 = vmatpush.bf16.msra.mxu0 %v7602
  %7612 = vmatpush.bf16.msra.mxu0 %v7601
  %7613 = vmatpush.bf16.msra.mxu0 %v7600
  %7614 = vmatpush.bf16.msra.mxu0 %v7599
  %7615 = vmatpush.bf16.msra.mxu0 %v7598
  %7616 = vmatpush.bf16.msra.mxu0 %v7597
  %7617 = vmatpush.bf16.msra.mxu0 %v7596
  %7618 = vmatpush.bf16.msra.mxu0 %v7595
  %7619 = vmatmul.bf16.gmra.mxu0 %v7542
  %v7620 = vpop.f32.mrf.mxu0
  %v7621 = vadd.f32 0.0, %v7620
  %v7622 = vpop.f32.mrf.mxu0
  %v7623 = vadd.f32 0.0, %v7622
  %7624 = vmatmul.bf16.gmra.mxu0 %v7543
  %v7625 = vpop.f32.mrf.mxu0
  %v7626 = vadd.f32 0.0, %v7625
  %v7627 = vpop.f32.mrf.mxu0
  %v7628 = vadd.f32 0.0, %v7627
  %7629 = vmatmul.bf16.gmra.mxu0 %v7544
  %v7630 = vpop.f32.mrf.mxu0
  %v7631 = vadd.f32 0.0, %v7630
  %v7632 = vpop.f32.mrf.mxu0
  %v7633 = vadd.f32 0.0, %v7632
  %7634 = vmatmul.bf16.gmra.mxu0 %v7545
  %v7635 = vpop.f32.mrf.mxu0
  %v7636 = vadd.f32 0.0, %v7635
  %v7637 = vpop.f32.mrf.mxu0
  %v7638 = vadd.f32 0.0, %v7637
  %7639 = vdwg.mxu0
  %v7656 = vunpack.c.l.b16 %v7518
  %v7657 = vunpack.c.l.b16 %v7519
  %v7658 = vunpack.c.l.b16 %v7520
  %v7659 = vunpack.c.l.b16 %v7521
  %v7660 = vunpack.c.l.b16 %v7522
  %v7661 = vunpack.c.l.b16 %v7523
  %v7662 = vunpack.c.l.b16 %v7524
  %v7663 = vunpack.c.l.b16 %v7525
  %v7664 = vunpack.c.l.b16 %v7526
  %v7665 = vunpack.c.l.b16 %v7527
  %v7666 = vunpack.c.l.b16 %v7528
  %v7667 = vunpack.c.l.b16 %v7529
  %v7668 = vunpack.c.l.b16 %v7530
  %v7669 = vunpack.c.l.b16 %v7531
  %v7670 = vunpack.c.l.b16 %v7532
  %v7671 = vunpack.c.l.b16 %v7533
  %v7672 = vpack.c.b16 %v7657, %v7656
  %v7673 = vpack.c.b16 %v7659, %v7658
  %v7674 = vpack.c.b16 %v7661, %v7660
  %v7675 = vpack.c.b16 %v7663, %v7662
  %v7676 = vpack.c.b16 %v7665, %v7664
  %v7677 = vpack.c.b16 %v7667, %v7666
  %v7678 = vpack.c.b16 %v7669, %v7668
  %v7679 = vpack.c.b16 %v7671, %v7670
  %7688 = vmatpush.bf16.msra.mxu0 %v7679
  %7689 = vmatpush.bf16.msra.mxu0 %v7678
  %7690 = vmatpush.bf16.msra.mxu0 %v7677
  %7691 = vmatpush.bf16.msra.mxu0 %v7676
  %7692 = vmatpush.bf16.msra.mxu0 %v7675
  %7693 = vmatpush.bf16.msra.mxu0 %v7674
  %7694 = vmatpush.bf16.msra.mxu0 %v7673
  %7695 = vmatpush.bf16.msra.mxu0 %v7672
  %7696 = vmatmul.bf16.gmra.mxu0 %v7514
  %v7697 = vpop.f32.mrf.mxu0
  %v7698 = vadd.f32 %v7621, %v7697
  %v7699 = vpop.f32.mrf.mxu0
  %v7700 = vadd.f32 %v7623, %v7699
  %7701 = vmatmul.bf16.gmra.mxu0 %v7515
  %v7702 = vpop.f32.mrf.mxu0
  %v7703 = vadd.f32 %v7626, %v7702
  %v7704 = vpop.f32.mrf.mxu0
  %v7705 = vadd.f32 %v7628, %v7704
  %7706 = vmatmul.bf16.gmra.mxu0 %v7516
  %v7707 = vpop.f32.mrf.mxu0
  %v7708 = vadd.f32 %v7631, %v7707
  %v7709 = vpop.f32.mrf.mxu0
  %v7710 = vadd.f32 %v7633, %v7709
  %7711 = vmatmul.bf16.gmra.mxu0 %v7517
  %v7712 = vpop.f32.mrf.mxu0
  %v7713 = vadd.f32 %v7636, %v7712
  %v7714 = vpop.f32.mrf.mxu0
  %v7715 = vadd.f32 %v7638, %v7714
  %7716 = vdwg.mxu0
  %v7717 = vld [vmem:[#allocation5 + $0x2] sm:$0xff]
  %v7718 = vld [vmem:[#allocation5 + $0xa] sm:$0xff]
  %v7719 = vld [vmem:[#allocation5 + $0x12] sm:$0xff]
  %v7720 = vld [vmem:[#allocation5 + $0x1a] sm:$0xff]
  %v7721 = vld [vmem:[#allocation5 + $0x22] sm:$0xff]
  %v7722 = vld [vmem:[#allocation5 + $0x2a] sm:$0xff]
  %v7723 = vld [vmem:[#allocation5 + $0x32] sm:$0xff]
  %v7724 = vld [vmem:[#allocation5 + $0x3a] sm:$0x3]
  %v7725 = vpack.c.bf16 %v7718, %v7717
  %v7726 = vpack.c.bf16 %v7720, %v7719
  %v7727 = vpack.c.bf16 %v7722, %v7721
  %v7728 = vpack.c.bf16 %v7724, %v7723
  %s7729 = scalar_lea.vmem %s5, 128
  %v7730 = vld [vmem:[%s7729] sm:$0xf]
  %v7731 = vld [vmem:[%s7729 + $0x4] sm:$0xf]
  %v7732 = vld [vmem:[%s7729 + $0x8] sm:$0xf]
  %v7733 = vld [vmem:[%s7729 + $0xc] sm:$0xf]
  %v7734 = vld [vmem:[%s7729 + $0x10] sm:$0xf]
  %v7735 = vld [vmem:[%s7729 + $0x14] sm:$0xf]
  %v7736 = vld [vmem:[%s7729 + $0x18] sm:$0xf]
  %v7737 = vld [vmem:[%s7729 + $0x1c] sm:$0xf]
  %v7738 = vld [vmem:[%s7729 + $0x20] sm:$0xf]
  %v7739 = vld [vmem:[%s7729 + $0x24] sm:$0xf]
  %v7740 = vld [vmem:[%s7729 + $0x28] sm:$0xf]
  %v7741 = vld [vmem:[%s7729 + $0x2c] sm:$0xf]
  %v7742 = vld [vmem:[%s7729 + $0x30] sm:$0xf]
  %v7743 = vld [vmem:[%s7729 + $0x34] sm:$0xf]
  %v7744 = vld [vmem:[%s7729 + $0x38] sm:$0xf]
  %v7745 = vld [vmem:[%s7729 + $0x3c] sm:$0xf]
  %v7762 = vunpack.c.l.b16 %v7730
  %v7763 = vunpack.c.l.b16 %v7731
  %v7764 = vunpack.c.l.b16 %v7732
  %v7765 = vunpack.c.l.b16 %v7733
  %v7766 = vunpack.c.l.b16 %v7734
  %v7767 = vunpack.c.l.b16 %v7735
  %v7768 = vunpack.c.l.b16 %v7736
  %v7769 = vunpack.c.l.b16 %v7737
  %v7770 = vunpack.c.l.b16 %v7738
  %v7771 = vunpack.c.l.b16 %v7739
  %v7772 = vunpack.c.l.b16 %v7740
  %v7773 = vunpack.c.l.b16 %v7741
  %v7774 = vunpack.c.l.b16 %v7742
  %v7775 = vunpack.c.l.b16 %v7743
  %v7776 = vunpack.c.l.b16 %v7744
  %v7777 = vunpack.c.l.b16 %v7745
  %v7778 = vpack.c.b16 %v7763, %v7762
  %v7779 = vpack.c.b16 %v7765, %v7764
  %v7780 = vpack.c.b16 %v7767, %v7766
  %v7781 = vpack.c.b16 %v7769, %v7768
  %v7782 = vpack.c.b16 %v7771, %v7770
  %v7783 = vpack.c.b16 %v7773, %v7772
  %v7784 = vpack.c.b16 %v7775, %v7774
  %v7785 = vpack.c.b16 %v7777, %v7776
  %7794 = vmatpush.bf16.msra.mxu0 %v7785
  %7795 = vmatpush.bf16.msra.mxu0 %v7784
  %7796 = vmatpush.bf16.msra.mxu0 %v7783
  %7797 = vmatpush.bf16.msra.mxu0 %v7782
  %7798 = vmatpush.bf16.msra.mxu0 %v7781
  %7799 = vmatpush.bf16.msra.mxu0 %v7780
  %7800 = vmatpush.bf16.msra.mxu0 %v7779
  %7801 = vmatpush.bf16.msra.mxu0 %v7778
  %7802 = vmatmul.bf16.gmra.mxu0 %v7725
  %v7803 = vpop.f32.mrf.mxu0
  %v7804 = vadd.f32 0.0, %v7803
  %v7805 = vpop.f32.mrf.mxu0
  %v7806 = vadd.f32 0.0, %v7805
  %7807 = vmatmul.bf16.gmra.mxu0 %v7726
  %v7808 = vpop.f32.mrf.mxu0
  %v7809 = vadd.f32 0.0, %v7808
  %v7810 = vpop.f32.mrf.mxu0
  %v7811 = vadd.f32 0.0, %v7810
  %7812 = vmatmul.bf16.gmra.mxu0 %v7727
  %v7813 = vpop.f32.mrf.mxu0
  %v7814 = vadd.f32 0.0, %v7813
  %v7815 = vpop.f32.mrf.mxu0
  %v7816 = vadd.f32 0.0, %v7815
  %7817 = vmatmul.bf16.gmra.mxu0 %v7728
  %v7818 = vpop.f32.mrf.mxu0
  %v7819 = vadd.f32 0.0, %v7818
  %v7820 = vpop.f32.mrf.mxu0
  %v7821 = vadd.f32 0.0, %v7820
  %7822 = vdwg.mxu0
  %v7823 = vadd.f32 %v7698, %v7804
  %v7824 = vadd.f32 %v7700, %v7806
  %v7825 = vadd.f32 %v7703, %v7809
  %v7826 = vadd.f32 %v7705, %v7811
  %v7827 = vadd.f32 %v7708, %v7814
  %v7828 = vadd.f32 %v7710, %v7816
  %v7829 = vadd.f32 %v7713, %v7819
  %v7830 = vadd.f32 %v7715, %v7821
  %v7831 = vld [vmem:[#allocation5 + $0x6] sm:$0xff]
  %v7832 = vld [vmem:[#allocation5 + $0xe] sm:$0xff]
  %v7833 = vld [vmem:[#allocation5 + $0x16] sm:$0xff]
  %v7834 = vld [vmem:[#allocation5 + $0x1e] sm:$0xff]
  %v7835 = vld [vmem:[#allocation5 + $0x26] sm:$0xff]
  %v7836 = vld [vmem:[#allocation5 + $0x2e] sm:$0xff]
  %v7837 = vld [vmem:[#allocation5 + $0x36] sm:$0xff]
  %v7838 = vld [vmem:[#allocation5 + $0x3e] sm:$0x3]
  %v7839 = vpack.c.bf16 %v7832, %v7831
  %v7840 = vpack.c.bf16 %v7834, %v7833
  %v7841 = vpack.c.bf16 %v7836, %v7835
  %v7842 = vpack.c.bf16 %v7838, %v7837
  %s7843 = scalar_lea.vmem %s5, 192
  %v7844 = vld [vmem:[%s7843] sm:$0xf]
  %v7845 = vld [vmem:[%s7843 + $0x4] sm:$0xf]
  %v7846 = vld [vmem:[%s7843 + $0x8] sm:$0xf]
  %v7847 = vld [vmem:[%s7843 + $0xc] sm:$0xf]
  %v7848 = vld [vmem:[%s7843 + $0x10] sm:$0xf]
  %v7849 = vld [vmem:[%s7843 + $0x14] sm:$0xf]
  %v7850 = vld [vmem:[%s7843 + $0x18] sm:$0xf]
  %v7851 = vld [vmem:[%s7843 + $0x1c] sm:$0xf]
  %v7852 = vld [vmem:[%s7843 + $0x20] sm:$0xf]
  %v7853 = vld [vmem:[%s7843 + $0x24] sm:$0xf]
  %v7854 = vld [vmem:[%s7843 + $0x28] sm:$0xf]
  %v7855 = vld [vmem:[%s7843 + $0x2c] sm:$0xf]
  %v7856 = vld [vmem:[%s7843 + $0x30] sm:$0xf]
  %v7857 = vld [vmem:[%s7843 + $0x34] sm:$0xf]
  %v7858 = vld [vmem:[%s7843 + $0x38] sm:$0xf]
  %v7859 = vld [vmem:[%s7843 + $0x3c] sm:$0xf]
  %v7876 = vunpack.c.l.b16 %v7844
  %v7877 = vunpack.c.l.b16 %v7845
  %v7878 = vunpack.c.l.b16 %v7846
  %v7879 = vunpack.c.l.b16 %v7847
  %v7880 = vunpack.c.l.b16 %v7848
  %v7881 = vunpack.c.l.b16 %v7849
  %v7882 = vunpack.c.l.b16 %v7850
  %v7883 = vunpack.c.l.b16 %v7851
  %v7884 = vunpack.c.l.b16 %v7852
  %v7885 = vunpack.c.l.b16 %v7853
  %v7886 = vunpack.c.l.b16 %v7854
  %v7887 = vunpack.c.l.b16 %v7855
  %v7888 = vunpack.c.l.b16 %v7856
  %v7889 = vunpack.c.l.b16 %v7857
  %v7890 = vunpack.c.l.b16 %v7858
  %v7891 = vunpack.c.l.b16 %v7859
  %v7892 = vpack.c.b16 %v7877, %v7876
  %v7893 = vpack.c.b16 %v7879, %v7878
  %v7894 = vpack.c.b16 %v7881, %v7880
  %v7895 = vpack.c.b16 %v7883, %v7882
  %v7896 = vpack.c.b16 %v7885, %v7884
  %v7897 = vpack.c.b16 %v7887, %v7886
  %v7898 = vpack.c.b16 %v7889, %v7888
  %v7899 = vpack.c.b16 %v7891, %v7890
  %7908 = vmatpush.bf16.msra.mxu0 %v7899
  %7909 = vmatpush.bf16.msra.mxu0 %v7898
  %7910 = vmatpush.bf16.msra.mxu0 %v7897
  %7911 = vmatpush.bf16.msra.mxu0 %v7896
  %7912 = vmatpush.bf16.msra.mxu0 %v7895
  %7913 = vmatpush.bf16.msra.mxu0 %v7894
  %7914 = vmatpush.bf16.msra.mxu0 %v7893
  %7915 = vmatpush.bf16.msra.mxu0 %v7892
  %7916 = vmatmul.bf16.gmra.mxu0 %v7839
  %v7917 = vpop.f32.mrf.mxu0
  %v7918 = vadd.f32 0.0, %v7917
  %v7919 = vpop.f32.mrf.mxu0
  %v7920 = vadd.f32 0.0, %v7919
  %7921 = vmatmul.bf16.gmra.mxu0 %v7840
  %v7922 = vpop.f32.mrf.mxu0
  %v7923 = vadd.f32 0.0, %v7922
  %v7924 = vpop.f32.mrf.mxu0
  %v7925 = vadd.f32 0.0, %v7924
  %7926 = vmatmul.bf16.gmra.mxu0 %v7841
  %v7927 = vpop.f32.mrf.mxu0
  %v7928 = vadd.f32 0.0, %v7927
  %v7929 = vpop.f32.mrf.mxu0
  %v7930 = vadd.f32 0.0, %v7929
  %7931 = vmatmul.bf16.gmra.mxu0 %v7842
  %v7932 = vpop.f32.mrf.mxu0
  %v7933 = vadd.f32 0.0, %v7932
  %v7934 = vpop.f32.mrf.mxu0
  %v7935 = vadd.f32 0.0, %v7934
  %7936 = vdwg.mxu0
  %v7937 = vadd.f32 %v7823, %v7918
  %v7938 = vadd.f32 %v7824, %v7920
  %v7939 = vadd.f32 %v7825, %v7923
  %v7940 = vadd.f32 %v7826, %v7925
  %v7941 = vadd.f32 %v7827, %v7928
  %v7942 = vadd.f32 %v7828, %v7930
  %v7943 = vadd.f32 %v7829, %v7933
  %v7944 = vadd.f32 %v7830, %v7935
  %v7945 = vld [vmem:[#allocation5 + $0x7] sm:$0xff]
  %v7946 = vld [vmem:[#allocation5 + $0xf] sm:$0xff]
  %v7947 = vld [vmem:[#allocation5 + $0x17] sm:$0xff]
  %v7948 = vld [vmem:[#allocation5 + $0x1f] sm:$0xff]
  %v7949 = vld [vmem:[#allocation5 + $0x27] sm:$0xff]
  %v7950 = vld [vmem:[#allocation5 + $0x2f] sm:$0xff]
  %v7951 = vld [vmem:[#allocation5 + $0x37] sm:$0xff]
  %v7952 = vld [vmem:[#allocation5 + $0x3f] sm:$0x3]
  %v7953 = vpack.c.bf16 %v7946, %v7945
  %v7954 = vpack.c.bf16 %v7948, %v7947
  %v7955 = vpack.c.bf16 %v7950, %v7949
  %v7956 = vpack.c.bf16 %v7952, %v7951
  %s7957 = scalar_lea.vmem %s5, 256
  %v7958 = vld [vmem:[%s7957] sm:$0xf]
  %v7959 = vld [vmem:[%s7957 + $0x4] sm:$0xf]
  %v7960 = vld [vmem:[%s7957 + $0x8] sm:$0xf]
  %v7961 = vld [vmem:[%s7957 + $0xc] sm:$0xf]
  %v7962 = vld [vmem:[%s7957 + $0x10] sm:$0xf]
  %v7963 = vld [vmem:[%s7957 + $0x14] sm:$0xf]
  %v7964 = vld [vmem:[%s7957 + $0x18] sm:$0xf]
  %v7965 = vld [vmem:[%s7957 + $0x1c] sm:$0xf]
  %v7966 = vld [vmem:[%s7957 + $0x20] sm:$0xf]
  %v7967 = vld [vmem:[%s7957 + $0x24] sm:$0xf]
  %v7968 = vld [vmem:[%s7957 + $0x28] sm:$0xf]
  %v7969 = vld [vmem:[%s7957 + $0x2c] sm:$0xf]
  %v7970 = vld [vmem:[%s7957 + $0x30] sm:$0xf]
  %v7971 = vld [vmem:[%s7957 + $0x34] sm:$0xf]
  %v7972 = vld [vmem:[%s7957 + $0x38] sm:$0xf]
  %v7973 = vld [vmem:[%s7957 + $0x3c] sm:$0xf]
  %v7990 = vunpack.c.l.b16 %v7958
  %v7991 = vunpack.c.l.b16 %v7959
  %v7992 = vunpack.c.l.b16 %v7960
  %v7993 = vunpack.c.l.b16 %v7961
  %v7994 = vunpack.c.l.b16 %v7962
  %v7995 = vunpack.c.l.b16 %v7963
  %v7996 = vunpack.c.l.b16 %v7964
  %v7997 = vunpack.c.l.b16 %v7965
  %v7998 = vunpack.c.l.b16 %v7966
  %v7999 = vunpack.c.l.b16 %v7967
  %v8000 = vunpack.c.l.b16 %v7968
  %v8001 = vunpack.c.l.b16 %v7969
  %v8002 = vunpack.c.l.b16 %v7970
  %v8003 = vunpack.c.l.b16 %v7971
  %v8004 = vunpack.c.l.b16 %v7972
  %v8005 = vunpack.c.l.b16 %v7973
  %v8006 = vpack.c.b16 %v7991, %v7990
  %v8007 = vpack.c.b16 %v7993, %v7992
  %v8008 = vpack.c.b16 %v7995, %v7994
  %v8009 = vpack.c.b16 %v7997, %v7996
  %v8010 = vpack.c.b16 %v7999, %v7998
  %v8011 = vpack.c.b16 %v8001, %v8000
  %v8012 = vpack.c.b16 %v8003, %v8002
  %v8013 = vpack.c.b16 %v8005, %v8004
  %8022 = vmatpush.bf16.msra.mxu0 %v8013
  %8023 = vmatpush.bf16.msra.mxu0 %v8012
  %8024 = vmatpush.bf16.msra.mxu0 %v8011
  %8025 = vmatpush.bf16.msra.mxu0 %v8010
  %8026 = vmatpush.bf16.msra.mxu0 %v8009
  %8027 = vmatpush.bf16.msra.mxu0 %v8008
  %8028 = vmatpush.bf16.msra.mxu0 %v8007
  %8029 = vmatpush.bf16.msra.mxu0 %v8006
  %8030 = vmatmul.bf16.gmra.mxu0 %v7953
  %v8031 = vpop.f32.mrf.mxu0
  %v8032 = vadd.f32 0.0, %v8031
  %v8033 = vpop.f32.mrf.mxu0
  %v8034 = vadd.f32 0.0, %v8033
  %8035 = vmatmul.bf16.gmra.mxu0 %v7954
  %v8036 = vpop.f32.mrf.mxu0
  %v8037 = vadd.f32 0.0, %v8036
  %v8038 = vpop.f32.mrf.mxu0
  %v8039 = vadd.f32 0.0, %v8038
  %8040 = vmatmul.bf16.gmra.mxu0 %v7955
  %v8041 = vpop.f32.mrf.mxu0
  %v8042 = vadd.f32 0.0, %v8041
  %v8043 = vpop.f32.mrf.mxu0
  %v8044 = vadd.f32 0.0, %v8043
  %8045 = vmatmul.bf16.gmra.mxu0 %v7956
  %v8046 = vpop.f32.mrf.mxu0
  %v8047 = vadd.f32 0.0, %v8046
  %v8048 = vpop.f32.mrf.mxu0
  %v8049 = vadd.f32 0.0, %v8048
  %8050 = vdwg.mxu0
  %v8051 = vadd.f32 %v7937, %v8032
  %v8052 = vadd.f32 %v7938, %v8034
  %v8053 = vadd.f32 %v7939, %v8037
  %v8054 = vadd.f32 %v7940, %v8039
  %v8055 = vadd.f32 %v7941, %v8042
  %v8056 = vadd.f32 %v7942, %v8044
  %v8057 = vadd.f32 %v7943, %v8047
  %v8058 = vadd.f32 %v7944, %v8049
  %v8059 = vld [vmem:[#allocation5 + $0x8] sm:$0xff]
  %v8060 = vld [vmem:[#allocation5 + $0x10] sm:$0xff]
  %v8061 = vld [vmem:[#allocation5 + $0x18] sm:$0xff]
  %v8062 = vld [vmem:[#allocation5 + $0x20] sm:$0xff]
  %v8063 = vld [vmem:[#allocation5 + $0x28] sm:$0xff]
  %v8064 = vld [vmem:[#allocation5 + $0x30] sm:$0xff]
  %v8065 = vld [vmem:[#allocation5 + $0x38] sm:$0xff]
  %v8066 = vld [vmem:[#allocation5 + $0x40] sm:$0x3]
  %v8067 = vpack.c.bf16 %v8060, %v8059
  %v8068 = vpack.c.bf16 %v8062, %v8061
  %v8069 = vpack.c.bf16 %v8064, %v8063
  %v8070 = vpack.c.bf16 %v8066, %v8065
  %s8071 = scalar_lea.vmem %s5, 320
  %v8072 = vld [vmem:[%s8071] sm:$0xf]
  %v8073 = vld [vmem:[%s8071 + $0x4] sm:$0xf]
  %v8074 = vld [vmem:[%s8071 + $0x8] sm:$0xf]
  %v8075 = vld [vmem:[%s8071 + $0xc] sm:$0xf]
  %v8076 = vld [vmem:[%s8071 + $0x10] sm:$0xf]
  %v8077 = vld [vmem:[%s8071 + $0x14] sm:$0xf]
  %v8078 = vld [vmem:[%s8071 + $0x18] sm:$0xf]
  %v8079 = vld [vmem:[%s8071 + $0x1c] sm:$0xf]
  %v8080 = vld [vmem:[%s8071 + $0x20] sm:$0xf]
  %v8081 = vld [vmem:[%s8071 + $0x24] sm:$0xf]
  %v8082 = vld [vmem:[%s8071 + $0x28] sm:$0xf]
  %v8083 = vld [vmem:[%s8071 + $0x2c] sm:$0xf]
  %v8084 = vld [vmem:[%s8071 + $0x30] sm:$0xf]
  %v8085 = vld [vmem:[%s8071 + $0x34] sm:$0xf]
  %v8086 = vld [vmem:[%s8071 + $0x38] sm:$0xf]
  %v8087 = vld [vmem:[%s8071 + $0x3c] sm:$0xf]
  %v8104 = vunpack.c.l.b16 %v8072
  %v8105 = vunpack.c.l.b16 %v8073
  %v8106 = vunpack.c.l.b16 %v8074
  %v8107 = vunpack.c.l.b16 %v8075
  %v8108 = vunpack.c.l.b16 %v8076
  %v8109 = vunpack.c.l.b16 %v8077
  %v8110 = vunpack.c.l.b16 %v8078
  %v8111 = vunpack.c.l.b16 %v8079
  %v8112 = vunpack.c.l.b16 %v8080
  %v8113 = vunpack.c.l.b16 %v8081
  %v8114 = vunpack.c.l.b16 %v8082
  %v8115 = vunpack.c.l.b16 %v8083
  %v8116 = vunpack.c.l.b16 %v8084
  %v8117 = vunpack.c.l.b16 %v8085
  %v8118 = vunpack.c.l.b16 %v8086
  %v8119 = vunpack.c.l.b16 %v8087
  %v8120 = vpack.c.b16 %v8105, %v8104
  %v8121 = vpack.c.b16 %v8107, %v8106
  %v8122 = vpack.c.b16 %v8109, %v8108
  %v8123 = vpack.c.b16 %v8111, %v8110
  %v8124 = vpack.c.b16 %v8113, %v8112
  %v8125 = vpack.c.b16 %v8115, %v8114
  %v8126 = vpack.c.b16 %v8117, %v8116
  %v8127 = vpack.c.b16 %v8119, %v8118
  %8136 = vmatpush.bf16.msra.mxu0 %v8127
  %8137 = vmatpush.bf16.msra.mxu0 %v8126
  %8138 = vmatpush.bf16.msra.mxu0 %v8125
  %8139 = vmatpush.bf16.msra.mxu0 %v8124
  %8140 = vmatpush.bf16.msra.mxu0 %v8123
  %8141 = vmatpush.bf16.msra.mxu0 %v8122
  %8142 = vmatpush.bf16.msra.mxu0 %v8121
  %8143 = vmatpush.bf16.msra.mxu0 %v8120
  %8144 = vmatmul.bf16.gmra.mxu0 %v8067
  %v8145 = vpop.f32.mrf.mxu0
  %v8146 = vadd.f32 0.0, %v8145
  %v8147 = vpop.f32.mrf.mxu0
  %v8148 = vadd.f32 0.0, %v8147
  %8149 = vmatmul.bf16.gmra.mxu0 %v8068
  %v8150 = vpop.f32.mrf.mxu0
  %v8151 = vadd.f32 0.0, %v8150
  %v8152 = vpop.f32.mrf.mxu0
  %v8153 = vadd.f32 0.0, %v8152
  %8154 = vmatmul.bf16.gmra.mxu0 %v8069
  %v8155 = vpop.f32.mrf.mxu0
  %v8156 = vadd.f32 0.0, %v8155
  %v8157 = vpop.f32.mrf.mxu0
  %v8158 = vadd.f32 0.0, %v8157
  %8159 = vmatmul.bf16.gmra.mxu0 %v8070
  %v8160 = vpop.f32.mrf.mxu0
  %v8161 = vadd.f32 0.0, %v8160
  %v8162 = vpop.f32.mrf.mxu0
  %v8163 = vadd.f32 0.0, %v8162
  %8164 = vdwg.mxu0
  %v8165 = vadd.f32 %v8051, %v8146
  %v8166 = vadd.f32 %v8052, %v8148
  %v8167 = vadd.f32 %v8053, %v8151
  %v8168 = vadd.f32 %v8054, %v8153
  %v8169 = vadd.f32 %v8055, %v8156
  %v8170 = vadd.f32 %v8056, %v8158
  %v8171 = vadd.f32 %v8057, %v8161
  %v8172 = vadd.f32 %v8058, %v8163
  %v8173 = vld [vmem:[#allocation5 + $0xc] sm:$0xff]
  %v8174 = vld [vmem:[#allocation5 + $0x14] sm:$0xff]
  %v8175 = vld [vmem:[#allocation5 + $0x1c] sm:$0xff]
  %v8176 = vld [vmem:[#allocation5 + $0x24] sm:$0xff]
  %v8177 = vld [vmem:[#allocation5 + $0x2c] sm:$0xff]
  %v8178 = vld [vmem:[#allocation5 + $0x34] sm:$0xff]
  %v8179 = vld [vmem:[#allocation5 + $0x3c] sm:$0xff]
  %v8180 = vld [vmem:[#allocation5 + $0x44] sm:$0x3]
  %v8181 = vpack.c.bf16 %v8174, %v8173
  %v8182 = vpack.c.bf16 %v8176, %v8175
  %v8183 = vpack.c.bf16 %v8178, %v8177
  %v8184 = vpack.c.bf16 %v8180, %v8179
  %s8185 = scalar_lea.vmem %s5, 384
  %v8186 = vld [vmem:[%s8185] sm:$0xf]
  %v8187 = vld [vmem:[%s8185 + $0x4] sm:$0xf]
  %v8188 = vld [vmem:[%s8185 + $0x8] sm:$0xf]
  %v8189 = vld [vmem:[%s8185 + $0xc] sm:$0xf]
  %v8190 = vld [vmem:[%s8185 + $0x10] sm:$0xf]
  %v8191 = vld [vmem:[%s8185 + $0x14] sm:$0xf]
  %v8192 = vld [vmem:[%s8185 + $0x18] sm:$0xf]
  %v8193 = vld [vmem:[%s8185 + $0x1c] sm:$0xf]
  %v8194 = vld [vmem:[%s8185 + $0x20] sm:$0xf]
  %v8195 = vld [vmem:[%s8185 + $0x24] sm:$0xf]
  %v8196 = vld [vmem:[%s8185 + $0x28] sm:$0xf]
  %v8197 = vld [vmem:[%s8185 + $0x2c] sm:$0xf]
  %v8198 = vld [vmem:[%s8185 + $0x30] sm:$0xf]
  %v8199 = vld [vmem:[%s8185 + $0x34] sm:$0xf]
  %v8200 = vld [vmem:[%s8185 + $0x38] sm:$0xf]
  %v8201 = vld [vmem:[%s8185 + $0x3c] sm:$0xf]
  %v8218 = vunpack.c.l.b16 %v8186
  %v8219 = vunpack.c.l.b16 %v8187
  %v8220 = vunpack.c.l.b16 %v8188
  %v8221 = vunpack.c.l.b16 %v8189
  %v8222 = vunpack.c.l.b16 %v8190
  %v8223 = vunpack.c.l.b16 %v8191
  %v8224 = vunpack.c.l.b16 %v8192
  %v8225 = vunpack.c.l.b16 %v8193
  %v8226 = vunpack.c.l.b16 %v8194
  %v8227 = vunpack.c.l.b16 %v8195
  %v8228 = vunpack.c.l.b16 %v8196
  %v8229 = vunpack.c.l.b16 %v8197
  %v8230 = vunpack.c.l.b16 %v8198
  %v8231 = vunpack.c.l.b16 %v8199
  %v8232 = vunpack.c.l.b16 %v8200
  %v8233 = vunpack.c.l.b16 %v8201
  %v8234 = vpack.c.b16 %v8219, %v8218
  %v8235 = vpack.c.b16 %v8221, %v8220
  %v8236 = vpack.c.b16 %v8223, %v8222
  %v8237 = vpack.c.b16 %v8225, %v8224
  %v8238 = vpack.c.b16 %v8227, %v8226
  %v8239 = vpack.c.b16 %v8229, %v8228
  %v8240 = vpack.c.b16 %v8231, %v8230
  %v8241 = vpack.c.b16 %v8233, %v8232
  %8250 = vmatpush.bf16.msra.mxu0 %v8241
  %8251 = vmatpush.bf16.msra.mxu0 %v8240
  %8252 = vmatpush.bf16.msra.mxu0 %v8239
  %8253 = vmatpush.bf16.msra.mxu0 %v8238
  %8254 = vmatpush.bf16.msra.mxu0 %v8237
  %8255 = vmatpush.bf16.msra.mxu0 %v8236
  %8256 = vmatpush.bf16.msra.mxu0 %v8235
  %8257 = vmatpush.bf16.msra.mxu0 %v8234
  %8258 = vmatmul.bf16.gmra.mxu0 %v8181
  %v8259 = vpop.f32.mrf.mxu0
  %v8260 = vadd.f32 0.0, %v8259
  %v8261 = vpop.f32.mrf.mxu0
  %v8262 = vadd.f32 0.0, %v8261
  %8263 = vmatmul.bf16.gmra.mxu0 %v8182
  %v8264 = vpop.f32.mrf.mxu0
  %v8265 = vadd.f32 0.0, %v8264
  %v8266 = vpop.f32.mrf.mxu0
  %v8267 = vadd.f32 0.0, %v8266
  %8268 = vmatmul.bf16.gmra.mxu0 %v8183
  %v8269 = vpop.f32.mrf.mxu0
  %v8270 = vadd.f32 0.0, %v8269
  %v8271 = vpop.f32.mrf.mxu0
  %v8272 = vadd.f32 0.0, %v8271
  %8273 = vmatmul.bf16.gmra.mxu0 %v8184
  %v8274 = vpop.f32.mrf.mxu0
  %v8275 = vadd.f32 0.0, %v8274
  %v8276 = vpop.f32.mrf.mxu0
  %v8277 = vadd.f32 0.0, %v8276
  %8278 = vdwg.mxu0
  %v8279 = vadd.f32 %v8165, %v8260
  %v8280 = vadd.f32 %v8166, %v8262
  %v8281 = vadd.f32 %v8167, %v8265
  %v8282 = vadd.f32 %v8168, %v8267
  %v8283 = vadd.f32 %v8169, %v8270
  %v8284 = vadd.f32 %v8170, %v8272
  %v8285 = vadd.f32 %v8171, %v8275
  %v8286 = vadd.f32 %v8172, %v8277
  %v8287 = vld [vmem:[#allocation5 + $0xd] sm:$0xff]
  %v8288 = vld [vmem:[#allocation5 + $0x15] sm:$0xff]
  %v8289 = vld [vmem:[#allocation5 + $0x1d] sm:$0xff]
  %v8290 = vld [vmem:[#allocation5 + $0x25] sm:$0xff]
  %v8291 = vld [vmem:[#allocation5 + $0x2d] sm:$0xff]
  %v8292 = vld [vmem:[#allocation5 + $0x35] sm:$0xff]
  %v8293 = vld [vmem:[#allocation5 + $0x3d] sm:$0xff]
  %v8294 = vld [vmem:[#allocation5 + $0x45] sm:$0x3]
  %v8295 = vpack.c.bf16 %v8288, %v8287
  %v8296 = vpack.c.bf16 %v8290, %v8289
  %v8297 = vpack.c.bf16 %v8292, %v8291
  %v8298 = vpack.c.bf16 %v8294, %v8293
  %s8299 = scalar_lea.vmem %s5, 448
  %v8300 = vld [vmem:[%s8299] sm:$0xf]
  %v8301 = vld [vmem:[%s8299 + $0x4] sm:$0xf]
  %v8302 = vld [vmem:[%s8299 + $0x8] sm:$0xf]
  %v8303 = vld [vmem:[%s8299 + $0xc] sm:$0xf]
  %v8304 = vld [vmem:[%s8299 + $0x10] sm:$0xf]
  %v8305 = vld [vmem:[%s8299 + $0x14] sm:$0xf]
  %v8306 = vld [vmem:[%s8299 + $0x18] sm:$0xf]
  %v8307 = vld [vmem:[%s8299 + $0x1c] sm:$0xf]
  %v8308 = vld [vmem:[%s8299 + $0x20] sm:$0xf]
  %v8309 = vld [vmem:[%s8299 + $0x24] sm:$0xf]
  %v8310 = vld [vmem:[%s8299 + $0x28] sm:$0xf]
  %v8311 = vld [vmem:[%s8299 + $0x2c] sm:$0xf]
  %v8312 = vld [vmem:[%s8299 + $0x30] sm:$0xf]
  %v8313 = vld [vmem:[%s8299 + $0x34] sm:$0xf]
  %v8314 = vld [vmem:[%s8299 + $0x38] sm:$0xf]
  %v8315 = vld [vmem:[%s8299 + $0x3c] sm:$0xf]
  %v8332 = vunpack.c.l.b16 %v8300
  %v8333 = vunpack.c.l.b16 %v8301
  %v8334 = vunpack.c.l.b16 %v8302
  %v8335 = vunpack.c.l.b16 %v8303
  %v8336 = vunpack.c.l.b16 %v8304
  %v8337 = vunpack.c.l.b16 %v8305
  %v8338 = vunpack.c.l.b16 %v8306
  %v8339 = vunpack.c.l.b16 %v8307
  %v8340 = vunpack.c.l.b16 %v8308
  %v8341 = vunpack.c.l.b16 %v8309
  %v8342 = vunpack.c.l.b16 %v8310
  %v8343 = vunpack.c.l.b16 %v8311
  %v8344 = vunpack.c.l.b16 %v8312
  %v8345 = vunpack.c.l.b16 %v8313
  %v8346 = vunpack.c.l.b16 %v8314
  %v8347 = vunpack.c.l.b16 %v8315
  %v8348 = vpack.c.b16 %v8333, %v8332
  %v8349 = vpack.c.b16 %v8335, %v8334
  %v8350 = vpack.c.b16 %v8337, %v8336
  %v8351 = vpack.c.b16 %v8339, %v8338
  %v8352 = vpack.c.b16 %v8341, %v8340
  %v8353 = vpack.c.b16 %v8343, %v8342
  %v8354 = vpack.c.b16 %v8345, %v8344
  %v8355 = vpack.c.b16 %v8347, %v8346
  %8364 = vmatpush.bf16.msra.mxu0 %v8355
  %8365 = vmatpush.bf16.msra.mxu0 %v8354
  %8366 = vmatpush.bf16.msra.mxu0 %v8353
  %8367 = vmatpush.bf16.msra.mxu0 %v8352
  %8368 = vmatpush.bf16.msra.mxu0 %v8351
  %8369 = vmatpush.bf16.msra.mxu0 %v8350
  %8370 = vmatpush.bf16.msra.mxu0 %v8349
  %8371 = vmatpush.bf16.msra.mxu0 %v8348
  %8372 = vmatmul.bf16.gmra.mxu0 %v8295
  %v8373 = vpop.f32.mrf.mxu0
  %v8374 = vadd.f32 0.0, %v8373
  %v8375 = vpop.f32.mrf.mxu0
  %v8376 = vadd.f32 0.0, %v8375
  %8377 = vmatmul.bf16.gmra.mxu0 %v8296
  %v8378 = vpop.f32.mrf.mxu0
  %v8379 = vadd.f32 0.0, %v8378
  %v8380 = vpop.f32.mrf.mxu0
  %v8381 = vadd.f32 0.0, %v8380
  %8382 = vmatmul.bf16.gmra.mxu0 %v8297
  %v8383 = vpop.f32.mrf.mxu0
  %v8384 = vadd.f32 0.0, %v8383
  %v8385 = vpop.f32.mrf.mxu0
  %v8386 = vadd.f32 0.0, %v8385
  %8387 = vmatmul.bf16.gmra.mxu0 %v8298
  %v8388 = vpop.f32.mrf.mxu0
  %v8389 = vadd.f32 0.0, %v8388
  %v8390 = vpop.f32.mrf.mxu0
  %v8391 = vadd.f32 0.0, %v8390
  %8392 = vdwg.mxu0
  %v8393 = vadd.f32 %v8279, %v8374
  %v8394 = vadd.f32 %v8280, %v8376
  %v8395 = vadd.f32 %v8281, %v8379
  %v8396 = vadd.f32 %v8282, %v8381
  %v8397 = vadd.f32 %v8283, %v8384
  %v8398 = vadd.f32 %v8284, %v8386
  %v8399 = vadd.f32 %v8285, %v8389
  %v8400 = vadd.f32 %v8286, %v8391
  %v8401 = vld [vmem:[#allocation5 + $0xe] sm:$0xff]
  %v8402 = vld [vmem:[#allocation5 + $0x16] sm:$0xff]
  %v8403 = vld [vmem:[#allocation5 + $0x1e] sm:$0xff]
  %v8404 = vld [vmem:[#allocation5 + $0x26] sm:$0xff]
  %v8405 = vld [vmem:[#allocation5 + $0x2e] sm:$0xff]
  %v8406 = vld [vmem:[#allocation5 + $0x36] sm:$0xff]
  %v8407 = vld [vmem:[#allocation5 + $0x3e] sm:$0xff]
  %v8408 = vld [vmem:[#allocation5 + $0x46] sm:$0x3]
  %v8409 = vpack.c.bf16 %v8402, %v8401
  %v8410 = vpack.c.bf16 %v8404, %v8403
  %v8411 = vpack.c.bf16 %v8406, %v8405
  %v8412 = vpack.c.bf16 %v8408, %v8407
  %s8413 = scalar_lea.vmem %s5, 512
  %v8414 = vld [vmem:[%s8413] sm:$0xf]
  %v8415 = vld [vmem:[%s8413 + $0x4] sm:$0xf]
  %v8416 = vld [vmem:[%s8413 + $0x8] sm:$0xf]
  %v8417 = vld [vmem:[%s8413 + $0xc] sm:$0xf]
  %v8418 = vld [vmem:[%s8413 + $0x10] sm:$0xf]
  %v8419 = vld [vmem:[%s8413 + $0x14] sm:$0xf]
  %v8420 = vld [vmem:[%s8413 + $0x18] sm:$0xf]
  %v8421 = vld [vmem:[%s8413 + $0x1c] sm:$0xf]
  %v8422 = vld [vmem:[%s8413 + $0x20] sm:$0xf]
  %v8423 = vld [vmem:[%s8413 + $0x24] sm:$0xf]
  %v8424 = vld [vmem:[%s8413 + $0x28] sm:$0xf]
  %v8425 = vld [vmem:[%s8413 + $0x2c] sm:$0xf]
  %v8426 = vld [vmem:[%s8413 + $0x30] sm:$0xf]
  %v8427 = vld [vmem:[%s8413 + $0x34] sm:$0xf]
  %v8428 = vld [vmem:[%s8413 + $0x38] sm:$0xf]
  %v8429 = vld [vmem:[%s8413 + $0x3c] sm:$0xf]
  %v8446 = vunpack.c.l.b16 %v8414
  %v8447 = vunpack.c.l.b16 %v8415
  %v8448 = vunpack.c.l.b16 %v8416
  %v8449 = vunpack.c.l.b16 %v8417
  %v8450 = vunpack.c.l.b16 %v8418
  %v8451 = vunpack.c.l.b16 %v8419
  %v8452 = vunpack.c.l.b16 %v8420
  %v8453 = vunpack.c.l.b16 %v8421
  %v8454 = vunpack.c.l.b16 %v8422
  %v8455 = vunpack.c.l.b16 %v8423
  %v8456 = vunpack.c.l.b16 %v8424
  %v8457 = vunpack.c.l.b16 %v8425
  %v8458 = vunpack.c.l.b16 %v8426
  %v8459 = vunpack.c.l.b16 %v8427
  %v8460 = vunpack.c.l.b16 %v8428
  %v8461 = vunpack.c.l.b16 %v8429
  %v8462 = vpack.c.b16 %v8447, %v8446
  %v8463 = vpack.c.b16 %v8449, %v8448
  %v8464 = vpack.c.b16 %v8451, %v8450
  %v8465 = vpack.c.b16 %v8453, %v8452
  %v8466 = vpack.c.b16 %v8455, %v8454
  %v8467 = vpack.c.b16 %v8457, %v8456
  %v8468 = vpack.c.b16 %v8459, %v8458
  %v8469 = vpack.c.b16 %v8461, %v8460
  %8478 = vmatpush.bf16.msra.mxu0 %v8469
  %8479 = vmatpush.bf16.msra.mxu0 %v8468
  %8480 = vmatpush.bf16.msra.mxu0 %v8467
  %8481 = vmatpush.bf16.msra.mxu0 %v8466
  %8482 = vmatpush.bf16.msra.mxu0 %v8465
  %8483 = vmatpush.bf16.msra.mxu0 %v8464
  %8484 = vmatpush.bf16.msra.mxu0 %v8463
  %8485 = vmatpush.bf16.msra.mxu0 %v8462
  %8486 = vmatmul.bf16.gmra.mxu0 %v8409
  %v8487 = vpop.f32.mrf.mxu0
  %v8488 = vadd.f32 0.0, %v8487
  %v8489 = vpop.f32.mrf.mxu0
  %v8490 = vadd.f32 0.0, %v8489
  %8491 = vmatmul.bf16.gmra.mxu0 %v8410
  %v8492 = vpop.f32.mrf.mxu0
  %v8493 = vadd.f32 0.0, %v8492
  %v8494 = vpop.f32.mrf.mxu0
  %v8495 = vadd.f32 0.0, %v8494
  %8496 = vmatmul.bf16.gmra.mxu0 %v8411
  %v8497 = vpop.f32.mrf.mxu0
  %v8498 = vadd.f32 0.0, %v8497
  %v8499 = vpop.f32.mrf.mxu0
  %v8500 = vadd.f32 0.0, %v8499
  %8501 = vmatmul.bf16.gmra.mxu0 %v8412
  %v8502 = vpop.f32.mrf.mxu0
  %v8503 = vadd.f32 0.0, %v8502
  %v8504 = vpop.f32.mrf.mxu0
  %v8505 = vadd.f32 0.0, %v8504
  %8506 = vdwg.mxu0
  %v8507 = vadd.f32 %v8393, %v8488
  %v8508 = vadd.f32 %v8394, %v8490
  %v8509 = vadd.f32 %v8395, %v8493
  %v8510 = vadd.f32 %v8396, %v8495
  %v8511 = vadd.f32 %v8397, %v8498
  %v8512 = vadd.f32 %v8398, %v8500
  %v8513 = vadd.f32 %v8399, %v8503
  %v8514 = vadd.f32 %v8400, %v8505
  %8515 = vst [vmem:[#allocation2] sm:$0xff] %v8507
  %8516 = vst [vmem:[#allocation2 + $0x8] sm:$0xff] %v8508
  %8517 = vst [vmem:[#allocation2 + $0x10] sm:$0xff] %v8509
  %8518 = vst [vmem:[#allocation2 + $0x18] sm:$0xff] %v8510
  %8519 = vst [vmem:[#allocation2 + $0x20] sm:$0xff] %v8511
  %8520 = vst [vmem:[#allocation2 + $0x28] sm:$0xff] %v8512
  %8521 = vst [vmem:[#allocation2 + $0x30] sm:$0xff] %v8513
  %8522 = vst [vmem:[#allocation2 + $0x38] sm:$0x3] %v8514
  %v8523 = vld [vmem:[#allocation2] sm:$0xff]
  %v8524 = vld [vmem:[#allocation2 + $0x8] sm:$0xff]
  %v8525 = vld [vmem:[#allocation2 + $0x10] sm:$0xff]
  %v8526 = vld [vmem:[#allocation2 + $0x18] sm:$0xff]
  %v8527 = vld [vmem:[#allocation2 + $0x20] sm:$0xff]
  %v8528 = vld [vmem:[#allocation2 + $0x28] sm:$0xff]
  %v8529 = vld [vmem:[#allocation2 + $0x30] sm:$0xff]
  %v8530 = vld [vmem:[#allocation2 + $0x38] sm:$0x1]
  %v8531 = vld [vmem:[#allocation2 + $0x1] sm:$0xff]
  %v8532 = vld [vmem:[#allocation2 + $0x9] sm:$0xff]
  %v8533 = vld [vmem:[#allocation2 + $0x11] sm:$0xff]
  %v8534 = vld [vmem:[#allocation2 + $0x19] sm:$0xff]
  %v8535 = vld [vmem:[#allocation2 + $0x21] sm:$0xff]
  %v8536 = vld [vmem:[#allocation2 + $0x29] sm:$0xff]
  %v8537 = vld [vmem:[#allocation2 + $0x31] sm:$0xff]
  %v8538 = vld [vmem:[#allocation2 + $0x39] sm:$0x1]
  %v8539 = vmax.f32 %v8523, %v8531
  %v8540 = vmax.f32 %v8524, %v8532
  %v8541 = vmax.f32 %v8525, %v8533
  %v8542 = vmax.f32 %v8526, %v8534
  %v8543 = vmax.f32 %v8527, %v8535
  %v8544 = vmax.f32 %v8528, %v8536
  %v8545 = vmax.f32 %v8529, %v8537
  %v8546 = vmax.f32 %v8530, %v8538
  %8547 = vst [vmem:[#allocation3] sm:$0xff] %v8539
  %8548 = vst [vmem:[#allocation3 + $0x8] sm:$0xff] %v8540
  %8549 = vst [vmem:[#allocation3 + $0x10] sm:$0xff] %v8541
  %8550 = vst [vmem:[#allocation3 + $0x18] sm:$0xff] %v8542
  %8551 = vst [vmem:[#allocation3 + $0x20] sm:$0xff] %v8543
  %8552 = vst [vmem:[#allocation3 + $0x28] sm:$0xff] %v8544
  %8553 = vst [vmem:[#allocation3 + $0x30] sm:$0xff] %v8545
  %8554 = vst [vmem:[#allocation3 + $0x38] sm:$0x1] %v8546
  %v8555 = vld [vmem:[#allocation3] sm:$0xff]
  %v8556 = vld [vmem:[#allocation3 + $0x8] sm:$0xff]
  %v8557 = vld [vmem:[#allocation3 + $0x10] sm:$0xff]
  %v8558 = vld [vmem:[#allocation3 + $0x18] sm:$0xff]
  %v8559 = vld [vmem:[#allocation3 + $0x20] sm:$0xff]
  %v8560 = vld [vmem:[#allocation3 + $0x28] sm:$0xff]
  %v8561 = vld [vmem:[#allocation3 + $0x30] sm:$0x7]
  %v8562 = vld [vmem:[#allocation3 + $0x6] sm:$0xff]
  %v8563 = vld [vmem:[#allocation3 + $0xe] sm:$0xff]
  %v8564 = vld [vmem:[#allocation3 + $0x16] sm:$0xff]
  %v8565 = vld [vmem:[#allocation3 + $0x1e] sm:$0xff]
  %v8566 = vld [vmem:[#allocation3 + $0x26] sm:$0xff]
  %v8567 = vld [vmem:[#allocation3 + $0x2e] sm:$0xff]
  %v8568 = vld [vmem:[#allocation3 + $0x36] sm:$0x7]
  %v8569 = vmax.f32 %v8555, %v8562
  %v8570 = vmax.f32 %v8556, %v8563
  %v8571 = vmax.f32 %v8557, %v8564
  %v8572 = vmax.f32 %v8558, %v8565
  %v8573 = vmax.f32 %v8559, %v8566
  %v8574 = vmax.f32 %v8560, %v8567
  %v8575 = vmax.f32 %v8561, %v8568
  %8576 = vst [vmem:[#allocation2] sm:$0xff] %v8569
  %8577 = vst [vmem:[#allocation2 + $0x8] sm:$0xff] %v8570
  %8578 = vst [vmem:[#allocation2 + $0x10] sm:$0xff] %v8571
  %8579 = vst [vmem:[#allocation2 + $0x18] sm:$0xff] %v8572
  %8580 = vst [vmem:[#allocation2 + $0x20] sm:$0xff] %v8573
  %8581 = vst [vmem:[#allocation2 + $0x28] sm:$0xff] %v8574
  %8582 = vst [vmem:[#allocation2 + $0x30] sm:$0x7] %v8575
  %v8583 = vld [vmem:[#allocation2] ss:$2 sm:$0x3]
  %8584 = vst [vmem:[#allocation6] sm:$0x3] %v8583
  %s8585 = scalar_lea.vmem [#allocation2], 12
  %v8586 = vld [vmem:[%s8585] ss:$2 sm:$0x3]
  %8587 = vst [vmem:[#allocation6 + $0x2] sm:$0x3] %v8586
  %s8588 = scalar_lea.vmem [#allocation2], 36
  %v8589 = vld [vmem:[%s8588] ss:$2 sm:$0x3]
  %8590 = vst [vmem:[#allocation6 + $0x4] sm:$0x3] %v8589
  %s8591 = scalar_lea.vmem [#allocation2], 48
  %v8592 = vld [vmem:[%s8591] ss:$2 sm:$0x3]
  %8593 = vst [vmem:[#allocation6 + $0x6] sm:$0x3] %v8592
  %v8594 = vld [vmem:[#allocation6] sm:$0xff]
  %v8595 = vld [vmem:[%s6] sm:$0x1]
  %v8597 = vperm.slane %v8595, 0
  %v8599 = vadd.f32 %v8594, %v8597
  %v8600 = vmax.f32 %v8599, 0.0
  %8601 = vst [vmem:[#allocation6] sm:$0xff] %v8600
  %v8602 = vld [vmem:[#allocation6] ss:$4 sm:$0x3]
  %s8603 = scalar_lea.vmem [#allocation6], 1
  %v8604 = vld [vmem:[%s8603] ss:$4 sm:$0x3]
  %s8605 = scalar_lea.vmem [#allocation6], 2
  %v8606 = vld [vmem:[%s8605] ss:$4 sm:$0x3]
  %s8607 = scalar_lea.vmem [#allocation6], 3
  %v8608 = vld [vmem:[%s8607] ss:$4 sm:$0x3]
  %v8609 = vpack.c.bf16 %v8602, %v8602
  %v8610 = vpack.c.bf16 %v8604, %v8604
  %v8611 = vpack.c.bf16 %v8606, %v8606
  %v8612 = vpack.c.bf16 %v8608, %v8608
  %s8613 = smul.u32 4, 64
  %s8614 = smul.u32 %s8613, 4
  %s8615 = sshll.u32 %s8614, 4
  %8616 = dma.done [#allocation8], %s8615
  %v8617 = vld [vmem:[#allocation7] sm:$0xff]
  %v8618 = vld [vmem:[#allocation7 + $0x8] sm:$0xff]
  %v8619 = vld [vmem:[#allocation7 + $0x10] sm:$0xff]
  %v8620 = vld [vmem:[#allocation7 + $0x18] sm:$0xff]
  %v8621 = vld [vmem:[#allocation7 + $0x20] sm:$0xff]
  %v8622 = vld [vmem:[#allocation7 + $0x28] sm:$0xff]
  %v8623 = vld [vmem:[#allocation7 + $0x30] sm:$0xff]
  %v8624 = vld [vmem:[#allocation7 + $0x38] sm:$0xff]
  %v8625 = vld [vmem:[#allocation7 + $0x40] sm:$0xff]
  %v8626 = vld [vmem:[#allocation7 + $0x48] sm:$0xff]
  %v8627 = vld [vmem:[#allocation7 + $0x50] sm:$0xff]
  %v8628 = vld [vmem:[#allocation7 + $0x58] sm:$0xff]
  %v8629 = vld [vmem:[#allocation7 + $0x60] sm:$0xff]
  %v8630 = vld [vmem:[#allocation7 + $0x68] sm:$0xff]
  %v8631 = vld [vmem:[#allocation7 + $0x70] sm:$0xff]
  %v8632 = vld [vmem:[#allocation7 + $0x78] sm:$0xff]
  %v8633 = vld [vmem:[#allocation7 + $0x80] sm:$0xff]
  %v8634 = vld [vmem:[#allocation7 + $0x88] sm:$0xff]
  %v8635 = vld [vmem:[#allocation7 + $0x90] sm:$0xff]
  %v8636 = vld [vmem:[#allocation7 + $0x98] sm:$0xff]
  %v8637 = vld [vmem:[#allocation7 + $0xa0] sm:$0xff]
  %v8638 = vld [vmem:[#allocation7 + $0xa8] sm:$0xff]
  %v8639 = vld [vmem:[#allocation7 + $0xb0] sm:$0xff]
  %v8640 = vld [vmem:[#allocation7 + $0xb8] sm:$0xff]
  %v8641 = vld [vmem:[#allocation7 + $0xc0] sm:$0xff]
  %v8642 = vld [vmem:[#allocation7 + $0xc8] sm:$0xff]
  %v8643 = vld [vmem:[#allocation7 + $0xd0] sm:$0xff]
  %v8644 = vld [vmem:[#allocation7 + $0xd8] sm:$0xff]
  %v8645 = vld [vmem:[#allocation7 + $0xe0] sm:$0xff]
  %v8646 = vld [vmem:[#allocation7 + $0xe8] sm:$0xff]
  %v8647 = vld [vmem:[#allocation7 + $0xf0] sm:$0xff]
  %v8648 = vld [vmem:[#allocation7 + $0xf8] sm:$0xff]
  %v8649 = vld [vmem:[#allocation7 + $0x100] sm:$0xff]
  %v8650 = vld [vmem:[#allocation7 + $0x108] sm:$0xff]
  %v8651 = vld [vmem:[#allocation7 + $0x110] sm:$0xff]
  %v8652 = vld [vmem:[#allocation7 + $0x118] sm:$0xff]
  %v8653 = vld [vmem:[#allocation7 + $0x120] sm:$0xff]
  %v8654 = vld [vmem:[#allocation7 + $0x128] sm:$0xff]
  %v8655 = vld [vmem:[#allocation7 + $0x130] sm:$0xff]
  %v8656 = vld [vmem:[#allocation7 + $0x138] sm:$0xff]
  %v8657 = vld [vmem:[#allocation7 + $0x140] sm:$0xff]
  %v8658 = vld [vmem:[#allocation7 + $0x148] sm:$0xff]
  %v8659 = vld [vmem:[#allocation7 + $0x150] sm:$0xff]
  %v8660 = vld [vmem:[#allocation7 + $0x158] sm:$0xff]
  %v8661 = vld [vmem:[#allocation7 + $0x160] sm:$0xff]
  %v8662 = vld [vmem:[#allocation7 + $0x168] sm:$0xff]
  %v8663 = vld [vmem:[#allocation7 + $0x170] sm:$0xff]
  %v8664 = vld [vmem:[#allocation7 + $0x178] sm:$0xff]
  %v8665 = vld [vmem:[#allocation7 + $0x180] sm:$0xff]
  %v8666 = vld [vmem:[#allocation7 + $0x188] sm:$0xff]
  %v8667 = vld [vmem:[#allocation7 + $0x190] sm:$0xff]
  %v8668 = vld [vmem:[#allocation7 + $0x198] sm:$0xff]
  %v8669 = vld [vmem:[#allocation7 + $0x1a0] sm:$0xff]
  %v8670 = vld [vmem:[#allocation7 + $0x1a8] sm:$0xff]
  %v8671 = vld [vmem:[#allocation7 + $0x1b0] sm:$0xff]
  %v8672 = vld [vmem:[#allocation7 + $0x1b8] sm:$0xff]
  %v8673 = vld [vmem:[#allocation7 + $0x1c0] sm:$0xff]
  %v8674 = vld [vmem:[#allocation7 + $0x1c8] sm:$0xff]
  %v8675 = vld [vmem:[#allocation7 + $0x1d0] sm:$0xff]
  %v8676 = vld [vmem:[#allocation7 + $0x1d8] sm:$0xff]
  %v8677 = vld [vmem:[#allocation7 + $0x1e0] sm:$0xff]
  %v8678 = vld [vmem:[#allocation7 + $0x1e8] sm:$0xff]
  %v8679 = vld [vmem:[#allocation7 + $0x1f0] sm:$0xff]
  %v8680 = vld [vmem:[#allocation7 + $0x1f8] sm:$0xff]
  %v8681 = vld [vmem:[#allocation7 + $0x200] sm:$0xff]
  %v8682 = vld [vmem:[#allocation7 + $0x208] sm:$0xff]
  %v8683 = vld [vmem:[#allocation7 + $0x210] sm:$0xff]
  %v8684 = vld [vmem:[#allocation7 + $0x218] sm:$0xff]
  %v8685 = vld [vmem:[#allocation7 + $0x220] sm:$0xff]
  %v8686 = vld [vmem:[#allocation7 + $0x228] sm:$0xff]
  %v8687 = vld [vmem:[#allocation7 + $0x230] sm:$0xff]
  %v8688 = vld [vmem:[#allocation7 + $0x238] sm:$0xff]
  %v8689 = vld [vmem:[#allocation7 + $0x240] sm:$0xff]
  %v8690 = vld [vmem:[#allocation7 + $0x248] sm:$0xff]
  %v8691 = vld [vmem:[#allocation7 + $0x250] sm:$0xff]
  %v8692 = vld [vmem:[#allocation7 + $0x258] sm:$0xff]
  %v8693 = vld [vmem:[#allocation7 + $0x260] sm:$0xff]
  %v8694 = vld [vmem:[#allocation7 + $0x268] sm:$0xff]
  %v8695 = vld [vmem:[#allocation7 + $0x270] sm:$0xff]
  %v8696 = vld [vmem:[#allocation7 + $0x278] sm:$0xff]
  %v8697 = vld [vmem:[#allocation7 + $0x280] sm:$0xff]
  %v8698 = vld [vmem:[#allocation7 + $0x288] sm:$0xff]
  %v8699 = vld [vmem:[#allocation7 + $0x290] sm:$0xff]
  %v8700 = vld [vmem:[#allocation7 + $0x298] sm:$0xff]
  %v8701 = vld [vmem:[#allocation7 + $0x2a0] sm:$0xff]
  %v8702 = vld [vmem:[#allocation7 + $0x2a8] sm:$0xff]
  %v8703 = vld [vmem:[#allocation7 + $0x2b0] sm:$0xff]
  %v8704 = vld [vmem:[#allocation7 + $0x2b8] sm:$0xff]
  %v8705 = vld [vmem:[#allocation7 + $0x2c0] sm:$0xff]
  %v8706 = vld [vmem:[#allocation7 + $0x2c8] sm:$0xff]
  %v8707 = vld [vmem:[#allocation7 + $0x2d0] sm:$0xff]
  %v8708 = vld [vmem:[#allocation7 + $0x2d8] sm:$0xff]
  %v8709 = vld [vmem:[#allocation7 + $0x2e0] sm:$0xff]
  %v8710 = vld [vmem:[#allocation7 + $0x2e8] sm:$0xff]
  %v8711 = vld [vmem:[#allocation7 + $0x2f0] sm:$0xff]
  %v8712 = vld [vmem:[#allocation7 + $0x2f8] sm:$0xff]
  %v8713 = vld [vmem:[#allocation7 + $0x300] sm:$0xff]
  %v8714 = vld [vmem:[#allocation7 + $0x308] sm:$0xff]
  %v8715 = vld [vmem:[#allocation7 + $0x310] sm:$0xff]
  %v8716 = vld [vmem:[#allocation7 + $0x318] sm:$0xff]
  %v8717 = vld [vmem:[#allocation7 + $0x320] sm:$0xff]
  %v8718 = vld [vmem:[#allocation7 + $0x328] sm:$0xff]
  %v8719 = vld [vmem:[#allocation7 + $0x330] sm:$0xff]
  %v8720 = vld [vmem:[#allocation7 + $0x338] sm:$0xff]
  %v8721 = vld [vmem:[#allocation7 + $0x340] sm:$0xff]
  %v8722 = vld [vmem:[#allocation7 + $0x348] sm:$0xff]
  %v8723 = vld [vmem:[#allocation7 + $0x350] sm:$0xff]
  %v8724 = vld [vmem:[#allocation7 + $0x358] sm:$0xff]
  %v8725 = vld [vmem:[#allocation7 + $0x360] sm:$0xff]
  %v8726 = vld [vmem:[#allocation7 + $0x368] sm:$0xff]
  %v8727 = vld [vmem:[#allocation7 + $0x370] sm:$0xff]
  %v8728 = vld [vmem:[#allocation7 + $0x378] sm:$0xff]
  %v8729 = vld [vmem:[#allocation7 + $0x380] sm:$0xff]
  %v8730 = vld [vmem:[#allocation7 + $0x388] sm:$0xff]
  %v8731 = vld [vmem:[#allocation7 + $0x390] sm:$0xff]
  %v8732 = vld [vmem:[#allocation7 + $0x398] sm:$0xff]
  %v8733 = vld [vmem:[#allocation7 + $0x3a0] sm:$0xff]
  %v8734 = vld [vmem:[#allocation7 + $0x3a8] sm:$0xff]
  %v8735 = vld [vmem:[#allocation7 + $0x3b0] sm:$0xff]
  %v8736 = vld [vmem:[#allocation7 + $0x3b8] sm:$0xff]
  %v8737 = vld [vmem:[#allocation7 + $0x3c0] sm:$0xff]
  %v8738 = vld [vmem:[#allocation7 + $0x3c8] sm:$0xff]
  %v8739 = vld [vmem:[#allocation7 + $0x3d0] sm:$0xff]
  %v8740 = vld [vmem:[#allocation7 + $0x3d8] sm:$0xff]
  %v8741 = vld [vmem:[#allocation7 + $0x3e0] sm:$0xff]
  %v8742 = vld [vmem:[#allocation7 + $0x3e8] sm:$0xff]
  %v8743 = vld [vmem:[#allocation7 + $0x3f0] sm:$0xff]
  %v8744 = vld [vmem:[#allocation7 + $0x3f8] sm:$0xff]
  %v8745 = vld [vmem:[%s8] sm:$0xf]
  %v8747 = vperm.slane %v8745, 0
  %v8748 = vperm.slane %v8745, 1
  %v8749 = vperm.slane %v8745, 2
  %v8750 = vperm.slane %v8745, 3
  %v8883 = vunpack.c.l.b16 %v8617
  %v8884 = vunpack.c.h.b16 %v8617
  %v8885 = vunpack.c.l.b16 %v8618
  %v8886 = vunpack.c.h.b16 %v8618
  %v8887 = vunpack.c.l.b16 %v8619
  %v8888 = vunpack.c.h.b16 %v8619
  %v8889 = vunpack.c.l.b16 %v8620
  %v8890 = vunpack.c.h.b16 %v8620
  %v8891 = vunpack.c.l.b16 %v8621
  %v8892 = vunpack.c.h.b16 %v8621
  %v8893 = vunpack.c.l.b16 %v8622
  %v8894 = vunpack.c.h.b16 %v8622
  %v8895 = vunpack.c.l.b16 %v8623
  %v8896 = vunpack.c.h.b16 %v8623
  %v8897 = vunpack.c.l.b16 %v8624
  %v8898 = vunpack.c.h.b16 %v8624
  %v8899 = vunpack.c.l.b16 %v8625
  %v8900 = vunpack.c.h.b16 %v8625
  %v8901 = vunpack.c.l.b16 %v8626
  %v8902 = vunpack.c.h.b16 %v8626
  %v8903 = vunpack.c.l.b16 %v8627
  %v8904 = vunpack.c.h.b16 %v8627
  %v8905 = vunpack.c.l.b16 %v8628
  %v8906 = vunpack.c.h.b16 %v8628
  %v8907 = vunpack.c.l.b16 %v8629
  %v8908 = vunpack.c.h.b16 %v8629
  %v8909 = vunpack.c.l.b16 %v8630
  %v8910 = vunpack.c.h.b16 %v8630
  %v8911 = vunpack.c.l.b16 %v8631
  %v8912 = vunpack.c.h.b16 %v8631
  %v8913 = vunpack.c.l.b16 %v8632
  %v8914 = vunpack.c.h.b16 %v8632
  %v8915 = vunpack.c.l.b16 %v8633
  %v8916 = vunpack.c.h.b16 %v8633
  %v8917 = vunpack.c.l.b16 %v8634
  %v8918 = vunpack.c.h.b16 %v8634
  %v8919 = vunpack.c.l.b16 %v8635
  %v8920 = vunpack.c.h.b16 %v8635
  %v8921 = vunpack.c.l.b16 %v8636
  %v8922 = vunpack.c.h.b16 %v8636
  %v8923 = vunpack.c.l.b16 %v8637
  %v8924 = vunpack.c.h.b16 %v8637
  %v8925 = vunpack.c.l.b16 %v8638
  %v8926 = vunpack.c.h.b16 %v8638
  %v8927 = vunpack.c.l.b16 %v8639
  %v8928 = vunpack.c.h.b16 %v8639
  %v8929 = vunpack.c.l.b16 %v8640
  %v8930 = vunpack.c.h.b16 %v8640
  %v8931 = vunpack.c.l.b16 %v8641
  %v8932 = vunpack.c.h.b16 %v8641
  %v8933 = vunpack.c.l.b16 %v8642
  %v8934 = vunpack.c.h.b16 %v8642
  %v8935 = vunpack.c.l.b16 %v8643
  %v8936 = vunpack.c.h.b16 %v8643
  %v8937 = vunpack.c.l.b16 %v8644
  %v8938 = vunpack.c.h.b16 %v8644
  %v8939 = vunpack.c.l.b16 %v8645
  %v8940 = vunpack.c.h.b16 %v8645
  %v8941 = vunpack.c.l.b16 %v8646
  %v8942 = vunpack.c.h.b16 %v8646
  %v8943 = vunpack.c.l.b16 %v8647
  %v8944 = vunpack.c.h.b16 %v8647
  %v8945 = vunpack.c.l.b16 %v8648
  %v8946 = vunpack.c.h.b16 %v8648
  %v8947 = vunpack.c.l.b16 %v8649
  %v8948 = vunpack.c.h.b16 %v8649
  %v8949 = vunpack.c.l.b16 %v8650
  %v8950 = vunpack.c.h.b16 %v8650
  %v8951 = vunpack.c.l.b16 %v8651
  %v8952 = vunpack.c.h.b16 %v8651
  %v8953 = vunpack.c.l.b16 %v8652
  %v8954 = vunpack.c.h.b16 %v8652
  %v8955 = vunpack.c.l.b16 %v8653
  %v8956 = vunpack.c.h.b16 %v8653
  %v8957 = vunpack.c.l.b16 %v8654
  %v8958 = vunpack.c.h.b16 %v8654
  %v8959 = vunpack.c.l.b16 %v8655
  %v8960 = vunpack.c.h.b16 %v8655
  %v8961 = vunpack.c.l.b16 %v8656
  %v8962 = vunpack.c.h.b16 %v8656
  %v8963 = vunpack.c.l.b16 %v8657
  %v8964 = vunpack.c.h.b16 %v8657
  %v8965 = vunpack.c.l.b16 %v8658
  %v8966 = vunpack.c.h.b16 %v8658
  %v8967 = vunpack.c.l.b16 %v8659
  %v8968 = vunpack.c.h.b16 %v8659
  %v8969 = vunpack.c.l.b16 %v8660
  %v8970 = vunpack.c.h.b16 %v8660
  %v8971 = vunpack.c.l.b16 %v8661
  %v8972 = vunpack.c.h.b16 %v8661
  %v8973 = vunpack.c.l.b16 %v8662
  %v8974 = vunpack.c.h.b16 %v8662
  %v8975 = vunpack.c.l.b16 %v8663
  %v8976 = vunpack.c.h.b16 %v8663
  %v8977 = vunpack.c.l.b16 %v8664
  %v8978 = vunpack.c.h.b16 %v8664
  %v8979 = vunpack.c.l.b16 %v8665
  %v8980 = vunpack.c.h.b16 %v8665
  %v8981 = vunpack.c.l.b16 %v8666
  %v8982 = vunpack.c.h.b16 %v8666
  %v8983 = vunpack.c.l.b16 %v8667
  %v8984 = vunpack.c.h.b16 %v8667
  %v8985 = vunpack.c.l.b16 %v8668
  %v8986 = vunpack.c.h.b16 %v8668
  %v8987 = vunpack.c.l.b16 %v8669
  %v8988 = vunpack.c.h.b16 %v8669
  %v8989 = vunpack.c.l.b16 %v8670
  %v8990 = vunpack.c.h.b16 %v8670
  %v8991 = vunpack.c.l.b16 %v8671
  %v8992 = vunpack.c.h.b16 %v8671
  %v8993 = vunpack.c.l.b16 %v8672
  %v8994 = vunpack.c.h.b16 %v8672
  %v8995 = vunpack.c.l.b16 %v8673
  %v8996 = vunpack.c.h.b16 %v8673
  %v8997 = vunpack.c.l.b16 %v8674
  %v8998 = vunpack.c.h.b16 %v8674
  %v8999 = vunpack.c.l.b16 %v8675
  %v9000 = vunpack.c.h.b16 %v8675
  %v9001 = vunpack.c.l.b16 %v8676
  %v9002 = vunpack.c.h.b16 %v8676
  %v9003 = vunpack.c.l.b16 %v8677
  %v9004 = vunpack.c.h.b16 %v8677
  %v9005 = vunpack.c.l.b16 %v8678
  %v9006 = vunpack.c.h.b16 %v8678
  %v9007 = vunpack.c.l.b16 %v8679
  %v9008 = vunpack.c.h.b16 %v8679
  %v9009 = vunpack.c.l.b16 %v8680
  %v9010 = vunpack.c.h.b16 %v8680
  %v9011 = vunpack.c.l.b16 %v8681
  %v9012 = vunpack.c.h.b16 %v8681
  %v9013 = vunpack.c.l.b16 %v8682
  %v9014 = vunpack.c.h.b16 %v8682
  %v9015 = vunpack.c.l.b16 %v8683
  %v9016 = vunpack.c.h.b16 %v8683
  %v9017 = vunpack.c.l.b16 %v8684
  %v9018 = vunpack.c.h.b16 %v8684
  %v9019 = vunpack.c.l.b16 %v8685
  %v9020 = vunpack.c.h.b16 %v8685
  %v9021 = vunpack.c.l.b16 %v8686
  %v9022 = vunpack.c.h.b16 %v8686
  %v9023 = vunpack.c.l.b16 %v8687
  %v9024 = vunpack.c.h.b16 %v8687
  %v9025 = vunpack.c.l.b16 %v8688
  %v9026 = vunpack.c.h.b16 %v8688
  %v9027 = vunpack.c.l.b16 %v8689
  %v9028 = vunpack.c.h.b16 %v8689
  %v9029 = vunpack.c.l.b16 %v8690
  %v9030 = vunpack.c.h.b16 %v8690
  %v9031 = vunpack.c.l.b16 %v8691
  %v9032 = vunpack.c.h.b16 %v8691
  %v9033 = vunpack.c.l.b16 %v8692
  %v9034 = vunpack.c.h.b16 %v8692
  %v9035 = vunpack.c.l.b16 %v8693
  %v9036 = vunpack.c.h.b16 %v8693
  %v9037 = vunpack.c.l.b16 %v8694
  %v9038 = vunpack.c.h.b16 %v8694
  %v9039 = vunpack.c.l.b16 %v8695
  %v9040 = vunpack.c.h.b16 %v8695
  %v9041 = vunpack.c.l.b16 %v8696
  %v9042 = vunpack.c.h.b16 %v8696
  %v9043 = vunpack.c.l.b16 %v8697
  %v9044 = vunpack.c.h.b16 %v8697
  %v9045 = vunpack.c.l.b16 %v8698
  %v9046 = vunpack.c.h.b16 %v8698
  %v9047 = vunpack.c.l.b16 %v8699
  %v9048 = vunpack.c.h.b16 %v8699
  %v9049 = vunpack.c.l.b16 %v8700
  %v9050 = vunpack.c.h.b16 %v8700
  %v9051 = vunpack.c.l.b16 %v8701
  %v9052 = vunpack.c.h.b16 %v8701
  %v9053 = vunpack.c.l.b16 %v8702
  %v9054 = vunpack.c.h.b16 %v8702
  %v9055 = vunpack.c.l.b16 %v8703
  %v9056 = vunpack.c.h.b16 %v8703
  %v9057 = vunpack.c.l.b16 %v8704
  %v9058 = vunpack.c.h.b16 %v8704
  %v9059 = vunpack.c.l.b16 %v8705
  %v9060 = vunpack.c.h.b16 %v8705
  %v9061 = vunpack.c.l.b16 %v8706
  %v9062 = vunpack.c.h.b16 %v8706
  %v9063 = vunpack.c.l.b16 %v8707
  %v9064 = vunpack.c.h.b16 %v8707
  %v9065 = vunpack.c.l.b16 %v8708
  %v9066 = vunpack.c.h.b16 %v8708
  %v9067 = vunpack.c.l.b16 %v8709
  %v9068 = vunpack.c.h.b16 %v8709
  %v9069 = vunpack.c.l.b16 %v8710
  %v9070 = vunpack.c.h.b16 %v8710
  %v9071 = vunpack.c.l.b16 %v8711
  %v9072 = vunpack.c.h.b16 %v8711
  %v9073 = vunpack.c.l.b16 %v8712
  %v9074 = vunpack.c.h.b16 %v8712
  %v9075 = vunpack.c.l.b16 %v8713
  %v9076 = vunpack.c.h.b16 %v8713
  %v9077 = vunpack.c.l.b16 %v8714
  %v9078 = vunpack.c.h.b16 %v8714
  %v9079 = vunpack.c.l.b16 %v8715
  %v9080 = vunpack.c.h.b16 %v8715
  %v9081 = vunpack.c.l.b16 %v8716
  %v9082 = vunpack.c.h.b16 %v8716
  %v9083 = vunpack.c.l.b16 %v8717
  %v9084 = vunpack.c.h.b16 %v8717
  %v9085 = vunpack.c.l.b16 %v8718
  %v9086 = vunpack.c.h.b16 %v8718
  %v9087 = vunpack.c.l.b16 %v8719
  %v9088 = vunpack.c.h.b16 %v8719
  %v9089 = vunpack.c.l.b16 %v8720
  %v9090 = vunpack.c.h.b16 %v8720
  %v9091 = vunpack.c.l.b16 %v8721
  %v9092 = vunpack.c.h.b16 %v8721
  %v9093 = vunpack.c.l.b16 %v8722
  %v9094 = vunpack.c.h.b16 %v8722
  %v9095 = vunpack.c.l.b16 %v8723
  %v9096 = vunpack.c.h.b16 %v8723
  %v9097 = vunpack.c.l.b16 %v8724
  %v9098 = vunpack.c.h.b16 %v8724
  %v9099 = vunpack.c.l.b16 %v8725
  %v9100 = vunpack.c.h.b16 %v8725
  %v9101 = vunpack.c.l.b16 %v8726
  %v9102 = vunpack.c.h.b16 %v8726
  %v9103 = vunpack.c.l.b16 %v8727
  %v9104 = vunpack.c.h.b16 %v8727
  %v9105 = vunpack.c.l.b16 %v8728
  %v9106 = vunpack.c.h.b16 %v8728
  %v9107 = vunpack.c.l.b16 %v8729
  %v9108 = vunpack.c.h.b16 %v8729
  %v9109 = vunpack.c.l.b16 %v8730
  %v9110 = vunpack.c.h.b16 %v8730
  %v9111 = vunpack.c.l.b16 %v8731
  %v9112 = vunpack.c.h.b16 %v8731
  %v9113 = vunpack.c.l.b16 %v8732
  %v9114 = vunpack.c.h.b16 %v8732
  %v9115 = vunpack.c.l.b16 %v8733
  %v9116 = vunpack.c.h.b16 %v8733
  %v9117 = vunpack.c.l.b16 %v8734
  %v9118 = vunpack.c.h.b16 %v8734
  %v9119 = vunpack.c.l.b16 %v8735
  %v9120 = vunpack.c.h.b16 %v8735
  %v9121 = vunpack.c.l.b16 %v8736
  %v9122 = vunpack.c.h.b16 %v8736
  %v9123 = vunpack.c.l.b16 %v8737
  %v9124 = vunpack.c.h.b16 %v8737
  %v9125 = vunpack.c.l.b16 %v8738
  %v9126 = vunpack.c.h.b16 %v8738
  %v9127 = vunpack.c.l.b16 %v8739
  %v9128 = vunpack.c.h.b16 %v8739
  %v9129 = vunpack.c.l.b16 %v8740
  %v9130 = vunpack.c.h.b16 %v8740
  %v9131 = vunpack.c.l.b16 %v8741
  %v9132 = vunpack.c.h.b16 %v8741
  %v9133 = vunpack.c.l.b16 %v8742
  %v9134 = vunpack.c.h.b16 %v8742
  %v9135 = vunpack.c.l.b16 %v8743
  %v9136 = vunpack.c.h.b16 %v8743
  %v9137 = vunpack.c.l.b16 %v8744
  %v9138 = vunpack.c.h.b16 %v8744
  %v9139 = vpack.c.b16 %v8887, %v8883
  %v9140 = vpack.c.b16 %v8888, %v8884
  %v9141 = vpack.c.b16 %v8889, %v8885
  %v9142 = vpack.c.b16 %v8890, %v8886
  %v9143 = vpack.c.b16 %v8895, %v8891
  %v9144 = vpack.c.b16 %v8896, %v8892
  %v9145 = vpack.c.b16 %v8897, %v8893
  %v9146 = vpack.c.b16 %v8898, %v8894
  %v9147 = vpack.c.b16 %v8903, %v8899
  %v9148 = vpack.c.b16 %v8904, %v8900
  %v9149 = vpack.c.b16 %v8905, %v8901
  %v9150 = vpack.c.b16 %v8906, %v8902
  %v9151 = vpack.c.b16 %v8911, %v8907
  %v9152 = vpack.c.b16 %v8912, %v8908
  %v9153 = vpack.c.b16 %v8913, %v8909
  %v9154 = vpack.c.b16 %v8914, %v8910
  %v9155 = vpack.c.b16 %v8919, %v8915
  %v9156 = vpack.c.b16 %v8920, %v8916
  %v9157 = vpack.c.b16 %v8921, %v8917
  %v9158 = vpack.c.b16 %v8922, %v8918
  %v9159 = vpack.c.b16 %v8927, %v8923
  %v9160 = vpack.c.b16 %v8928, %v8924
  %v9161 = vpack.c.b16 %v8929, %v8925
  %v9162 = vpack.c.b16 %v8930, %v8926
  %v9163 = vpack.c.b16 %v8935, %v8931
  %v9164 = vpack.c.b16 %v8936, %v8932
  %v9165 = vpack.c.b16 %v8937, %v8933
  %v9166 = vpack.c.b16 %v8938, %v8934
  %v9167 = vpack.c.b16 %v8943, %v8939
  %v9168 = vpack.c.b16 %v8944, %v8940
  %v9169 = vpack.c.b16 %v8945, %v8941
  %v9170 = vpack.c.b16 %v8946, %v8942
  %v9171 = vpack.c.b16 %v8951, %v8947
  %v9172 = vpack.c.b16 %v8952, %v8948
  %v9173 = vpack.c.b16 %v8953, %v8949
  %v9174 = vpack.c.b16 %v8954, %v8950
  %v9175 = vpack.c.b16 %v8959, %v8955
  %v9176 = vpack.c.b16 %v8960, %v8956
  %v9177 = vpack.c.b16 %v8961, %v8957
  %v9178 = vpack.c.b16 %v8962, %v8958
  %v9179 = vpack.c.b16 %v8967, %v8963
  %v9180 = vpack.c.b16 %v8968, %v8964
  %v9181 = vpack.c.b16 %v8969, %v8965
  %v9182 = vpack.c.b16 %v8970, %v8966
  %v9183 = vpack.c.b16 %v8975, %v8971
  %v9184 = vpack.c.b16 %v8976, %v8972
  %v9185 = vpack.c.b16 %v8977, %v8973
  %v9186 = vpack.c.b16 %v8978, %v8974
  %v9187 = vpack.c.b16 %v8983, %v8979
  %v9188 = vpack.c.b16 %v8984, %v8980
  %v9189 = vpack.c.b16 %v8985, %v8981
  %v9190 = vpack.c.b16 %v8986, %v8982
  %v9191 = vpack.c.b16 %v8991, %v8987
  %v9192 = vpack.c.b16 %v8992, %v8988
  %v9193 = vpack.c.b16 %v8993, %v8989
  %v9194 = vpack.c.b16 %v8994, %v8990
  %v9195 = vpack.c.b16 %v8999, %v8995
  %v9196 = vpack.c.b16 %v9000, %v8996
  %v9197 = vpack.c.b16 %v9001, %v8997
  %v9198 = vpack.c.b16 %v9002, %v8998
  %v9199 = vpack.c.b16 %v9007, %v9003
  %v9200 = vpack.c.b16 %v9008, %v9004
  %v9201 = vpack.c.b16 %v9009, %v9005
  %v9202 = vpack.c.b16 %v9010, %v9006
  %v9203 = vpack.c.b16 %v9015, %v9011
  %v9204 = vpack.c.b16 %v9016, %v9012
  %v9205 = vpack.c.b16 %v9017, %v9013
  %v9206 = vpack.c.b16 %v9018, %v9014
  %v9207 = vpack.c.b16 %v9023, %v9019
  %v9208 = vpack.c.b16 %v9024, %v9020
  %v9209 = vpack.c.b16 %v9025, %v9021
  %v9210 = vpack.c.b16 %v9026, %v9022
  %v9211 = vpack.c.b16 %v9031, %v9027
  %v9212 = vpack.c.b16 %v9032, %v9028
  %v9213 = vpack.c.b16 %v9033, %v9029
  %v9214 = vpack.c.b16 %v9034, %v9030
  %v9215 = vpack.c.b16 %v9039, %v9035
  %v9216 = vpack.c.b16 %v9040, %v9036
  %v9217 = vpack.c.b16 %v9041, %v9037
  %v9218 = vpack.c.b16 %v9042, %v9038
  %v9219 = vpack.c.b16 %v9047, %v9043
  %v9220 = vpack.c.b16 %v9048, %v9044
  %v9221 = vpack.c.b16 %v9049, %v9045
  %v9222 = vpack.c.b16 %v9050, %v9046
  %v9223 = vpack.c.b16 %v9055, %v9051
  %v9224 = vpack.c.b16 %v9056, %v9052
  %v9225 = vpack.c.b16 %v9057, %v9053
  %v9226 = vpack.c.b16 %v9058, %v9054
  %v9227 = vpack.c.b16 %v9063, %v9059
  %v9228 = vpack.c.b16 %v9064, %v9060
  %v9229 = vpack.c.b16 %v9065, %v9061
  %v9230 = vpack.c.b16 %v9066, %v9062
  %v9231 = vpack.c.b16 %v9071, %v9067
  %v9232 = vpack.c.b16 %v9072, %v9068
  %v9233 = vpack.c.b16 %v9073, %v9069
  %v9234 = vpack.c.b16 %v9074, %v9070
  %v9235 = vpack.c.b16 %v9079, %v9075
  %v9236 = vpack.c.b16 %v9080, %v9076
  %v9237 = vpack.c.b16 %v9081, %v9077
  %v9238 = vpack.c.b16 %v9082, %v9078
  %v9239 = vpack.c.b16 %v9087, %v9083
  %v9240 = vpack.c.b16 %v9088, %v9084
  %v9241 = vpack.c.b16 %v9089, %v9085
  %v9242 = vpack.c.b16 %v9090, %v9086
  %v9243 = vpack.c.b16 %v9095, %v9091
  %v9244 = vpack.c.b16 %v9096, %v9092
  %v9245 = vpack.c.b16 %v9097, %v9093
  %v9246 = vpack.c.b16 %v9098, %v9094
  %v9247 = vpack.c.b16 %v9103, %v9099
  %v9248 = vpack.c.b16 %v9104, %v9100
  %v9249 = vpack.c.b16 %v9105, %v9101
  %v9250 = vpack.c.b16 %v9106, %v9102
  %v9251 = vpack.c.b16 %v9111, %v9107
  %v9252 = vpack.c.b16 %v9112, %v9108
  %v9253 = vpack.c.b16 %v9113, %v9109
  %v9254 = vpack.c.b16 %v9114, %v9110
  %v9255 = vpack.c.b16 %v9119, %v9115
  %v9256 = vpack.c.b16 %v9120, %v9116
  %v9257 = vpack.c.b16 %v9121, %v9117
  %v9258 = vpack.c.b16 %v9122, %v9118
  %v9259 = vpack.c.b16 %v9127, %v9123
  %v9260 = vpack.c.b16 %v9128, %v9124
  %v9261 = vpack.c.b16 %v9129, %v9125
  %v9262 = vpack.c.b16 %v9130, %v9126
  %v9263 = vpack.c.b16 %v9135, %v9131
  %v9264 = vpack.c.b16 %v9136, %v9132
  %v9265 = vpack.c.b16 %v9137, %v9133
  %v9266 = vpack.c.b16 %v9138, %v9134
  %9395 = vmatpush.bf16.msra.mxu0 %v9167
  %9396 = vmatpush.bf16.msra.mxu0 %v9163
  %9397 = vmatpush.bf16.msra.mxu0 %v9159
  %9398 = vmatpush.bf16.msra.mxu0 %v9155
  %9399 = vmatpush.bf16.msra.mxu0 %v9151
  %9400 = vmatpush.bf16.msra.mxu0 %v9147
  %9401 = vmatpush.bf16.msra.mxu0 %v9143
  %9402 = vmatpush.bf16.msra.mxu0 %v9139
  %9403 = vmatmul.bf16.gmra.mxu0 %v8609
  %v9404 = vpop.f32.mrf.mxu0
  %v9405 = vadd.f32 %v8747, %v9404
  %v9406 = vpop.f32.mrf.mxu0
  %9407 = vdwg.mxu0
  %9408 = vmatpush.bf16.msra.mxu0 %v9199
  %9409 = vmatpush.bf16.msra.mxu0 %v9195
  %9410 = vmatpush.bf16.msra.mxu0 %v9191
  %9411 = vmatpush.bf16.msra.mxu0 %v9187
  %9412 = vmatpush.bf16.msra.mxu0 %v9183
  %9413 = vmatpush.bf16.msra.mxu0 %v9179
  %9414 = vmatpush.bf16.msra.mxu0 %v9175
  %9415 = vmatpush.bf16.msra.mxu0 %v9171
  %9416 = vmatmul.bf16.gmra.mxu0 %v8610
  %v9417 = vpop.f32.mrf.mxu0
  %v9418 = vadd.f32 %v9405, %v9417
  %v9419 = vpop.f32.mrf.mxu0
  %9420 = vdwg.mxu0
  %9421 = vmatpush.bf16.msra.mxu0 %v9231
  %9422 = vmatpush.bf16.msra.mxu0 %v9227
  %9423 = vmatpush.bf16.msra.mxu0 %v9223
  %9424 = vmatpush.bf16.msra.mxu0 %v9219
  %9425 = vmatpush.bf16.msra.mxu0 %v9215
  %9426 = vmatpush.bf16.msra.mxu0 %v9211
  %9427 = vmatpush.bf16.msra.mxu0 %v9207
  %9428 = vmatpush.bf16.msra.mxu0 %v9203
  %9429 = vmatmul.bf16.gmra.mxu0 %v8611
  %v9430 = vpop.f32.mrf.mxu0
  %v9431 = vadd.f32 %v9418, %v9430
  %v9432 = vpop.f32.mrf.mxu0
  %9433 = vdwg.mxu0
  %9434 = vmatpush.bf16.msra.mxu0 %v9263
  %9435 = vmatpush.bf16.msra.mxu0 %v9259
  %9436 = vmatpush.bf16.msra.mxu0 %v9255
  %9437 = vmatpush.bf16.msra.mxu0 %v9251
  %9438 = vmatpush.bf16.msra.mxu0 %v9247
  %9439 = vmatpush.bf16.msra.mxu0 %v9243
  %9440 = vmatpush.bf16.msra.mxu0 %v9239
  %9441 = vmatpush.bf16.msra.mxu0 %v9235
  %9442 = vmatmul.bf16.gmra.mxu0 %v8612
  %v9443 = vpop.f32.mrf.mxu0
  %v9444 = vadd.f32 %v9431, %v9443
  %v9445 = vpop.f32.mrf.mxu0
  %9446 = vdwg.mxu0
  %9447 = vmatpush.bf16.msra.mxu0 %v9168
  %9448 = vmatpush.bf16.msra.mxu0 %v9164
  %9449 = vmatpush.bf16.msra.mxu0 %v9160
  %9450 = vmatpush.bf16.msra.mxu0 %v9156
  %9451 = vmatpush.bf16.msra.mxu0 %v9152
  %9452 = vmatpush.bf16.msra.mxu0 %v9148
  %9453 = vmatpush.bf16.msra.mxu0 %v9144
  %9454 = vmatpush.bf16.msra.mxu0 %v9140
  %9455 = vmatmul.bf16.gmra.mxu0 %v8609
  %v9456 = vpop.f32.mrf.mxu0
  %v9457 = vadd.f32 %v8748, %v9456
  %v9458 = vpop.f32.mrf.mxu0
  %9459 = vdwg.mxu0
  %9460 = vmatpush.bf16.msra.mxu0 %v9200
  %9461 = vmatpush.bf16.msra.mxu0 %v9196
  %9462 = vmatpush.bf16.msra.mxu0 %v9192
  %9463 = vmatpush.bf16.msra.mxu0 %v9188
  %9464 = vmatpush.bf16.msra.mxu0 %v9184
  %9465 = vmatpush.bf16.msra.mxu0 %v9180
  %9466 = vmatpush.bf16.msra.mxu0 %v9176
  %9467 = vmatpush.bf16.msra.mxu0 %v9172
  %9468 = vmatmul.bf16.gmra.mxu0 %v8610
  %v9469 = vpop.f32.mrf.mxu0
  %v9470 = vadd.f32 %v9457, %v9469
  %v9471 = vpop.f32.mrf.mxu0
  %9472 = vdwg.mxu0
  %9473 = vmatpush.bf16.msra.mxu0 %v9232
  %9474 = vmatpush.bf16.msra.mxu0 %v9228
  %9475 = vmatpush.bf16.msra.mxu0 %v9224
  %9476 = vmatpush.bf16.msra.mxu0 %v9220
  %9477 = vmatpush.bf16.msra.mxu0 %v9216
  %9478 = vmatpush.bf16.msra.mxu0 %v9212
  %9479 = vmatpush.bf16.msra.mxu0 %v9208
  %9480 = vmatpush.bf16.msra.mxu0 %v9204
  %9481 = vmatmul.bf16.gmra.mxu0 %v8611
  %v9482 = vpop.f32.mrf.mxu0
  %v9483 = vadd.f32 %v9470, %v9482
  %v9484 = vpop.f32.mrf.mxu0
  %9485 = vdwg.mxu0
  %9486 = vmatpush.bf16.msra.mxu0 %v9264
  %9487 = vmatpush.bf16.msra.mxu0 %v9260
  %9488 = vmatpush.bf16.msra.mxu0 %v9256
  %9489 = vmatpush.bf16.msra.mxu0 %v9252
  %9490 = vmatpush.bf16.msra.mxu0 %v9248
  %9491 = vmatpush.bf16.msra.mxu0 %v9244
  %9492 = vmatpush.bf16.msra.mxu0 %v9240
  %9493 = vmatpush.bf16.msra.mxu0 %v9236
  %9494 = vmatmul.bf16.gmra.mxu0 %v8612
  %v9495 = vpop.f32.mrf.mxu0
  %v9496 = vadd.f32 %v9483, %v9495
  %v9497 = vpop.f32.mrf.mxu0
  %9498 = vdwg.mxu0
  %9499 = vmatpush.bf16.msra.mxu0 %v9169
  %9500 = vmatpush.bf16.msra.mxu0 %v9165
  %9501 = vmatpush.bf16.msra.mxu0 %v9161
  %9502 = vmatpush.bf16.msra.mxu0 %v9157
  %9503 = vmatpush.bf16.msra.mxu0 %v9153
  %9504 = vmatpush.bf16.msra.mxu0 %v9149
  %9505 = vmatpush.bf16.msra.mxu0 %v9145
  %9506 = vmatpush.bf16.msra.mxu0 %v9141
  %9507 = vmatmul.bf16.gmra.mxu0 %v8609
  %v9508 = vpop.f32.mrf.mxu0
  %v9509 = vadd.f32 %v8749, %v9508
  %v9510 = vpop.f32.mrf.mxu0
  %9511 = vdwg.mxu0
  %9512 = vmatpush.bf16.msra.mxu0 %v9201
  %9513 = vmatpush.bf16.msra.mxu0 %v9197
  %9514 = vmatpush.bf16.msra.mxu0 %v9193
  %9515 = vmatpush.bf16.msra.mxu0 %v9189
  %9516 = vmatpush.bf16.msra.mxu0 %v9185
  %9517 = vmatpush.bf16.msra.mxu0 %v9181
  %9518 = vmatpush.bf16.msra.mxu0 %v9177
  %9519 = vmatpush.bf16.msra.mxu0 %v9173
  %9520 = vmatmul.bf16.gmra.mxu0 %v8610
  %v9521 = vpop.f32.mrf.mxu0
  %v9522 = vadd.f32 %v9509, %v9521
  %v9523 = vpop.f32.mrf.mxu0
  %9524 = vdwg.mxu0
  %9525 = vmatpush.bf16.msra.mxu0 %v9233
  %9526 = vmatpush.bf16.msra.mxu0 %v9229
  %9527 = vmatpush.bf16.msra.mxu0 %v9225
  %9528 = vmatpush.bf16.msra.mxu0 %v9221
  %9529 = vmatpush.bf16.msra.mxu0 %v9217
  %9530 = vmatpush.bf16.msra.mxu0 %v9213
  %9531 = vmatpush.bf16.msra.mxu0 %v9209
  %9532 = vmatpush.bf16.msra.mxu0 %v9205
  %9533 = vmatmul.bf16.gmra.mxu0 %v8611
  %v9534 = vpop.f32.mrf.mxu0
  %v9535 = vadd.f32 %v9522, %v9534
  %v9536 = vpop.f32.mrf.mxu0
  %9537 = vdwg.mxu0
  %9538 = vmatpush.bf16.msra.mxu0 %v9265
  %9539 = vmatpush.bf16.msra.mxu0 %v9261
  %9540 = vmatpush.bf16.msra.mxu0 %v9257
  %9541 = vmatpush.bf16.msra.mxu0 %v9253
  %9542 = vmatpush.bf16.msra.mxu0 %v9249
  %9543 = vmatpush.bf16.msra.mxu0 %v9245
  %9544 = vmatpush.bf16.msra.mxu0 %v9241
  %9545 = vmatpush.bf16.msra.mxu0 %v9237
  %9546 = vmatmul.bf16.gmra.mxu0 %v8612
  %v9547 = vpop.f32.mrf.mxu0
  %v9548 = vadd.f32 %v9535, %v9547
  %v9549 = vpop.f32.mrf.mxu0
  %9550 = vdwg.mxu0
  %9551 = vmatpush.bf16.msra.mxu0 %v9170
  %9552 = vmatpush.bf16.msra.mxu0 %v9166
  %9553 = vmatpush.bf16.msra.mxu0 %v9162
  %9554 = vmatpush.bf16.msra.mxu0 %v9158
  %9555 = vmatpush.bf16.msra.mxu0 %v9154
  %9556 = vmatpush.bf16.msra.mxu0 %v9150
  %9557 = vmatpush.bf16.msra.mxu0 %v9146
  %9558 = vmatpush.bf16.msra.mxu0 %v9142
  %9559 = vmatmul.bf16.gmra.mxu0 %v8609
  %v9560 = vpop.f32.mrf.mxu0
  %v9561 = vadd.f32 %v8750, %v9560
  %v9562 = vpop.f32.mrf.mxu0
  %9563 = vdwg.mxu0
  %9564 = vmatpush.bf16.msra.mxu0 %v9202
  %9565 = vmatpush.bf16.msra.mxu0 %v9198
  %9566 = vmatpush.bf16.msra.mxu0 %v9194
  %9567 = vmatpush.bf16.msra.mxu0 %v9190
  %9568 = vmatpush.bf16.msra.mxu0 %v9186
  %9569 = vmatpush.bf16.msra.mxu0 %v9182
  %9570 = vmatpush.bf16.msra.mxu0 %v9178
  %9571 = vmatpush.bf16.msra.mxu0 %v9174
  %9572 = vmatmul.bf16.gmra.mxu0 %v8610
  %v9573 = vpop.f32.mrf.mxu0
  %v9574 = vadd.f32 %v9561, %v9573
  %v9575 = vpop.f32.mrf.mxu0
  %9576 = vdwg.mxu0
  %9577 = vmatpush.bf16.msra.mxu0 %v9234
  %9578 = vmatpush.bf16.msra.mxu0 %v9230
  %9579 = vmatpush.bf16.msra.mxu0 %v9226
  %9580 = vmatpush.bf16.msra.mxu0 %v9222
  %9581 = vmatpush.bf16.msra.mxu0 %v9218
  %9582 = vmatpush.bf16.msra.mxu0 %v9214
  %9583 = vmatpush.bf16.msra.mxu0 %v9210
  %9584 = vmatpush.bf16.msra.mxu0 %v9206
  %9585 = vmatmul.bf16.gmra.mxu0 %v8611
  %v9586 = vpop.f32.mrf.mxu0
  %v9587 = vadd.f32 %v9574, %v9586
  %v9588 = vpop.f32.mrf.mxu0
  %9589 = vdwg.mxu0
  %9590 = vmatpush.bf16.msra.mxu0 %v9266
  %9591 = vmatpush.bf16.msra.mxu0 %v9262
  %9592 = vmatpush.bf16.msra.mxu0 %v9258
  %9593 = vmatpush.bf16.msra.mxu0 %v9254
  %9594 = vmatpush.bf16.msra.mxu0 %v9250
  %9595 = vmatpush.bf16.msra.mxu0 %v9246
  %9596 = vmatpush.bf16.msra.mxu0 %v9242
  %9597 = vmatpush.bf16.msra.mxu0 %v9238
  %9598 = vmatmul.bf16.gmra.mxu0 %v8612
  %v9599 = vpop.f32.mrf.mxu0
  %v9600 = vadd.f32 %v9587, %v9599
  %v9601 = vpop.f32.mrf.mxu0
  %9602 = vdwg.mxu0
  %v9603 = vmax.f32 %v9444, 0.0
  %v9604 = vmax.f32 %v9496, 0.0
  %v9605 = vmax.f32 %v9548, 0.0
  %v9606 = vmax.f32 %v9600, 0.0
  %v9607 = vld [vmem:[%s9] sm:$0xff]
  %v9608 = vld [vmem:[%s9 + $0x8] sm:$0xff]
  %v9609 = vld [vmem:[%s9 + $0x10] sm:$0xff]
  %v9610 = vld [vmem:[%s9 + $0x18] sm:$0xff]
  %v9611 = vld [vmem:[%s9 + $0x20] sm:$0xff]
  %v9612 = vld [vmem:[%s9 + $0x28] sm:$0xff]
  %v9613 = vld [vmem:[%s9 + $0x30] sm:$0xff]
  %v9614 = vld [vmem:[%s9 + $0x38] sm:$0xff]
  %v9615 = vld [vmem:[%s9 + $0x40] sm:$0xff]
  %v9616 = vld [vmem:[%s9 + $0x48] sm:$0xff]
  %v9617 = vld [vmem:[%s9 + $0x50] sm:$0xff]
  %v9618 = vld [vmem:[%s9 + $0x58] sm:$0xff]
  %v9619 = vld [vmem:[%s9 + $0x60] sm:$0xff]
  %v9620 = vld [vmem:[%s9 + $0x68] sm:$0xff]
  %v9621 = vld [vmem:[%s9 + $0x70] sm:$0xff]
  %v9622 = vld [vmem:[%s9 + $0x78] sm:$0xff]
  %v9623 = vld [vmem:[%s9 + $0x80] sm:$0xff]
  %v9624 = vld [vmem:[%s9 + $0x88] sm:$0xff]
  %v9625 = vld [vmem:[%s9 + $0x90] sm:$0xff]
  %v9626 = vld [vmem:[%s9 + $0x98] sm:$0xff]
  %v9627 = vld [vmem:[%s9 + $0xa0] sm:$0xff]
  %v9628 = vld [vmem:[%s9 + $0xa8] sm:$0xff]
  %v9629 = vld [vmem:[%s9 + $0xb0] sm:$0xff]
  %v9630 = vld [vmem:[%s9 + $0xb8] sm:$0xff]
  %v9631 = vld [vmem:[%s9 + $0xc0] sm:$0xff]
  %v9632 = vld [vmem:[%s9 + $0xc8] sm:$0xff]
  %v9633 = vld [vmem:[%s9 + $0xd0] sm:$0xff]
  %v9634 = vld [vmem:[%s9 + $0xd8] sm:$0xff]
  %v9635 = vld [vmem:[%s9 + $0xe0] sm:$0xff]
  %v9636 = vld [vmem:[%s9 + $0xe8] sm:$0xff]
  %v9637 = vld [vmem:[%s9 + $0xf0] sm:$0xff]
  %v9638 = vld [vmem:[%s9 + $0xf8] sm:$0xff]
  %v9639 = vld [vmem:[%s9 + $0x100] sm:$0xff]
  %v9640 = vld [vmem:[%s9 + $0x108] sm:$0xff]
  %v9641 = vld [vmem:[%s9 + $0x110] sm:$0xff]
  %v9642 = vld [vmem:[%s9 + $0x118] sm:$0xff]
  %v9643 = vld [vmem:[%s9 + $0x120] sm:$0xff]
  %v9644 = vld [vmem:[%s9 + $0x128] sm:$0xff]
  %v9645 = vld [vmem:[%s9 + $0x130] sm:$0xff]
  %v9646 = vld [vmem:[%s9 + $0x138] sm:$0xff]
  %v9647 = vld [vmem:[%s9 + $0x140] sm:$0xff]
  %v9648 = vld [vmem:[%s9 + $0x148] sm:$0xff]
  %v9649 = vld [vmem:[%s9 + $0x150] sm:$0xff]
  %v9650 = vld [vmem:[%s9 + $0x158] sm:$0xff]
  %v9651 = vld [vmem:[%s9 + $0x160] sm:$0xff]
  %v9652 = vld [vmem:[%s9 + $0x168] sm:$0xff]
  %v9653 = vld [vmem:[%s9 + $0x170] sm:$0xff]
  %v9654 = vld [vmem:[%s9 + $0x178] sm:$0xff]
  %v9655 = vld [vmem:[%s9 + $0x180] sm:$0xff]
  %v9656 = vld [vmem:[%s9 + $0x188] sm:$0xff]
  %v9657 = vld [vmem:[%s9 + $0x190] sm:$0xff]
  %v9658 = vld [vmem:[%s9 + $0x198] sm:$0xff]
  %v9659 = vld [vmem:[%s9 + $0x1a0] sm:$0xff]
  %v9660 = vld [vmem:[%s9 + $0x1a8] sm:$0xff]
  %v9661 = vld [vmem:[%s9 + $0x1b0] sm:$0xff]
  %v9662 = vld [vmem:[%s9 + $0x1b8] sm:$0xff]
  %v9663 = vld [vmem:[%s9 + $0x1c0] sm:$0xff]
  %v9664 = vld [vmem:[%s9 + $0x1c8] sm:$0xff]
  %v9665 = vld [vmem:[%s9 + $0x1d0] sm:$0xff]
  %v9666 = vld [vmem:[%s9 + $0x1d8] sm:$0xff]
  %v9667 = vld [vmem:[%s9 + $0x1e0] sm:$0xff]
  %v9668 = vld [vmem:[%s9 + $0x1e8] sm:$0xff]
  %v9669 = vld [vmem:[%s9 + $0x1f0] sm:$0xff]
  %v9670 = vld [vmem:[%s9 + $0x1f8] sm:$0xff]
  %v9671 = vld [vmem:[#allocation9] sm:$0x1]
  %v9673 = vperm.slane %v9671, 0
  %9675 = vmatpush.msra.mxu0 %v9622
  %9676 = vmatpush.msra.mxu0 %v9621
  %9677 = vmatpush.msra.mxu0 %v9620
  %9678 = vmatpush.msra.mxu0 %v9619
  %9679 = vmatpush.msra.mxu0 %v9618
  %9680 = vmatpush.msra.mxu0 %v9617
  %9681 = vmatpush.msra.mxu0 %v9616
  %9682 = vmatpush.msra.mxu0 %v9615
  %9683 = vmatpush.msra.mxu0 %v9614
  %9684 = vmatpush.msra.mxu0 %v9613
  %9685 = vmatpush.msra.mxu0 %v9612
  %9686 = vmatpush.msra.mxu0 %v9611
  %9687 = vmatpush.msra.mxu0 %v9610
  %9688 = vmatpush.msra.mxu0 %v9609
  %9689 = vmatpush.msra.mxu0 %v9608
  %9690 = vmatpush.msra.mxu0 %v9607
  %9691 = vmatmul.f32.gmra.mxu0 %v9603
  %v9692 = vpop.f32.mrf.mxu0
  %v9693 = vadd.f32 %v9673, %v9692
  %9694 = vdwg.mxu0
  %9695 = vmatpush.msra.mxu0 %v9638
  %9696 = vmatpush.msra.mxu0 %v9637
  %9697 = vmatpush.msra.mxu0 %v9636
  %9698 = vmatpush.msra.mxu0 %v9635
  %9699 = vmatpush.msra.mxu0 %v9634
  %9700 = vmatpush.msra.mxu0 %v9633
  %9701 = vmatpush.msra.mxu0 %v9632
  %9702 = vmatpush.msra.mxu0 %v9631
  %9703 = vmatpush.msra.mxu0 %v9630
  %9704 = vmatpush.msra.mxu0 %v9629
  %9705 = vmatpush.msra.mxu0 %v9628
  %9706 = vmatpush.msra.mxu0 %v9627
  %9707 = vmatpush.msra.mxu0 %v9626
  %9708 = vmatpush.msra.mxu0 %v9625
  %9709 = vmatpush.msra.mxu0 %v9624
  %9710 = vmatpush.msra.mxu0 %v9623
  %9711 = vmatmul.f32.gmra.mxu0 %v9604
  %v9712 = vpop.f32.mrf.mxu0
  %v9713 = vadd.f32 %v9693, %v9712
  %9714 = vdwg.mxu0
  %9715 = vmatpush.msra.mxu0 %v9654
  %9716 = vmatpush.msra.mxu0 %v9653
  %9717 = vmatpush.msra.mxu0 %v9652
  %9718 = vmatpush.msra.mxu0 %v9651
  %9719 = vmatpush.msra.mxu0 %v9650
  %9720 = vmatpush.msra.mxu0 %v9649
  %9721 = vmatpush.msra.mxu0 %v9648
  %9722 = vmatpush.msra.mxu0 %v9647
  %9723 = vmatpush.msra.mxu0 %v9646
  %9724 = vmatpush.msra.mxu0 %v9645
  %9725 = vmatpush.msra.mxu0 %v9644
  %9726 = vmatpush.msra.mxu0 %v9643
  %9727 = vmatpush.msra.mxu0 %v9642
  %9728 = vmatpush.msra.mxu0 %v9641
  %9729 = vmatpush.msra.mxu0 %v9640
  %9730 = vmatpush.msra.mxu0 %v9639
  %9731 = vmatmul.f32.gmra.mxu0 %v9605
  %v9732 = vpop.f32.mrf.mxu0
  %v9733 = vadd.f32 %v9713, %v9732
  %9734 = vdwg.mxu0
  %9735 = vmatpush.msra.mxu0 %v9670
  %9736 = vmatpush.msra.mxu0 %v9669
  %9737 = vmatpush.msra.mxu0 %v9668
  %9738 = vmatpush.msra.mxu0 %v9667
  %9739 = vmatpush.msra.mxu0 %v9666
  %9740 = vmatpush.msra.mxu0 %v9665
  %9741 = vmatpush.msra.mxu0 %v9664
  %9742 = vmatpush.msra.mxu0 %v9663
  %9743 = vmatpush.msra.mxu0 %v9662
  %9744 = vmatpush.msra.mxu0 %v9661
  %9745 = vmatpush.msra.mxu0 %v9660
  %9746 = vmatpush.msra.mxu0 %v9659
  %9747 = vmatpush.msra.mxu0 %v9658
  %9748 = vmatpush.msra.mxu0 %v9657
  %9749 = vmatpush.msra.mxu0 %v9656
  %9750 = vmatpush.msra.mxu0 %v9655
  %9751 = vmatmul.f32.gmra.mxu0 %v9606
  %v9752 = vpop.f32.mrf.mxu0
  %v9753 = vadd.f32 %v9733, %v9752
  %9754 = vdwg.mxu0
  %vm9755 = vcmask 1024
  %9756 = vst.msk [vmem:[%s11] sm:$0x3] %vm9755, %v9753
  // Predicated region
  $region61: #{forward.1} parent=0 // pred_check
    _
  $region62: #{forward.1} parent=0 // pred_check_branch
    %9758 = sbr.rel (0) target = $region64
  $region63: #{forward.1} parent=0 // pred_region
    _
  $region64: #{forward.1} parent=0 // pred_fallthru
    _
  // Predicated region
  $region65: #{forward.1} parent=0 // pred_check
    _
  $region66: #{forward.1} parent=0 // pred_check_branch
    %9760 = sbr.rel (0) target = $region68
  $region67: #{forward.1} parent=0 // pred_region
    _
  $region68: #{forward.1} parent=0 // pred_fallthru
    _
  %9761 = vsyncmov [#allocation8]
  %s9762 = vpop.sfrf %9761
  %p9763 = scmp.eq.s32.totalorder %s9762, 0
  %p9764 = pneg %p9763
  %9766 = shalt.err (%p9764)

</llo_original>
